<compile_context>
chip_gen: v7x
topology: tpu7x:2x2x1
jax: 0.10.0
libtpu: 0.0.40
codegen_flags: <defaults>
</compile_context>

<pallas_src>
import jax
import jax.numpy as jnp
from jax.experimental import pallas as pl
from jax.experimental.pallas import tpu as pltpu


# ----------------------------- Pallas kernel ------------------------------ #
# Fixed geometry:
#   4x84x84 -conv1(8x8,s4)-> 32x20x20 -conv2(4x4,s2)-> 64x9x9
#   -conv3(3x3,s1)-> 64x7x7 -flatten-> 3136 -FC-> 512 -FC-> 4
#
# Extended-row layouts (garbage columns never feed valid results):
#   y1 : row = qh*10+qw (100 valid + 4 pad), lane = phase*32 + channel (128)
#   y2 : row = o2h*10 + o2w_ext (90, col 9 garbage) + 6 pad rows, lane = ch
#   y3 : row = o3h*10 + o3w_ext (70, cols 7..9 garbage), lane = ch

def _conv_dqn_kernel(p1_ref, w1_ref, b1_ref, w2_ref, b2_ref, w3_ref, b3_ref,
                     wf_ref, bf_ref, wo_ref, bo_ref, out_ref,
                     y1_ref, y2_ref, l3_ref, y3_ref, xf_ref):
    f32 = jnp.float32
    bf16 = jnp.bfloat16

    # ---- conv1: ONE GEMM (104,1024)@(1024,128), block-diag phase weight ----
    a1 = jnp.dot(p1_ref[...], w1_ref[...], preferred_element_type=f32)
    y1_ref[...] = jnp.maximum(a1 + b1_ref[...], 0.0).astype(bf16)
    # (pad patch rows 100..103 are zeros -> y1 pad rows = relu(bias): finite,
    #  and they only ever feed garbage extended columns of conv2.)

    # ---- conv2 (4x4, s2): 4 slab GEMMs (90,128)@(128,64), tree-summed ------
    d = []
    for k2 in range(4):
        dh, dw = k2 // 2, k2 % 2
        lhs = y1_ref[pl.ds(dh * 10 + dw, 90), :]                    # bf16
        d.append(jnp.dot(lhs, w2_ref[pl.ds(k2 * 128, 128), :],
                         preferred_element_type=f32))
    acc2 = (d[0] + d[1]) + (d[2] + d[3])
    y2_ref[pl.ds(0, 90), :] = jnp.maximum(acc2 + b2_ref[...], 0.0).astype(bf16)
    y2_ref[pl.ds(90, 6), :] = jnp.zeros((6, 64), bf16)              # pad rows

    # ---- conv3 (3x3, s1): build (70,576) im2col, then ONE GEMM --------------
    for k3 in range(9):
        kh, kw = k3 // 3, k3 % 3
        l3_ref[:, pl.ds(k3 * 64, 64)] = y2_ref[pl.ds(kh * 10 + kw, 70), :]
    acc3 = jnp.dot(l3_ref[...], w3_ref[...], preferred_element_type=f32)
    y3_ref[...] = jnp.maximum(acc3 + b3_ref[...], 0.0)              # (70,64) f32

    # ---- FC1 (3136 -> 512): scatter 49 valid rows -> flat row, ONE GEMM -----
    for o3h in range(7):
        for o3w in range(7):
            hw = o3h * 7 + o3w
            xf_ref[:, pl.ds(hw * 64, 64)] = y3_ref[pl.ds(o3h * 10 + o3w, 1), :]
    h = jnp.dot(xf_ref[...].astype(bf16), wf_ref[...],
                preferred_element_type=f32)
    h = jnp.maximum(h + bf_ref[...], 0.0).astype(bf16)              # (1,512)

    # ---- FC2 (512 -> 4) ------------------------------------------------------
    q = jnp.dot(h, wo_ref[...], preferred_element_type=f32) + bo_ref[...]
    out_ref[0] = q                                                   # (1,4)


def _fused_forward_call(patches_bf16, prep, batch):
    def wspec(shape):
        return pl.BlockSpec(shape, lambda b: (0, 0))

    out = pl.pallas_call(
        _conv_dqn_kernel,
        out_shape=jax.ShapeDtypeStruct((batch, 1, 4), jnp.float32),
        grid=(batch,),
        in_specs=[
            pl.BlockSpec((104, 1024), lambda b: (b, 0)),   # conv1 patches
            wspec((1024, 128)), wspec((1, 128)),           # w1 (block-diag), b1
            wspec((512, 64)),   wspec((1, 64)),            # w2 (phase-packed), b2
            wspec((576, 64)),   wspec((1, 64)),            # w3, b3
            wspec((3136, 512)), wspec((1, 512)),           # wf (permuted), bf
            wspec((512, 4)),    wspec((1, 4)),             # wo, bo
        ],
        out_specs=pl.BlockSpec((1, 1, 4), lambda b: (b, 0, 0)),
        scratch_shapes=[
            pltpu.VMEM((104, 128), jnp.bfloat16),   # y1 (lane-packed phases)
            pltpu.VMEM((96, 64), jnp.bfloat16),     # y2 (+ pad rows)
            pltpu.VMEM((70, 576), jnp.bfloat16),    # conv3 im2col lhs
            pltpu.VMEM((70, 64), jnp.float32),      # y3 = relu(conv3)
            pltpu.VMEM((1, 3136), jnp.float32),     # flattened FC1 input
        ],
        compiler_params=pltpu.CompilerParams(
            dimension_semantics=("parallel",),
            vmem_limit_bytes=32 * 1024 * 1024,
        ),
    )(patches_bf16, prep["w1"], prep["b1"], prep["w2"], prep["b2"],
      prep["w3"], prep["b3"], prep["wf"], prep["bf"], prep["wo"], prep["bo"])
    return out[:, 0, :]


# ------------------------------ host-side glue ----------------------------- #

def _conv1_patches_packed(x_nchw):
    """(B,4,84,84) f32 -> (B*104, 1024) bf16 conv1 patch rows.

    Row (per sample) = qh*10 + qw (rows 100..103 are zero pad).
    Col = (ph*2+pw)*256 + kh*32 + kw*4 + c with oh = 2*qh+ph, ow = 2*qw+pw.
    Built in XLA in bf16 (cast before the im2col to halve its traffic).
    """
    B = x_nchw.shape[0]
    x = x_nchw.astype(jnp.bfloat16).transpose(0, 2, 3, 1)      # NHWC bf16
    taps = [x[:, kh:kh + 77:4, kw:kw + 77:4, :]
            for kh in range(8) for kw in range(8)]             # each (B,20,20,4)
    p = jnp.stack(taps, axis=3)                                # (B,20,20,64,4)
    p = p.reshape(B, 20, 20, 8, 8, 4)                          # (b,oh,ow,kh,kw,c)
    p = p.reshape(B, 10, 2, 10, 2, 8, 8, 4)                    # (b,qh,ph,qw,pw,..)
    p = p.transpose(0, 1, 3, 2, 4, 5, 6, 7)                    # (b,qh,qw,ph,pw,..)
    p = p.reshape(B, 100, 1024)
    p = jnp.pad(p, ((0, 0), (0, 4), (0, 0)))                   # zero pad rows
    return p.reshape(B * 104, 1024)


def prepare_params(p):
    """One-time weight preparation (outside the per-step forward)."""
    f32, bf16 = jnp.float32, jnp.bfloat16

    def conv_rows(w):   # (O,C,KH,KW) -> (KH*KW*C, O), rows ordered (kh,kw,c)
        O, C, KH, KW = w.shape
        return w.transpose(2, 3, 1, 0).reshape(KH * KW * C, O)

    # conv1: block-diagonal over the 4 stride-2 phases so one GEMM yields the
    # lane-packed (row=qh*10+qw, lane=phase*32+channel) conv1 output directly.
    w1r = conv_rows(p["w1"])                                   # (256, 32)
    w1e = jnp.zeros((1024, 128), f32)
    for s in range(4):
        w1e = w1e.at[s * 256:(s + 1) * 256, s * 32:(s + 1) * 32].set(w1r)
    b1e = jnp.tile(p["b1"], 4).reshape(1, 128)

    # conv2: one (128,64) block per (dh=kh//2, dw=kw//2); within a block the
    # rows are (phase=(kh%2)*2+(kw%2))*32 + in_channel, matching packed y1.
    w2p = (p["w2"].transpose(2, 3, 1, 0)        # (kh, kw, c, o)
           .reshape(2, 2, 2, 2, 32, 64)         # (dh, ph, dw, pw, c, o)
           .transpose(0, 2, 1, 3, 4, 5)         # (dh, dw, ph, pw, c, o)
           .reshape(512, 64))

    w3p = conv_rows(p["w3"])                    # (576, 64), rows (kh,kw,c)

    # FC1 rows reordered: torch flatten index = c*49 + hw  ->  hw*64 + c.
    wfp = (p["wf"].T.reshape(64, 49, 512)       # [c, hw, out]
           .transpose(1, 0, 2)                  # [hw, c, out]
           .reshape(3136, 512))

    return dict(
        w1=w1e.astype(bf16),        b1=b1e.astype(f32),
        w2=w2p.astype(bf16),        b2=p["b2"].reshape(1, -1).astype(f32),
        w3=w3p.astype(bf16),        b3=p["b3"].reshape(1, -1).astype(f32),
        wf=wfp.astype(bf16),        bf=p["bf"].reshape(1, -1).astype(f32),
        wo=p["wo"].T.astype(bf16),  bo=p["bo"].reshape(1, -1).astype(f32),
    )


@jax.jit
def conv_dqn_forward(x_nchw, prep):
    B = x_nchw.shape[0]
    patches = _conv1_patches_packed(x_nchw)      # (B*104, 1024) bf16
    return _fused_forward_call(patches, prep, B)


# -------------------------- parameters / reference ------------------------- #

def init_params(key):
    ks = jax.random.split(key, 10)

    def u(k, shape, fan_in):
        bound = 1.0 / (fan_in ** 0.5)
        return jax.random.uniform(k, shape, jnp.float32, -bound, bound)

    return dict(
        w1=u(ks[0], (32, 4, 8, 8), 4 * 8 * 8),   b1=u(ks[1], (32,), 4 * 8 * 8),
        w2=u(ks[2], (64, 32, 4, 4), 32 * 4 * 4), b2=u(ks[3], (64,), 32 * 4 * 4),
        w3=u(ks[4], (64, 64, 3, 3), 64 * 3 * 3), b3=u(ks[5], (64,), 64 * 3 * 3),
        wf=u(ks[6], (512, 3136), 3136),          bf=u(ks[7], (512,), 3136),
        wo=u(ks[8], (4, 512), 512),              bo=u(ks[9], (4,), 512),
    )


def reference_forward(x, p):
    """Plain-JAX float32 reference with exact PyTorch semantics (NCHW convs)."""
    def conv(x, w, b, s):
        y = jax.lax.conv_general_dilated(
            x, w, window_strides=(s, s), padding="VALID",
            dimension_numbers=("NCHW", "OIHW", "NCHW"))
        return jax.nn.relu(y + b[None, :, None, None])

    x = conv(x, p["w1"], p["b1"], 4)
    x = conv(x, p["w2"], p["b2"], 2)
    x = conv(x, p["w3"], p["b3"], 1)
    x = x.reshape(x.shape[0], -1)
    x = jax.nn.relu(x @ p["wf"].T + p["bf"])
    return x @ p["wo"].T + p["bo"]


# ----------------------------------- main ---------------------------------- #

if __name__ == "__main__":
    key = jax.random.PRNGKey(0)
    k_x, k_p = jax.random.split(key)

    params = init_params(k_p)
    prep = prepare_params(params)       # one-time weight repack / cast
    x = jax.random.normal(k_x, (2, 4, 84, 84), dtype=jnp.float32)

    out = jax.block_until_ready(conv_dqn_forward(x, prep))

    ref = reference_forward(x, params)
    assert out.shape == (2, 4), out.shape
    max_err = float(jnp.max(jnp.abs(out - ref)))
    # bf16 weights + bf16 activations (f32 accumulation) vs f32 reference.
    assert jnp.allclose(out, ref, atol=2e-2, rtol=2e-2), (
        f"Pallas output does not match reference (max abs err {max_err})")

    print("KERNEL_OK")
</pallas_src>

<mosaic_0001>
module attributes {stable_mosaic.version = 11 : i64} {
  func.func @_conv_dqn_kernel(%arg0: i32, %arg1: memref<104x1024xbf16, #tpu.memory_space<vmem>>, %arg2: memref<1024x128xbf16, #tpu.memory_space<vmem>>, %arg3: memref<1x128xf32, #tpu.memory_space<vmem>>, %arg4: memref<512x64xbf16, #tpu.memory_space<vmem>>, %arg5: memref<1x64xf32, #tpu.memory_space<vmem>>, %arg6: memref<576x64xbf16, #tpu.memory_space<vmem>>, %arg7: memref<1x64xf32, #tpu.memory_space<vmem>>, %arg8: memref<3136x512xbf16, #tpu.memory_space<vmem>>, %arg9: memref<1x512xf32, #tpu.memory_space<vmem>>, %arg10: memref<512x4xbf16, #tpu.memory_space<vmem>>, %arg11: memref<1x4xf32, #tpu.memory_space<vmem>>, %arg12: memref<1x1x4xf32, #tpu.memory_space<vmem>>, %arg13: memref<104x128xbf16, #tpu.memory_space<vmem>>, %arg14: memref<96x64xbf16, #tpu.memory_space<vmem>>, %arg15: memref<70x576xbf16, #tpu.memory_space<vmem>>, %arg16: memref<70x64xf32, #tpu.memory_space<vmem>>, %arg17: memref<1x3136xf32, #tpu.memory_space<vmem>>) attributes {dimension_semantics = [#tpu.dimension_semantics<parallel>], iteration_bounds = array<i64: 2>, scalar_prefetch = 0 : i64, scratch_operands = 5 : i64, tpu.core_type = #tpu.core_type<tc>, window_params = [{transform_indices = @transform_0, window_bounds = array<i64: 104, 1024>}, {pipeline_mode = #tpu.pipeline_mode<synchronous>, transform_indices = @transform_1, window_bounds = array<i64: 1024, 128>}, {pipeline_mode = #tpu.pipeline_mode<synchronous>, transform_indices = @transform_2, window_bounds = array<i64: 1, 128>}, {pipeline_mode = #tpu.pipeline_mode<synchronous>, transform_indices = @transform_3, window_bounds = array<i64: 512, 64>}, {pipeline_mode = #tpu.pipeline_mode<synchronous>, transform_indices = @transform_4, window_bounds = array<i64: 1, 64>}, {pipeline_mode = #tpu.pipeline_mode<synchronous>, transform_indices = @transform_5, window_bounds = array<i64: 576, 64>}, {pipeline_mode = #tpu.pipeline_mode<synchronous>, transform_indices = @transform_6, window_bounds = array<i64: 1, 64>}, {pipeline_mode = #tpu.pipeline_mode<synchronous>, transform_indices = @transform_7, window_bounds = array<i64: 3136, 512>}, {pipeline_mode = #tpu.pipeline_mode<synchronous>, transform_indices = @transform_8, window_bounds = array<i64: 1, 512>}, {pipeline_mode = #tpu.pipeline_mode<synchronous>, transform_indices = @transform_9, window_bounds = array<i64: 512, 4>}, {pipeline_mode = #tpu.pipeline_mode<synchronous>, transform_indices = @transform_10, window_bounds = array<i64: 1, 4>}, {transform_indices = @transform_11, window_bounds = array<i64: 1, 1, 4>}]} {
    %c0 = arith.constant 0 : index
    %c0_0 = arith.constant 0 : index
    %0 = vector.load %arg1[%c0, %c0_0] : memref<104x1024xbf16, #tpu.memory_space<vmem>>, vector<104x1024xbf16>
    %c0_1 = arith.constant 0 : index
    %c0_2 = arith.constant 0 : index
    %1 = vector.load %arg2[%c0_1, %c0_2] : memref<1024x128xbf16, #tpu.memory_space<vmem>>, vector<1024x128xbf16>
    %cst = arith.constant dense<0.000000e+00> : vector<104x128xf32>
    %2 = tpu.matmul %0, %1, %cst {dimension_numbers = #tpu.dot_dimension_numbers<[1], [0], [0], [1], [0, 0, 1, 1], [], []>} : vector<104x1024xbf16>, vector<1024x128xbf16>, vector<104x128xf32> -> vector<104x128xf32>
    %c0_3 = arith.constant 0 : index
    %c0_4 = arith.constant 0 : index
    %3 = vector.load %arg3[%c0_3, %c0_4] : memref<1x128xf32, #tpu.memory_space<vmem>>, vector<1x128xf32>
    %4 = vector.broadcast %3 : vector<1x128xf32> to vector<104x128xf32>
    %5 = arith.addf %2, %4 : vector<104x128xf32>
    %cst_5 = arith.constant 0.000000e+00 : f32
    %6 = vector.broadcast %cst_5 : f32 to vector<104x128xf32>
    %7 = arith.maximumf %5, %6 : vector<104x128xf32>
    %8 = arith.truncf %7 : vector<104x128xf32> to vector<104x128xbf16>
    %c0_6 = arith.constant 0 : index
    %c0_7 = arith.constant 0 : index
    %9 = vector.load %arg13[%c0_6, %c0_7] : memref<104x128xbf16, #tpu.memory_space<vmem>>, vector<104x128xbf16>
    tpu.vector_store %arg13[%c0_6, %c0_7], %8 {strides = array<i32>} : memref<104x128xbf16, #tpu.memory_space<vmem>>, vector<104x128xbf16>,
    %c0_8 = arith.constant 0 : index
    %c0_9 = arith.constant 0 : index
    %10 = vector.load %arg13[%c0_8, %c0_9] : memref<104x128xbf16, #tpu.memory_space<vmem>>, vector<90x128xbf16>
    %c0_10 = arith.constant 0 : index
    %c0_11 = arith.constant 0 : index
    %11 = vector.load %arg4[%c0_10, %c0_11] : memref<512x64xbf16, #tpu.memory_space<vmem>>, vector<128x64xbf16>
    %cst_12 = arith.constant dense<0.000000e+00> : vector<90x64xf32>
    %12 = tpu.matmul %10, %11, %cst_12 {dimension_numbers = #tpu.dot_dimension_numbers<[1], [0], [0], [1], [0, 0, 1, 1], [], []>} : vector<90x128xbf16>, vector<128x64xbf16>, vector<90x64xf32> -> vector<90x64xf32>
    %c1 = arith.constant 1 : index
    %c0_13 = arith.constant 0 : index
    %13 = vector.load %arg13[%c1, %c0_13] : memref<104x128xbf16, #tpu.memory_space<vmem>>, vector<90x128xbf16>
    %c128 = arith.constant 128 : index
    %c0_14 = arith.constant 0 : index
    %14 = vector.load %arg4[%c128, %c0_14] : memref<512x64xbf16, #tpu.memory_space<vmem>>, vector<128x64xbf16>
    %cst_15 = arith.constant dense<0.000000e+00> : vector<90x64xf32>
    %15 = tpu.matmul %13, %14, %cst_15 {dimension_numbers = #tpu.dot_dimension_numbers<[1], [0], [0], [1], [0, 0, 1, 1], [], []>} : vector<90x128xbf16>, vector<128x64xbf16>, vector<90x64xf32> -> vector<90x64xf32>
    %c10 = arith.constant 10 : index
    %c0_16 = arith.constant 0 : index
    %16 = vector.load %arg13[%c10, %c0_16] : memref<104x128xbf16, #tpu.memory_space<vmem>>, vector<90x128xbf16>
    %c256 = arith.constant 256 : index
    %c0_17 = arith.constant 0 : index
    %17 = vector.load %arg4[%c256, %c0_17] : memref<512x64xbf16, #tpu.memory_space<vmem>>, vector<128x64xbf16>
    %cst_18 = arith.constant dense<0.000000e+00> : vector<90x64xf32>
    %18 = tpu.matmul %16, %17, %cst_18 {dimension_numbers = #tpu.dot_dimension_numbers<[1], [0], [0], [1], [0, 0, 1, 1], [], []>} : vector<90x128xbf16>, vector<128x64xbf16>, vector<90x64xf32> -> vector<90x64xf32>
    %c11 = arith.constant 11 : index
    %c0_19 = arith.constant 0 : index
    %19 = vector.load %arg13[%c11, %c0_19] : memref<104x128xbf16, #tpu.memory_space<vmem>>, vector<90x128xbf16>
    %c384 = arith.constant 384 : index
    %c0_20 = arith.constant 0 : index
    %20 = vector.load %arg4[%c384, %c0_20] : memref<512x64xbf16, #tpu.memory_space<vmem>>, vector<128x64xbf16>
    %cst_21 = arith.constant dense<0.000000e+00> : vector<90x64xf32>
    %21 = tpu.matmul %19, %20, %cst_21 {dimension_numbers = #tpu.dot_dimension_numbers<[1], [0], [0], [1], [0, 0, 1, 1], [], []>} : vector<90x128xbf16>, vector<128x64xbf16>, vector<90x64xf32> -> vector<90x64xf32>
    %22 = arith.addf %12, %15 : vector<90x64xf32>
    %23 = arith.addf %18, %21 : vector<90x64xf32>
    %24 = arith.addf %22, %23 : vector<90x64xf32>
    %c0_22 = arith.constant 0 : index
    %c0_23 = arith.constant 0 : index
    %25 = vector.load %arg5[%c0_22, %c0_23] : memref<1x64xf32, #tpu.memory_space<vmem>>, vector<1x64xf32>
    %26 = vector.broadcast %25 : vector<1x64xf32> to vector<90x64xf32>
    %27 = arith.addf %24, %26 : vector<90x64xf32>
    %cst_24 = arith.constant 0.000000e+00 : f32
    %28 = vector.broadcast %cst_24 : f32 to vector<90x64xf32>
    %29 = arith.maximumf %27, %28 : vector<90x64xf32>
    %30 = arith.truncf %29 : vector<90x64xf32> to vector<90x64xbf16>
    %c0_25 = arith.constant 0 : index
    %c0_26 = arith.constant 0 : index
    %31 = vector.load %arg14[%c0_25, %c0_26] : memref<96x64xbf16, #tpu.memory_space<vmem>>, vector<90x64xbf16>
    tpu.vector_store %arg14[%c0_25, %c0_26], %30 {strides = array<i32>} : memref<96x64xbf16, #tpu.memory_space<vmem>>, vector<90x64xbf16>,
    %cst_27 = arith.constant 0.000000e+00 : bf16
    %32 = vector.broadcast %cst_27 : bf16 to vector<6x64xbf16>
    %c90 = arith.constant 90 : index
    %c0_28 = arith.constant 0 : index
    %33 = vector.load %arg14[%c90, %c0_28] : memref<96x64xbf16, #tpu.memory_space<vmem>>, vector<6x64xbf16>
    tpu.vector_store %arg14[%c90, %c0_28], %32 {strides = array<i32>} : memref<96x64xbf16, #tpu.memory_space<vmem>>, vector<6x64xbf16>,
    %c0_29 = arith.constant 0 : index
    %c0_30 = arith.constant 0 : index
    %34 = vector.load %arg14[%c0_29, %c0_30] : memref<96x64xbf16, #tpu.memory_space<vmem>>, vector<70x64xbf16>
    %c0_31 = arith.constant 0 : index
    %c0_32 = arith.constant 0 : index
    %35 = vector.load %arg15[%c0_31, %c0_32] : memref<70x576xbf16, #tpu.memory_space<vmem>>, vector<70x64xbf16>
    tpu.vector_store %arg15[%c0_31, %c0_32], %34 {strides = array<i32>} : memref<70x576xbf16, #tpu.memory_space<vmem>>, vector<70x64xbf16>,
    %c1_33 = arith.constant 1 : index
    %c0_34 = arith.constant 0 : index
    %36 = vector.load %arg14[%c1_33, %c0_34] : memref<96x64xbf16, #tpu.memory_space<vmem>>, vector<70x64xbf16>
    %c0_35 = arith.constant 0 : index
    %c64 = arith.constant 64 : index
    %37 = vector.load %arg15[%c0_35, %c64] : memref<70x576xbf16, #tpu.memory_space<vmem>>, vector<70x64xbf16>
    tpu.vector_store %arg15[%c0_35, %c64], %36 {strides = array<i32>} : memref<70x576xbf16, #tpu.memory_space<vmem>>, vector<70x64xbf16>,
    %c2 = arith.constant 2 : index
    %c0_36 = arith.constant 0 : index
    %38 = vector.load %arg14[%c2, %c0_36] : memref<96x64xbf16, #tpu.memory_space<vmem>>, vector<70x64xbf16>
    %c0_37 = arith.constant 0 : index
    %c128_38 = arith.constant 128 : index
    %39 = vector.load %arg15[%c0_37, %c128_38] : memref<70x576xbf16, #tpu.memory_space<vmem>>, vector<70x64xbf16>
    tpu.vector_store %arg15[%c0_37, %c128_38], %38 {strides = array<i32>} : memref<70x576xbf16, #tpu.memory_space<vmem>>, vector<70x64xbf16>,
    %c10_39 = arith.constant 10 : index
    %c0_40 = arith.constant 0 : index
    %40 = vector.load %arg14[%c10_39, %c0_40] : memref<96x64xbf16, #tpu.memory_space<vmem>>, vector<70x64xbf16>
    %c0_41 = arith.constant 0 : index
    %c192 = arith.constant 192 : index
    %41 = vector.load %arg15[%c0_41, %c192] : memref<70x576xbf16, #tpu.memory_space<vmem>>, vector<70x64xbf16>
    tpu.vector_store %arg15[%c0_41, %c192], %40 {strides = array<i32>} : memref<70x576xbf16, #tpu.memory_space<vmem>>, vector<70x64xbf16>,
    %c11_42 = arith.constant 11 : index
    %c0_43 = arith.constant 0 : index
    %42 = vector.load %arg14[%c11_42, %c0_43] : memref<96x64xbf16, #tpu.memory_space<vmem>>, vector<70x64xbf16>
    %c0_44 = arith.constant 0 : index
    %c256_45 = arith.constant 256 : index
    %43 = vector.load %arg15[%c0_44, %c256_45] : memref<70x576xbf16, #tpu.memory_space<vmem>>, vector<70x64xbf16>
    tpu.vector_store %arg15[%c0_44, %c256_45], %42 {strides = array<i32>} : memref<70x576xbf16, #tpu.memory_space<vmem>>, vector<70x64xbf16>,
    %c12 = arith.constant 12 : index
    %c0_46 = arith.constant 0 : index
    %44 = vector.load %arg14[%c12, %c0_46] : memref<96x64xbf16, #tpu.memory_space<vmem>>, vector<70x64xbf16>
    %c0_47 = arith.constant 0 : index
    %c320 = arith.constant 320 : index
    %45 = vector.load %arg15[%c0_47, %c320] : memref<70x576xbf16, #tpu.memory_space<vmem>>, vector<70x64xbf16>
    tpu.vector_store %arg15[%c0_47, %c320], %44 {strides = array<i32>} : memref<70x576xbf16, #tpu.memory_space<vmem>>, vector<70x64xbf16>,
    %c20 = arith.constant 20 : index
    %c0_48 = arith.constant 0 : index
    %46 = vector.load %arg14[%c20, %c0_48] : memref<96x64xbf16, #tpu.memory_space<vmem>>, vector<70x64xbf16>
    %c0_49 = arith.constant 0 : index
    %c384_50 = arith.constant 384 : index
    %47 = vector.load %arg15[%c0_49, %c384_50] : memref<70x576xbf16, #tpu.memory_space<vmem>>, vector<70x64xbf16>
    tpu.vector_store %arg15[%c0_49, %c384_50], %46 {strides = array<i32>} : memref<70x576xbf16, #tpu.memory_space<vmem>>, vector<70x64xbf16>,
    %c21 = arith.constant 21 : index
    %c0_51 = arith.constant 0 : index
    %48 = vector.load %arg14[%c21, %c0_51] : memref<96x64xbf16, #tpu.memory_space<vmem>>, vector<70x64xbf16>
    %c0_52 = arith.constant 0 : index
    %c448 = arith.constant 448 : index
    %49 = vector.load %arg15[%c0_52, %c448] : memref<70x576xbf16, #tpu.memory_space<vmem>>, vector<70x64xbf16>
    tpu.vector_store %arg15[%c0_52, %c448], %48 {strides = array<i32>} : memref<70x576xbf16, #tpu.memory_space<vmem>>, vector<70x64xbf16>,
    %c22 = arith.constant 22 : index
    %c0_53 = arith.constant 0 : index
    %50 = vector.load %arg14[%c22, %c0_53] : memref<96x64xbf16, #tpu.memory_space<vmem>>, vector<70x64xbf16>
    %c0_54 = arith.constant 0 : index
    %c512 = arith.constant 512 : index
    %51 = vector.load %arg15[%c0_54, %c512] : memref<70x576xbf16, #tpu.memory_space<vmem>>, vector<70x64xbf16>
    tpu.vector_store %arg15[%c0_54, %c512], %50 {strides = array<i32>} : memref<70x576xbf16, #tpu.memory_space<vmem>>, vector<70x64xbf16>,
    %c0_55 = arith.constant 0 : index
    %c0_56 = arith.constant 0 : index
    %52 = vector.load %arg15[%c0_55, %c0_56] : memref<70x576xbf16, #tpu.memory_space<vmem>>, vector<70x576xbf16>
    %c0_57 = arith.constant 0 : index
    %c0_58 = arith.constant 0 : index
    %53 = vector.load %arg6[%c0_57, %c0_58] : memref<576x64xbf16, #tpu.memory_space<vmem>>, vector<576x64xbf16>
    %cst_59 = arith.constant dense<0.000000e+00> : vector<70x64xf32>
    %54 = tpu.matmul %52, %53, %cst_59 {dimension_numbers = #tpu.dot_dimension_numbers<[1], [0], [0], [1], [0, 0, 1, 1], [], []>} : vector<70x576xbf16>, vector<576x64xbf16>, vector<70x64xf32> -> vector<70x64xf32>
    %c0_60 = arith.constant 0 : index
    %c0_61 = arith.constant 0 : index
    %55 = vector.load %arg7[%c0_60, %c0_61] : memref<1x64xf32, #tpu.memory_space<vmem>>, vector<1x64xf32>
    %56 = vector.broadcast %55 : vector<1x64xf32> to vector<70x64xf32>
    %57 = arith.addf %54, %56 : vector<70x64xf32>
    %cst_62 = arith.constant 0.000000e+00 : f32
    %58 = vector.broadcast %cst_62 : f32 to vector<70x64xf32>
    %59 = arith.maximumf %57, %58 : vector<70x64xf32>
    %c0_63 = arith.constant 0 : index
    %c0_64 = arith.constant 0 : index
    %60 = vector.load %arg16[%c0_63, %c0_64] : memref<70x64xf32, #tpu.memory_space<vmem>>, vector<70x64xf32>
    tpu.vector_store %arg16[%c0_63, %c0_64], %59 {strides = array<i32>} : memref<70x64xf32, #tpu.memory_space<vmem>>, vector<70x64xf32>,
    %c0_65 = arith.constant 0 : index
    %c0_66 = arith.constant 0 : index
    %61 = vector.load %arg16[%c0_65, %c0_66] : memref<70x64xf32, #tpu.memory_space<vmem>>, vector<1x64xf32>
    %c0_67 = arith.constant 0 : index
    %c0_68 = arith.constant 0 : index
    %62 = vector.load %arg17[%c0_67, %c0_68] : memref<1x3136xf32, #tpu.memory_space<vmem>>, vector<1x64xf32>
    tpu.vector_store %arg17[%c0_67, %c0_68], %61 {strides = array<i32>} : memref<1x3136xf32, #tpu.memory_space<vmem>>, vector<1x64xf32>,
    %c1_69 = arith.constant 1 : index
    %c0_70 = arith.constant 0 : index
    %63 = vector.load %arg16[%c1_69, %c0_70] : memref<70x64xf32, #tpu.memory_space<vmem>>, vector<1x64xf32>
    %c0_71 = arith.constant 0 : index
    %c64_72 = arith.constant 64 : index
    %64 = vector.load %arg17[%c0_71, %c64_72] : memref<1x3136xf32, #tpu.memory_space<vmem>>, vector<1x64xf32>
    tpu.vector_store %arg17[%c0_71, %c64_72], %63 {strides = array<i32>} : memref<1x3136xf32, #tpu.memory_space<vmem>>, vector<1x64xf32>,
    %c2_73 = arith.constant 2 : index
    %c0_74 = arith.constant 0 : index
    %65 = vector.load %arg16[%c2_73, %c0_74] : memref<70x64xf32, #tpu.memory_space<vmem>>, vector<1x64xf32>
    %c0_75 = arith.constant 0 : index
    %c128_76 = arith.constant 128 : index
    %66 = vector.load %arg17[%c0_75, %c128_76] : memref<1x3136xf32, #tpu.memory_space<vmem>>, vector<1x64xf32>
    tpu.vector_store %arg17[%c0_75, %c128_76], %65 {strides = array<i32>} : memref<1x3136xf32, #tpu.memory_space<vmem>>, vector<1x64xf32>,
    %c3 = arith.constant 3 : index
    %c0_77 = arith.constant 0 : index
    %67 = vector.load %arg16[%c3, %c0_77] : memref<70x64xf32, #tpu.memory_space<vmem>>, vector<1x64xf32>
    %c0_78 = arith.constant 0 : index
    %c192_79 = arith.constant 192 : index
    %68 = vector.load %arg17[%c0_78, %c192_79] : memref<1x3136xf32, #tpu.memory_space<vmem>>, vector<1x64xf32>
    tpu.vector_store %arg17[%c0_78, %c192_79], %67 {strides = array<i32>} : memref<1x3136xf32, #tpu.memory_space<vmem>>, vector<1x64xf32>,
    %c4 = arith.constant 4 : index
    %c0_80 = arith.constant 0 : index
    %69 = vector.load %arg16[%c4, %c0_80] : memref<70x64xf32, #tpu.memory_space<vmem>>, vector<1x64xf32>
    %c0_81 = arith.constant 0 : index
    %c256_82 = arith.constant 256 : index
    %70 = vector.load %arg17[%c0_81, %c256_82] : memref<1x3136xf32, #tpu.memory_space<vmem>>, vector<1x64xf32>
    tpu.vector_store %arg17[%c0_81, %c256_82], %69 {strides = array<i32>} : memref<1x3136xf32, #tpu.memory_space<vmem>>, vector<1x64xf32>,
    %c5 = arith.constant 5 : index
    %c0_83 = arith.constant 0 : index
    %71 = vector.load %arg16[%c5, %c0_83] : memref<70x64xf32, #tpu.memory_space<vmem>>, vector<1x64xf32>
    %c0_84 = arith.constant 0 : index
    %c320_85 = arith.constant 320 : index
    %72 = vector.load %arg17[%c0_84, %c320_85] : memref<1x3136xf32, #tpu.memory_space<vmem>>, vector<1x64xf32>
    tpu.vector_store %arg17[%c0_84, %c320_85], %71 {strides = array<i32>} : memref<1x3136xf32, #tpu.memory_space<vmem>>, vector<1x64xf32>,
    %c6 = arith.constant 6 : index
    %c0_86 = arith.constant 0 : index
    %73 = vector.load %arg16[%c6, %c0_86] : memref<70x64xf32, #tpu.memory_space<vmem>>, vector<1x64xf32>
    %c0_87 = arith.constant 0 : index
    %c384_88 = arith.constant 384 : index
    %74 = vector.load %arg17[%c0_87, %c384_88] : memref<1x3136xf32, #tpu.memory_space<vmem>>, vector<1x64xf32>
    tpu.vector_store %arg17[%c0_87, %c384_88], %73 {strides = array<i32>} : memref<1x3136xf32, #tpu.memory_space<vmem>>, vector<1x64xf32>,
    %c10_89 = arith.constant 10 : index
    %c0_90 = arith.constant 0 : index
    %75 = vector.load %arg16[%c10_89, %c0_90] : memref<70x64xf32, #tpu.memory_space<vmem>>, vector<1x64xf32>
    %c0_91 = arith.constant 0 : index
    %c448_92 = arith.constant 448 : index
    %76 = vector.load %arg17[%c0_91, %c448_92] : memref<1x3136xf32, #tpu.memory_space<vmem>>, vector<1x64xf32>
    tpu.vector_store %arg17[%c0_91, %c448_92], %75 {strides = array<i32>} : memref<1x3136xf32, #tpu.memory_space<vmem>>, vector<1x64xf32>,
    %c11_93 = arith.constant 11 : index
    %c0_94 = arith.constant 0 : index
    %77 = vector.load %arg16[%c11_93, %c0_94] : memref<70x64xf32, #tpu.memory_space<vmem>>, vector<1x64xf32>
    %c0_95 = arith.constant 0 : index
    %c512_96 = arith.constant 512 : index
    %78 = vector.load %arg17[%c0_95, %c512_96] : memref<1x3136xf32, #tpu.memory_space<vmem>>, vector<1x64xf32>
    tpu.vector_store %arg17[%c0_95, %c512_96], %77 {strides = array<i32>} : memref<1x3136xf32, #tpu.memory_space<vmem>>, vector<1x64xf32>,
    %c12_97 = arith.constant 12 : index
    %c0_98 = arith.constant 0 : index
    %79 = vector.load %arg16[%c12_97, %c0_98] : memref<70x64xf32, #tpu.memory_space<vmem>>, vector<1x64xf32>
    %c0_99 = arith.constant 0 : index
    %c576 = arith.constant 576 : index
    %80 = vector.load %arg17[%c0_99, %c576] : memref<1x3136xf32, #tpu.memory_space<vmem>>, vector<1x64xf32>
    tpu.vector_store %arg17[%c0_99, %c576], %79 {strides = array<i32>} : memref<1x3136xf32, #tpu.memory_space<vmem>>, vector<1x64xf32>,
    %c13 = arith.constant 13 : index
    %c0_100 = arith.constant 0 : index
    %81 = vector.load %arg16[%c13, %c0_100] : memref<70x64xf32, #tpu.memory_space<vmem>>, vector<1x64xf32>
    %c0_101 = arith.constant 0 : index
    %c640 = arith.constant 640 : index
    %82 = vector.load %arg17[%c0_101, %c640] : memref<1x3136xf32, #tpu.memory_space<vmem>>, vector<1x64xf32>
    tpu.vector_store %arg17[%c0_101, %c640], %81 {strides = array<i32>} : memref<1x3136xf32, #tpu.memory_space<vmem>>, vector<1x64xf32>,
    %c14 = arith.constant 14 : index
    %c0_102 = arith.constant 0 : index
    %83 = vector.load %arg16[%c14, %c0_102] : memref<70x64xf32, #tpu.memory_space<vmem>>, vector<1x64xf32>
    %c0_103 = arith.constant 0 : index
    %c704 = arith.constant 704 : index
    %84 = vector.load %arg17[%c0_103, %c704] : memref<1x3136xf32, #tpu.memory_space<vmem>>, vector<1x64xf32>
    tpu.vector_store %arg17[%c0_103, %c704], %83 {strides = array<i32>} : memref<1x3136xf32, #tpu.memory_space<vmem>>, vector<1x64xf32>,
    %c15 = arith.constant 15 : index
    %c0_104 = arith.constant 0 : index
    %85 = vector.load %arg16[%c15, %c0_104] : memref<70x64xf32, #tpu.memory_space<vmem>>, vector<1x64xf32>
    %c0_105 = arith.constant 0 : index
    %c768 = arith.constant 768 : index
    %86 = vector.load %arg17[%c0_105, %c768] : memref<1x3136xf32, #tpu.memory_space<vmem>>, vector<1x64xf32>
    tpu.vector_store %arg17[%c0_105, %c768], %85 {strides = array<i32>} : memref<1x3136xf32, #tpu.memory_space<vmem>>, vector<1x64xf32>,
    %c16 = arith.constant 16 : index
    %c0_106 = arith.constant 0 : index
    %87 = vector.load %arg16[%c16, %c0_106] : memref<70x64xf32, #tpu.memory_space<vmem>>, vector<1x64xf32>
    %c0_107 = arith.constant 0 : index
    %c832 = arith.constant 832 : index
    %88 = vector.load %arg17[%c0_107, %c832] : memref<1x3136xf32, #tpu.memory_space<vmem>>, vector<1x64xf32>
    tpu.vector_store %arg17[%c0_107, %c832], %87 {strides = array<i32>} : memref<1x3136xf32, #tpu.memory_space<vmem>>, vector<1x64xf32>,
    %c20_108 = arith.constant 20 : index
    %c0_109 = arith.constant 0 : index
    %89 = vector.load %arg16[%c20_108, %c0_109] : memref<70x64xf32, #tpu.memory_space<vmem>>, vector<1x64xf32>
    %c0_110 = arith.constant 0 : index
    %c896 = arith.constant 896 : index
    %90 = vector.load %arg17[%c0_110, %c896] : memref<1x3136xf32, #tpu.memory_space<vmem>>, vector<1x64xf32>
    tpu.vector_store %arg17[%c0_110, %c896], %89 {strides = array<i32>} : memref<1x3136xf32, #tpu.memory_space<vmem>>, vector<1x64xf32>,
    %c21_111 = arith.constant 21 : index
    %c0_112 = arith.constant 0 : index
    %91 = vector.load %arg16[%c21_111, %c0_112] : memref<70x64xf32, #tpu.memory_space<vmem>>, vector<1x64xf32>
    %c0_113 = arith.constant 0 : index
    %c960 = arith.constant 960 : index
    %92 = vector.load %arg17[%c0_113, %c960] : memref<1x3136xf32, #tpu.memory_space<vmem>>, vector<1x64xf32>
    tpu.vector_store %arg17[%c0_113, %c960], %91 {strides = array<i32>} : memref<1x3136xf32, #tpu.memory_space<vmem>>, vector<1x64xf32>,
    %c22_114 = arith.constant 22 : index
    %c0_115 = arith.constant 0 : index
    %93 = vector.load %arg16[%c22_114, %c0_115] : memref<70x64xf32, #tpu.memory_space<vmem>>, vector<1x64xf32>
    %c0_116 = arith.constant 0 : index
    %c1024 = arith.constant 1024 : index
    %94 = vector.load %arg17[%c0_116, %c1024] : memref<1x3136xf32, #tpu.memory_space<vmem>>, vector<1x64xf32>
    tpu.vector_store %arg17[%c0_116, %c1024], %93 {strides = array<i32>} : memref<1x3136xf32, #tpu.memory_space<vmem>>, vector<1x64xf32>,
    %c23 = arith.constant 23 : index
    %c0_117 = arith.constant 0 : index
    %95 = vector.load %arg16[%c23, %c0_117] : memref<70x64xf32, #tpu.memory_space<vmem>>, vector<1x64xf32>
    %c0_118 = arith.constant 0 : index
    %c1088 = arith.constant 1088 : index
    %96 = vector.load %arg17[%c0_118, %c1088] : memref<1x3136xf32, #tpu.memory_space<vmem>>, vector<1x64xf32>
    tpu.vector_store %arg17[%c0_118, %c1088], %95 {strides = array<i32>} : memref<1x3136xf32, #tpu.memory_space<vmem>>, vector<1x64xf32>,
    %c24 = arith.constant 24 : index
    %c0_119 = arith.constant 0 : index
    %97 = vector.load %arg16[%c24, %c0_119] : memref<70x64xf32, #tpu.memory_space<vmem>>, vector<1x64xf32>
    %c0_120 = arith.constant 0 : index
    %c1152 = arith.constant 1152 : index
    %98 = vector.load %arg17[%c0_120, %c1152] : memref<1x3136xf32, #tpu.memory_space<vmem>>, vector<1x64xf32>
    tpu.vector_store %arg17[%c0_120, %c1152], %97 {strides = array<i32>} : memref<1x3136xf32, #tpu.memory_space<vmem>>, vector<1x64xf32>,
    %c25 = arith.constant 25 : index
    %c0_121 = arith.constant 0 : index
    %99 = vector.load %arg16[%c25, %c0_121] : memref<70x64xf32, #tpu.memory_space<vmem>>, vector<1x64xf32>
    %c0_122 = arith.constant 0 : index
    %c1216 = arith.constant 1216 : index
    %100 = vector.load %arg17[%c0_122, %c1216] : memref<1x3136xf32, #tpu.memory_space<vmem>>, vector<1x64xf32>
    tpu.vector_store %arg17[%c0_122, %c1216], %99 {strides = array<i32>} : memref<1x3136xf32, #tpu.memory_space<vmem>>, vector<1x64xf32>,
    %c26 = arith.constant 26 : index
    %c0_123 = arith.constant 0 : index
    %101 = vector.load %arg16[%c26, %c0_123] : memref<70x64xf32, #tpu.memory_space<vmem>>, vector<1x64xf32>
    %c0_124 = arith.constant 0 : index
    %c1280 = arith.constant 1280 : index
    %102 = vector.load %arg17[%c0_124, %c1280] : memref<1x3136xf32, #tpu.memory_space<vmem>>, vector<1x64xf32>
    tpu.vector_store %arg17[%c0_124, %c1280], %101 {strides = array<i32>} : memref<1x3136xf32, #tpu.memory_space<vmem>>, vector<1x64xf32>,
    %c30 = arith.constant 30 : index
    %c0_125 = arith.constant 0 : index
    %103 = vector.load %arg16[%c30, %c0_125] : memref<70x64xf32, #tpu.memory_space<vmem>>, vector<1x64xf32>
    %c0_126 = arith.constant 0 : index
    %c1344 = arith.constant 1344 : index
    %104 = vector.load %arg17[%c0_126, %c1344] : memref<1x3136xf32, #tpu.memory_space<vmem>>, vector<1x64xf32>
    tpu.vector_store %arg17[%c0_126, %c1344], %103 {strides = array<i32>} : memref<1x3136xf32, #tpu.memory_space<vmem>>, vector<1x64xf32>,
    %c31 = arith.constant 31 : index
    %c0_127 = arith.constant 0 : index
    %105 = vector.load %arg16[%c31, %c0_127] : memref<70x64xf32, #tpu.memory_space<vmem>>, vector<1x64xf32>
    %c0_128 = arith.constant 0 : index
    %c1408 = arith.constant 1408 : index
    %106 = vector.load %arg17[%c0_128, %c1408] : memref<1x3136xf32, #tpu.memory_space<vmem>>, vector<1x64xf32>
    tpu.vector_store %arg17[%c0_128, %c1408], %105 {strides = array<i32>} : memref<1x3136xf32, #tpu.memory_space<vmem>>, vector<1x64xf32>,
    %c32 = arith.constant 32 : index
    %c0_129 = arith.constant 0 : index
    %107 = vector.load %arg16[%c32, %c0_129] : memref<70x64xf32, #tpu.memory_space<vmem>>, vector<1x64xf32>
    %c0_130 = arith.constant 0 : index
    %c1472 = arith.constant 1472 : index
    %108 = vector.load %arg17[%c0_130, %c1472] : memref<1x3136xf32, #tpu.memory_space<vmem>>, vector<1x64xf32>
    tpu.vector_store %arg17[%c0_130, %c1472], %107 {strides = array<i32>} : memref<1x3136xf32, #tpu.memory_space<vmem>>, vector<1x64xf32>,
    %c33 = arith.constant 33 : index
    %c0_131 = arith.constant 0 : index
    %109 = vector.load %arg16[%c33, %c0_131] : memref<70x64xf32, #tpu.memory_space<vmem>>, vector<1x64xf32>
    %c0_132 = arith.constant 0 : index
    %c1536 = arith.constant 1536 : index
    %110 = vector.load %arg17[%c0_132, %c1536] : memref<1x3136xf32, #tpu.memory_space<vmem>>, vector<1x64xf32>
    tpu.vector_store %arg17[%c0_132, %c1536], %109 {strides = array<i32>} : memref<1x3136xf32, #tpu.memory_space<vmem>>, vector<1x64xf32>,
    %c34 = arith.constant 34 : index
    %c0_133 = arith.constant 0 : index
    %111 = vector.load %arg16[%c34, %c0_133] : memref<70x64xf32, #tpu.memory_space<vmem>>, vector<1x64xf32>
    %c0_134 = arith.constant 0 : index
    %c1600 = arith.constant 1600 : index
    %112 = vector.load %arg17[%c0_134, %c1600] : memref<1x3136xf32, #tpu.memory_space<vmem>>, vector<1x64xf32>
    tpu.vector_store %arg17[%c0_134, %c1600], %111 {strides = array<i32>} : memref<1x3136xf32, #tpu.memory_space<vmem>>, vector<1x64xf32>,
    %c35 = arith.constant 35 : index
    %c0_135 = arith.constant 0 : index
    %113 = vector.load %arg16[%c35, %c0_135] : memref<70x64xf32, #tpu.memory_space<vmem>>, vector<1x64xf32>
    %c0_136 = arith.constant 0 : index
    %c1664 = arith.constant 1664 : index
    %114 = vector.load %arg17[%c0_136, %c1664] : memref<1x3136xf32, #tpu.memory_space<vmem>>, vector<1x64xf32>
    tpu.vector_store %arg17[%c0_136, %c1664], %113 {strides = array<i32>} : memref<1x3136xf32, #tpu.memory_space<vmem>>, vector<1x64xf32>,
    %c36 = arith.constant 36 : index
    %c0_137 = arith.constant 0 : index
    %115 = vector.load %arg16[%c36, %c0_137] : memref<70x64xf32, #tpu.memory_space<vmem>>, vector<1x64xf32>
    %c0_138 = arith.constant 0 : index
    %c1728 = arith.constant 1728 : index
    %116 = vector.load %arg17[%c0_138, %c1728] : memref<1x3136xf32, #tpu.memory_space<vmem>>, vector<1x64xf32>
    tpu.vector_store %arg17[%c0_138, %c1728], %115 {strides = array<i32>} : memref<1x3136xf32, #tpu.memory_space<vmem>>, vector<1x64xf32>,
    %c40 = arith.constant 40 : index
    %c0_139 = arith.constant 0 : index
    %117 = vector.load %arg16[%c40, %c0_139] : memref<70x64xf32, #tpu.memory_space<vmem>>, vector<1x64xf32>
    %c0_140 = arith.constant 0 : index
    %c1792 = arith.constant 1792 : index
    %118 = vector.load %arg17[%c0_140, %c1792] : memref<1x3136xf32, #tpu.memory_space<vmem>>, vector<1x64xf32>
    tpu.vector_store %arg17[%c0_140, %c1792], %117 {strides = array<i32>} : memref<1x3136xf32, #tpu.memory_space<vmem>>, vector<1x64xf32>,
    %c41 = arith.constant 41 : index
    %c0_141 = arith.constant 0 : index
    %119 = vector.load %arg16[%c41, %c0_141] : memref<70x64xf32, #tpu.memory_space<vmem>>, vector<1x64xf32>
    %c0_142 = arith.constant 0 : index
    %c1856 = arith.constant 1856 : index
    %120 = vector.load %arg17[%c0_142, %c1856] : memref<1x3136xf32, #tpu.memory_space<vmem>>, vector<1x64xf32>
    tpu.vector_store %arg17[%c0_142, %c1856], %119 {strides = array<i32>} : memref<1x3136xf32, #tpu.memory_space<vmem>>, vector<1x64xf32>,
    %c42 = arith.constant 42 : index
    %c0_143 = arith.constant 0 : index
    %121 = vector.load %arg16[%c42, %c0_143] : memref<70x64xf32, #tpu.memory_space<vmem>>, vector<1x64xf32>
    %c0_144 = arith.constant 0 : index
    %c1920 = arith.constant 1920 : index
    %122 = vector.load %arg17[%c0_144, %c1920] : memref<1x3136xf32, #tpu.memory_space<vmem>>, vector<1x64xf32>
    tpu.vector_store %arg17[%c0_144, %c1920], %121 {strides = array<i32>} : memref<1x3136xf32, #tpu.memory_space<vmem>>, vector<1x64xf32>,
    %c43 = arith.constant 43 : index
    %c0_145 = arith.constant 0 : index
    %123 = vector.load %arg16[%c43, %c0_145] : memref<70x64xf32, #tpu.memory_space<vmem>>, vector<1x64xf32>
    %c0_146 = arith.constant 0 : index
    %c1984 = arith.constant 1984 : index
    %124 = vector.load %arg17[%c0_146, %c1984] : memref<1x3136xf32, #tpu.memory_space<vmem>>, vector<1x64xf32>
    tpu.vector_store %arg17[%c0_146, %c1984], %123 {strides = array<i32>} : memref<1x3136xf32, #tpu.memory_space<vmem>>, vector<1x64xf32>,
    %c44 = arith.constant 44 : index
    %c0_147 = arith.constant 0 : index
    %125 = vector.load %arg16[%c44, %c0_147] : memref<70x64xf32, #tpu.memory_space<vmem>>, vector<1x64xf32>
    %c0_148 = arith.constant 0 : index
    %c2048 = arith.constant 2048 : index
    %126 = vector.load %arg17[%c0_148, %c2048] : memref<1x3136xf32, #tpu.memory_space<vmem>>, vector<1x64xf32>
    tpu.vector_store %arg17[%c0_148, %c2048], %125 {strides = array<i32>} : memref<1x3136xf32, #tpu.memory_space<vmem>>, vector<1x64xf32>,
    %c45 = arith.constant 45 : index
    %c0_149 = arith.constant 0 : index
    %127 = vector.load %arg16[%c45, %c0_149] : memref<70x64xf32, #tpu.memory_space<vmem>>, vector<1x64xf32>
    %c0_150 = arith.constant 0 : index
    %c2112 = arith.constant 2112 : index
    %128 = vector.load %arg17[%c0_150, %c2112] : memref<1x3136xf32, #tpu.memory_space<vmem>>, vector<1x64xf32>
    tpu.vector_store %arg17[%c0_150, %c2112], %127 {strides = array<i32>} : memref<1x3136xf32, #tpu.memory_space<vmem>>, vector<1x64xf32>,
    %c46 = arith.constant 46 : index
    %c0_151 = arith.constant 0 : index
    %129 = vector.load %arg16[%c46, %c0_151] : memref<70x64xf32, #tpu.memory_space<vmem>>, vector<1x64xf32>
    %c0_152 = arith.constant 0 : index
    %c2176 = arith.constant 2176 : index
    %130 = vector.load %arg17[%c0_152, %c2176] : memref<1x3136xf32, #tpu.memory_space<vmem>>, vector<1x64xf32>
    tpu.vector_store %arg17[%c0_152, %c2176], %129 {strides = array<i32>} : memref<1x3136xf32, #tpu.memory_space<vmem>>, vector<1x64xf32>,
    %c50 = arith.constant 50 : index
    %c0_153 = arith.constant 0 : index
    %131 = vector.load %arg16[%c50, %c0_153] : memref<70x64xf32, #tpu.memory_space<vmem>>, vector<1x64xf32>
    %c0_154 = arith.constant 0 : index
    %c2240 = arith.constant 2240 : index
    %132 = vector.load %arg17[%c0_154, %c2240] : memref<1x3136xf32, #tpu.memory_space<vmem>>, vector<1x64xf32>
    tpu.vector_store %arg17[%c0_154, %c2240], %131 {strides = array<i32>} : memref<1x3136xf32, #tpu.memory_space<vmem>>, vector<1x64xf32>,
    %c51 = arith.constant 51 : index
    %c0_155 = arith.constant 0 : index
    %133 = vector.load %arg16[%c51, %c0_155] : memref<70x64xf32, #tpu.memory_space<vmem>>, vector<1x64xf32>
    %c0_156 = arith.constant 0 : index
    %c2304 = arith.constant 2304 : index
    %134 = vector.load %arg17[%c0_156, %c2304] : memref<1x3136xf32, #tpu.memory_space<vmem>>, vector<1x64xf32>
    tpu.vector_store %arg17[%c0_156, %c2304], %133 {strides = array<i32>} : memref<1x3136xf32, #tpu.memory_space<vmem>>, vector<1x64xf32>,
    %c52 = arith.constant 52 : index
    %c0_157 = arith.constant 0 : index
    %135 = vector.load %arg16[%c52, %c0_157] : memref<70x64xf32, #tpu.memory_space<vmem>>, vector<1x64xf32>
    %c0_158 = arith.constant 0 : index
    %c2368 = arith.constant 2368 : index
    %136 = vector.load %arg17[%c0_158, %c2368] : memref<1x3136xf32, #tpu.memory_space<vmem>>, vector<1x64xf32>
    tpu.vector_store %arg17[%c0_158, %c2368], %135 {strides = array<i32>} : memref<1x3136xf32, #tpu.memory_space<vmem>>, vector<1x64xf32>,
    %c53 = arith.constant 53 : index
    %c0_159 = arith.constant 0 : index
    %137 = vector.load %arg16[%c53, %c0_159] : memref<70x64xf32, #tpu.memory_space<vmem>>, vector<1x64xf32>
    %c0_160 = arith.constant 0 : index
    %c2432 = arith.constant 2432 : index
    %138 = vector.load %arg17[%c0_160, %c2432] : memref<1x3136xf32, #tpu.memory_space<vmem>>, vector<1x64xf32>
    tpu.vector_store %arg17[%c0_160, %c2432], %137 {strides = array<i32>} : memref<1x3136xf32, #tpu.memory_space<vmem>>, vector<1x64xf32>,
    %c54 = arith.constant 54 : index
    %c0_161 = arith.constant 0 : index
    %139 = vector.load %arg16[%c54, %c0_161] : memref<70x64xf32, #tpu.memory_space<vmem>>, vector<1x64xf32>
    %c0_162 = arith.constant 0 : index
    %c2496 = arith.constant 2496 : index
    %140 = vector.load %arg17[%c0_162, %c2496] : memref<1x3136xf32, #tpu.memory_space<vmem>>, vector<1x64xf32>
    tpu.vector_store %arg17[%c0_162, %c2496], %139 {strides = array<i32>} : memref<1x3136xf32, #tpu.memory_space<vmem>>, vector<1x64xf32>,
    %c55 = arith.constant 55 : index
    %c0_163 = arith.constant 0 : index
    %141 = vector.load %arg16[%c55, %c0_163] : memref<70x64xf32, #tpu.memory_space<vmem>>, vector<1x64xf32>
    %c0_164 = arith.constant 0 : index
    %c2560 = arith.constant 2560 : index
    %142 = vector.load %arg17[%c0_164, %c2560] : memref<1x3136xf32, #tpu.memory_space<vmem>>, vector<1x64xf32>
    tpu.vector_store %arg17[%c0_164, %c2560], %141 {strides = array<i32>} : memref<1x3136xf32, #tpu.memory_space<vmem>>, vector<1x64xf32>,
    %c56 = arith.constant 56 : index
    %c0_165 = arith.constant 0 : index
    %143 = vector.load %arg16[%c56, %c0_165] : memref<70x64xf32, #tpu.memory_space<vmem>>, vector<1x64xf32>
    %c0_166 = arith.constant 0 : index
    %c2624 = arith.constant 2624 : index
    %144 = vector.load %arg17[%c0_166, %c2624] : memref<1x3136xf32, #tpu.memory_space<vmem>>, vector<1x64xf32>
    tpu.vector_store %arg17[%c0_166, %c2624], %143 {strides = array<i32>} : memref<1x3136xf32, #tpu.memory_space<vmem>>, vector<1x64xf32>,
    %c60 = arith.constant 60 : index
    %c0_167 = arith.constant 0 : index
    %145 = vector.load %arg16[%c60, %c0_167] : memref<70x64xf32, #tpu.memory_space<vmem>>, vector<1x64xf32>
    %c0_168 = arith.constant 0 : index
    %c2688 = arith.constant 2688 : index
    %146 = vector.load %arg17[%c0_168, %c2688] : memref<1x3136xf32, #tpu.memory_space<vmem>>, vector<1x64xf32>
    tpu.vector_store %arg17[%c0_168, %c2688], %145 {strides = array<i32>} : memref<1x3136xf32, #tpu.memory_space<vmem>>, vector<1x64xf32>,
    %c61 = arith.constant 61 : index
    %c0_169 = arith.constant 0 : index
    %147 = vector.load %arg16[%c61, %c0_169] : memref<70x64xf32, #tpu.memory_space<vmem>>, vector<1x64xf32>
    %c0_170 = arith.constant 0 : index
    %c2752 = arith.constant 2752 : index
    %148 = vector.load %arg17[%c0_170, %c2752] : memref<1x3136xf32, #tpu.memory_space<vmem>>, vector<1x64xf32>
    tpu.vector_store %arg17[%c0_170, %c2752], %147 {strides = array<i32>} : memref<1x3136xf32, #tpu.memory_space<vmem>>, vector<1x64xf32>,
    %c62 = arith.constant 62 : index
    %c0_171 = arith.constant 0 : index
    %149 = vector.load %arg16[%c62, %c0_171] : memref<70x64xf32, #tpu.memory_space<vmem>>, vector<1x64xf32>
    %c0_172 = arith.constant 0 : index
    %c2816 = arith.constant 2816 : index
    %150 = vector.load %arg17[%c0_172, %c2816] : memref<1x3136xf32, #tpu.memory_space<vmem>>, vector<1x64xf32>
    tpu.vector_store %arg17[%c0_172, %c2816], %149 {strides = array<i32>} : memref<1x3136xf32, #tpu.memory_space<vmem>>, vector<1x64xf32>,
    %c63 = arith.constant 63 : index
    %c0_173 = arith.constant 0 : index
    %151 = vector.load %arg16[%c63, %c0_173] : memref<70x64xf32, #tpu.memory_space<vmem>>, vector<1x64xf32>
    %c0_174 = arith.constant 0 : index
    %c2880 = arith.constant 2880 : index
    %152 = vector.load %arg17[%c0_174, %c2880] : memref<1x3136xf32, #tpu.memory_space<vmem>>, vector<1x64xf32>
    tpu.vector_store %arg17[%c0_174, %c2880], %151 {strides = array<i32>} : memref<1x3136xf32, #tpu.memory_space<vmem>>, vector<1x64xf32>,
    %c64_175 = arith.constant 64 : index
    %c0_176 = arith.constant 0 : index
    %153 = vector.load %arg16[%c64_175, %c0_176] : memref<70x64xf32, #tpu.memory_space<vmem>>, vector<1x64xf32>
    %c0_177 = arith.constant 0 : index
    %c2944 = arith.constant 2944 : index
    %154 = vector.load %arg17[%c0_177, %c2944] : memref<1x3136xf32, #tpu.memory_space<vmem>>, vector<1x64xf32>
    tpu.vector_store %arg17[%c0_177, %c2944], %153 {strides = array<i32>} : memref<1x3136xf32, #tpu.memory_space<vmem>>, vector<1x64xf32>,
    %c65 = arith.constant 65 : index
    %c0_178 = arith.constant 0 : index
    %155 = vector.load %arg16[%c65, %c0_178] : memref<70x64xf32, #tpu.memory_space<vmem>>, vector<1x64xf32>
    %c0_179 = arith.constant 0 : index
    %c3008 = arith.constant 3008 : index
    %156 = vector.load %arg17[%c0_179, %c3008] : memref<1x3136xf32, #tpu.memory_space<vmem>>, vector<1x64xf32>
    tpu.vector_store %arg17[%c0_179, %c3008], %155 {strides = array<i32>} : memref<1x3136xf32, #tpu.memory_space<vmem>>, vector<1x64xf32>,
    %c66 = arith.constant 66 : index
    %c0_180 = arith.constant 0 : index
    %157 = vector.load %arg16[%c66, %c0_180] : memref<70x64xf32, #tpu.memory_space<vmem>>, vector<1x64xf32>
    %c0_181 = arith.constant 0 : index
    %c3072 = arith.constant 3072 : index
    %158 = vector.load %arg17[%c0_181, %c3072] : memref<1x3136xf32, #tpu.memory_space<vmem>>, vector<1x64xf32>
    tpu.vector_store %arg17[%c0_181, %c3072], %157 {strides = array<i32>} : memref<1x3136xf32, #tpu.memory_space<vmem>>, vector<1x64xf32>,
    %c0_182 = arith.constant 0 : index
    %c0_183 = arith.constant 0 : index
    %159 = vector.load %arg17[%c0_182, %c0_183] : memref<1x3136xf32, #tpu.memory_space<vmem>>, vector<1x3136xf32>
    %160 = arith.truncf %159 : vector<1x3136xf32> to vector<1x3136xbf16>
    %c0_184 = arith.constant 0 : index
    %c0_185 = arith.constant 0 : index
    %161 = vector.load %arg8[%c0_184, %c0_185] : memref<3136x512xbf16, #tpu.memory_space<vmem>>, vector<3136x512xbf16>
    %cst_186 = arith.constant dense<0.000000e+00> : vector<1x512xf32>
    %162 = tpu.matmul %160, %161, %cst_186 {dimension_numbers = #tpu.dot_dimension_numbers<[1], [0], [0], [1], [0, 0, 1, 1], [], []>} : vector<1x3136xbf16>, vector<3136x512xbf16>, vector<1x512xf32> -> vector<1x512xf32>
    %c0_187 = arith.constant 0 : index
    %c0_188 = arith.constant 0 : index
    %163 = vector.load %arg9[%c0_187, %c0_188] : memref<1x512xf32, #tpu.memory_space<vmem>>, vector<1x512xf32>
    %164 = arith.addf %162, %163 : vector<1x512xf32>
    %cst_189 = arith.constant 0.000000e+00 : f32
    %165 = vector.broadcast %cst_189 : f32 to vector<1x512xf32>
    %166 = arith.maximumf %164, %165 : vector<1x512xf32>
    %167 = arith.truncf %166 : vector<1x512xf32> to vector<1x512xbf16>
    %c0_190 = arith.constant 0 : index
    %c0_191 = arith.constant 0 : index
    %168 = vector.load %arg10[%c0_190, %c0_191] : memref<512x4xbf16, #tpu.memory_space<vmem>>, vector<512x4xbf16>
    %cst_192 = arith.constant dense<0.000000e+00> : vector<1x4xf32>
    %169 = tpu.matmul %167, %168, %cst_192 {dimension_numbers = #tpu.dot_dimension_numbers<[1], [0], [0], [1], [0, 0, 1, 1], [], []>} : vector<1x512xbf16>, vector<512x4xbf16>, vector<1x4xf32> -> vector<1x4xf32>
    %c0_193 = arith.constant 0 : index
    %c0_194 = arith.constant 0 : index
    %170 = vector.load %arg11[%c0_193, %c0_194] : memref<1x4xf32, #tpu.memory_space<vmem>>, vector<1x4xf32>
    %171 = arith.addf %169, %170 : vector<1x4xf32>
    %c0_195 = arith.constant 0 : index
    %c0_196 = arith.constant 0 : index
    %c0_197 = arith.constant 0 : index
    %172 = vector.load %arg12[%c0_195, %c0_196, %c0_197] : memref<1x1x4xf32, #tpu.memory_space<vmem>>, vector<1x1x4xf32>
    %173 = vector.shape_cast %172 : vector<1x1x4xf32> to vector<1x4xf32>
    %174 = vector.shape_cast %171 : vector<1x4xf32> to vector<1x1x4xf32>
    tpu.vector_store %arg12[%c0_195, %c0_196, %c0_197], %174 {strides = array<i32>} : memref<1x1x4xf32, #tpu.memory_space<vmem>>, vector<1x1x4xf32>,
    return
  }
  func.func @transform_0(%arg0: i32) -> (i32, i32) {
    %c0_i32 = arith.constant 0 : i32
    %c0_i32_0 = arith.constant 0 : i32
    return %arg0, %c0_i32 : i32, i32
  }
  func.func @transform_1(%arg0: i32) -> (i32, i32) {
    %c0_i32 = arith.constant 0 : i32
    %c0_i32_0 = arith.constant 0 : i32
    %c0_i32_1 = arith.constant 0 : i32
    return %c0_i32, %c0_i32_0 : i32, i32
  }
  func.func @transform_2(%arg0: i32) -> (i32, i32) {
    %c0_i32 = arith.constant 0 : i32
    %c0_i32_0 = arith.constant 0 : i32
    %c0_i32_1 = arith.constant 0 : i32
    return %c0_i32, %c0_i32_0 : i32, i32
  }
  func.func @transform_3(%arg0: i32) -> (i32, i32) {
    %c0_i32 = arith.constant 0 : i32
    %c0_i32_0 = arith.constant 0 : i32
    %c0_i32_1 = arith.constant 0 : i32
    return %c0_i32, %c0_i32_0 : i32, i32
  }
  func.func @transform_4(%arg0: i32) -> (i32, i32) {
    %c0_i32 = arith.constant 0 : i32
    %c0_i32_0 = arith.constant 0 : i32
    %c0_i32_1 = arith.constant 0 : i32
    return %c0_i32, %c0_i32_0 : i32, i32
  }
  func.func @transform_5(%arg0: i32) -> (i32, i32) {
    %c0_i32 = arith.constant 0 : i32
    %c0_i32_0 = arith.constant 0 : i32
    %c0_i32_1 = arith.constant 0 : i32
    return %c0_i32, %c0_i32_0 : i32, i32
  }
  func.func @transform_6(%arg0: i32) -> (i32, i32) {
    %c0_i32 = arith.constant 0 : i32
    %c0_i32_0 = arith.constant 0 : i32
    %c0_i32_1 = arith.constant 0 : i32
    return %c0_i32, %c0_i32_0 : i32, i32
  }
  func.func @transform_7(%arg0: i32) -> (i32, i32) {
    %c0_i32 = arith.constant 0 : i32
    %c0_i32_0 = arith.constant 0 : i32
    %c0_i32_1 = arith.constant 0 : i32
    return %c0_i32, %c0_i32_0 : i32, i32
  }
  func.func @transform_8(%arg0: i32) -> (i32, i32) {
    %c0_i32 = arith.constant 0 : i32
    %c0_i32_0 = arith.constant 0 : i32
    %c0_i32_1 = arith.constant 0 : i32
    return %c0_i32, %c0_i32_0 : i32, i32
  }
  func.func @transform_9(%arg0: i32) -> (i32, i32) {
    %c0_i32 = arith.constant 0 : i32
    %c0_i32_0 = arith.constant 0 : i32
    %c0_i32_1 = arith.constant 0 : i32
    return %c0_i32, %c0_i32_0 : i32, i32
  }
  func.func @transform_10(%arg0: i32) -> (i32, i32) {
    %c0_i32 = arith.constant 0 : i32
    %c0_i32_0 = arith.constant 0 : i32
    %c0_i32_1 = arith.constant 0 : i32
    return %c0_i32, %c0_i32_0 : i32, i32
  }
  func.func @transform_11(%arg0: i32) -> (i32, i32, i32) {
    %c0_i32 = arith.constant 0 : i32
    %c0_i32_0 = arith.constant 0 : i32
    %c0_i32_1 = arith.constant 0 : i32
    return %arg0, %c0_i32, %c0_i32_0 : i32, i32, i32
  }
}

</mosaic_0001>

<llo_original>
// kernel: conv_dqn_forward.1
$region0: #{conv_dqn_forward.1}
  #allocation0 [shape = 'u32[]', space=smem, size = 0x4, offset = 0x4, fixed_abs, tag = 'smem constant byte address 0x4 - core index']
  #allocation1 [shape = 'u32[144,128]{1,0:T(1,128)}', space=vmem, size = 0x12000, scoped, tag = 'internal scratch']
  #allocation2 [shape = 'bf16[104,128]{1,0:T(8,128)(2,1)}', space=vmem, size = 0x6800, scoped, tag = 'scratch operand']
  #allocation3 [shape = 'bf16[96,64]{1,0:T(16,128)(2,1)}', space=vmem, size = 0x6000, scoped, tag = 'scratch operand']
  #allocation4 [shape = 'bf16[70,576]{1,0:T(8,128)(2,1)}', space=vmem, size = 0x16800, scoped, tag = 'scratch operand']
  #allocation5 [shape = 'f32[70,64]{1,0:T(8,128)}', space=vmem, size = 0x9000, scoped, tag = 'scratch operand']
  #allocation6 [shape = 'f32[1,3136]{1,0:T(1,128)}', space=vmem, size = 0x3200, scoped, tag = 'scratch operand']
  %s0 = inlined_call_operand.vmem [shape: bf16[208,1024], index: 0, kind: input, shape index: {}]
  %s1 = inlined_call_operand.vmem [shape: bf16[1024,128], index: 1, kind: input, shape index: {}]
  %s2 = inlined_call_operand.vmem [shape: f32[1,128], index: 2, kind: input, shape index: {}]
  %s3 = inlined_call_operand.vmem [shape: bf16[512,64], index: 3, kind: input, shape index: {}]
  %s4 = inlined_call_operand.vmem [shape: f32[1,64], index: 4, kind: input, shape index: {}]
  %s5 = inlined_call_operand.vmem [shape: bf16[576,64], index: 5, kind: input, shape index: {}]
  %s6 = inlined_call_operand.vmem [shape: f32[1,64], index: 6, kind: input, shape index: {}]
  %s7 = inlined_call_operand.vmem [shape: bf16[3136,512], index: 7, kind: input, shape index: {}]
  %s8 = inlined_call_operand.vmem [shape: f32[1,512], index: 8, kind: input, shape index: {}]
  %s9 = inlined_call_operand.vmem [shape: bf16[512,4], index: 9, kind: input, shape index: {}]
  %s10 = inlined_call_operand.vmem [shape: f32[1,4], index: 10, kind: input, shape index: {}]
  %s11 = inlined_call_operand.hbm [shape: f32[2,1,4], index: 11, kind: output, shape index: {}]
  %s12 = sld [smem:[#allocation0]]
  $region77: #{conv_dqn_forward.1} parent=0
    _
  %s14 = ssub.s32 1, %s12
  %s15 = scalar_select 0, %s14, %s12
  $region1: #{conv_dqn_forward.1} parent=0
    #allocation7 [shape = 'u8[1024]{0}', space=vmem, size = 0x400, scoped, tag = 'output window, operand 0']
    #allocation8 [shape = 's32[2]{0}', space=sflag, size = 0x8, scoped, tag = 'scoped memory for conv_dqn_forward.1']
    %16 = vsyncpa [#allocation8], 0
    %s17 = scalar_lea.sflag [#allocation8], 1
    %18 = vsyncpa %s17, 0
    loop: start=0, step=1, limit=4
    $region2: #{conv_dqn_forward.1} parent=1 // loop_pre_header
      _
    $region3: #{conv_dqn_forward.1} parent=1 // loop_header
      %s20 = sphi 0, %s24
      %p21 = scmp.ge.s32.totalorder %s20, 4
      %s30 = sphi 0, %s32
      %s33 = sphi 0, %s30
      %s34 = sphi 0, %s33
      %s50 = sphi 0, %s34
      %s54 = sphi 0, %s54
      %s56 = sphi 0, %s54
      %s57 = sphi 0, %s56
      %s71 = sphi 0, %s57
      %s75 = sphi 0, %s75
      %s77 = sphi 0, %s75
      %s78 = sphi 0, %s77
      %s92 = sphi 0, %s78
      %s96 = sphi 0, %s96
      %s98 = sphi 0, %s96
      %s99 = sphi 0, %s98
      %s113 = sphi 0, %s99
      %s117 = sphi 0, %s117
      %s119 = sphi 0, %s117
      %s120 = sphi 0, %s119
      %s134 = sphi 0, %s120
      %s138 = sphi 0, %s138
      %s140 = sphi 0, %s138
      %s141 = sphi 0, %s140
      %s155 = sphi 0, %s141
      %s159 = sphi 0, %s159
      %s161 = sphi 0, %s159
      %s162 = sphi 0, %s161
      %s176 = sphi 0, %s162
      %s180 = sphi 0, %s180
      %s182 = sphi 0, %s180
      %s183 = sphi 0, %s182
      %s197 = sphi 0, %s183
      %s201 = sphi 0, %s201
      %s203 = sphi 0, %s201
      %s204 = sphi 0, %s203
      %s218 = sphi 0, %s204
      %s222 = sphi 0, %s222
      %s224 = sphi 0, %s222
      %s225 = sphi 0, %s224
      %s239 = sphi 0, %s225
      %s243 = sphi 0, %s243
      %s245 = sphi 0, %s243
      %s246 = sphi 0, %s245
      %s260 = sphi 0, %s246
      %s266 = sphi 0, %s268
      %s269 = sphi 0, %s266
      %s270 = sphi 0, %s269
      %s286 = sphi 0, %s270
    $region4: #{conv_dqn_forward.1} parent=1 // loop_header_branch
      %23 = sbr.rel (%p21) target = $region8
    $region5: #{conv_dqn_forward.1} parent=1 // loop_body
      %s25 = ssub.s32 %s20, 1
      %s26 = ssub.s32 %s20, 2
      %s27 = sadd.s32 %s20, 1
      %s28 = ssub.s32 %s20, %s27
      %p29 = scmp.eq.s32.totalorder %s28, 0
      %s31 = sadd.s32 %s30, 1
      %s32 = scalar_select %p29, %s30, %s31
      %p35 = pneg %p29
      %p36 = scmp.eq.s32.totalorder %s20, 1
      %p37 = por %p35, %p36
      %p38 = scmp.ne.s32.totalorder %s30, %s33
      %p39 = scmp.eq.s32.totalorder %s20, 0
      %p40 = por %p38, %p39
      %p41 = scmp.ne.s32.totalorder %s30, %s33
      %p42 = scmp.eq.s32.totalorder %s25, 1
      %p43 = por %p41, %p42
      %p44 = scmp.ne.s32.totalorder %s33, %s34
      %p45 = scmp.eq.s32.totalorder %s25, 0
      %p46 = por %p44, %p45
      %p47 = scmp.ne.s32.totalorder %s33, %s34
      %p48 = scmp.eq.s32.totalorder %s26, 1
      %p49 = por %p47, %p48
      %p51 = scmp.ne.s32.totalorder %s34, %s50
      %p52 = scmp.eq.s32.totalorder %s26, 0
      %p53 = por %p51, %p52
      %s55 = sadd.s32 %s54, 1
      %p58 = scmp.eq.s32.totalorder %s20, 1
      %p59 = scmp.ne.s32.totalorder %s54, %s56
      %p60 = scmp.eq.s32.totalorder %s20, 0
      %p61 = por %p59, %p60
      %p62 = scmp.ne.s32.totalorder %s54, %s56
      %p63 = scmp.eq.s32.totalorder %s25, 1
      %p64 = por %p62, %p63
      %p65 = scmp.ne.s32.totalorder %s56, %s57
      %p66 = scmp.eq.s32.totalorder %s25, 0
      %p67 = por %p65, %p66
      %p68 = scmp.ne.s32.totalorder %s56, %s57
      %p69 = scmp.eq.s32.totalorder %s26, 1
      %p70 = por %p68, %p69
      %p72 = scmp.ne.s32.totalorder %s57, %s71
      %p73 = scmp.eq.s32.totalorder %s26, 0
      %p74 = por %p72, %p73
      %s76 = sadd.s32 %s75, 1
      %p79 = scmp.eq.s32.totalorder %s20, 1
      %p80 = scmp.ne.s32.totalorder %s75, %s77
      %p81 = scmp.eq.s32.totalorder %s20, 0
      %p82 = por %p80, %p81
      %p83 = scmp.ne.s32.totalorder %s75, %s77
      %p84 = scmp.eq.s32.totalorder %s25, 1
      %p85 = por %p83, %p84
      %p86 = scmp.ne.s32.totalorder %s77, %s78
      %p87 = scmp.eq.s32.totalorder %s25, 0
      %p88 = por %p86, %p87
      %p89 = scmp.ne.s32.totalorder %s77, %s78
      %p90 = scmp.eq.s32.totalorder %s26, 1
      %p91 = por %p89, %p90
      %p93 = scmp.ne.s32.totalorder %s78, %s92
      %p94 = scmp.eq.s32.totalorder %s26, 0
      %p95 = por %p93, %p94
      %s97 = sadd.s32 %s96, 1
      %p100 = scmp.eq.s32.totalorder %s20, 1
      %p101 = scmp.ne.s32.totalorder %s96, %s98
      %p102 = scmp.eq.s32.totalorder %s20, 0
      %p103 = por %p101, %p102
      %p104 = scmp.ne.s32.totalorder %s96, %s98
      %p105 = scmp.eq.s32.totalorder %s25, 1
      %p106 = por %p104, %p105
      %p107 = scmp.ne.s32.totalorder %s98, %s99
      %p108 = scmp.eq.s32.totalorder %s25, 0
      %p109 = por %p107, %p108
      %p110 = scmp.ne.s32.totalorder %s98, %s99
      %p111 = scmp.eq.s32.totalorder %s26, 1
      %p112 = por %p110, %p111
      %p114 = scmp.ne.s32.totalorder %s99, %s113
      %p115 = scmp.eq.s32.totalorder %s26, 0
      %p116 = por %p114, %p115
      %s118 = sadd.s32 %s117, 1
      %p121 = scmp.eq.s32.totalorder %s20, 1
      %p122 = scmp.ne.s32.totalorder %s117, %s119
      %p123 = scmp.eq.s32.totalorder %s20, 0
      %p124 = por %p122, %p123
      %p125 = scmp.ne.s32.totalorder %s117, %s119
      %p126 = scmp.eq.s32.totalorder %s25, 1
      %p127 = por %p125, %p126
      %p128 = scmp.ne.s32.totalorder %s119, %s120
      %p129 = scmp.eq.s32.totalorder %s25, 0
      %p130 = por %p128, %p129
      %p131 = scmp.ne.s32.totalorder %s119, %s120
      %p132 = scmp.eq.s32.totalorder %s26, 1
      %p133 = por %p131, %p132
      %p135 = scmp.ne.s32.totalorder %s120, %s134
      %p136 = scmp.eq.s32.totalorder %s26, 0
      %p137 = por %p135, %p136
      %s139 = sadd.s32 %s138, 1
      %p142 = scmp.eq.s32.totalorder %s20, 1
      %p143 = scmp.ne.s32.totalorder %s138, %s140
      %p144 = scmp.eq.s32.totalorder %s20, 0
      %p145 = por %p143, %p144
      %p146 = scmp.ne.s32.totalorder %s138, %s140
      %p147 = scmp.eq.s32.totalorder %s25, 1
      %p148 = por %p146, %p147
      %p149 = scmp.ne.s32.totalorder %s140, %s141
      %p150 = scmp.eq.s32.totalorder %s25, 0
      %p151 = por %p149, %p150
      %p152 = scmp.ne.s32.totalorder %s140, %s141
      %p153 = scmp.eq.s32.totalorder %s26, 1
      %p154 = por %p152, %p153
      %p156 = scmp.ne.s32.totalorder %s141, %s155
      %p157 = scmp.eq.s32.totalorder %s26, 0
      %p158 = por %p156, %p157
      %s160 = sadd.s32 %s159, 1
      %p163 = scmp.eq.s32.totalorder %s20, 1
      %p164 = scmp.ne.s32.totalorder %s159, %s161
      %p165 = scmp.eq.s32.totalorder %s20, 0
      %p166 = por %p164, %p165
      %p167 = scmp.ne.s32.totalorder %s159, %s161
      %p168 = scmp.eq.s32.totalorder %s25, 1
      %p169 = por %p167, %p168
      %p170 = scmp.ne.s32.totalorder %s161, %s162
      %p171 = scmp.eq.s32.totalorder %s25, 0
      %p172 = por %p170, %p171
      %p173 = scmp.ne.s32.totalorder %s161, %s162
      %p174 = scmp.eq.s32.totalorder %s26, 1
      %p175 = por %p173, %p174
      %p177 = scmp.ne.s32.totalorder %s162, %s176
      %p178 = scmp.eq.s32.totalorder %s26, 0
      %p179 = por %p177, %p178
      %s181 = sadd.s32 %s180, 1
      %p184 = scmp.eq.s32.totalorder %s20, 1
      %p185 = scmp.ne.s32.totalorder %s180, %s182
      %p186 = scmp.eq.s32.totalorder %s20, 0
      %p187 = por %p185, %p186
      %p188 = scmp.ne.s32.totalorder %s180, %s182
      %p189 = scmp.eq.s32.totalorder %s25, 1
      %p190 = por %p188, %p189
      %p191 = scmp.ne.s32.totalorder %s182, %s183
      %p192 = scmp.eq.s32.totalorder %s25, 0
      %p193 = por %p191, %p192
      %p194 = scmp.ne.s32.totalorder %s182, %s183
      %p195 = scmp.eq.s32.totalorder %s26, 1
      %p196 = por %p194, %p195
      %p198 = scmp.ne.s32.totalorder %s183, %s197
      %p199 = scmp.eq.s32.totalorder %s26, 0
      %p200 = por %p198, %p199
      %s202 = sadd.s32 %s201, 1
      %p205 = scmp.eq.s32.totalorder %s20, 1
      %p206 = scmp.ne.s32.totalorder %s201, %s203
      %p207 = scmp.eq.s32.totalorder %s20, 0
      %p208 = por %p206, %p207
      %p209 = scmp.ne.s32.totalorder %s201, %s203
      %p210 = scmp.eq.s32.totalorder %s25, 1
      %p211 = por %p209, %p210
      %p212 = scmp.ne.s32.totalorder %s203, %s204
      %p213 = scmp.eq.s32.totalorder %s25, 0
      %p214 = por %p212, %p213
      %p215 = scmp.ne.s32.totalorder %s203, %s204
      %p216 = scmp.eq.s32.totalorder %s26, 1
      %p217 = por %p215, %p216
      %p219 = scmp.ne.s32.totalorder %s204, %s218
      %p220 = scmp.eq.s32.totalorder %s26, 0
      %p221 = por %p219, %p220
      %s223 = sadd.s32 %s222, 1
      %p226 = scmp.eq.s32.totalorder %s20, 1
      %p227 = scmp.ne.s32.totalorder %s222, %s224
      %p228 = scmp.eq.s32.totalorder %s20, 0
      %p229 = por %p227, %p228
      %p230 = scmp.ne.s32.totalorder %s222, %s224
      %p231 = scmp.eq.s32.totalorder %s25, 1
      %p232 = por %p230, %p231
      %p233 = scmp.ne.s32.totalorder %s224, %s225
      %p234 = scmp.eq.s32.totalorder %s25, 0
      %p235 = por %p233, %p234
      %p236 = scmp.ne.s32.totalorder %s224, %s225
      %p237 = scmp.eq.s32.totalorder %s26, 1
      %p238 = por %p236, %p237
      %p240 = scmp.ne.s32.totalorder %s225, %s239
      %p241 = scmp.eq.s32.totalorder %s26, 0
      %p242 = por %p240, %p241
      %s244 = sadd.s32 %s243, 1
      %p247 = scmp.eq.s32.totalorder %s20, 1
      %p248 = scmp.ne.s32.totalorder %s243, %s245
      %p249 = scmp.eq.s32.totalorder %s20, 0
      %p250 = por %p248, %p249
      %p251 = scmp.ne.s32.totalorder %s243, %s245
      %p252 = scmp.eq.s32.totalorder %s25, 1
      %p253 = por %p251, %p252
      %p254 = scmp.ne.s32.totalorder %s245, %s246
      %p255 = scmp.eq.s32.totalorder %s25, 0
      %p256 = por %p254, %p255
      %p257 = scmp.ne.s32.totalorder %s245, %s246
      %p258 = scmp.eq.s32.totalorder %s26, 1
      %p259 = por %p257, %p258
      %p261 = scmp.ne.s32.totalorder %s246, %s260
      %p262 = scmp.eq.s32.totalorder %s26, 0
      %p263 = por %p261, %p262
      %s264 = ssub.s32 %s20, %s27
      %p265 = scmp.eq.s32.totalorder %s264, 0
      %s267 = sadd.s32 %s266, 1
      %s268 = scalar_select %p265, %s266, %s267
      %p271 = pneg %p265
      %p272 = scmp.eq.s32.totalorder %s20, 1
      %p273 = por %p271, %p272
      %p274 = scmp.ne.s32.totalorder %s266, %s269
      %p275 = scmp.eq.s32.totalorder %s20, 0
      %p276 = por %p274, %p275
      %p277 = scmp.ne.s32.totalorder %s266, %s269
      %p278 = scmp.eq.s32.totalorder %s25, 1
      %p279 = por %p277, %p278
      %p280 = scmp.ne.s32.totalorder %s269, %s270
      %p281 = scmp.eq.s32.totalorder %s25, 0
      %p282 = por %p280, %p281
      %p283 = scmp.ne.s32.totalorder %s269, %s270
      %p284 = scmp.eq.s32.totalorder %s26, 1
      %p285 = por %p283, %p284
      %p287 = scmp.ne.s32.totalorder %s270, %s286
      %p288 = scmp.eq.s32.totalorder %s26, 0
      %p289 = por %p287, %p288
      %p290 = scmp.le.s32.totalorder 1, %s20
      %p291 = scmp.lt.s32.totalorder %s20, 3
      %p292 = pnand %p290, %p291
      %p293 = pneg %p292
      // Predicated region
      $region9: #{conv_dqn_forward.1} parent=5 // pred_check
        _
      $region10: #{conv_dqn_forward.1} parent=5 // pred_check_branch
        %295 = sbr.rel (%p292) target = $region12
      $region11: #{conv_dqn_forward.1} parent=5 // pred_region
        %s296 = ssub.s32 %s20, 1
        // Predicated region
        $region13: #{conv_dqn_forward.1} parent=11 // pred_check
          %p297 = pneg %p67
        $region14: #{conv_dqn_forward.1} parent=11 // pred_check_branch
          %299 = sbr.rel (%p297) target = $region16
        $region15: #{conv_dqn_forward.1} parent=11 // pred_region
          _
        $region16: #{conv_dqn_forward.1} parent=11 // pred_fallthru
          _
        // Predicated region
        $region17: #{conv_dqn_forward.1} parent=11 // pred_check
          %p300 = pneg %p88
        $region18: #{conv_dqn_forward.1} parent=11 // pred_check_branch
          %302 = sbr.rel (%p300) target = $region20
        $region19: #{conv_dqn_forward.1} parent=11 // pred_region
          _
        $region20: #{conv_dqn_forward.1} parent=11 // pred_fallthru
          _
        // Predicated region
        $region21: #{conv_dqn_forward.1} parent=11 // pred_check
          %p303 = pneg %p109
        $region22: #{conv_dqn_forward.1} parent=11 // pred_check_branch
          %305 = sbr.rel (%p303) target = $region24
        $region23: #{conv_dqn_forward.1} parent=11 // pred_region
          _
        $region24: #{conv_dqn_forward.1} parent=11 // pred_fallthru
          _
        // Predicated region
        $region25: #{conv_dqn_forward.1} parent=11 // pred_check
          %p306 = pneg %p130
        $region26: #{conv_dqn_forward.1} parent=11 // pred_check_branch
          %308 = sbr.rel (%p306) target = $region28
        $region27: #{conv_dqn_forward.1} parent=11 // pred_region
          _
        $region28: #{conv_dqn_forward.1} parent=11 // pred_fallthru
          _
        // Predicated region
        $region29: #{conv_dqn_forward.1} parent=11 // pred_check
          %p309 = pneg %p151
        $region30: #{conv_dqn_forward.1} parent=11 // pred_check_branch
          %311 = sbr.rel (%p309) target = $region32
        $region31: #{conv_dqn_forward.1} parent=11 // pred_region
          _
        $region32: #{conv_dqn_forward.1} parent=11 // pred_fallthru
          _
        // Predicated region
        $region33: #{conv_dqn_forward.1} parent=11 // pred_check
          %p312 = pneg %p172
        $region34: #{conv_dqn_forward.1} parent=11 // pred_check_branch
          %314 = sbr.rel (%p312) target = $region36
        $region35: #{conv_dqn_forward.1} parent=11 // pred_region
          _
        $region36: #{conv_dqn_forward.1} parent=11 // pred_fallthru
          _
        // Predicated region
        $region37: #{conv_dqn_forward.1} parent=11 // pred_check
          %p315 = pneg %p193
        $region38: #{conv_dqn_forward.1} parent=11 // pred_check_branch
          %317 = sbr.rel (%p315) target = $region40
        $region39: #{conv_dqn_forward.1} parent=11 // pred_region
          _
        $region40: #{conv_dqn_forward.1} parent=11 // pred_fallthru
          _
        // Predicated region
        $region41: #{conv_dqn_forward.1} parent=11 // pred_check
          %p318 = pneg %p214
        $region42: #{conv_dqn_forward.1} parent=11 // pred_check_branch
          %320 = sbr.rel (%p318) target = $region44
        $region43: #{conv_dqn_forward.1} parent=11 // pred_region
          _
        $region44: #{conv_dqn_forward.1} parent=11 // pred_fallthru
          _
        // Predicated region
        $region45: #{conv_dqn_forward.1} parent=11 // pred_check
          %p321 = pneg %p235
        $region46: #{conv_dqn_forward.1} parent=11 // pred_check_branch
          %323 = sbr.rel (%p321) target = $region48
        $region47: #{conv_dqn_forward.1} parent=11 // pred_region
          _
        $region48: #{conv_dqn_forward.1} parent=11 // pred_fallthru
          _
        // Predicated region
        $region49: #{conv_dqn_forward.1} parent=11 // pred_check
          %p324 = pneg %p256
        $region50: #{conv_dqn_forward.1} parent=11 // pred_check_branch
          %326 = sbr.rel (%p324) target = $region52
        $region51: #{conv_dqn_forward.1} parent=11 // pred_region
          _
        $region52: #{conv_dqn_forward.1} parent=11 // pred_fallthru
          _
      $region12: #{conv_dqn_forward.1} parent=5 // pred_fallthru
        _
      %p327 = scmp.lt.s32.totalorder %s20, 2
      // Predicated region
      $region53: #{conv_dqn_forward.1} parent=5 // pred_check
        %p328 = pneg %p327
      $region54: #{conv_dqn_forward.1} parent=5 // pred_check_branch
        %330 = sbr.rel (%p328) target = $region56
      $region55: #{conv_dqn_forward.1} parent=5 // pred_region
        // Predicated region
        $region57: #{conv_dqn_forward.1} parent=55 // pred_check
          %p331 = pneg %p40
        $region58: #{conv_dqn_forward.1} parent=55 // pred_check_branch
          %333 = sbr.rel (%p331) target = $region60
        $region59: #{conv_dqn_forward.1} parent=55 // pred_region
          %s334 = smul.u32 13, %s20
          %p335 = scmp.lt.s32.totalorder %s334, 25
          %s336 = scalar_select %p335, %s334, 25
          %s337 = smul.addr %s336, 8
          %s338 = smul.addr %s337, 4
          %s339 = scalar_lea.vmem %s0, %s338
          %s340 = smul.u32 13, %s20
        $region60: #{conv_dqn_forward.1} parent=55 // pred_fallthru
          _
      $region56: #{conv_dqn_forward.1} parent=5 // pred_fallthru
        _
      %p341 = scmp.le.s32.totalorder 1, %s20
      %p342 = scmp.lt.s32.totalorder %s20, 3
      %p343 = pnand %p341, %p342
      %p344 = pneg %p343
      // Predicated region
      $region61: #{conv_dqn_forward.1} parent=5 // pred_check
        _
      $region62: #{conv_dqn_forward.1} parent=5 // pred_check_branch
        %346 = sbr.rel (%p343) target = $region64
      $region63: #{conv_dqn_forward.1} parent=5 // pred_region
        %s347 = ssub.s32 %s20, 1
        %s348 = smul.u32 13, %s25
        %p349 = scmp.lt.s32.totalorder %s348, 25
        %s350 = scalar_select %p349, %s348, 25
        %s351 = smul.addr %s350, 8
        %s352 = smul.addr %s351, 4
        %s353 = scalar_lea.vmem %s0, %s352
        %p354 = pneg %p46
        %p355 = pneg %p43
        %p356 = pneg %p67
        %p357 = pneg %p64
        %p358 = pneg %p88
        %p359 = pneg %p85
        %p360 = pneg %p109
        %p361 = pneg %p106
        %p362 = pneg %p130
        %p363 = pneg %p127
        %p364 = pneg %p151
        %p365 = pneg %p148
        %p366 = pneg %p172
        %p367 = pneg %p169
        %p368 = pneg %p193
        %p369 = pneg %p190
        %p370 = pneg %p214
        %p371 = pneg %p211
        %p372 = pneg %p235
        %p373 = pneg %p232
        %p374 = pneg %p256
        %p375 = pneg %p253
        %p376 = pneg %p282
        %p377 = pneg %p279
        %s378 = sand.u32 %s269, 1
        %s379 = scalar_lea.sflag [#allocation8], %s378
        %s380 = sand.u32 %s269, 1
        %s381 = scalar_lea.vmem [#allocation7], %s380
        %s382 = smul.u32 13, %s25
        %p383 = scmp.lt.s32.totalorder %s382, 25
        %s384 = scalar_select %p383, %s382, 25
        %s385 = smul.addr %s384, 8
        %s386 = smul.addr %s385, 4
        %s387 = scalar_lea.vmem %s0, %s386
        %s388 = smul.u32 13, %s25
        %v390 = vld [vmem:[%s387] sm:$0xff]
        %v391 = vld [vmem:[%s387 + $0x8] sm:$0xff]
        %v392 = vld [vmem:[%s387 + $0x10] sm:$0xff]
        %v393 = vld [vmem:[%s387 + $0x18] sm:$0xff]
        %v394 = vld [vmem:[%s387 + $0x20] sm:$0xff]
        %v395 = vld [vmem:[%s387 + $0x28] sm:$0xff]
        %v396 = vld [vmem:[%s387 + $0x30] sm:$0xff]
        %v397 = vld [vmem:[%s387 + $0x38] sm:$0xff]
        %v398 = vld [vmem:[%s387 + $0x40] sm:$0xff]
        %v399 = vld [vmem:[%s387 + $0x48] sm:$0xff]
        %v400 = vld [vmem:[%s387 + $0x50] sm:$0xff]
        %v401 = vld [vmem:[%s387 + $0x58] sm:$0xff]
        %v402 = vld [vmem:[%s387 + $0x60] sm:$0xff]
        %v403 = vld [vmem:[%s387 + $0x68] sm:$0xff]
        %v404 = vld [vmem:[%s387 + $0x70] sm:$0xff]
        %v405 = vld [vmem:[%s387 + $0x78] sm:$0xff]
        %v406 = vld [vmem:[%s387 + $0x80] sm:$0xff]
        %v407 = vld [vmem:[%s387 + $0x88] sm:$0xff]
        %v408 = vld [vmem:[%s387 + $0x90] sm:$0xff]
        %v409 = vld [vmem:[%s387 + $0x98] sm:$0xff]
        %v410 = vld [vmem:[%s387 + $0xa0] sm:$0xff]
        %v411 = vld [vmem:[%s387 + $0xa8] sm:$0xff]
        %v412 = vld [vmem:[%s387 + $0xb0] sm:$0xff]
        %v413 = vld [vmem:[%s387 + $0xb8] sm:$0xff]
        %v414 = vld [vmem:[%s387 + $0xc0] sm:$0xff]
        %v415 = vld [vmem:[%s387 + $0xc8] sm:$0xff]
        %v416 = vld [vmem:[%s387 + $0xd0] sm:$0xff]
        %v417 = vld [vmem:[%s387 + $0xd8] sm:$0xff]
        %v418 = vld [vmem:[%s387 + $0xe0] sm:$0xff]
        %v419 = vld [vmem:[%s387 + $0xe8] sm:$0xff]
        %v420 = vld [vmem:[%s387 + $0xf0] sm:$0xff]
        %v421 = vld [vmem:[%s387 + $0xf8] sm:$0xff]
        %v422 = vld [vmem:[%s387 + $0x100] sm:$0xff]
        %v423 = vld [vmem:[%s387 + $0x108] sm:$0xff]
        %v424 = vld [vmem:[%s387 + $0x110] sm:$0xff]
        %v425 = vld [vmem:[%s387 + $0x118] sm:$0xff]
        %v426 = vld [vmem:[%s387 + $0x120] sm:$0xff]
        %v427 = vld [vmem:[%s387 + $0x128] sm:$0xff]
        %v428 = vld [vmem:[%s387 + $0x130] sm:$0xff]
        %v429 = vld [vmem:[%s387 + $0x138] sm:$0xff]
        %v430 = vld [vmem:[%s387 + $0x140] sm:$0xff]
        %v431 = vld [vmem:[%s387 + $0x148] sm:$0xff]
        %v432 = vld [vmem:[%s387 + $0x150] sm:$0xff]
        %v433 = vld [vmem:[%s387 + $0x158] sm:$0xff]
        %v434 = vld [vmem:[%s387 + $0x160] sm:$0xff]
        %v435 = vld [vmem:[%s387 + $0x168] sm:$0xff]
        %v436 = vld [vmem:[%s387 + $0x170] sm:$0xff]
        %v437 = vld [vmem:[%s387 + $0x178] sm:$0xff]
        %v438 = vld [vmem:[%s387 + $0x180] sm:$0xff]
        %v439 = vld [vmem:[%s387 + $0x188] sm:$0xff]
        %v440 = vld [vmem:[%s387 + $0x190] sm:$0xff]
        %v441 = vld [vmem:[%s387 + $0x198] sm:$0xff]
        %v442 = vld [vmem:[%s1] sm:$0xf]
        %v443 = vld [vmem:[%s1 + $0x4] sm:$0xf]
        %v444 = vld [vmem:[%s1 + $0x8] sm:$0xf]
        %v445 = vld [vmem:[%s1 + $0xc] sm:$0xf]
        %v446 = vld [vmem:[%s1 + $0x10] sm:$0xf]
        %v447 = vld [vmem:[%s1 + $0x14] sm:$0xf]
        %v448 = vld [vmem:[%s1 + $0x18] sm:$0xf]
        %v449 = vld [vmem:[%s1 + $0x1c] sm:$0xf]
        %v450 = vld [vmem:[%s1 + $0x20] sm:$0xf]
        %v451 = vld [vmem:[%s1 + $0x24] sm:$0xf]
        %v452 = vld [vmem:[%s1 + $0x28] sm:$0xf]
        %v453 = vld [vmem:[%s1 + $0x2c] sm:$0xf]
        %v454 = vld [vmem:[%s1 + $0x30] sm:$0xf]
        %v455 = vld [vmem:[%s1 + $0x34] sm:$0xf]
        %v456 = vld [vmem:[%s1 + $0x38] sm:$0xf]
        %v457 = vld [vmem:[%s1 + $0x3c] sm:$0xf]
        %v458 = vld [vmem:[%s1 + $0x40] sm:$0xf]
        %v459 = vld [vmem:[%s1 + $0x44] sm:$0xf]
        %v460 = vld [vmem:[%s1 + $0x48] sm:$0xf]
        %v461 = vld [vmem:[%s1 + $0x4c] sm:$0xf]
        %v462 = vld [vmem:[%s1 + $0x50] sm:$0xf]
        %v463 = vld [vmem:[%s1 + $0x54] sm:$0xf]
        %v464 = vld [vmem:[%s1 + $0x58] sm:$0xf]
        %v465 = vld [vmem:[%s1 + $0x5c] sm:$0xf]
        %v466 = vld [vmem:[%s1 + $0x60] sm:$0xf]
        %v467 = vld [vmem:[%s1 + $0x64] sm:$0xf]
        %v468 = vld [vmem:[%s1 + $0x68] sm:$0xf]
        %v469 = vld [vmem:[%s1 + $0x6c] sm:$0xf]
        %v470 = vld [vmem:[%s1 + $0x70] sm:$0xf]
        %v471 = vld [vmem:[%s1 + $0x74] sm:$0xf]
        %v472 = vld [vmem:[%s1 + $0x78] sm:$0xf]
        %v473 = vld [vmem:[%s1 + $0x7c] sm:$0xf]
        %v474 = vld [vmem:[%s1 + $0x80] sm:$0xf]
        %v475 = vld [vmem:[%s1 + $0x84] sm:$0xf]
        %v476 = vld [vmem:[%s1 + $0x88] sm:$0xf]
        %v477 = vld [vmem:[%s1 + $0x8c] sm:$0xf]
        %v478 = vld [vmem:[%s1 + $0x90] sm:$0xf]
        %v479 = vld [vmem:[%s1 + $0x94] sm:$0xf]
        %v480 = vld [vmem:[%s1 + $0x98] sm:$0xf]
        %v481 = vld [vmem:[%s1 + $0x9c] sm:$0xf]
        %v482 = vld [vmem:[%s1 + $0xa0] sm:$0xf]
        %v483 = vld [vmem:[%s1 + $0xa4] sm:$0xf]
        %v484 = vld [vmem:[%s1 + $0xa8] sm:$0xf]
        %v485 = vld [vmem:[%s1 + $0xac] sm:$0xf]
        %v486 = vld [vmem:[%s1 + $0xb0] sm:$0xf]
        %v487 = vld [vmem:[%s1 + $0xb4] sm:$0xf]
        %v488 = vld [vmem:[%s1 + $0xb8] sm:$0xf]
        %v489 = vld [vmem:[%s1 + $0xbc] sm:$0xf]
        %v490 = vld [vmem:[%s1 + $0xc0] sm:$0xf]
        %v491 = vld [vmem:[%s1 + $0xc4] sm:$0xf]
        %v492 = vld [vmem:[%s1 + $0xc8] sm:$0xf]
        %v493 = vld [vmem:[%s1 + $0xcc] sm:$0xf]
        %v494 = vld [vmem:[%s1 + $0xd0] sm:$0xf]
        %v495 = vld [vmem:[%s1 + $0xd4] sm:$0xf]
        %v496 = vld [vmem:[%s1 + $0xd8] sm:$0xf]
        %v497 = vld [vmem:[%s1 + $0xdc] sm:$0xf]
        %v498 = vld [vmem:[%s1 + $0xe0] sm:$0xf]
        %v499 = vld [vmem:[%s1 + $0xe4] sm:$0xf]
        %v500 = vld [vmem:[%s1 + $0xe8] sm:$0xf]
        %v501 = vld [vmem:[%s1 + $0xec] sm:$0xf]
        %v502 = vld [vmem:[%s1 + $0xf0] sm:$0xf]
        %v503 = vld [vmem:[%s1 + $0xf4] sm:$0xf]
        %v504 = vld [vmem:[%s1 + $0xf8] sm:$0xf]
        %v505 = vld [vmem:[%s1 + $0xfc] sm:$0xf]
        %v506 = vld [vmem:[%s1 + $0x100] sm:$0xf]
        %v507 = vld [vmem:[%s1 + $0x104] sm:$0xf]
        %v508 = vld [vmem:[%s1 + $0x108] sm:$0xf]
        %v509 = vld [vmem:[%s1 + $0x10c] sm:$0xf]
        %v510 = vld [vmem:[%s1 + $0x110] sm:$0xf]
        %v511 = vld [vmem:[%s1 + $0x114] sm:$0xf]
        %v512 = vld [vmem:[%s1 + $0x118] sm:$0xf]
        %v513 = vld [vmem:[%s1 + $0x11c] sm:$0xf]
        %v514 = vld [vmem:[%s1 + $0x120] sm:$0xf]
        %v515 = vld [vmem:[%s1 + $0x124] sm:$0xf]
        %v516 = vld [vmem:[%s1 + $0x128] sm:$0xf]
        %v517 = vld [vmem:[%s1 + $0x12c] sm:$0xf]
        %v518 = vld [vmem:[%s1 + $0x130] sm:$0xf]
        %v519 = vld [vmem:[%s1 + $0x134] sm:$0xf]
        %v520 = vld [vmem:[%s1 + $0x138] sm:$0xf]
        %v521 = vld [vmem:[%s1 + $0x13c] sm:$0xf]
        %v522 = vld [vmem:[%s1 + $0x140] sm:$0xf]
        %v523 = vld [vmem:[%s1 + $0x144] sm:$0xf]
        %v524 = vld [vmem:[%s1 + $0x148] sm:$0xf]
        %v525 = vld [vmem:[%s1 + $0x14c] sm:$0xf]
        %v526 = vld [vmem:[%s1 + $0x150] sm:$0xf]
        %v527 = vld [vmem:[%s1 + $0x154] sm:$0xf]
        %v528 = vld [vmem:[%s1 + $0x158] sm:$0xf]
        %v529 = vld [vmem:[%s1 + $0x15c] sm:$0xf]
        %v530 = vld [vmem:[%s1 + $0x160] sm:$0xf]
        %v531 = vld [vmem:[%s1 + $0x164] sm:$0xf]
        %v532 = vld [vmem:[%s1 + $0x168] sm:$0xf]
        %v533 = vld [vmem:[%s1 + $0x16c] sm:$0xf]
        %v534 = vld [vmem:[%s1 + $0x170] sm:$0xf]
        %v535 = vld [vmem:[%s1 + $0x174] sm:$0xf]
        %v536 = vld [vmem:[%s1 + $0x178] sm:$0xf]
        %v537 = vld [vmem:[%s1 + $0x17c] sm:$0xf]
        %v538 = vld [vmem:[%s1 + $0x180] sm:$0xf]
        %v539 = vld [vmem:[%s1 + $0x184] sm:$0xf]
        %v540 = vld [vmem:[%s1 + $0x188] sm:$0xf]
        %v541 = vld [vmem:[%s1 + $0x18c] sm:$0xf]
        %v542 = vld [vmem:[%s1 + $0x190] sm:$0xf]
        %v543 = vld [vmem:[%s1 + $0x194] sm:$0xf]
        %v544 = vld [vmem:[%s1 + $0x198] sm:$0xf]
        %v545 = vld [vmem:[%s1 + $0x19c] sm:$0xf]
        %v546 = vld [vmem:[%s1 + $0x1a0] sm:$0xf]
        %v547 = vld [vmem:[%s1 + $0x1a4] sm:$0xf]
        %v548 = vld [vmem:[%s1 + $0x1a8] sm:$0xf]
        %v549 = vld [vmem:[%s1 + $0x1ac] sm:$0xf]
        %v550 = vld [vmem:[%s1 + $0x1b0] sm:$0xf]
        %v551 = vld [vmem:[%s1 + $0x1b4] sm:$0xf]
        %v552 = vld [vmem:[%s1 + $0x1b8] sm:$0xf]
        %v553 = vld [vmem:[%s1 + $0x1bc] sm:$0xf]
        %v554 = vld [vmem:[%s1 + $0x1c0] sm:$0xf]
        %v555 = vld [vmem:[%s1 + $0x1c4] sm:$0xf]
        %v556 = vld [vmem:[%s1 + $0x1c8] sm:$0xf]
        %v557 = vld [vmem:[%s1 + $0x1cc] sm:$0xf]
        %v558 = vld [vmem:[%s1 + $0x1d0] sm:$0xf]
        %v559 = vld [vmem:[%s1 + $0x1d4] sm:$0xf]
        %v560 = vld [vmem:[%s1 + $0x1d8] sm:$0xf]
        %v561 = vld [vmem:[%s1 + $0x1dc] sm:$0xf]
        %v562 = vld [vmem:[%s1 + $0x1e0] sm:$0xf]
        %v563 = vld [vmem:[%s1 + $0x1e4] sm:$0xf]
        %v564 = vld [vmem:[%s1 + $0x1e8] sm:$0xf]
        %v565 = vld [vmem:[%s1 + $0x1ec] sm:$0xf]
        %v566 = vld [vmem:[%s1 + $0x1f0] sm:$0xf]
        %v567 = vld [vmem:[%s1 + $0x1f4] sm:$0xf]
        %v568 = vld [vmem:[%s1 + $0x1f8] sm:$0xf]
        %v569 = vld [vmem:[%s1 + $0x1fc] sm:$0xf]
        %v570 = vld [vmem:[%s2] sm:$0x1]
        %v572 = vlaneseq
        %v573 = vshrl.u32 %v572, 7
        %v574 = vsub.s32 0, %v573
        %v575 = vrot.slane %v570, %v574
        %v629 = vunpack.c.l.b16 %v390
        %v630 = vunpack.c.h.b16 %v390
        %v631 = vunpack.c.l.b16 %v391
        %v632 = vunpack.c.h.b16 %v391
        %v633 = vunpack.c.l.b16 %v392
        %v634 = vunpack.c.h.b16 %v392
        %v635 = vunpack.c.l.b16 %v393
        %v636 = vunpack.c.h.b16 %v393
        %v637 = vunpack.c.l.b16 %v394
        %v638 = vunpack.c.h.b16 %v394
        %v639 = vunpack.c.l.b16 %v395
        %v640 = vunpack.c.h.b16 %v395
        %v641 = vunpack.c.l.b16 %v396
        %v642 = vunpack.c.h.b16 %v396
        %v643 = vunpack.c.l.b16 %v397
        %v644 = vunpack.c.h.b16 %v397
        %v645 = vunpack.c.l.b16 %v398
        %v646 = vunpack.c.h.b16 %v398
        %v647 = vunpack.c.l.b16 %v399
        %v648 = vunpack.c.h.b16 %v399
        %v649 = vunpack.c.l.b16 %v400
        %v650 = vunpack.c.h.b16 %v400
        %v651 = vunpack.c.l.b16 %v401
        %v652 = vunpack.c.h.b16 %v401
        %v653 = vunpack.c.l.b16 %v402
        %v654 = vunpack.c.h.b16 %v402
        %v655 = vunpack.c.l.b16 %v403
        %v656 = vunpack.c.h.b16 %v403
        %v657 = vunpack.c.l.b16 %v404
        %v658 = vunpack.c.h.b16 %v404
        %v659 = vunpack.c.l.b16 %v405
        %v660 = vunpack.c.h.b16 %v405
        %v661 = vunpack.c.l.b16 %v406
        %v662 = vunpack.c.h.b16 %v406
        %v663 = vunpack.c.l.b16 %v407
        %v664 = vunpack.c.h.b16 %v407
        %v665 = vunpack.c.l.b16 %v408
        %v666 = vunpack.c.h.b16 %v408
        %v667 = vunpack.c.l.b16 %v409
        %v668 = vunpack.c.h.b16 %v409
        %v669 = vunpack.c.l.b16 %v410
        %v670 = vunpack.c.h.b16 %v410
        %v671 = vunpack.c.l.b16 %v411
        %v672 = vunpack.c.h.b16 %v411
        %v673 = vunpack.c.l.b16 %v412
        %v674 = vunpack.c.h.b16 %v412
        %v675 = vunpack.c.l.b16 %v413
        %v676 = vunpack.c.h.b16 %v413
        %v677 = vunpack.c.l.b16 %v414
        %v678 = vunpack.c.h.b16 %v414
        %v679 = vunpack.c.l.b16 %v415
        %v680 = vunpack.c.h.b16 %v415
        %v681 = vunpack.c.l.b16 %v416
        %v682 = vunpack.c.h.b16 %v416
        %v683 = vunpack.c.l.b16 %v417
        %v684 = vunpack.c.h.b16 %v417
        %v685 = vunpack.c.l.b16 %v418
        %v686 = vunpack.c.h.b16 %v418
        %v687 = vunpack.c.l.b16 %v419
        %v688 = vunpack.c.h.b16 %v419
        %v689 = vunpack.c.l.b16 %v420
        %v690 = vunpack.c.h.b16 %v420
        %v691 = vunpack.c.l.b16 %v421
        %v692 = vunpack.c.h.b16 %v421
        %v693 = vunpack.c.l.b16 %v422
        %v694 = vunpack.c.h.b16 %v422
        %v695 = vunpack.c.l.b16 %v423
        %v696 = vunpack.c.h.b16 %v423
        %v697 = vunpack.c.l.b16 %v424
        %v698 = vunpack.c.h.b16 %v424
        %v699 = vunpack.c.l.b16 %v425
        %v700 = vunpack.c.h.b16 %v425
        %v701 = vunpack.c.l.b16 %v426
        %v702 = vunpack.c.h.b16 %v426
        %v703 = vunpack.c.l.b16 %v427
        %v704 = vunpack.c.h.b16 %v427
        %v705 = vunpack.c.l.b16 %v428
        %v706 = vunpack.c.h.b16 %v428
        %v707 = vunpack.c.l.b16 %v429
        %v708 = vunpack.c.h.b16 %v429
        %v709 = vunpack.c.l.b16 %v430
        %v710 = vunpack.c.h.b16 %v430
        %v711 = vunpack.c.l.b16 %v431
        %v712 = vunpack.c.h.b16 %v431
        %v713 = vunpack.c.l.b16 %v432
        %v714 = vunpack.c.h.b16 %v432
        %v715 = vunpack.c.l.b16 %v433
        %v716 = vunpack.c.h.b16 %v433
        %v717 = vunpack.c.l.b16 %v434
        %v718 = vunpack.c.h.b16 %v434
        %v719 = vunpack.c.l.b16 %v435
        %v720 = vunpack.c.h.b16 %v435
        %v721 = vunpack.c.l.b16 %v436
        %v722 = vunpack.c.h.b16 %v436
        %v723 = vunpack.c.l.b16 %v437
        %v724 = vunpack.c.h.b16 %v437
        %v725 = vunpack.c.l.b16 %v438
        %v726 = vunpack.c.h.b16 %v438
        %v727 = vunpack.c.l.b16 %v439
        %v728 = vunpack.c.h.b16 %v439
        %v729 = vunpack.c.l.b16 %v440
        %v730 = vunpack.c.h.b16 %v440
        %v731 = vunpack.c.l.b16 %v441
        %v732 = vunpack.c.h.b16 %v441
        %v733 = vpack.c.b16 %v637, %v629
        %v734 = vpack.c.b16 %v638, %v630
        %v735 = vpack.c.b16 %v639, %v631
        %v736 = vpack.c.b16 %v640, %v632
        %v737 = vpack.c.b16 %v641, %v633
        %v738 = vpack.c.b16 %v642, %v634
        %v739 = vpack.c.b16 %v643, %v635
        %v740 = vpack.c.b16 %v644, %v636
        %v741 = vpack.c.b16 %v653, %v645
        %v742 = vpack.c.b16 %v654, %v646
        %v743 = vpack.c.b16 %v655, %v647
        %v744 = vpack.c.b16 %v656, %v648
        %v745 = vpack.c.b16 %v657, %v649
        %v746 = vpack.c.b16 %v658, %v650
        %v747 = vpack.c.b16 %v659, %v651
        %v748 = vpack.c.b16 %v660, %v652
        %v749 = vpack.c.b16 %v669, %v661
        %v750 = vpack.c.b16 %v670, %v662
        %v751 = vpack.c.b16 %v671, %v663
        %v752 = vpack.c.b16 %v672, %v664
        %v753 = vpack.c.b16 %v673, %v665
        %v754 = vpack.c.b16 %v674, %v666
        %v755 = vpack.c.b16 %v675, %v667
        %v756 = vpack.c.b16 %v676, %v668
        %v757 = vpack.c.b16 %v685, %v677
        %v758 = vpack.c.b16 %v686, %v678
        %v759 = vpack.c.b16 %v687, %v679
        %v760 = vpack.c.b16 %v688, %v680
        %v761 = vpack.c.b16 %v689, %v681
        %v762 = vpack.c.b16 %v690, %v682
        %v763 = vpack.c.b16 %v691, %v683
        %v764 = vpack.c.b16 %v692, %v684
        %v765 = vpack.c.b16 %v701, %v693
        %v766 = vpack.c.b16 %v702, %v694
        %v767 = vpack.c.b16 %v703, %v695
        %v768 = vpack.c.b16 %v704, %v696
        %v769 = vpack.c.b16 %v705, %v697
        %v770 = vpack.c.b16 %v706, %v698
        %v771 = vpack.c.b16 %v707, %v699
        %v772 = vpack.c.b16 %v708, %v700
        %v773 = vpack.c.b16 %v717, %v709
        %v774 = vpack.c.b16 %v718, %v710
        %v775 = vpack.c.b16 %v719, %v711
        %v776 = vpack.c.b16 %v720, %v712
        %v777 = vpack.c.b16 %v721, %v713
        %v778 = vpack.c.b16 %v722, %v714
        %v779 = vpack.c.b16 %v723, %v715
        %v780 = vpack.c.b16 %v724, %v716
        %v781 = vpack.c.b16 %v725, %v725
        %v782 = vpack.c.b16 %v726, %v726
        %v783 = vpack.c.b16 %v727, %v727
        %v784 = vpack.c.b16 %v728, %v728
        %v785 = vpack.c.b16 %v729, %v729
        %v786 = vpack.c.b16 %v730, %v730
        %v787 = vpack.c.b16 %v731, %v731
        %v788 = vpack.c.b16 %v732, %v732
        %v973 = vunpack.c.l.b16 %v442
        %v974 = vunpack.c.l.b16 %v443
        %v975 = vunpack.c.l.b16 %v444
        %v976 = vunpack.c.l.b16 %v445
        %v977 = vunpack.c.l.b16 %v446
        %v978 = vunpack.c.l.b16 %v447
        %v979 = vunpack.c.l.b16 %v448
        %v980 = vunpack.c.l.b16 %v449
        %v981 = vunpack.c.l.b16 %v450
        %v982 = vunpack.c.l.b16 %v451
        %v983 = vunpack.c.l.b16 %v452
        %v984 = vunpack.c.l.b16 %v453
        %v985 = vunpack.c.l.b16 %v454
        %v986 = vunpack.c.l.b16 %v455
        %v987 = vunpack.c.l.b16 %v456
        %v988 = vunpack.c.l.b16 %v457
        %v989 = vunpack.c.l.b16 %v458
        %v990 = vunpack.c.l.b16 %v459
        %v991 = vunpack.c.l.b16 %v460
        %v992 = vunpack.c.l.b16 %v461
        %v993 = vunpack.c.l.b16 %v462
        %v994 = vunpack.c.l.b16 %v463
        %v995 = vunpack.c.l.b16 %v464
        %v996 = vunpack.c.l.b16 %v465
        %v997 = vunpack.c.l.b16 %v466
        %v998 = vunpack.c.l.b16 %v467
        %v999 = vunpack.c.l.b16 %v468
        %v1000 = vunpack.c.l.b16 %v469
        %v1001 = vunpack.c.l.b16 %v470
        %v1002 = vunpack.c.l.b16 %v471
        %v1003 = vunpack.c.l.b16 %v472
        %v1004 = vunpack.c.l.b16 %v473
        %v1005 = vunpack.c.l.b16 %v474
        %v1006 = vunpack.c.l.b16 %v475
        %v1007 = vunpack.c.l.b16 %v476
        %v1008 = vunpack.c.l.b16 %v477
        %v1009 = vunpack.c.l.b16 %v478
        %v1010 = vunpack.c.l.b16 %v479
        %v1011 = vunpack.c.l.b16 %v480
        %v1012 = vunpack.c.l.b16 %v481
        %v1013 = vunpack.c.l.b16 %v482
        %v1014 = vunpack.c.l.b16 %v483
        %v1015 = vunpack.c.l.b16 %v484
        %v1016 = vunpack.c.l.b16 %v485
        %v1017 = vunpack.c.l.b16 %v486
        %v1018 = vunpack.c.l.b16 %v487
        %v1019 = vunpack.c.l.b16 %v488
        %v1020 = vunpack.c.l.b16 %v489
        %v1021 = vunpack.c.l.b16 %v490
        %v1022 = vunpack.c.l.b16 %v491
        %v1023 = vunpack.c.l.b16 %v492
        %v1024 = vunpack.c.l.b16 %v493
        %v1025 = vunpack.c.l.b16 %v494
        %v1026 = vunpack.c.l.b16 %v495
        %v1027 = vunpack.c.l.b16 %v496
        %v1028 = vunpack.c.l.b16 %v497
        %v1029 = vunpack.c.l.b16 %v498
        %v1030 = vunpack.c.l.b16 %v499
        %v1031 = vunpack.c.l.b16 %v500
        %v1032 = vunpack.c.l.b16 %v501
        %v1033 = vunpack.c.l.b16 %v502
        %v1034 = vunpack.c.l.b16 %v503
        %v1035 = vunpack.c.l.b16 %v504
        %v1036 = vunpack.c.l.b16 %v505
        %v1037 = vunpack.c.l.b16 %v506
        %v1038 = vunpack.c.l.b16 %v507
        %v1039 = vunpack.c.l.b16 %v508
        %v1040 = vunpack.c.l.b16 %v509
        %v1041 = vunpack.c.l.b16 %v510
        %v1042 = vunpack.c.l.b16 %v511
        %v1043 = vunpack.c.l.b16 %v512
        %v1044 = vunpack.c.l.b16 %v513
        %v1045 = vunpack.c.l.b16 %v514
        %v1046 = vunpack.c.l.b16 %v515
        %v1047 = vunpack.c.l.b16 %v516
        %v1048 = vunpack.c.l.b16 %v517
        %v1049 = vunpack.c.l.b16 %v518
        %v1050 = vunpack.c.l.b16 %v519
        %v1051 = vunpack.c.l.b16 %v520
        %v1052 = vunpack.c.l.b16 %v521
        %v1053 = vunpack.c.l.b16 %v522
        %v1054 = vunpack.c.l.b16 %v523
        %v1055 = vunpack.c.l.b16 %v524
        %v1056 = vunpack.c.l.b16 %v525
        %v1057 = vunpack.c.l.b16 %v526
        %v1058 = vunpack.c.l.b16 %v527
        %v1059 = vunpack.c.l.b16 %v528
        %v1060 = vunpack.c.l.b16 %v529
        %v1061 = vunpack.c.l.b16 %v530
        %v1062 = vunpack.c.l.b16 %v531
        %v1063 = vunpack.c.l.b16 %v532
        %v1064 = vunpack.c.l.b16 %v533
        %v1065 = vunpack.c.l.b16 %v534
        %v1066 = vunpack.c.l.b16 %v535
        %v1067 = vunpack.c.l.b16 %v536
        %v1068 = vunpack.c.l.b16 %v537
        %v1069 = vunpack.c.l.b16 %v538
        %v1070 = vunpack.c.l.b16 %v539
        %v1071 = vunpack.c.l.b16 %v540
        %v1072 = vunpack.c.l.b16 %v541
        %v1073 = vunpack.c.l.b16 %v542
        %v1074 = vunpack.c.l.b16 %v543
        %v1075 = vunpack.c.l.b16 %v544
        %v1076 = vunpack.c.l.b16 %v545
        %v1077 = vunpack.c.l.b16 %v546
        %v1078 = vunpack.c.l.b16 %v547
        %v1079 = vunpack.c.l.b16 %v548
        %v1080 = vunpack.c.l.b16 %v549
        %v1081 = vunpack.c.l.b16 %v550
        %v1082 = vunpack.c.l.b16 %v551
        %v1083 = vunpack.c.l.b16 %v552
        %v1084 = vunpack.c.l.b16 %v553
        %v1085 = vunpack.c.l.b16 %v554
        %v1086 = vunpack.c.l.b16 %v555
        %v1087 = vunpack.c.l.b16 %v556
        %v1088 = vunpack.c.l.b16 %v557
        %v1089 = vunpack.c.l.b16 %v558
        %v1090 = vunpack.c.l.b16 %v559
        %v1091 = vunpack.c.l.b16 %v560
        %v1092 = vunpack.c.l.b16 %v561
        %v1093 = vunpack.c.l.b16 %v562
        %v1094 = vunpack.c.l.b16 %v563
        %v1095 = vunpack.c.l.b16 %v564
        %v1096 = vunpack.c.l.b16 %v565
        %v1097 = vunpack.c.l.b16 %v566
        %v1098 = vunpack.c.l.b16 %v567
        %v1099 = vunpack.c.l.b16 %v568
        %v1100 = vunpack.c.l.b16 %v569
        %v1101 = vpack.c.b16 %v974, %v973
        %v1102 = vpack.c.b16 %v976, %v975
        %v1103 = vpack.c.b16 %v978, %v977
        %v1104 = vpack.c.b16 %v980, %v979
        %v1105 = vpack.c.b16 %v982, %v981
        %v1106 = vpack.c.b16 %v984, %v983
        %v1107 = vpack.c.b16 %v986, %v985
        %v1108 = vpack.c.b16 %v988, %v987
        %v1109 = vpack.c.b16 %v990, %v989
        %v1110 = vpack.c.b16 %v992, %v991
        %v1111 = vpack.c.b16 %v994, %v993
        %v1112 = vpack.c.b16 %v996, %v995
        %v1113 = vpack.c.b16 %v998, %v997
        %v1114 = vpack.c.b16 %v1000, %v999
        %v1115 = vpack.c.b16 %v1002, %v1001
        %v1116 = vpack.c.b16 %v1004, %v1003
        %v1117 = vpack.c.b16 %v1006, %v1005
        %v1118 = vpack.c.b16 %v1008, %v1007
        %v1119 = vpack.c.b16 %v1010, %v1009
        %v1120 = vpack.c.b16 %v1012, %v1011
        %v1121 = vpack.c.b16 %v1014, %v1013
        %v1122 = vpack.c.b16 %v1016, %v1015
        %v1123 = vpack.c.b16 %v1018, %v1017
        %v1124 = vpack.c.b16 %v1020, %v1019
        %v1125 = vpack.c.b16 %v1022, %v1021
        %v1126 = vpack.c.b16 %v1024, %v1023
        %v1127 = vpack.c.b16 %v1026, %v1025
        %v1128 = vpack.c.b16 %v1028, %v1027
        %v1129 = vpack.c.b16 %v1030, %v1029
        %v1130 = vpack.c.b16 %v1032, %v1031
        %v1131 = vpack.c.b16 %v1034, %v1033
        %v1132 = vpack.c.b16 %v1036, %v1035
        %v1133 = vpack.c.b16 %v1038, %v1037
        %v1134 = vpack.c.b16 %v1040, %v1039
        %v1135 = vpack.c.b16 %v1042, %v1041
        %v1136 = vpack.c.b16 %v1044, %v1043
        %v1137 = vpack.c.b16 %v1046, %v1045
        %v1138 = vpack.c.b16 %v1048, %v1047
        %v1139 = vpack.c.b16 %v1050, %v1049
        %v1140 = vpack.c.b16 %v1052, %v1051
        %v1141 = vpack.c.b16 %v1054, %v1053
        %v1142 = vpack.c.b16 %v1056, %v1055
        %v1143 = vpack.c.b16 %v1058, %v1057
        %v1144 = vpack.c.b16 %v1060, %v1059
        %v1145 = vpack.c.b16 %v1062, %v1061
        %v1146 = vpack.c.b16 %v1064, %v1063
        %v1147 = vpack.c.b16 %v1066, %v1065
        %v1148 = vpack.c.b16 %v1068, %v1067
        %v1149 = vpack.c.b16 %v1070, %v1069
        %v1150 = vpack.c.b16 %v1072, %v1071
        %v1151 = vpack.c.b16 %v1074, %v1073
        %v1152 = vpack.c.b16 %v1076, %v1075
        %v1153 = vpack.c.b16 %v1078, %v1077
        %v1154 = vpack.c.b16 %v1080, %v1079
        %v1155 = vpack.c.b16 %v1082, %v1081
        %v1156 = vpack.c.b16 %v1084, %v1083
        %v1157 = vpack.c.b16 %v1086, %v1085
        %v1158 = vpack.c.b16 %v1088, %v1087
        %v1159 = vpack.c.b16 %v1090, %v1089
        %v1160 = vpack.c.b16 %v1092, %v1091
        %v1161 = vpack.c.b16 %v1094, %v1093
        %v1162 = vpack.c.b16 %v1096, %v1095
        %v1163 = vpack.c.b16 %v1098, %v1097
        %v1164 = vpack.c.b16 %v1100, %v1099
        %1229 = vmatprep.subr.bf16.mxu0 0
        %1230 = vmatpush1.bf16.msra.mxu0 %v1101
        %1231 = vmatprep.subr.bf16.mxu0 0
        %1232 = vmatpush1.bf16.msra.mxu0 %v1102
        %1233 = vmatprep.subr.bf16.mxu0 0
        %1234 = vmatpush1.bf16.msra.mxu0 %v1103
        %1235 = vmatprep.subr.bf16.mxu0 0
        %1236 = vmatpush1.bf16.msra.mxu0 %v1104
        %1237 = vmatprep.subr.bf16.mxu0 0
        %1238 = vmatpush1.bf16.msra.mxu0 %v1105
        %1239 = vmatprep.subr.bf16.mxu0 0
        %1240 = vmatpush1.bf16.msra.mxu0 %v1106
        %1241 = vmatprep.subr.bf16.mxu0 0
        %1242 = vmatpush1.bf16.msra.mxu0 %v1107
        %1243 = vmatprep.subr.bf16.mxu0 0
        %1244 = vmatpush1.bf16.msra.mxu0 %v1108
        %1245 = vmatprep.subr.bf16.mxu0 0
        %1246 = vmatpush1.bf16.msra.mxu0 %v1109
        %1247 = vmatprep.subr.bf16.mxu0 0
        %1248 = vmatpush1.bf16.msra.mxu0 %v1110
        %1249 = vmatprep.subr.bf16.mxu0 0
        %1250 = vmatpush1.bf16.msra.mxu0 %v1111
        %1251 = vmatprep.subr.bf16.mxu0 0
        %1252 = vmatpush1.bf16.msra.mxu0 %v1112
        %1253 = vmatprep.subr.bf16.mxu0 0
        %1254 = vmatpush1.bf16.msra.mxu0 %v1113
        %1255 = vmatprep.subr.bf16.mxu0 0
        %1256 = vmatpush1.bf16.msra.mxu0 %v1114
        %1257 = vmatprep.subr.bf16.mxu0 0
        %1258 = vmatpush1.bf16.msra.mxu0 %v1115
        %1259 = vmatprep.subr.bf16.mxu0 0
        %1260 = vmatpush1.bf16.msra.mxu0 %v1116
        %1261 = vmatprep.mubr.bf16.mxu0 %v734
        %1262 = vmatmul.mubr.bf16.gmra.mrb[0].mxu0 %v733
        %v1263 = vpop.f32.mrb[0].mxu0
        %v1264 = vadd.f32 %v575, %v1263
        %v1265 = vpop.f32.mrb[0].mxu0
        %v1266 = vpop.f32.mrb[0].mxu0
        %v1267 = vadd.f32 %v575, %v1266
        %v1268 = vpop.f32.mrb[0].mxu0
        %1269 = vmatprep.mubr.bf16.mxu0 %v742
        %1270 = vmatmul.mubr.bf16.gmra.mrb[0].mxu0 %v741
        %v1271 = vpop.f32.mrb[0].mxu0
        %v1272 = vadd.f32 %v575, %v1271
        %v1273 = vpop.f32.mrb[0].mxu0
        %v1274 = vpop.f32.mrb[0].mxu0
        %v1275 = vadd.f32 %v575, %v1274
        %v1276 = vpop.f32.mrb[0].mxu0
        %1277 = vmatprep.mubr.bf16.mxu0 %v750
        %1278 = vmatmul.mubr.bf16.gmra.mrb[0].mxu0 %v749
        %v1279 = vpop.f32.mrb[0].mxu0
        %v1280 = vadd.f32 %v575, %v1279
        %v1281 = vpop.f32.mrb[0].mxu0
        %v1282 = vpop.f32.mrb[0].mxu0
        %v1283 = vadd.f32 %v575, %v1282
        %v1284 = vpop.f32.mrb[0].mxu0
        %1285 = vmatprep.mubr.bf16.mxu0 %v758
        %1286 = vmatmul.mubr.bf16.gmra.mrb[0].mxu0 %v757
        %v1287 = vpop.f32.mrb[0].mxu0
        %v1288 = vadd.f32 %v575, %v1287
        %v1289 = vpop.f32.mrb[0].mxu0
        %v1290 = vpop.f32.mrb[0].mxu0
        %v1291 = vadd.f32 %v575, %v1290
        %v1292 = vpop.f32.mrb[0].mxu0
        %1293 = vmatprep.mubr.bf16.mxu0 %v766
        %1294 = vmatmul.mubr.bf16.gmra.mrb[0].mxu0 %v765
        %v1295 = vpop.f32.mrb[0].mxu0
        %v1296 = vadd.f32 %v575, %v1295
        %v1297 = vpop.f32.mrb[0].mxu0
        %v1298 = vpop.f32.mrb[0].mxu0
        %v1299 = vadd.f32 %v575, %v1298
        %v1300 = vpop.f32.mrb[0].mxu0
        %1301 = vmatprep.mubr.bf16.mxu0 %v774
        %1302 = vmatmul.mubr.bf16.gmra.mrb[0].mxu0 %v773
        %v1303 = vpop.f32.mrb[0].mxu0
        %v1304 = vadd.f32 %v575, %v1303
        %v1305 = vpop.f32.mrb[0].mxu0
        %v1306 = vpop.f32.mrb[0].mxu0
        %v1307 = vadd.f32 %v575, %v1306
        %v1308 = vpop.f32.mrb[0].mxu0
        %1309 = vmatprep.mubr.bf16.mxu0 %v782
        %1310 = vmatmul.mubr.bf16.gmra.mrb[0].mxu0 %v781
        %v1311 = vpop.f32.mrb[0].mxu0
        %v1312 = vadd.f32 %v575, %v1311
        %v1313 = vpop.f32.mrb[0].mxu0
        %v1314 = vpop.f32.mrb[0].mxu0
        %v1315 = vpop.f32.mrb[0].mxu0
        %1316 = vdwg.mxu0
        %1317 = vmatprep.subr.bf16.mxu0 0
        %1318 = vmatpush1.bf16.msra.mxu0 %v1117
        %1319 = vmatprep.subr.bf16.mxu0 0
        %1320 = vmatpush1.bf16.msra.mxu0 %v1118
        %1321 = vmatprep.subr.bf16.mxu0 0
        %1322 = vmatpush1.bf16.msra.mxu0 %v1119
        %1323 = vmatprep.subr.bf16.mxu0 0
        %1324 = vmatpush1.bf16.msra.mxu0 %v1120
        %1325 = vmatprep.subr.bf16.mxu0 0
        %1326 = vmatpush1.bf16.msra.mxu0 %v1121
        %1327 = vmatprep.subr.bf16.mxu0 0
        %1328 = vmatpush1.bf16.msra.mxu0 %v1122
        %1329 = vmatprep.subr.bf16.mxu0 0
        %1330 = vmatpush1.bf16.msra.mxu0 %v1123
        %1331 = vmatprep.subr.bf16.mxu0 0
        %1332 = vmatpush1.bf16.msra.mxu0 %v1124
        %1333 = vmatprep.subr.bf16.mxu0 0
        %1334 = vmatpush1.bf16.msra.mxu0 %v1125
        %1335 = vmatprep.subr.bf16.mxu0 0
        %1336 = vmatpush1.bf16.msra.mxu0 %v1126
        %1337 = vmatprep.subr.bf16.mxu0 0
        %1338 = vmatpush1.bf16.msra.mxu0 %v1127
        %1339 = vmatprep.subr.bf16.mxu0 0
        %1340 = vmatpush1.bf16.msra.mxu0 %v1128
        %1341 = vmatprep.subr.bf16.mxu0 0
        %1342 = vmatpush1.bf16.msra.mxu0 %v1129
        %1343 = vmatprep.subr.bf16.mxu0 0
        %1344 = vmatpush1.bf16.msra.mxu0 %v1130
        %1345 = vmatprep.subr.bf16.mxu0 0
        %1346 = vmatpush1.bf16.msra.mxu0 %v1131
        %1347 = vmatprep.subr.bf16.mxu0 0
        %1348 = vmatpush1.bf16.msra.mxu0 %v1132
        %1349 = vmatprep.mubr.bf16.mxu0 %v736
        %1350 = vmatmul.mubr.bf16.gmra.mrb[0].mxu0 %v735
        %v1351 = vpop.f32.mrb[0].mxu0
        %v1352 = vadd.f32 %v1264, %v1351
        %v1353 = vpop.f32.mrb[0].mxu0
        %v1354 = vpop.f32.mrb[0].mxu0
        %v1355 = vadd.f32 %v1267, %v1354
        %v1356 = vpop.f32.mrb[0].mxu0
        %1357 = vmatprep.mubr.bf16.mxu0 %v744
        %1358 = vmatmul.mubr.bf16.gmra.mrb[0].mxu0 %v743
        %v1359 = vpop.f32.mrb[0].mxu0
        %v1360 = vadd.f32 %v1272, %v1359
        %v1361 = vpop.f32.mrb[0].mxu0
        %v1362 = vpop.f32.mrb[0].mxu0
        %v1363 = vadd.f32 %v1275, %v1362
        %v1364 = vpop.f32.mrb[0].mxu0
        %1365 = vmatprep.mubr.bf16.mxu0 %v752
        %1366 = vmatmul.mubr.bf16.gmra.mrb[0].mxu0 %v751
        %v1367 = vpop.f32.mrb[0].mxu0
        %v1368 = vadd.f32 %v1280, %v1367
        %v1369 = vpop.f32.mrb[0].mxu0
        %v1370 = vpop.f32.mrb[0].mxu0
        %v1371 = vadd.f32 %v1283, %v1370
        %v1372 = vpop.f32.mrb[0].mxu0
        %1373 = vmatprep.mubr.bf16.mxu0 %v760
        %1374 = vmatmul.mubr.bf16.gmra.mrb[0].mxu0 %v759
        %v1375 = vpop.f32.mrb[0].mxu0
        %v1376 = vadd.f32 %v1288, %v1375
        %v1377 = vpop.f32.mrb[0].mxu0
        %v1378 = vpop.f32.mrb[0].mxu0
        %v1379 = vadd.f32 %v1291, %v1378
        %v1380 = vpop.f32.mrb[0].mxu0
        %1381 = vmatprep.mubr.bf16.mxu0 %v768
        %1382 = vmatmul.mubr.bf16.gmra.mrb[0].mxu0 %v767
        %v1383 = vpop.f32.mrb[0].mxu0
        %v1384 = vadd.f32 %v1296, %v1383
        %v1385 = vpop.f32.mrb[0].mxu0
        %v1386 = vpop.f32.mrb[0].mxu0
        %v1387 = vadd.f32 %v1299, %v1386
        %v1388 = vpop.f32.mrb[0].mxu0
        %1389 = vmatprep.mubr.bf16.mxu0 %v776
        %1390 = vmatmul.mubr.bf16.gmra.mrb[0].mxu0 %v775
        %v1391 = vpop.f32.mrb[0].mxu0
        %v1392 = vadd.f32 %v1304, %v1391
        %v1393 = vpop.f32.mrb[0].mxu0
        %v1394 = vpop.f32.mrb[0].mxu0
        %v1395 = vadd.f32 %v1307, %v1394
        %v1396 = vpop.f32.mrb[0].mxu0
        %1397 = vmatprep.mubr.bf16.mxu0 %v784
        %1398 = vmatmul.mubr.bf16.gmra.mrb[0].mxu0 %v783
        %v1399 = vpop.f32.mrb[0].mxu0
        %v1400 = vadd.f32 %v1312, %v1399
        %v1401 = vpop.f32.mrb[0].mxu0
        %v1402 = vpop.f32.mrb[0].mxu0
        %v1403 = vpop.f32.mrb[0].mxu0
        %1404 = vdwg.mxu0
        %1405 = vmatprep.subr.bf16.mxu0 0
        %1406 = vmatpush1.bf16.msra.mxu0 %v1133
        %1407 = vmatprep.subr.bf16.mxu0 0
        %1408 = vmatpush1.bf16.msra.mxu0 %v1134
        %1409 = vmatprep.subr.bf16.mxu0 0
        %1410 = vmatpush1.bf16.msra.mxu0 %v1135
        %1411 = vmatprep.subr.bf16.mxu0 0
        %1412 = vmatpush1.bf16.msra.mxu0 %v1136
        %1413 = vmatprep.subr.bf16.mxu0 0
        %1414 = vmatpush1.bf16.msra.mxu0 %v1137
        %1415 = vmatprep.subr.bf16.mxu0 0
        %1416 = vmatpush1.bf16.msra.mxu0 %v1138
        %1417 = vmatprep.subr.bf16.mxu0 0
        %1418 = vmatpush1.bf16.msra.mxu0 %v1139
        %1419 = vmatprep.subr.bf16.mxu0 0
        %1420 = vmatpush1.bf16.msra.mxu0 %v1140
        %1421 = vmatprep.subr.bf16.mxu0 0
        %1422 = vmatpush1.bf16.msra.mxu0 %v1141
        %1423 = vmatprep.subr.bf16.mxu0 0
        %1424 = vmatpush1.bf16.msra.mxu0 %v1142
        %1425 = vmatprep.subr.bf16.mxu0 0
        %1426 = vmatpush1.bf16.msra.mxu0 %v1143
        %1427 = vmatprep.subr.bf16.mxu0 0
        %1428 = vmatpush1.bf16.msra.mxu0 %v1144
        %1429 = vmatprep.subr.bf16.mxu0 0
        %1430 = vmatpush1.bf16.msra.mxu0 %v1145
        %1431 = vmatprep.subr.bf16.mxu0 0
        %1432 = vmatpush1.bf16.msra.mxu0 %v1146
        %1433 = vmatprep.subr.bf16.mxu0 0
        %1434 = vmatpush1.bf16.msra.mxu0 %v1147
        %1435 = vmatprep.subr.bf16.mxu0 0
        %1436 = vmatpush1.bf16.msra.mxu0 %v1148
        %1437 = vmatprep.mubr.bf16.mxu0 %v738
        %1438 = vmatmul.mubr.bf16.gmra.mrb[0].mxu0 %v737
        %v1439 = vpop.f32.mrb[0].mxu0
        %v1440 = vadd.f32 %v1352, %v1439
        %v1441 = vpop.f32.mrb[0].mxu0
        %v1442 = vpop.f32.mrb[0].mxu0
        %v1443 = vadd.f32 %v1355, %v1442
        %v1444 = vpop.f32.mrb[0].mxu0
        %1445 = vmatprep.mubr.bf16.mxu0 %v746
        %1446 = vmatmul.mubr.bf16.gmra.mrb[0].mxu0 %v745
        %v1447 = vpop.f32.mrb[0].mxu0
        %v1448 = vadd.f32 %v1360, %v1447
        %v1449 = vpop.f32.mrb[0].mxu0
        %v1450 = vpop.f32.mrb[0].mxu0
        %v1451 = vadd.f32 %v1363, %v1450
        %v1452 = vpop.f32.mrb[0].mxu0
        %1453 = vmatprep.mubr.bf16.mxu0 %v754
        %1454 = vmatmul.mubr.bf16.gmra.mrb[0].mxu0 %v753
        %v1455 = vpop.f32.mrb[0].mxu0
        %v1456 = vadd.f32 %v1368, %v1455
        %v1457 = vpop.f32.mrb[0].mxu0
        %v1458 = vpop.f32.mrb[0].mxu0
        %v1459 = vadd.f32 %v1371, %v1458
        %v1460 = vpop.f32.mrb[0].mxu0
        %1461 = vmatprep.mubr.bf16.mxu0 %v762
        %1462 = vmatmul.mubr.bf16.gmra.mrb[0].mxu0 %v761
        %v1463 = vpop.f32.mrb[0].mxu0
        %v1464 = vadd.f32 %v1376, %v1463
        %v1465 = vpop.f32.mrb[0].mxu0
        %v1466 = vpop.f32.mrb[0].mxu0
        %v1467 = vadd.f32 %v1379, %v1466
        %v1468 = vpop.f32.mrb[0].mxu0
        %1469 = vmatprep.mubr.bf16.mxu0 %v770
        %1470 = vmatmul.mubr.bf16.gmra.mrb[0].mxu0 %v769
        %v1471 = vpop.f32.mrb[0].mxu0
        %v1472 = vadd.f32 %v1384, %v1471
        %v1473 = vpop.f32.mrb[0].mxu0
        %v1474 = vpop.f32.mrb[0].mxu0
        %v1475 = vadd.f32 %v1387, %v1474
        %v1476 = vpop.f32.mrb[0].mxu0
        %1477 = vmatprep.mubr.bf16.mxu0 %v778
        %1478 = vmatmul.mubr.bf16.gmra.mrb[0].mxu0 %v777
        %v1479 = vpop.f32.mrb[0].mxu0
        %v1480 = vadd.f32 %v1392, %v1479
        %v1481 = vpop.f32.mrb[0].mxu0
        %v1482 = vpop.f32.mrb[0].mxu0
        %v1483 = vadd.f32 %v1395, %v1482
        %v1484 = vpop.f32.mrb[0].mxu0
        %1485 = vmatprep.mubr.bf16.mxu0 %v786
        %1486 = vmatmul.mubr.bf16.gmra.mrb[0].mxu0 %v785
        %v1487 = vpop.f32.mrb[0].mxu0
        %v1488 = vadd.f32 %v1400, %v1487
        %v1489 = vpop.f32.mrb[0].mxu0
        %v1490 = vpop.f32.mrb[0].mxu0
        %v1491 = vpop.f32.mrb[0].mxu0
        %1492 = vdwg.mxu0
        %1493 = vmatprep.subr.bf16.mxu0 0
        %1494 = vmatpush1.bf16.msra.mxu0 %v1149
        %1495 = vmatprep.subr.bf16.mxu0 0
        %1496 = vmatpush1.bf16.msra.mxu0 %v1150
        %1497 = vmatprep.subr.bf16.mxu0 0
        %1498 = vmatpush1.bf16.msra.mxu0 %v1151
        %1499 = vmatprep.subr.bf16.mxu0 0
        %1500 = vmatpush1.bf16.msra.mxu0 %v1152
        %1501 = vmatprep.subr.bf16.mxu0 0
        %1502 = vmatpush1.bf16.msra.mxu0 %v1153
        %1503 = vmatprep.subr.bf16.mxu0 0
        %1504 = vmatpush1.bf16.msra.mxu0 %v1154
        %1505 = vmatprep.subr.bf16.mxu0 0
        %1506 = vmatpush1.bf16.msra.mxu0 %v1155
        %1507 = vmatprep.subr.bf16.mxu0 0
        %1508 = vmatpush1.bf16.msra.mxu0 %v1156
        %1509 = vmatprep.subr.bf16.mxu0 0
        %1510 = vmatpush1.bf16.msra.mxu0 %v1157
        %1511 = vmatprep.subr.bf16.mxu0 0
        %1512 = vmatpush1.bf16.msra.mxu0 %v1158
        %1513 = vmatprep.subr.bf16.mxu0 0
        %1514 = vmatpush1.bf16.msra.mxu0 %v1159
        %1515 = vmatprep.subr.bf16.mxu0 0
        %1516 = vmatpush1.bf16.msra.mxu0 %v1160
        %1517 = vmatprep.subr.bf16.mxu0 0
        %1518 = vmatpush1.bf16.msra.mxu0 %v1161
        %1519 = vmatprep.subr.bf16.mxu0 0
        %1520 = vmatpush1.bf16.msra.mxu0 %v1162
        %1521 = vmatprep.subr.bf16.mxu0 0
        %1522 = vmatpush1.bf16.msra.mxu0 %v1163
        %1523 = vmatprep.subr.bf16.mxu0 0
        %1524 = vmatpush1.bf16.msra.mxu0 %v1164
        %1525 = vmatprep.mubr.bf16.mxu0 %v740
        %1526 = vmatmul.mubr.bf16.gmra.mrb[0].mxu0 %v739
        %v1527 = vpop.f32.mrb[0].mxu0
        %v1528 = vadd.f32 %v1440, %v1527
        %v1529 = vpop.f32.mrb[0].mxu0
        %v1530 = vpop.f32.mrb[0].mxu0
        %v1531 = vadd.f32 %v1443, %v1530
        %v1532 = vpop.f32.mrb[0].mxu0
        %1533 = vmatprep.mubr.bf16.mxu0 %v748
        %1534 = vmatmul.mubr.bf16.gmra.mrb[0].mxu0 %v747
        %v1535 = vpop.f32.mrb[0].mxu0
        %v1536 = vadd.f32 %v1448, %v1535
        %v1537 = vpop.f32.mrb[0].mxu0
        %v1538 = vpop.f32.mrb[0].mxu0
        %v1539 = vadd.f32 %v1451, %v1538
        %v1540 = vpop.f32.mrb[0].mxu0
        %1541 = vmatprep.mubr.bf16.mxu0 %v756
        %1542 = vmatmul.mubr.bf16.gmra.mrb[0].mxu0 %v755
        %v1543 = vpop.f32.mrb[0].mxu0
        %v1544 = vadd.f32 %v1456, %v1543
        %v1545 = vpop.f32.mrb[0].mxu0
        %v1546 = vpop.f32.mrb[0].mxu0
        %v1547 = vadd.f32 %v1459, %v1546
        %v1548 = vpop.f32.mrb[0].mxu0
        %1549 = vmatprep.mubr.bf16.mxu0 %v764
        %1550 = vmatmul.mubr.bf16.gmra.mrb[0].mxu0 %v763
        %v1551 = vpop.f32.mrb[0].mxu0
        %v1552 = vadd.f32 %v1464, %v1551
        %v1553 = vpop.f32.mrb[0].mxu0
        %v1554 = vpop.f32.mrb[0].mxu0
        %v1555 = vadd.f32 %v1467, %v1554
        %v1556 = vpop.f32.mrb[0].mxu0
        %1557 = vmatprep.mubr.bf16.mxu0 %v772
        %1558 = vmatmul.mubr.bf16.gmra.mrb[0].mxu0 %v771
        %v1559 = vpop.f32.mrb[0].mxu0
        %v1560 = vadd.f32 %v1472, %v1559
        %v1561 = vpop.f32.mrb[0].mxu0
        %v1562 = vpop.f32.mrb[0].mxu0
        %v1563 = vadd.f32 %v1475, %v1562
        %v1564 = vpop.f32.mrb[0].mxu0
        %1565 = vmatprep.mubr.bf16.mxu0 %v780
        %1566 = vmatmul.mubr.bf16.gmra.mrb[0].mxu0 %v779
        %v1567 = vpop.f32.mrb[0].mxu0
        %v1568 = vadd.f32 %v1480, %v1567
        %v1569 = vpop.f32.mrb[0].mxu0
        %v1570 = vpop.f32.mrb[0].mxu0
        %v1571 = vadd.f32 %v1483, %v1570
        %v1572 = vpop.f32.mrb[0].mxu0
        %1573 = vmatprep.mubr.bf16.mxu0 %v788
        %1574 = vmatmul.mubr.bf16.gmra.mrb[0].mxu0 %v787
        %v1575 = vpop.f32.mrb[0].mxu0
        %v1576 = vadd.f32 %v1488, %v1575
        %v1577 = vpop.f32.mrb[0].mxu0
        %v1578 = vpop.f32.mrb[0].mxu0
        %v1579 = vpop.f32.mrb[0].mxu0
        %1580 = vdwg.mxu0
        %v1581 = vmax.f32 %v1528, 0.0
        %v1582 = vmax.f32 %v1531, 0.0
        %v1583 = vmax.f32 %v1536, 0.0
        %v1584 = vmax.f32 %v1539, 0.0
        %v1585 = vmax.f32 %v1544, 0.0
        %v1586 = vmax.f32 %v1547, 0.0
        %v1587 = vmax.f32 %v1552, 0.0
        %v1588 = vmax.f32 %v1555, 0.0
        %v1589 = vmax.f32 %v1560, 0.0
        %v1590 = vmax.f32 %v1563, 0.0
        %v1591 = vmax.f32 %v1568, 0.0
        %v1592 = vmax.f32 %v1571, 0.0
        %v1593 = vmax.f32 %v1576, 0.0
        %v1594 = vpack.c.bf16 %v1582, %v1581
        %v1595 = vpack.c.bf16 %v1584, %v1583
        %v1596 = vpack.c.bf16 %v1586, %v1585
        %v1597 = vpack.c.bf16 %v1588, %v1587
        %v1598 = vpack.c.bf16 %v1590, %v1589
        %v1599 = vpack.c.bf16 %v1592, %v1591
        %v1600 = vpack.c.bf16 %v1593, %v1593
        %v1608 = vunpack.c.l.b16 %v1594
        %v1609 = vunpack.c.h.b16 %v1594
        %v1610 = vunpack.c.l.b16 %v1595
        %v1611 = vunpack.c.h.b16 %v1595
        %v1612 = vunpack.c.l.b16 %v1596
        %v1613 = vunpack.c.h.b16 %v1596
        %v1614 = vunpack.c.l.b16 %v1597
        %v1615 = vunpack.c.h.b16 %v1597
        %v1616 = vunpack.c.l.b16 %v1598
        %v1617 = vunpack.c.h.b16 %v1598
        %v1618 = vunpack.c.l.b16 %v1599
        %v1619 = vunpack.c.h.b16 %v1599
        %v1620 = vunpack.c.l.b16 %v1600
        %v1621 = vpack.c.b16 %v1608, %v1608
        %v1622 = vpack.c.b16 %v1609, %v1609
        %v1623 = vpack.c.b16 %v1610, %v1610
        %v1624 = vpack.c.b16 %v1611, %v1611
        %v1625 = vpack.c.b16 %v1612, %v1612
        %v1626 = vpack.c.b16 %v1613, %v1613
        %v1627 = vpack.c.b16 %v1614, %v1614
        %v1628 = vpack.c.b16 %v1615, %v1615
        %v1629 = vpack.c.b16 %v1616, %v1616
        %v1630 = vpack.c.b16 %v1617, %v1617
        %v1631 = vpack.c.b16 %v1618, %v1618
        %v1632 = vpack.c.b16 %v1619, %v1619
        %v1633 = vpack.c.b16 %v1620, %v1620
        %1647 = vst [vmem:[#allocation2] sm:$0xf] %v1621
        %1648 = vst [vmem:[#allocation2 + $0x4] sm:$0xf] %v1622
        %1649 = vst [vmem:[#allocation2 + $0x8] sm:$0xf] %v1623
        %1650 = vst [vmem:[#allocation2 + $0xc] sm:$0xf] %v1624
        %1651 = vst [vmem:[#allocation2 + $0x10] sm:$0xf] %v1625
        %1652 = vst [vmem:[#allocation2 + $0x14] sm:$0xf] %v1626
        %1653 = vst [vmem:[#allocation2 + $0x18] sm:$0xf] %v1627
        %1654 = vst [vmem:[#allocation2 + $0x1c] sm:$0xf] %v1628
        %1655 = vst [vmem:[#allocation2 + $0x20] sm:$0xf] %v1629
        %1656 = vst [vmem:[#allocation2 + $0x24] sm:$0xf] %v1630
        %1657 = vst [vmem:[#allocation2 + $0x28] sm:$0xf] %v1631
        %1658 = vst [vmem:[#allocation2 + $0x2c] sm:$0xf] %v1632
        %1659 = vst [vmem:[#allocation2 + $0x30] sm:$0xf] %v1633
        %v1660 = vld [vmem:[#allocation2] sm:$0xf]
        %v1661 = vld [vmem:[#allocation2 + $0x4] sm:$0xf]
        %v1662 = vld [vmem:[#allocation2 + $0x8] sm:$0xf]
        %v1663 = vld [vmem:[#allocation2 + $0xc] sm:$0xf]
        %v1664 = vld [vmem:[#allocation2 + $0x10] sm:$0xf]
        %v1665 = vld [vmem:[#allocation2 + $0x14] sm:$0xf]
        %v1666 = vld [vmem:[#allocation2 + $0x18] sm:$0xf]
        %v1667 = vld [vmem:[#allocation2 + $0x1c] sm:$0xf]
        %v1668 = vld [vmem:[#allocation2 + $0x20] sm:$0xf]
        %v1669 = vld [vmem:[#allocation2 + $0x24] sm:$0xf]
        %v1670 = vld [vmem:[#allocation2 + $0x28] sm:$0xf]
        %v1671 = vld [vmem:[#allocation2 + $0x2c] sm:$0x1]
        %v1672 = vld [vmem:[%s3] sm:$0xf]
        %v1673 = vld [vmem:[%s3 + $0x4] sm:$0xf]
        %v1674 = vld [vmem:[%s3 + $0x8] sm:$0xf]
        %v1675 = vld [vmem:[%s3 + $0xc] sm:$0xf]
        %v1676 = vld [vmem:[%s3 + $0x10] sm:$0xf]
        %v1677 = vld [vmem:[%s3 + $0x14] sm:$0xf]
        %v1678 = vld [vmem:[%s3 + $0x18] sm:$0xf]
        %v1679 = vld [vmem:[%s3 + $0x1c] sm:$0xf]
        %v1680 = vld [vmem:[%s3 + $0x20] sm:$0xf]
        %v1681 = vld [vmem:[%s3 + $0x24] sm:$0xf]
        %v1682 = vld [vmem:[%s3 + $0x28] sm:$0xf]
        %v1683 = vld [vmem:[%s3 + $0x2c] sm:$0xf]
        %v1684 = vld [vmem:[%s3 + $0x30] sm:$0xf]
        %v1685 = vld [vmem:[%s3 + $0x34] sm:$0xf]
        %v1686 = vld [vmem:[%s3 + $0x38] sm:$0xf]
        %v1687 = vld [vmem:[%s3 + $0x3c] sm:$0xf]
        %v1688 = vld [vmem:[#allocation2 + $0x2c] sm:$0x3]
        %v1689 = vld [vmem:[%s3 + $0x40] sm:$0xf]
        %v1690 = vld [vmem:[%s3 + $0x44] sm:$0xf]
        %v1691 = vld [vmem:[%s3 + $0x48] sm:$0xf]
        %v1692 = vld [vmem:[%s3 + $0x4c] sm:$0xf]
        %v1693 = vld [vmem:[%s3 + $0x50] sm:$0xf]
        %v1694 = vld [vmem:[%s3 + $0x54] sm:$0xf]
        %v1695 = vld [vmem:[%s3 + $0x58] sm:$0xf]
        %v1696 = vld [vmem:[%s3 + $0x5c] sm:$0xf]
        %v1697 = vld [vmem:[%s3 + $0x60] sm:$0xf]
        %v1698 = vld [vmem:[%s3 + $0x64] sm:$0xf]
        %v1699 = vld [vmem:[%s3 + $0x68] sm:$0xf]
        %v1700 = vld [vmem:[%s3 + $0x6c] sm:$0xf]
        %v1701 = vld [vmem:[%s3 + $0x70] sm:$0xf]
        %v1702 = vld [vmem:[%s3 + $0x74] sm:$0xf]
        %v1703 = vld [vmem:[%s3 + $0x78] sm:$0xf]
        %v1704 = vld [vmem:[%s3 + $0x7c] sm:$0xf]
        %v1717 = vunpack.c.l.b16 %v1660
        %v1718 = vunpack.c.l.b16 %v1661
        %v1719 = vunpack.c.l.b16 %v1662
        %v1720 = vunpack.c.l.b16 %v1663
        %v1721 = vunpack.c.l.b16 %v1664
        %v1722 = vunpack.c.l.b16 %v1665
        %v1723 = vunpack.c.l.b16 %v1666
        %v1724 = vunpack.c.l.b16 %v1667
        %v1725 = vunpack.c.l.b16 %v1668
        %v1726 = vunpack.c.l.b16 %v1669
        %v1727 = vunpack.c.l.b16 %v1670
        %v1728 = vunpack.c.l.b16 %v1688
        %v1729 = vpack.c.b16 %v1718, %v1717
        %v1730 = vpack.c.b16 %v1720, %v1719
        %v1731 = vpack.c.b16 %v1722, %v1721
        %v1732 = vpack.c.b16 %v1724, %v1723
        %v1733 = vpack.c.b16 %v1726, %v1725
        %v1734 = vpack.c.b16 %v1728, %v1727
        %vm1735 = vsmask.f32 7424
        %v1737 = vshrl.u32 %v1729, 16
        %v1739 = vshll.u32 %v1729, 16
        %v1741 = vrot.slane %v1739, 1
        %v1742 = vor.u32 %v1737, %v1741
        %v1744 = vshll.u32 %v1730, 16
        %v1746 = vrot.slane %v1744, 1
        %v1747 = vsel %vm1735, %v1742, %v1746
        %v1748 = vshrl.u32 %v1730, 16
        %v1750 = vor.u32 %v1748, %v1746
        %v1752 = vshll.u32 %v1731, 16
        %v1754 = vrot.slane %v1752, 1
        %v1755 = vsel %vm1735, %v1750, %v1754
        %v1756 = vshrl.u32 %v1731, 16
        %v1758 = vor.u32 %v1756, %v1754
        %v1760 = vshll.u32 %v1732, 16
        %v1762 = vrot.slane %v1760, 1
        %v1763 = vsel %vm1735, %v1758, %v1762
        %v1764 = vshrl.u32 %v1732, 16
        %v1766 = vor.u32 %v1764, %v1762
        %v1768 = vshll.u32 %v1733, 16
        %v1770 = vrot.slane %v1768, 1
        %v1771 = vsel %vm1735, %v1766, %v1770
        %v1772 = vshrl.u32 %v1733, 16
        %v1774 = vor.u32 %v1772, %v1770
        %v1776 = vshll.u32 %v1734, 16
        %v1778 = vrot.slane %v1776, 1
        %v1779 = vsel %vm1735, %v1774, %v1778
        %v1780 = vshrl.u32 %v1734, 16
        %v1782 = vor.u32 %v1780, %v1778
        %v1805 = vunpack.c.l.b16 %v1689
        %v1806 = vunpack.c.l.b16 %v1690
        %v1807 = vunpack.c.l.b16 %v1691
        %v1808 = vunpack.c.l.b16 %v1692
        %v1809 = vunpack.c.l.b16 %v1693
        %v1810 = vunpack.c.l.b16 %v1694
        %v1811 = vunpack.c.l.b16 %v1695
        %v1812 = vunpack.c.l.b16 %v1696
        %v1813 = vunpack.c.l.b16 %v1697
        %v1814 = vunpack.c.l.b16 %v1698
        %v1815 = vunpack.c.l.b16 %v1699
        %v1816 = vunpack.c.l.b16 %v1700
        %v1817 = vunpack.c.l.b16 %v1701
        %v1818 = vunpack.c.l.b16 %v1702
        %v1819 = vunpack.c.l.b16 %v1703
        %v1820 = vunpack.c.l.b16 %v1704
        %v1821 = vpack.c.b16 %v1806, %v1805
        %v1822 = vpack.c.b16 %v1808, %v1807
        %v1823 = vpack.c.b16 %v1810, %v1809
        %v1824 = vpack.c.b16 %v1812, %v1811
        %v1825 = vpack.c.b16 %v1814, %v1813
        %v1826 = vpack.c.b16 %v1816, %v1815
        %v1827 = vpack.c.b16 %v1818, %v1817
        %v1828 = vpack.c.b16 %v1820, %v1819
        %1837 = vmatprep.subr.bf16.mxu0 0
        %1838 = vmatpush1.bf16.msra.mxu0 %v1821
        %1839 = vmatprep.subr.bf16.mxu0 0
        %1840 = vmatpush1.bf16.msra.mxu0 %v1822
        %1841 = vmatprep.subr.bf16.mxu0 0
        %1842 = vmatpush1.bf16.msra.mxu0 %v1823
        %1843 = vmatprep.subr.bf16.mxu0 0
        %1844 = vmatpush1.bf16.msra.mxu0 %v1824
        %1845 = vmatprep.subr.bf16.mxu0 0
        %1846 = vmatpush1.bf16.msra.mxu0 %v1825
        %1847 = vmatprep.subr.bf16.mxu0 0
        %1848 = vmatpush1.bf16.msra.mxu0 %v1826
        %1849 = vmatprep.subr.bf16.mxu0 0
        %1850 = vmatpush1.bf16.msra.mxu0 %v1827
        %1851 = vmatprep.subr.bf16.mxu0 0
        %1852 = vmatpush1.bf16.msra.mxu0 %v1828
        %1853 = vmatprep.subr.bf16.mxu0 0
        %1854 = vmatpush1.bf16.msra.mxu0 0
        %1855 = vmatprep.subr.bf16.mxu0 0
        %1856 = vmatpush1.bf16.msra.mxu0 0
        %1857 = vmatprep.subr.bf16.mxu0 0
        %1858 = vmatpush1.bf16.msra.mxu0 0
        %1859 = vmatprep.subr.bf16.mxu0 0
        %1860 = vmatpush1.bf16.msra.mxu0 0
        %1861 = vmatprep.subr.bf16.mxu0 0
        %1862 = vmatpush1.bf16.msra.mxu0 0
        %1863 = vmatprep.subr.bf16.mxu0 0
        %1864 = vmatpush1.bf16.msra.mxu0 0
        %1865 = vmatprep.subr.bf16.mxu0 0
        %1866 = vmatpush1.bf16.msra.mxu0 0
        %1867 = vmatprep.subr.bf16.mxu0 0
        %1868 = vmatpush1.bf16.msra.mxu0 0
        %1869 = vmatprep.mubr.bf16.mxu0 0
        %1870 = vmatmul.mubr.bf16.gmra.mrb[0].mxu0 %v1747
        %v1871 = vpop.f32.mrb[0].mxu0
        %v1872 = vadd.f32 0.0, %v1871
        %v1873 = vpop.f32.mrb[0].mxu0
        %v1874 = vpop.f32.mrb[0].mxu0
        %v1875 = vadd.f32 0.0, %v1874
        %v1876 = vpop.f32.mrb[0].mxu0
        %1877 = vmatprep.mubr.bf16.mxu0 0
        %1878 = vmatmul.mubr.bf16.gmra.mrb[0].mxu0 %v1755
        %v1879 = vpop.f32.mrb[0].mxu0
        %v1880 = vadd.f32 0.0, %v1879
        %v1881 = vpop.f32.mrb[0].mxu0
        %v1882 = vpop.f32.mrb[0].mxu0
        %v1883 = vadd.f32 0.0, %v1882
        %v1884 = vpop.f32.mrb[0].mxu0
        %1885 = vmatprep.mubr.bf16.mxu0 0
        %1886 = vmatmul.mubr.bf16.gmra.mrb[0].mxu0 %v1763
        %v1887 = vpop.f32.mrb[0].mxu0
        %v1888 = vadd.f32 0.0, %v1887
        %v1889 = vpop.f32.mrb[0].mxu0
        %v1890 = vpop.f32.mrb[0].mxu0
        %v1891 = vadd.f32 0.0, %v1890
        %v1892 = vpop.f32.mrb[0].mxu0
        %1893 = vmatprep.mubr.bf16.mxu0 0
        %1894 = vmatmul.mubr.bf16.gmra.mrb[0].mxu0 %v1771
        %v1895 = vpop.f32.mrb[0].mxu0
        %v1896 = vadd.f32 0.0, %v1895
        %v1897 = vpop.f32.mrb[0].mxu0
        %v1898 = vpop.f32.mrb[0].mxu0
        %v1899 = vadd.f32 0.0, %v1898
        %v1900 = vpop.f32.mrb[0].mxu0
        %1901 = vmatprep.mubr.bf16.mxu0 0
        %1902 = vmatmul.mubr.bf16.gmra.mrb[0].mxu0 %v1779
        %v1903 = vpop.f32.mrb[0].mxu0
        %v1904 = vadd.f32 0.0, %v1903
        %v1905 = vpop.f32.mrb[0].mxu0
        %v1906 = vpop.f32.mrb[0].mxu0
        %v1907 = vadd.f32 0.0, %v1906
        %v1908 = vpop.f32.mrb[0].mxu0
        %1909 = vmatprep.mubr.bf16.mxu0 0
        %1910 = vmatmul.mubr.bf16.gmra.mrb[0].mxu0 %v1782
        %v1911 = vpop.f32.mrb[0].mxu0
        %v1912 = vadd.f32 0.0, %v1911
        %v1913 = vpop.f32.mrb[0].mxu0
        %v1914 = vpop.f32.mrb[0].mxu0
        %v1915 = vadd.f32 0.0, %v1914
        %v1916 = vpop.f32.mrb[0].mxu0
        %1917 = vdwg.mxu0
        %v1918 = vld [vmem:[#allocation2 + $0x4] sm:$0xe]
        %v1919 = vld [vmem:[#allocation2 + $0x8] sm:$0xf]
        %v1920 = vld [vmem:[#allocation2 + $0xc] sm:$0xf]
        %v1921 = vld [vmem:[#allocation2 + $0x10] sm:$0xf]
        %v1922 = vld [vmem:[#allocation2 + $0x14] sm:$0xf]
        %v1923 = vld [vmem:[#allocation2 + $0x18] sm:$0xf]
        %v1924 = vld [vmem:[#allocation2 + $0x1c] sm:$0xf]
        %v1925 = vld [vmem:[#allocation2 + $0x20] sm:$0xf]
        %v1926 = vld [vmem:[#allocation2 + $0x24] sm:$0xf]
        %v1927 = vld [vmem:[#allocation2 + $0x28] sm:$0xf]
        %v1928 = vld [vmem:[#allocation2 + $0x2c] sm:$0xf]
        %v1929 = vld [vmem:[#allocation2 + $0x30] sm:$0x3]
        %v1930 = vld [vmem:[%s3 + $0x80] sm:$0xf]
        %v1931 = vld [vmem:[%s3 + $0x84] sm:$0xf]
        %v1932 = vld [vmem:[%s3 + $0x88] sm:$0xf]
        %v1933 = vld [vmem:[%s3 + $0x8c] sm:$0xf]
        %v1934 = vld [vmem:[%s3 + $0x90] sm:$0xf]
        %v1935 = vld [vmem:[%s3 + $0x94] sm:$0xf]
        %v1936 = vld [vmem:[%s3 + $0x98] sm:$0xf]
        %v1937 = vld [vmem:[%s3 + $0x9c] sm:$0xf]
        %v1938 = vld [vmem:[%s3 + $0xa0] sm:$0xf]
        %v1939 = vld [vmem:[%s3 + $0xa4] sm:$0xf]
        %v1940 = vld [vmem:[%s3 + $0xa8] sm:$0xf]
        %v1941 = vld [vmem:[%s3 + $0xac] sm:$0xf]
        %v1942 = vld [vmem:[%s3 + $0xb0] sm:$0xf]
        %v1943 = vld [vmem:[%s3 + $0xb4] sm:$0xf]
        %v1944 = vld [vmem:[%s3 + $0xb8] sm:$0xf]
        %v1945 = vld [vmem:[%s3 + $0xbc] sm:$0xf]
        %v1946 = vld [vmem:[#allocation2 + $0x30] sm:$0x7]
        %v1947 = vld [vmem:[%s3 + $0xc0] sm:$0xf]
        %v1948 = vld [vmem:[%s3 + $0xc4] sm:$0xf]
        %v1949 = vld [vmem:[%s3 + $0xc8] sm:$0xf]
        %v1950 = vld [vmem:[%s3 + $0xcc] sm:$0xf]
        %v1951 = vld [vmem:[%s3 + $0xd0] sm:$0xf]
        %v1952 = vld [vmem:[%s3 + $0xd4] sm:$0xf]
        %v1953 = vld [vmem:[%s3 + $0xd8] sm:$0xf]
        %v1954 = vld [vmem:[%s3 + $0xdc] sm:$0xf]
        %v1955 = vld [vmem:[%s3 + $0xe0] sm:$0xf]
        %v1956 = vld [vmem:[%s3 + $0xe4] sm:$0xf]
        %v1957 = vld [vmem:[%s3 + $0xe8] sm:$0xf]
        %v1958 = vld [vmem:[%s3 + $0xec] sm:$0xf]
        %v1959 = vld [vmem:[%s3 + $0xf0] sm:$0xf]
        %v1960 = vld [vmem:[%s3 + $0xf4] sm:$0xf]
        %v1961 = vld [vmem:[%s3 + $0xf8] sm:$0xf]
        %v1962 = vld [vmem:[%s3 + $0xfc] sm:$0xf]
        %v1975 = vunpack.c.l.b16 %v1918
        %v1976 = vunpack.c.l.b16 %v1919
        %v1977 = vunpack.c.l.b16 %v1920
        %v1978 = vunpack.c.l.b16 %v1921
        %v1979 = vunpack.c.l.b16 %v1922
        %v1980 = vunpack.c.l.b16 %v1923
        %v1981 = vunpack.c.l.b16 %v1924
        %v1982 = vunpack.c.l.b16 %v1925
        %v1983 = vunpack.c.l.b16 %v1926
        %v1984 = vunpack.c.l.b16 %v1927
        %v1985 = vunpack.c.l.b16 %v1928
        %v1986 = vunpack.c.l.b16 %v1946
        %v1987 = vpack.c.b16 %v1976, %v1975
        %v1988 = vpack.c.b16 %v1978, %v1977
        %v1989 = vpack.c.b16 %v1980, %v1979
        %v1990 = vpack.c.b16 %v1982, %v1981
        %v1991 = vpack.c.b16 %v1984, %v1983
        %v1992 = vpack.c.b16 %v1986, %v1985
        %vm1993 = vsmask.f32 6400
        %v1995 = vshrl.u32 %v1987, 16
        %v1997 = vrot.slane %v1995, 1
        %v1998 = vshll.u32 %v1987, 16
        %v2000 = vrot.slane %v1998, 2
        %v2001 = vor.u32 %v1997, %v2000
        %v2003 = vshrl.u32 %v1988, 16
        %v2005 = vrot.slane %v2003, 1
        %v2006 = vshll.u32 %v1988, 16
        %v2008 = vrot.slane %v2006, 2
        %v2009 = vor.u32 %v2005, %v2008
        %v2010 = vsel %vm1993, %v2001, %v2009
        %v2012 = vshrl.u32 %v1989, 16
        %v2014 = vrot.slane %v2012, 1
        %v2015 = vshll.u32 %v1989, 16
        %v2017 = vrot.slane %v2015, 2
        %v2018 = vor.u32 %v2014, %v2017
        %v2019 = vsel %vm1993, %v2009, %v2018
        %v2021 = vshrl.u32 %v1990, 16
        %v2023 = vrot.slane %v2021, 1
        %v2024 = vshll.u32 %v1990, 16
        %v2026 = vrot.slane %v2024, 2
        %v2027 = vor.u32 %v2023, %v2026
        %v2028 = vsel %vm1993, %v2018, %v2027
        %v2030 = vshrl.u32 %v1991, 16
        %v2032 = vrot.slane %v2030, 1
        %v2033 = vshll.u32 %v1991, 16
        %v2035 = vrot.slane %v2033, 2
        %v2036 = vor.u32 %v2032, %v2035
        %v2037 = vsel %vm1993, %v2027, %v2036
        %v2039 = vshrl.u32 %v1992, 16
        %v2041 = vrot.slane %v2039, 1
        %v2042 = vshll.u32 %v1992, 16
        %v2044 = vrot.slane %v2042, 2
        %v2045 = vor.u32 %v2041, %v2044
        %v2046 = vsel %vm1993, %v2036, %v2045
        %v2069 = vunpack.c.l.b16 %v1947
        %v2070 = vunpack.c.l.b16 %v1948
        %v2071 = vunpack.c.l.b16 %v1949
        %v2072 = vunpack.c.l.b16 %v1950
        %v2073 = vunpack.c.l.b16 %v1951
        %v2074 = vunpack.c.l.b16 %v1952
        %v2075 = vunpack.c.l.b16 %v1953
        %v2076 = vunpack.c.l.b16 %v1954
        %v2077 = vunpack.c.l.b16 %v1955
        %v2078 = vunpack.c.l.b16 %v1956
        %v2079 = vunpack.c.l.b16 %v1957
        %v2080 = vunpack.c.l.b16 %v1958
        %v2081 = vunpack.c.l.b16 %v1959
        %v2082 = vunpack.c.l.b16 %v1960
        %v2083 = vunpack.c.l.b16 %v1961
        %v2084 = vunpack.c.l.b16 %v1962
        %v2085 = vpack.c.b16 %v2070, %v2069
        %v2086 = vpack.c.b16 %v2072, %v2071
        %v2087 = vpack.c.b16 %v2074, %v2073
        %v2088 = vpack.c.b16 %v2076, %v2075
        %v2089 = vpack.c.b16 %v2078, %v2077
        %v2090 = vpack.c.b16 %v2080, %v2079
        %v2091 = vpack.c.b16 %v2082, %v2081
        %v2092 = vpack.c.b16 %v2084, %v2083
        %2101 = vmatprep.subr.bf16.mxu0 0
        %2102 = vmatpush1.bf16.msra.mxu0 %v2085
        %2103 = vmatprep.subr.bf16.mxu0 0
        %2104 = vmatpush1.bf16.msra.mxu0 %v2086
        %2105 = vmatprep.subr.bf16.mxu0 0
        %2106 = vmatpush1.bf16.msra.mxu0 %v2087
        %2107 = vmatprep.subr.bf16.mxu0 0
        %2108 = vmatpush1.bf16.msra.mxu0 %v2088
        %2109 = vmatprep.subr.bf16.mxu0 0
        %2110 = vmatpush1.bf16.msra.mxu0 %v2089
        %2111 = vmatprep.subr.bf16.mxu0 0
        %2112 = vmatpush1.bf16.msra.mxu0 %v2090
        %2113 = vmatprep.subr.bf16.mxu0 0
        %2114 = vmatpush1.bf16.msra.mxu0 %v2091
        %2115 = vmatprep.subr.bf16.mxu0 0
        %2116 = vmatpush1.bf16.msra.mxu0 %v2092
        %2117 = vmatprep.subr.bf16.mxu0 0
        %2118 = vmatpush1.bf16.msra.mxu0 0
        %2119 = vmatprep.subr.bf16.mxu0 0
        %2120 = vmatpush1.bf16.msra.mxu0 0
        %2121 = vmatprep.subr.bf16.mxu0 0
        %2122 = vmatpush1.bf16.msra.mxu0 0
        %2123 = vmatprep.subr.bf16.mxu0 0
        %2124 = vmatpush1.bf16.msra.mxu0 0
        %2125 = vmatprep.subr.bf16.mxu0 0
        %2126 = vmatpush1.bf16.msra.mxu0 0
        %2127 = vmatprep.subr.bf16.mxu0 0
        %2128 = vmatpush1.bf16.msra.mxu0 0
        %2129 = vmatprep.subr.bf16.mxu0 0
        %2130 = vmatpush1.bf16.msra.mxu0 0
        %2131 = vmatprep.subr.bf16.mxu0 0
        %2132 = vmatpush1.bf16.msra.mxu0 0
        %2133 = vmatprep.mubr.bf16.mxu0 0
        %2134 = vmatmul.mubr.bf16.gmra.mrb[0].mxu0 %v2010
        %v2135 = vpop.f32.mrb[0].mxu0
        %v2136 = vadd.f32 0.0, %v2135
        %v2137 = vpop.f32.mrb[0].mxu0
        %v2138 = vpop.f32.mrb[0].mxu0
        %v2139 = vadd.f32 0.0, %v2138
        %v2140 = vpop.f32.mrb[0].mxu0
        %2141 = vmatprep.mubr.bf16.mxu0 0
        %2142 = vmatmul.mubr.bf16.gmra.mrb[0].mxu0 %v2019
        %v2143 = vpop.f32.mrb[0].mxu0
        %v2144 = vadd.f32 0.0, %v2143
        %v2145 = vpop.f32.mrb[0].mxu0
        %v2146 = vpop.f32.mrb[0].mxu0
        %v2147 = vadd.f32 0.0, %v2146
        %v2148 = vpop.f32.mrb[0].mxu0
        %2149 = vmatprep.mubr.bf16.mxu0 0
        %2150 = vmatmul.mubr.bf16.gmra.mrb[0].mxu0 %v2028
        %v2151 = vpop.f32.mrb[0].mxu0
        %v2152 = vadd.f32 0.0, %v2151
        %v2153 = vpop.f32.mrb[0].mxu0
        %v2154 = vpop.f32.mrb[0].mxu0
        %v2155 = vadd.f32 0.0, %v2154
        %v2156 = vpop.f32.mrb[0].mxu0
        %2157 = vmatprep.mubr.bf16.mxu0 0
        %2158 = vmatmul.mubr.bf16.gmra.mrb[0].mxu0 %v2037
        %v2159 = vpop.f32.mrb[0].mxu0
        %v2160 = vadd.f32 0.0, %v2159
        %v2161 = vpop.f32.mrb[0].mxu0
        %v2162 = vpop.f32.mrb[0].mxu0
        %v2163 = vadd.f32 0.0, %v2162
        %v2164 = vpop.f32.mrb[0].mxu0
        %2165 = vmatprep.mubr.bf16.mxu0 0
        %2166 = vmatmul.mubr.bf16.gmra.mrb[0].mxu0 %v2046
        %v2167 = vpop.f32.mrb[0].mxu0
        %v2168 = vadd.f32 0.0, %v2167
        %v2169 = vpop.f32.mrb[0].mxu0
        %v2170 = vpop.f32.mrb[0].mxu0
        %v2171 = vadd.f32 0.0, %v2170
        %v2172 = vpop.f32.mrb[0].mxu0
        %2173 = vmatprep.mubr.bf16.mxu0 0
        %2174 = vmatmul.mubr.bf16.gmra.mrb[0].mxu0 %v2045
        %v2175 = vpop.f32.mrb[0].mxu0
        %v2176 = vadd.f32 0.0, %v2175
        %v2177 = vpop.f32.mrb[0].mxu0
        %v2178 = vpop.f32.mrb[0].mxu0
        %v2179 = vadd.f32 0.0, %v2178
        %v2180 = vpop.f32.mrb[0].mxu0
        %2181 = vdwg.mxu0
        %v2183 = vunpack.c.l.b16 %v1671
        %v2184 = vpack.c.b16 %v2183, %v1727
        %v2207 = vunpack.c.l.b16 %v1672
        %v2208 = vunpack.c.l.b16 %v1673
        %v2209 = vunpack.c.l.b16 %v1674
        %v2210 = vunpack.c.l.b16 %v1675
        %v2211 = vunpack.c.l.b16 %v1676
        %v2212 = vunpack.c.l.b16 %v1677
        %v2213 = vunpack.c.l.b16 %v1678
        %v2214 = vunpack.c.l.b16 %v1679
        %v2215 = vunpack.c.l.b16 %v1680
        %v2216 = vunpack.c.l.b16 %v1681
        %v2217 = vunpack.c.l.b16 %v1682
        %v2218 = vunpack.c.l.b16 %v1683
        %v2219 = vunpack.c.l.b16 %v1684
        %v2220 = vunpack.c.l.b16 %v1685
        %v2221 = vunpack.c.l.b16 %v1686
        %v2222 = vunpack.c.l.b16 %v1687
        %v2223 = vpack.c.b16 %v2208, %v2207
        %v2224 = vpack.c.b16 %v2210, %v2209
        %v2225 = vpack.c.b16 %v2212, %v2211
        %v2226 = vpack.c.b16 %v2214, %v2213
        %v2227 = vpack.c.b16 %v2216, %v2215
        %v2228 = vpack.c.b16 %v2218, %v2217
        %v2229 = vpack.c.b16 %v2220, %v2219
        %v2230 = vpack.c.b16 %v2222, %v2221
        %2239 = vmatprep.subr.bf16.mxu0 0
        %2240 = vmatpush1.bf16.msra.mxu0 %v2223
        %2241 = vmatprep.subr.bf16.mxu0 0
        %2242 = vmatpush1.bf16.msra.mxu0 %v2224
        %2243 = vmatprep.subr.bf16.mxu0 0
        %2244 = vmatpush1.bf16.msra.mxu0 %v2225
        %2245 = vmatprep.subr.bf16.mxu0 0
        %2246 = vmatpush1.bf16.msra.mxu0 %v2226
        %2247 = vmatprep.subr.bf16.mxu0 0
        %2248 = vmatpush1.bf16.msra.mxu0 %v2227
        %2249 = vmatprep.subr.bf16.mxu0 0
        %2250 = vmatpush1.bf16.msra.mxu0 %v2228
        %2251 = vmatprep.subr.bf16.mxu0 0
        %2252 = vmatpush1.bf16.msra.mxu0 %v2229
        %2253 = vmatprep.subr.bf16.mxu0 0
        %2254 = vmatpush1.bf16.msra.mxu0 %v2230
        %2255 = vmatprep.subr.bf16.mxu0 0
        %2256 = vmatpush1.bf16.msra.mxu0 0
        %2257 = vmatprep.subr.bf16.mxu0 0
        %2258 = vmatpush1.bf16.msra.mxu0 0
        %2259 = vmatprep.subr.bf16.mxu0 0
        %2260 = vmatpush1.bf16.msra.mxu0 0
        %2261 = vmatprep.subr.bf16.mxu0 0
        %2262 = vmatpush1.bf16.msra.mxu0 0
        %2263 = vmatprep.subr.bf16.mxu0 0
        %2264 = vmatpush1.bf16.msra.mxu0 0
        %2265 = vmatprep.subr.bf16.mxu0 0
        %2266 = vmatpush1.bf16.msra.mxu0 0
        %2267 = vmatprep.subr.bf16.mxu0 0
        %2268 = vmatpush1.bf16.msra.mxu0 0
        %2269 = vmatprep.subr.bf16.mxu0 0
        %2270 = vmatpush1.bf16.msra.mxu0 0
        %2271 = vmatprep.mubr.bf16.mxu0 0
        %2272 = vmatmul.mubr.bf16.gmra.mrb[0].mxu0 %v1729
        %v2273 = vpop.f32.mrb[0].mxu0
        %v2274 = vadd.f32 %v1872, %v2273
        %v2275 = vpop.f32.mrb[0].mxu0
        %v2276 = vpop.f32.mrb[0].mxu0
        %v2277 = vadd.f32 %v1875, %v2276
        %v2278 = vpop.f32.mrb[0].mxu0
        %2279 = vmatprep.mubr.bf16.mxu0 0
        %2280 = vmatmul.mubr.bf16.gmra.mrb[0].mxu0 %v1730
        %v2281 = vpop.f32.mrb[0].mxu0
        %v2282 = vadd.f32 %v1880, %v2281
        %v2283 = vpop.f32.mrb[0].mxu0
        %v2284 = vpop.f32.mrb[0].mxu0
        %v2285 = vadd.f32 %v1883, %v2284
        %v2286 = vpop.f32.mrb[0].mxu0
        %2287 = vmatprep.mubr.bf16.mxu0 0
        %2288 = vmatmul.mubr.bf16.gmra.mrb[0].mxu0 %v1731
        %v2289 = vpop.f32.mrb[0].mxu0
        %v2290 = vadd.f32 %v1888, %v2289
        %v2291 = vpop.f32.mrb[0].mxu0
        %v2292 = vpop.f32.mrb[0].mxu0
        %v2293 = vadd.f32 %v1891, %v2292
        %v2294 = vpop.f32.mrb[0].mxu0
        %2295 = vmatprep.mubr.bf16.mxu0 0
        %2296 = vmatmul.mubr.bf16.gmra.mrb[0].mxu0 %v1732
        %v2297 = vpop.f32.mrb[0].mxu0
        %v2298 = vadd.f32 %v1896, %v2297
        %v2299 = vpop.f32.mrb[0].mxu0
        %v2300 = vpop.f32.mrb[0].mxu0
        %v2301 = vadd.f32 %v1899, %v2300
        %v2302 = vpop.f32.mrb[0].mxu0
        %2303 = vmatprep.mubr.bf16.mxu0 0
        %2304 = vmatmul.mubr.bf16.gmra.mrb[0].mxu0 %v1733
        %v2305 = vpop.f32.mrb[0].mxu0
        %v2306 = vadd.f32 %v1904, %v2305
        %v2307 = vpop.f32.mrb[0].mxu0
        %v2308 = vpop.f32.mrb[0].mxu0
        %v2309 = vadd.f32 %v1907, %v2308
        %v2310 = vpop.f32.mrb[0].mxu0
        %2311 = vmatprep.mubr.bf16.mxu0 0
        %2312 = vmatmul.mubr.bf16.gmra.mrb[0].mxu0 %v2184
        %v2313 = vpop.f32.mrb[0].mxu0
        %v2314 = vadd.f32 %v1912, %v2313
        %v2315 = vpop.f32.mrb[0].mxu0
        %v2316 = vpop.f32.mrb[0].mxu0
        %v2317 = vadd.f32 %v1915, %v2316
        %v2318 = vpop.f32.mrb[0].mxu0
        %2319 = vdwg.mxu0
        %v2321 = vunpack.c.l.b16 %v1929
        %v2322 = vpack.c.b16 %v2321, %v1985
        %vm2323 = vcmask 1046528
        %v2324 = vrot.slane %v1987, 1
        %v2325 = vrot.slane %v1988, 1
        %v2326 = vsel %vm2323, %v2324, %v2325
        %v2327 = vrot.slane %v1989, 1
        %v2328 = vsel %vm2323, %v2325, %v2327
        %v2329 = vrot.slane %v1990, 1
        %v2330 = vsel %vm2323, %v2327, %v2329
        %v2331 = vrot.slane %v1991, 1
        %v2332 = vsel %vm2323, %v2329, %v2331
        %v2333 = vrot.slane %v2322, 1
        %v2334 = vsel %vm2323, %v2331, %v2333
        %v2357 = vunpack.c.l.b16 %v1930
        %v2358 = vunpack.c.l.b16 %v1931
        %v2359 = vunpack.c.l.b16 %v1932
        %v2360 = vunpack.c.l.b16 %v1933
        %v2361 = vunpack.c.l.b16 %v1934
        %v2362 = vunpack.c.l.b16 %v1935
        %v2363 = vunpack.c.l.b16 %v1936
        %v2364 = vunpack.c.l.b16 %v1937
        %v2365 = vunpack.c.l.b16 %v1938
        %v2366 = vunpack.c.l.b16 %v1939
        %v2367 = vunpack.c.l.b16 %v1940
        %v2368 = vunpack.c.l.b16 %v1941
        %v2369 = vunpack.c.l.b16 %v1942
        %v2370 = vunpack.c.l.b16 %v1943
        %v2371 = vunpack.c.l.b16 %v1944
        %v2372 = vunpack.c.l.b16 %v1945
        %v2373 = vpack.c.b16 %v2358, %v2357
        %v2374 = vpack.c.b16 %v2360, %v2359
        %v2375 = vpack.c.b16 %v2362, %v2361
        %v2376 = vpack.c.b16 %v2364, %v2363
        %v2377 = vpack.c.b16 %v2366, %v2365
        %v2378 = vpack.c.b16 %v2368, %v2367
        %v2379 = vpack.c.b16 %v2370, %v2369
        %v2380 = vpack.c.b16 %v2372, %v2371
        %2389 = vmatprep.subr.bf16.mxu0 0
        %2390 = vmatpush1.bf16.msra.mxu0 %v2373
        %2391 = vmatprep.subr.bf16.mxu0 0
        %2392 = vmatpush1.bf16.msra.mxu0 %v2374
        %2393 = vmatprep.subr.bf16.mxu0 0
        %2394 = vmatpush1.bf16.msra.mxu0 %v2375
        %2395 = vmatprep.subr.bf16.mxu0 0
        %2396 = vmatpush1.bf16.msra.mxu0 %v2376
        %2397 = vmatprep.subr.bf16.mxu0 0
        %2398 = vmatpush1.bf16.msra.mxu0 %v2377
        %2399 = vmatprep.subr.bf16.mxu0 0
        %2400 = vmatpush1.bf16.msra.mxu0 %v2378
        %2401 = vmatprep.subr.bf16.mxu0 0
        %2402 = vmatpush1.bf16.msra.mxu0 %v2379
        %2403 = vmatprep.subr.bf16.mxu0 0
        %2404 = vmatpush1.bf16.msra.mxu0 %v2380
        %2405 = vmatprep.subr.bf16.mxu0 0
        %2406 = vmatpush1.bf16.msra.mxu0 0
        %2407 = vmatprep.subr.bf16.mxu0 0
        %2408 = vmatpush1.bf16.msra.mxu0 0
        %2409 = vmatprep.subr.bf16.mxu0 0
        %2410 = vmatpush1.bf16.msra.mxu0 0
        %2411 = vmatprep.subr.bf16.mxu0 0
        %2412 = vmatpush1.bf16.msra.mxu0 0
        %2413 = vmatprep.subr.bf16.mxu0 0
        %2414 = vmatpush1.bf16.msra.mxu0 0
        %2415 = vmatprep.subr.bf16.mxu0 0
        %2416 = vmatpush1.bf16.msra.mxu0 0
        %2417 = vmatprep.subr.bf16.mxu0 0
        %2418 = vmatpush1.bf16.msra.mxu0 0
        %2419 = vmatprep.subr.bf16.mxu0 0
        %2420 = vmatpush1.bf16.msra.mxu0 0
        %2421 = vmatprep.mubr.bf16.mxu0 0
        %2422 = vmatmul.mubr.bf16.gmra.mrb[0].mxu0 %v2326
        %v2423 = vpop.f32.mrb[0].mxu0
        %v2424 = vadd.f32 %v2136, %v2423
        %v2425 = vpop.f32.mrb[0].mxu0
        %v2426 = vpop.f32.mrb[0].mxu0
        %v2427 = vadd.f32 %v2139, %v2426
        %v2428 = vpop.f32.mrb[0].mxu0
        %2429 = vmatprep.mubr.bf16.mxu0 0
        %2430 = vmatmul.mubr.bf16.gmra.mrb[0].mxu0 %v2328
        %v2431 = vpop.f32.mrb[0].mxu0
        %v2432 = vadd.f32 %v2144, %v2431
        %v2433 = vpop.f32.mrb[0].mxu0
        %v2434 = vpop.f32.mrb[0].mxu0
        %v2435 = vadd.f32 %v2147, %v2434
        %v2436 = vpop.f32.mrb[0].mxu0
        %2437 = vmatprep.mubr.bf16.mxu0 0
        %2438 = vmatmul.mubr.bf16.gmra.mrb[0].mxu0 %v2330
        %v2439 = vpop.f32.mrb[0].mxu0
        %v2440 = vadd.f32 %v2152, %v2439
        %v2441 = vpop.f32.mrb[0].mxu0
        %v2442 = vpop.f32.mrb[0].mxu0
        %v2443 = vadd.f32 %v2155, %v2442
        %v2444 = vpop.f32.mrb[0].mxu0
        %2445 = vmatprep.mubr.bf16.mxu0 0
        %2446 = vmatmul.mubr.bf16.gmra.mrb[0].mxu0 %v2332
        %v2447 = vpop.f32.mrb[0].mxu0
        %v2448 = vadd.f32 %v2160, %v2447
        %v2449 = vpop.f32.mrb[0].mxu0
        %v2450 = vpop.f32.mrb[0].mxu0
        %v2451 = vadd.f32 %v2163, %v2450
        %v2452 = vpop.f32.mrb[0].mxu0
        %2453 = vmatprep.mubr.bf16.mxu0 0
        %2454 = vmatmul.mubr.bf16.gmra.mrb[0].mxu0 %v2334
        %v2455 = vpop.f32.mrb[0].mxu0
        %v2456 = vadd.f32 %v2168, %v2455
        %v2457 = vpop.f32.mrb[0].mxu0
        %v2458 = vpop.f32.mrb[0].mxu0
        %v2459 = vadd.f32 %v2171, %v2458
        %v2460 = vpop.f32.mrb[0].mxu0
        %2461 = vmatprep.mubr.bf16.mxu0 0
        %2462 = vmatmul.mubr.bf16.gmra.mrb[0].mxu0 %v2333
        %v2463 = vpop.f32.mrb[0].mxu0
        %v2464 = vadd.f32 %v2176, %v2463
        %v2465 = vpop.f32.mrb[0].mxu0
        %v2466 = vpop.f32.mrb[0].mxu0
        %v2467 = vadd.f32 %v2179, %v2466
        %v2468 = vpop.f32.mrb[0].mxu0
        %2469 = vdwg.mxu0
        %v2470 = vadd.f32 %v2274, %v2424
        %v2471 = vadd.f32 %v2277, %v2427
        %v2472 = vadd.f32 %v2282, %v2432
        %v2473 = vadd.f32 %v2285, %v2435
        %v2474 = vadd.f32 %v2290, %v2440
        %v2475 = vadd.f32 %v2293, %v2443
        %v2476 = vadd.f32 %v2298, %v2448
        %v2477 = vadd.f32 %v2301, %v2451
        %v2478 = vadd.f32 %v2306, %v2456
        %v2479 = vadd.f32 %v2309, %v2459
        %v2480 = vadd.f32 %v2314, %v2464
        %v2481 = vadd.f32 %v2317, %v2467
        %v2482 = vld [vmem:[%s4] sm:$0x1]
        %v2484 = vlaneseq
        %v2485 = vshrl.u32 %v2484, 7
        %v2486 = vsub.s32 0, %v2485
        %v2487 = vrot.slane %v2482, %v2486
        %v2489 = vadd.f32 %v2470, %v2487
        %v2490 = vadd.f32 %v2471, %v2487
        %v2491 = vadd.f32 %v2472, %v2487
        %v2492 = vadd.f32 %v2473, %v2487
        %v2493 = vadd.f32 %v2474, %v2487
        %v2494 = vadd.f32 %v2475, %v2487
        %v2495 = vadd.f32 %v2476, %v2487
        %v2496 = vadd.f32 %v2477, %v2487
        %v2497 = vadd.f32 %v2478, %v2487
        %v2498 = vadd.f32 %v2479, %v2487
        %v2499 = vadd.f32 %v2480, %v2487
        %v2500 = vadd.f32 %v2481, %v2487
        %v2501 = vmax.f32 %v2489, 0.0
        %v2502 = vmax.f32 %v2490, 0.0
        %v2503 = vmax.f32 %v2491, 0.0
        %v2504 = vmax.f32 %v2492, 0.0
        %v2505 = vmax.f32 %v2493, 0.0
        %v2506 = vmax.f32 %v2494, 0.0
        %v2507 = vmax.f32 %v2495, 0.0
        %v2508 = vmax.f32 %v2496, 0.0
        %v2509 = vmax.f32 %v2497, 0.0
        %v2510 = vmax.f32 %v2498, 0.0
        %v2511 = vmax.f32 %v2499, 0.0
        %v2512 = vmax.f32 %v2500, 0.0
        %v2513 = vpack.c.bf16 %v2502, %v2501
        %v2514 = vpack.c.bf16 %v2504, %v2503
        %v2515 = vpack.c.bf16 %v2506, %v2505
        %v2516 = vpack.c.bf16 %v2508, %v2507
        %v2517 = vpack.c.bf16 %v2510, %v2509
        %v2518 = vpack.c.bf16 %v2512, %v2511
        %vm2519 = vcmask 523264
        %2520 = vst.msk [vmem:[#allocation3] sm:$0xff] %vm2519, %v2513
        %2521 = vst.msk [vmem:[#allocation3 + $0x8] sm:$0xff] %vm2519, %v2514
        %2522 = vst.msk [vmem:[#allocation3 + $0x10] sm:$0xff] %vm2519, %v2515
        %2523 = vst.msk [vmem:[#allocation3 + $0x18] sm:$0xff] %vm2519, %v2516
        %2524 = vst.msk [vmem:[#allocation3 + $0x20] sm:$0xff] %vm2519, %v2517
        %vm2525 = vcmask 520192
        %2526 = vst.msk [vmem:[#allocation3 + $0x28] sm:$0x1f] %vm2525, %v2518
        %vm2527 = vcmask 523269
        %2528 = vst.msk [vmem:[#allocation3 + $0x28] sm:$0xe0] %vm2527, 0
        %v2529 = vld [vmem:[#allocation3] sm:$0xff]
        %v2530 = vld [vmem:[#allocation3 + $0x8] sm:$0xff]
        %v2531 = vld [vmem:[#allocation3 + $0x10] sm:$0xff]
        %v2532 = vld [vmem:[#allocation3 + $0x18] sm:$0xff]
        %v2533 = vld [vmem:[#allocation3 + $0x20] sm:$0x7]
        %v2539 = vunpack.c.l.b16 %v2529
        %v2540 = vunpack.c.h.b16 %v2529
        %v2541 = vunpack.c.l.b16 %v2530
        %v2542 = vunpack.c.h.b16 %v2530
        %v2543 = vunpack.c.l.b16 %v2531
        %v2544 = vunpack.c.h.b16 %v2531
        %v2545 = vunpack.c.l.b16 %v2532
        %v2546 = vunpack.c.h.b16 %v2532
        %v2547 = vunpack.c.l.b16 %v2533
        %v2548 = vpack.c.b16 %v2539, %v2539
        %v2549 = vpack.c.b16 %v2540, %v2540
        %v2550 = vpack.c.b16 %v2541, %v2541
        %v2551 = vpack.c.b16 %v2542, %v2542
        %v2552 = vpack.c.b16 %v2543, %v2543
        %v2553 = vpack.c.b16 %v2544, %v2544
        %v2554 = vpack.c.b16 %v2545, %v2545
        %v2555 = vpack.c.b16 %v2546, %v2546
        %v2556 = vpack.c.b16 %v2547, %v2547
        %vm2566 = vcmask 519168
        %2567 = vst.msk [vmem:[#allocation4] sm:$0xf] %vm2566, %v2548
        %2568 = vst.msk [vmem:[#allocation4 + $0x14] sm:$0xf] %vm2566, %v2549
        %2569 = vst.msk [vmem:[#allocation4 + $0x28] sm:$0xf] %vm2566, %v2550
        %2570 = vst.msk [vmem:[#allocation4 + $0x3c] sm:$0xf] %vm2566, %v2551
        %2571 = vst.msk [vmem:[#allocation4 + $0x50] sm:$0xf] %vm2566, %v2552
        %2572 = vst.msk [vmem:[#allocation4 + $0x64] sm:$0xf] %vm2566, %v2553
        %2573 = vst.msk [vmem:[#allocation4 + $0x78] sm:$0xf] %vm2566, %v2554
        %2574 = vst.msk [vmem:[#allocation4 + $0x8c] sm:$0xf] %vm2566, %v2555
        %vm2575 = vcmask 518144
        %2576 = vst.msk [vmem:[#allocation4 + $0xa0] sm:$0x7] %vm2575, %v2556
        %v2577 = vld [vmem:[#allocation3] sm:$0xff]
        %v2578 = vld [vmem:[#allocation3 + $0x8] sm:$0xff]
        %v2579 = vld [vmem:[#allocation3 + $0x10] sm:$0xff]
        %v2580 = vld [vmem:[#allocation3 + $0x18] sm:$0xff]
        %v2581 = vld [vmem:[#allocation3 + $0x20] sm:$0xf]
        %v2587 = vunpack.c.l.b16 %v2577
        %v2588 = vunpack.c.h.b16 %v2577
        %v2589 = vunpack.c.l.b16 %v2578
        %v2590 = vunpack.c.h.b16 %v2578
        %v2591 = vunpack.c.l.b16 %v2579
        %v2592 = vunpack.c.h.b16 %v2579
        %v2593 = vunpack.c.l.b16 %v2580
        %v2594 = vunpack.c.h.b16 %v2580
        %v2595 = vunpack.c.l.b16 %v2581
        %v2596 = vpack.c.b16 %v2587, %v2587
        %v2597 = vpack.c.b16 %v2588, %v2588
        %v2598 = vpack.c.b16 %v2589, %v2589
        %v2599 = vpack.c.b16 %v2590, %v2590
        %v2600 = vpack.c.b16 %v2591, %v2591
        %v2601 = vpack.c.b16 %v2592, %v2592
        %v2602 = vpack.c.b16 %v2593, %v2593
        %v2603 = vpack.c.b16 %v2594, %v2594
        %v2604 = vpack.c.b16 %v2595, %v2595
        %vm2605 = vsmask.f32 3328
        %vm2606 = vsmask.f32 7440
        %vm2607 = vmor %vm2605, %vm2606
        %v2609 = vshrl.u32 %v2596, 16
        %v2611 = vrot.slane %v2609, 4
        %v2612 = vshll.u32 %v2596, 16
        %v2614 = vrot.slane %v2612, 5
        %v2615 = vor.u32 %v2611, %v2614
        %v2616 = vrot.slane %v2615, 4
        %v2618 = vshll.u32 %v2597, 16
        %v2620 = vrot.slane %v2618, 5
        %v2621 = vsel %vm2607, %v2616, %v2620
        %v2622 = vshrl.u32 %v2597, 16
        %v2624 = vrot.slane %v2622, 4
        %v2625 = vor.u32 %v2624, %v2620
        %v2626 = vrot.slane %v2625, 4
        %v2628 = vshll.u32 %v2598, 16
        %v2630 = vrot.slane %v2628, 5
        %v2631 = vsel %vm2607, %v2626, %v2630
        %v2632 = vshrl.u32 %v2598, 16
        %v2634 = vrot.slane %v2632, 4
        %v2635 = vor.u32 %v2634, %v2630
        %v2636 = vrot.slane %v2635, 4
        %v2638 = vshll.u32 %v2599, 16
        %v2640 = vrot.slane %v2638, 5
        %v2641 = vsel %vm2607, %v2636, %v2640
        %v2642 = vshrl.u32 %v2599, 16
        %v2644 = vrot.slane %v2642, 4
        %v2645 = vor.u32 %v2644, %v2640
        %v2646 = vrot.slane %v2645, 4
        %v2648 = vshll.u32 %v2600, 16
        %v2650 = vrot.slane %v2648, 5
        %v2651 = vsel %vm2607, %v2646, %v2650
        %v2652 = vshrl.u32 %v2600, 16
        %v2654 = vrot.slane %v2652, 4
        %v2655 = vor.u32 %v2654, %v2650
        %v2656 = vrot.slane %v2655, 4
        %v2658 = vshll.u32 %v2601, 16
        %v2660 = vrot.slane %v2658, 5
        %v2661 = vsel %vm2607, %v2656, %v2660
        %v2662 = vshrl.u32 %v2601, 16
        %v2664 = vrot.slane %v2662, 4
        %v2665 = vor.u32 %v2664, %v2660
        %v2666 = vrot.slane %v2665, 4
        %v2668 = vshll.u32 %v2602, 16
        %v2670 = vrot.slane %v2668, 5
        %v2671 = vsel %vm2607, %v2666, %v2670
        %v2672 = vshrl.u32 %v2602, 16
        %v2674 = vrot.slane %v2672, 4
        %v2675 = vor.u32 %v2674, %v2670
        %v2676 = vrot.slane %v2675, 4
        %v2678 = vshll.u32 %v2603, 16
        %v2680 = vrot.slane %v2678, 5
        %v2681 = vsel %vm2607, %v2676, %v2680
        %v2682 = vshrl.u32 %v2603, 16
        %v2684 = vrot.slane %v2682, 4
        %v2685 = vor.u32 %v2684, %v2680
        %v2686 = vrot.slane %v2685, 4
        %v2688 = vshll.u32 %v2604, 16
        %v2690 = vrot.slane %v2688, 5
        %v2691 = vsel %vm2607, %v2686, %v2690
        %v2692 = vshrl.u32 %v2604, 16
        %v2694 = vrot.slane %v2692, 4
        %v2695 = vor.u32 %v2694, %v2690
        %v2696 = vrot.slane %v2695, 4
        %2697 = vrot.lane.b32.xlu0 %v2621, 64
        %v2698 = vpop.permute.xlu0 %2697
        %2699 = vrot.lane.b32.xlu0 %v2631, 64
        %v2700 = vpop.permute.xlu0 %2699
        %2701 = vrot.lane.b32.xlu0 %v2641, 64
        %v2702 = vpop.permute.xlu0 %2701
        %2703 = vrot.lane.b32.xlu0 %v2651, 64
        %v2704 = vpop.permute.xlu0 %2703
        %2705 = vrot.lane.b32.xlu0 %v2661, 64
        %v2706 = vpop.permute.xlu0 %2705
        %2707 = vrot.lane.b32.xlu0 %v2671, 64
        %v2708 = vpop.permute.xlu0 %2707
        %2709 = vrot.lane.b32.xlu0 %v2681, 64
        %v2710 = vpop.permute.xlu0 %2709
        %2711 = vrot.lane.b32.xlu0 %v2691, 64
        %v2712 = vpop.permute.xlu0 %2711
        %2713 = vrot.lane.b32.xlu0 %v2696, 64
        %v2714 = vpop.permute.xlu0 %2713
        %vm2724 = vcmask 1043968
        %2725 = vst.msk [vmem:[#allocation4] sm:$0xf] %vm2724, %v2698
        %2726 = vst.msk [vmem:[#allocation4 + $0x14] sm:$0xf] %vm2724, %v2700
        %2727 = vst.msk [vmem:[#allocation4 + $0x28] sm:$0xf] %vm2724, %v2702
        %2728 = vst.msk [vmem:[#allocation4 + $0x3c] sm:$0xf] %vm2724, %v2704
        %2729 = vst.msk [vmem:[#allocation4 + $0x50] sm:$0xf] %vm2724, %v2706
        %2730 = vst.msk [vmem:[#allocation4 + $0x64] sm:$0xf] %vm2724, %v2708
        %2731 = vst.msk [vmem:[#allocation4 + $0x78] sm:$0xf] %vm2724, %v2710
        %2732 = vst.msk [vmem:[#allocation4 + $0x8c] sm:$0xf] %vm2724, %v2712
        %vm2733 = vcmask 1042944
        %2734 = vst.msk [vmem:[#allocation4 + $0xa0] sm:$0x7] %vm2733, %v2714
        %v2735 = vld [vmem:[#allocation3] sm:$0xfe]
        %v2736 = vld [vmem:[#allocation3 + $0x8] sm:$0xff]
        %v2737 = vld [vmem:[#allocation3 + $0x10] sm:$0xff]
        %v2738 = vld [vmem:[#allocation3 + $0x18] sm:$0xff]
        %v2739 = vld [vmem:[#allocation3 + $0x20] sm:$0xf]
        %v2745 = vunpack.c.l.b16 %v2735
        %v2746 = vunpack.c.h.b16 %v2735
        %v2747 = vunpack.c.l.b16 %v2736
        %v2748 = vunpack.c.h.b16 %v2736
        %v2749 = vunpack.c.l.b16 %v2737
        %v2750 = vunpack.c.h.b16 %v2737
        %v2751 = vunpack.c.l.b16 %v2738
        %v2752 = vunpack.c.h.b16 %v2738
        %v2753 = vunpack.c.l.b16 %v2739
        %v2754 = vpack.c.b16 %v2745, %v2745
        %v2755 = vpack.c.b16 %v2746, %v2746
        %v2756 = vpack.c.b16 %v2747, %v2747
        %v2757 = vpack.c.b16 %v2748, %v2748
        %v2758 = vpack.c.b16 %v2749, %v2749
        %v2759 = vpack.c.b16 %v2750, %v2750
        %v2760 = vpack.c.b16 %v2751, %v2751
        %v2761 = vpack.c.b16 %v2752, %v2752
        %v2762 = vpack.c.b16 %v2753, %v2753
        %vm2763 = vcmask 1042432
        %vm2764 = vcmask 1046532
        %vm2765 = vmor %vm2763, %vm2764
        %v2766 = vrot.slane %v2754, 5
        %v2767 = vrot.slane %v2766, 4
        %v2768 = vrot.slane %v2755, 5
        %v2769 = vsel %vm2765, %v2767, %v2768
        %v2770 = vrot.slane %v2768, 4
        %v2771 = vrot.slane %v2756, 5
        %v2772 = vsel %vm2765, %v2770, %v2771
        %v2773 = vrot.slane %v2771, 4
        %v2774 = vrot.slane %v2757, 5
        %v2775 = vsel %vm2765, %v2773, %v2774
        %v2776 = vrot.slane %v2774, 4
        %v2777 = vrot.slane %v2758, 5
        %v2778 = vsel %vm2765, %v2776, %v2777
        %v2779 = vrot.slane %v2777, 4
        %v2780 = vrot.slane %v2759, 5
        %v2781 = vsel %vm2765, %v2779, %v2780
        %v2782 = vrot.slane %v2780, 4
        %v2783 = vrot.slane %v2760, 5
        %v2784 = vsel %vm2765, %v2782, %v2783
        %v2785 = vrot.slane %v2783, 4
        %v2786 = vrot.slane %v2761, 5
        %v2787 = vsel %vm2765, %v2785, %v2786
        %v2788 = vrot.slane %v2786, 4
        %v2789 = vrot.slane %v2762, 5
        %v2790 = vsel %vm2765, %v2788, %v2789
        %v2791 = vrot.slane %v2789, 4
        %2801 = vst.msk [vmem:[#allocation4 + $0x4] sm:$0xf] %vm2566, %v2769
        %2802 = vst.msk [vmem:[#allocation4 + $0x18] sm:$0xf] %vm2566, %v2772
        %2803 = vst.msk [vmem:[#allocation4 + $0x2c] sm:$0xf] %vm2566, %v2775
        %2804 = vst.msk [vmem:[#allocation4 + $0x40] sm:$0xf] %vm2566, %v2778
        %2805 = vst.msk [vmem:[#allocation4 + $0x54] sm:$0xf] %vm2566, %v2781
        %2806 = vst.msk [vmem:[#allocation4 + $0x68] sm:$0xf] %vm2566, %v2784
        %2807 = vst.msk [vmem:[#allocation4 + $0x7c] sm:$0xf] %vm2566, %v2787
        %2808 = vst.msk [vmem:[#allocation4 + $0x90] sm:$0xf] %vm2566, %v2790
        %2809 = vst.msk [vmem:[#allocation4 + $0xa4] sm:$0x7] %vm2575, %v2791
        %v2810 = vld [vmem:[#allocation3] sm:$0xe0]
        %v2811 = vld [vmem:[#allocation3 + $0x8] sm:$0xff]
        %v2812 = vld [vmem:[#allocation3 + $0x10] sm:$0xff]
        %v2813 = vld [vmem:[#allocation3 + $0x18] sm:$0xff]
        %v2814 = vld [vmem:[#allocation3 + $0x20] sm:$0xff]
        %v2820 = vunpack.c.h.b16 %v2810
        %v2821 = vunpack.c.l.b16 %v2811
        %v2822 = vunpack.c.h.b16 %v2811
        %v2823 = vunpack.c.l.b16 %v2812
        %v2824 = vunpack.c.h.b16 %v2812
        %v2825 = vunpack.c.l.b16 %v2813
        %v2826 = vunpack.c.h.b16 %v2813
        %v2827 = vunpack.c.l.b16 %v2814
        %v2828 = vunpack.c.h.b16 %v2814
        %v2829 = vpack.c.b16 %v2820, %v2820
        %v2830 = vpack.c.b16 %v2821, %v2821
        %v2831 = vpack.c.b16 %v2822, %v2822
        %v2832 = vpack.c.b16 %v2823, %v2823
        %v2833 = vpack.c.b16 %v2824, %v2824
        %v2834 = vpack.c.b16 %v2825, %v2825
        %v2835 = vpack.c.b16 %v2826, %v2826
        %v2836 = vpack.c.b16 %v2827, %v2827
        %v2837 = vpack.c.b16 %v2828, %v2828
        %v2838 = vrot.slane %v2829, 5
        %v2839 = vrot.slane %v2838, 4
        %v2840 = vrot.slane %v2830, 5
        %v2841 = vsel %vm2765, %v2839, %v2840
        %v2842 = vrot.slane %v2840, 4
        %v2843 = vrot.slane %v2831, 5
        %v2844 = vsel %vm2765, %v2842, %v2843
        %v2845 = vrot.slane %v2843, 4
        %v2846 = vrot.slane %v2832, 5
        %v2847 = vsel %vm2765, %v2845, %v2846
        %v2848 = vrot.slane %v2846, 4
        %v2849 = vrot.slane %v2833, 5
        %v2850 = vsel %vm2765, %v2848, %v2849
        %v2851 = vrot.slane %v2849, 4
        %v2852 = vrot.slane %v2834, 5
        %v2853 = vsel %vm2765, %v2851, %v2852
        %v2854 = vrot.slane %v2852, 4
        %v2855 = vrot.slane %v2835, 5
        %v2856 = vsel %vm2765, %v2854, %v2855
        %v2857 = vrot.slane %v2855, 4
        %v2858 = vrot.slane %v2836, 5
        %v2859 = vsel %vm2765, %v2857, %v2858
        %v2860 = vrot.slane %v2858, 4
        %v2861 = vrot.slane %v2837, 5
        %v2862 = vsel %vm2765, %v2860, %v2861
        %v2863 = vrot.slane %v2861, 4
        %2864 = vrot.lane.b32.xlu0 %v2841, 64
        %v2865 = vpop.permute.xlu0 %2864
        %2866 = vrot.lane.b32.xlu0 %v2844, 64
        %v2867 = vpop.permute.xlu0 %2866
        %2868 = vrot.lane.b32.xlu0 %v2847, 64
        %v2869 = vpop.permute.xlu0 %2868
        %2870 = vrot.lane.b32.xlu0 %v2850, 64
        %v2871 = vpop.permute.xlu0 %2870
        %2872 = vrot.lane.b32.xlu0 %v2853, 64
        %v2873 = vpop.permute.xlu0 %2872
        %2874 = vrot.lane.b32.xlu0 %v2856, 64
        %v2875 = vpop.permute.xlu0 %2874
        %2876 = vrot.lane.b32.xlu0 %v2859, 64
        %v2877 = vpop.permute.xlu0 %2876
        %2878 = vrot.lane.b32.xlu0 %v2862, 64
        %v2879 = vpop.permute.xlu0 %2878
        %2880 = vrot.lane.b32.xlu0 %v2863, 64
        %v2881 = vpop.permute.xlu0 %2880
        %2891 = vst.msk [vmem:[#allocation4 + $0x4] sm:$0xf] %vm2724, %v2865
        %2892 = vst.msk [vmem:[#allocation4 + $0x18] sm:$0xf] %vm2724, %v2867
        %2893 = vst.msk [vmem:[#allocation4 + $0x2c] sm:$0xf] %vm2724, %v2869
        %2894 = vst.msk [vmem:[#allocation4 + $0x40] sm:$0xf] %vm2724, %v2871
        %2895 = vst.msk [vmem:[#allocation4 + $0x54] sm:$0xf] %vm2724, %v2873
        %2896 = vst.msk [vmem:[#allocation4 + $0x68] sm:$0xf] %vm2724, %v2875
        %2897 = vst.msk [vmem:[#allocation4 + $0x7c] sm:$0xf] %vm2724, %v2877
        %2898 = vst.msk [vmem:[#allocation4 + $0x90] sm:$0xf] %vm2724, %v2879
        %2899 = vst.msk [vmem:[#allocation4 + $0xa4] sm:$0x7] %vm2733, %v2881
        %v2900 = vld [vmem:[#allocation3] sm:$0xe0]
        %v2901 = vld [vmem:[#allocation3 + $0x8] sm:$0xff]
        %v2902 = vld [vmem:[#allocation3 + $0x10] sm:$0xff]
        %v2903 = vld [vmem:[#allocation3 + $0x18] sm:$0xff]
        %v2904 = vld [vmem:[#allocation3 + $0x20] sm:$0xff]
        %v2905 = vld [vmem:[#allocation3 + $0x28] sm:$0x1]
        %v2912 = vunpack.c.h.b16 %v2900
        %v2913 = vunpack.c.l.b16 %v2901
        %v2914 = vunpack.c.h.b16 %v2901
        %v2915 = vunpack.c.l.b16 %v2902
        %v2916 = vunpack.c.h.b16 %v2902
        %v2917 = vunpack.c.l.b16 %v2903
        %v2918 = vunpack.c.h.b16 %v2903
        %v2919 = vunpack.c.l.b16 %v2904
        %v2920 = vunpack.c.h.b16 %v2904
        %v2921 = vunpack.c.l.b16 %v2905
        %v2922 = vpack.c.b16 %v2912, %v2912
        %v2923 = vpack.c.b16 %v2913, %v2913
        %v2924 = vpack.c.b16 %v2914, %v2914
        %v2925 = vpack.c.b16 %v2915, %v2915
        %v2926 = vpack.c.b16 %v2916, %v2916
        %v2927 = vpack.c.b16 %v2917, %v2917
        %v2928 = vpack.c.b16 %v2918, %v2918
        %v2929 = vpack.c.b16 %v2919, %v2919
        %v2930 = vpack.c.b16 %v2920, %v2920
        %v2931 = vpack.c.b16 %v2921, %v2921
        %vm2932 = vsmask.f32 2304
        %vm2933 = vsmask.f32 6416
        %vm2934 = vmor %vm2932, %vm2933
        %v2936 = vshrl.u32 %v2922, 16
        %v2938 = vrot.slane %v2936, 5
        %v2939 = vshll.u32 %v2922, 16
        %v2941 = vrot.slane %v2939, 6
        %v2942 = vor.u32 %v2938, %v2941
        %v2943 = vrot.slane %v2942, 4
        %v2945 = vshrl.u32 %v2923, 16
        %v2947 = vrot.slane %v2945, 5
        %v2948 = vshll.u32 %v2923, 16
        %v2950 = vrot.slane %v2948, 6
        %v2951 = vor.u32 %v2947, %v2950
        %v2952 = vsel %vm2934, %v2943, %v2951
        %v2953 = vrot.slane %v2951, 4
        %v2955 = vshrl.u32 %v2924, 16
        %v2957 = vrot.slane %v2955, 5
        %v2958 = vshll.u32 %v2924, 16
        %v2960 = vrot.slane %v2958, 6
        %v2961 = vor.u32 %v2957, %v2960
        %v2962 = vsel %vm2934, %v2953, %v2961
        %v2963 = vrot.slane %v2961, 4
        %v2965 = vshrl.u32 %v2925, 16
        %v2967 = vrot.slane %v2965, 5
        %v2968 = vshll.u32 %v2925, 16
        %v2970 = vrot.slane %v2968, 6
        %v2971 = vor.u32 %v2967, %v2970
        %v2972 = vsel %vm2934, %v2963, %v2971
        %v2973 = vrot.slane %v2971, 4
        %v2975 = vshrl.u32 %v2926, 16
        %v2977 = vrot.slane %v2975, 5
        %v2978 = vshll.u32 %v2926, 16
        %v2980 = vrot.slane %v2978, 6
        %v2981 = vor.u32 %v2977, %v2980
        %v2982 = vsel %vm2934, %v2973, %v2981
        %v2983 = vrot.slane %v2981, 4
        %v2985 = vshrl.u32 %v2927, 16
        %v2987 = vrot.slane %v2985, 5
        %v2988 = vshll.u32 %v2927, 16
        %v2990 = vrot.slane %v2988, 6
        %v2991 = vor.u32 %v2987, %v2990
        %v2992 = vsel %vm2934, %v2983, %v2991
        %v2993 = vrot.slane %v2991, 4
        %v2995 = vshrl.u32 %v2928, 16
        %v2997 = vrot.slane %v2995, 5
        %v2998 = vshll.u32 %v2928, 16
        %v3000 = vrot.slane %v2998, 6
        %v3001 = vor.u32 %v2997, %v3000
        %v3002 = vsel %vm2934, %v2993, %v3001
        %v3003 = vrot.slane %v3001, 4
        %v3005 = vshrl.u32 %v2929, 16
        %v3007 = vrot.slane %v3005, 5
        %v3008 = vshll.u32 %v2929, 16
        %v3010 = vrot.slane %v3008, 6
        %v3011 = vor.u32 %v3007, %v3010
        %v3012 = vsel %vm2934, %v3003, %v3011
        %v3013 = vrot.slane %v3011, 4
        %v3015 = vshrl.u32 %v2930, 16
        %v3017 = vrot.slane %v3015, 5
        %v3018 = vshll.u32 %v2930, 16
        %v3020 = vrot.slane %v3018, 6
        %v3021 = vor.u32 %v3017, %v3020
        %v3022 = vsel %vm2934, %v3013, %v3021
        %v3023 = vrot.slane %v3021, 4
        %v3025 = vshll.u32 %v2931, 16
        %v3027 = vrot.slane %v3025, 6
        %v3028 = vsel %vm2934, %v3023, %v3027
        %3038 = vst.msk [vmem:[#allocation4 + $0x8] sm:$0xf] %vm2566, %v2952
        %3039 = vst.msk [vmem:[#allocation4 + $0x1c] sm:$0xf] %vm2566, %v2962
        %3040 = vst.msk [vmem:[#allocation4 + $0x30] sm:$0xf] %vm2566, %v2972
        %3041 = vst.msk [vmem:[#allocation4 + $0x44] sm:$0xf] %vm2566, %v2982
        %3042 = vst.msk [vmem:[#allocation4 + $0x58] sm:$0xf] %vm2566, %v2992
        %3043 = vst.msk [vmem:[#allocation4 + $0x6c] sm:$0xf] %vm2566, %v3002
        %3044 = vst.msk [vmem:[#allocation4 + $0x80] sm:$0xf] %vm2566, %v3012
        %3045 = vst.msk [vmem:[#allocation4 + $0x94] sm:$0xf] %vm2566, %v3022
        %3046 = vst.msk [vmem:[#allocation4 + $0xa8] sm:$0x7] %vm2575, %v3028
        %v3047 = vld [vmem:[#allocation3] sm:$0xc0]
        %v3048 = vld [vmem:[#allocation3 + $0x8] sm:$0xff]
        %v3049 = vld [vmem:[#allocation3 + $0x10] sm:$0xff]
        %v3050 = vld [vmem:[#allocation3 + $0x18] sm:$0xff]
        %v3051 = vld [vmem:[#allocation3 + $0x20] sm:$0xff]
        %v3052 = vld [vmem:[#allocation3 + $0x28] sm:$0x1]
        %v3059 = vunpack.c.h.b16 %v3047
        %v3060 = vunpack.c.l.b16 %v3048
        %v3061 = vunpack.c.h.b16 %v3048
        %v3062 = vunpack.c.l.b16 %v3049
        %v3063 = vunpack.c.h.b16 %v3049
        %v3064 = vunpack.c.l.b16 %v3050
        %v3065 = vunpack.c.h.b16 %v3050
        %v3066 = vunpack.c.l.b16 %v3051
        %v3067 = vunpack.c.h.b16 %v3051
        %v3068 = vunpack.c.l.b16 %v3052
        %v3069 = vpack.c.b16 %v3059, %v3059
        %v3070 = vpack.c.b16 %v3060, %v3060
        %v3071 = vpack.c.b16 %v3061, %v3061
        %v3072 = vpack.c.b16 %v3062, %v3062
        %v3073 = vpack.c.b16 %v3063, %v3063
        %v3074 = vpack.c.b16 %v3064, %v3064
        %v3075 = vpack.c.b16 %v3065, %v3065
        %v3076 = vpack.c.b16 %v3066, %v3066
        %v3077 = vpack.c.b16 %v3067, %v3067
        %v3078 = vpack.c.b16 %v3068, %v3068
        %vm3079 = vcmask 1041408
        %vm3080 = vcmask 1045508
        %vm3081 = vmor %vm3079, %vm3080
        %v3082 = vrot.slane %v3069, 6
        %v3083 = vrot.slane %v3082, 4
        %v3084 = vrot.slane %v3070, 6
        %v3085 = vsel %vm3081, %v3083, %v3084
        %v3086 = vrot.slane %v3084, 4
        %v3087 = vrot.slane %v3071, 6
        %v3088 = vsel %vm3081, %v3086, %v3087
        %v3089 = vrot.slane %v3087, 4
        %v3090 = vrot.slane %v3072, 6
        %v3091 = vsel %vm3081, %v3089, %v3090
        %v3092 = vrot.slane %v3090, 4
        %v3093 = vrot.slane %v3073, 6
        %v3094 = vsel %vm3081, %v3092, %v3093
        %v3095 = vrot.slane %v3093, 4
        %v3096 = vrot.slane %v3074, 6
        %v3097 = vsel %vm3081, %v3095, %v3096
        %v3098 = vrot.slane %v3096, 4
        %v3099 = vrot.slane %v3075, 6
        %v3100 = vsel %vm3081, %v3098, %v3099
        %v3101 = vrot.slane %v3099, 4
        %v3102 = vrot.slane %v3076, 6
        %v3103 = vsel %vm3081, %v3101, %v3102
        %v3104 = vrot.slane %v3102, 4
        %v3105 = vrot.slane %v3077, 6
        %v3106 = vsel %vm3081, %v3104, %v3105
        %v3107 = vrot.slane %v3105, 4
        %v3108 = vrot.slane %v3078, 6
        %v3109 = vsel %vm3081, %v3107, %v3108
        %3110 = vrot.lane.b32.xlu0 %v3085, 64
        %v3111 = vpop.permute.xlu0 %3110
        %3112 = vrot.lane.b32.xlu0 %v3088, 64
        %v3113 = vpop.permute.xlu0 %3112
        %3114 = vrot.lane.b32.xlu0 %v3091, 64
        %v3115 = vpop.permute.xlu0 %3114
        %3116 = vrot.lane.b32.xlu0 %v3094, 64
        %v3117 = vpop.permute.xlu0 %3116
        %3118 = vrot.lane.b32.xlu0 %v3097, 64
        %v3119 = vpop.permute.xlu0 %3118
        %3120 = vrot.lane.b32.xlu0 %v3100, 64
        %v3121 = vpop.permute.xlu0 %3120
        %3122 = vrot.lane.b32.xlu0 %v3103, 64
        %v3123 = vpop.permute.xlu0 %3122
        %3124 = vrot.lane.b32.xlu0 %v3106, 64
        %v3125 = vpop.permute.xlu0 %3124
        %3126 = vrot.lane.b32.xlu0 %v3109, 64
        %v3127 = vpop.permute.xlu0 %3126
        %3137 = vst.msk [vmem:[#allocation4 + $0x8] sm:$0xf] %vm2724, %v3111
        %3138 = vst.msk [vmem:[#allocation4 + $0x1c] sm:$0xf] %vm2724, %v3113
        %3139 = vst.msk [vmem:[#allocation4 + $0x30] sm:$0xf] %vm2724, %v3115
        %3140 = vst.msk [vmem:[#allocation4 + $0x44] sm:$0xf] %vm2724, %v3117
        %3141 = vst.msk [vmem:[#allocation4 + $0x58] sm:$0xf] %vm2724, %v3119
        %3142 = vst.msk [vmem:[#allocation4 + $0x6c] sm:$0xf] %vm2724, %v3121
        %3143 = vst.msk [vmem:[#allocation4 + $0x80] sm:$0xf] %vm2724, %v3123
        %3144 = vst.msk [vmem:[#allocation4 + $0x94] sm:$0xf] %vm2724, %v3125
        %3145 = vst.msk [vmem:[#allocation4 + $0xa8] sm:$0x7] %vm2733, %v3127
        %v3146 = vld [vmem:[#allocation3 + $0x8] sm:$0xfc]
        %v3147 = vld [vmem:[#allocation3 + $0x10] sm:$0xff]
        %v3148 = vld [vmem:[#allocation3 + $0x18] sm:$0xff]
        %v3149 = vld [vmem:[#allocation3 + $0x20] sm:$0xff]
        %v3150 = vld [vmem:[#allocation3 + $0x28] sm:$0x1f]
        %v3156 = vunpack.c.l.b16 %v3146
        %v3157 = vunpack.c.h.b16 %v3146
        %v3158 = vunpack.c.l.b16 %v3147
        %v3159 = vunpack.c.h.b16 %v3147
        %v3160 = vunpack.c.l.b16 %v3148
        %v3161 = vunpack.c.h.b16 %v3148
        %v3162 = vunpack.c.l.b16 %v3149
        %v3163 = vunpack.c.h.b16 %v3149
        %v3164 = vunpack.c.l.b16 %v3150
        %v3165 = vunpack.c.h.b16 %v3150
        %v3166 = vpack.c.b16 %v3156, %v3156
        %v3167 = vpack.c.b16 %v3157, %v3157
        %v3168 = vpack.c.b16 %v3158, %v3158
        %v3169 = vpack.c.b16 %v3159, %v3159
        %v3170 = vpack.c.b16 %v3160, %v3160
        %v3171 = vpack.c.b16 %v3161, %v3161
        %v3172 = vpack.c.b16 %v3162, %v3162
        %v3173 = vpack.c.b16 %v3163, %v3163
        %v3174 = vpack.c.b16 %v3164, %v3164
        %v3175 = vpack.c.b16 %v3165, %v3165
        %v3176 = vrot.slane %v3166, 6
        %v3177 = vrot.slane %v3176, 4
        %v3178 = vrot.slane %v3167, 6
        %v3179 = vsel %vm3081, %v3177, %v3178
        %v3180 = vrot.slane %v3178, 4
        %v3181 = vrot.slane %v3168, 6
        %v3182 = vsel %vm3081, %v3180, %v3181
        %v3183 = vrot.slane %v3181, 4
        %v3184 = vrot.slane %v3169, 6
        %v3185 = vsel %vm3081, %v3183, %v3184
        %v3186 = vrot.slane %v3184, 4
        %v3187 = vrot.slane %v3170, 6
        %v3188 = vsel %vm3081, %v3186, %v3187
        %v3189 = vrot.slane %v3187, 4
        %v3190 = vrot.slane %v3171, 6
        %v3191 = vsel %vm3081, %v3189, %v3190
        %v3192 = vrot.slane %v3190, 4
        %v3193 = vrot.slane %v3172, 6
        %v3194 = vsel %vm3081, %v3192, %v3193
        %v3195 = vrot.slane %v3193, 4
        %v3196 = vrot.slane %v3173, 6
        %v3197 = vsel %vm3081, %v3195, %v3196
        %v3198 = vrot.slane %v3196, 4
        %v3199 = vrot.slane %v3174, 6
        %v3200 = vsel %vm3081, %v3198, %v3199
        %v3201 = vrot.slane %v3199, 4
        %v3202 = vrot.slane %v3175, 6
        %v3203 = vsel %vm3081, %v3201, %v3202
        %3213 = vst.msk [vmem:[#allocation4 + $0xc] sm:$0xf] %vm2566, %v3179
        %3214 = vst.msk [vmem:[#allocation4 + $0x20] sm:$0xf] %vm2566, %v3182
        %3215 = vst.msk [vmem:[#allocation4 + $0x34] sm:$0xf] %vm2566, %v3185
        %3216 = vst.msk [vmem:[#allocation4 + $0x48] sm:$0xf] %vm2566, %v3188
        %3217 = vst.msk [vmem:[#allocation4 + $0x5c] sm:$0xf] %vm2566, %v3191
        %3218 = vst.msk [vmem:[#allocation4 + $0x70] sm:$0xf] %vm2566, %v3194
        %3219 = vst.msk [vmem:[#allocation4 + $0x84] sm:$0xf] %vm2566, %v3197
        %3220 = vst.msk [vmem:[#allocation4 + $0x98] sm:$0xf] %vm2566, %v3200
        %3221 = vst.msk [vmem:[#allocation4 + $0xac] sm:$0x7] %vm2575, %v3203
        %v3222 = vld [vmem:[#allocation3 + $0x8] sm:$0xfc]
        %v3223 = vld [vmem:[#allocation3 + $0x10] sm:$0xff]
        %v3224 = vld [vmem:[#allocation3 + $0x18] sm:$0xff]
        %v3225 = vld [vmem:[#allocation3 + $0x20] sm:$0xff]
        %v3226 = vld [vmem:[#allocation3 + $0x28] sm:$0x3f]
        %v3232 = vunpack.c.l.b16 %v3222
        %v3233 = vunpack.c.h.b16 %v3222
        %v3234 = vunpack.c.l.b16 %v3223
        %v3235 = vunpack.c.h.b16 %v3223
        %v3236 = vunpack.c.l.b16 %v3224
        %v3237 = vunpack.c.h.b16 %v3224
        %v3238 = vunpack.c.l.b16 %v3225
        %v3239 = vunpack.c.h.b16 %v3225
        %v3240 = vunpack.c.l.b16 %v3226
        %v3241 = vunpack.c.h.b16 %v3226
        %v3242 = vpack.c.b16 %v3232, %v3232
        %v3243 = vpack.c.b16 %v3233, %v3233
        %v3244 = vpack.c.b16 %v3234, %v3234
        %v3245 = vpack.c.b16 %v3235, %v3235
        %v3246 = vpack.c.b16 %v3236, %v3236
        %v3247 = vpack.c.b16 %v3237, %v3237
        %v3248 = vpack.c.b16 %v3238, %v3238
        %v3249 = vpack.c.b16 %v3239, %v3239
        %v3250 = vpack.c.b16 %v3240, %v3240
        %v3251 = vpack.c.b16 %v3241, %v3241
        %vm3252 = vsmask.f32 1280
        %vm3253 = vsmask.f32 5392
        %vm3254 = vmor %vm3252, %vm3253
        %v3256 = vshrl.u32 %v3242, 16
        %v3258 = vrot.slane %v3256, 6
        %v3259 = vshll.u32 %v3242, 16
        %v3261 = vrot.slane %v3259, 7
        %v3262 = vor.u32 %v3258, %v3261
        %v3263 = vrot.slane %v3262, 4
        %v3265 = vshrl.u32 %v3243, 16
        %v3267 = vrot.slane %v3265, 6
        %v3268 = vshll.u32 %v3243, 16
        %v3270 = vrot.slane %v3268, 7
        %v3271 = vor.u32 %v3267, %v3270
        %v3272 = vsel %vm3254, %v3263, %v3271
        %v3273 = vrot.slane %v3271, 4
        %v3275 = vshrl.u32 %v3244, 16
        %v3277 = vrot.slane %v3275, 6
        %v3278 = vshll.u32 %v3244, 16
        %v3280 = vrot.slane %v3278, 7
        %v3281 = vor.u32 %v3277, %v3280
        %v3282 = vsel %vm3254, %v3273, %v3281
        %v3283 = vrot.slane %v3281, 4
        %v3285 = vshrl.u32 %v3245, 16
        %v3287 = vrot.slane %v3285, 6
        %v3288 = vshll.u32 %v3245, 16
        %v3290 = vrot.slane %v3288, 7
        %v3291 = vor.u32 %v3287, %v3290
        %v3292 = vsel %vm3254, %v3283, %v3291
        %v3293 = vrot.slane %v3291, 4
        %v3295 = vshrl.u32 %v3246, 16
        %v3297 = vrot.slane %v3295, 6
        %v3298 = vshll.u32 %v3246, 16
        %v3300 = vrot.slane %v3298, 7
        %v3301 = vor.u32 %v3297, %v3300
        %v3302 = vsel %vm3254, %v3293, %v3301
        %v3303 = vrot.slane %v3301, 4
        %v3305 = vshrl.u32 %v3247, 16
        %v3307 = vrot.slane %v3305, 6
        %v3308 = vshll.u32 %v3247, 16
        %v3310 = vrot.slane %v3308, 7
        %v3311 = vor.u32 %v3307, %v3310
        %v3312 = vsel %vm3254, %v3303, %v3311
        %v3313 = vrot.slane %v3311, 4
        %v3315 = vshrl.u32 %v3248, 16
        %v3317 = vrot.slane %v3315, 6
        %v3318 = vshll.u32 %v3248, 16
        %v3320 = vrot.slane %v3318, 7
        %v3321 = vor.u32 %v3317, %v3320
        %v3322 = vsel %vm3254, %v3313, %v3321
        %v3323 = vrot.slane %v3321, 4
        %v3325 = vshrl.u32 %v3249, 16
        %v3327 = vrot.slane %v3325, 6
        %v3328 = vshll.u32 %v3249, 16
        %v3330 = vrot.slane %v3328, 7
        %v3331 = vor.u32 %v3327, %v3330
        %v3332 = vsel %vm3254, %v3323, %v3331
        %v3333 = vrot.slane %v3331, 4
        %v3335 = vshrl.u32 %v3250, 16
        %v3337 = vrot.slane %v3335, 6
        %v3338 = vshll.u32 %v3250, 16
        %v3340 = vrot.slane %v3338, 7
        %v3341 = vor.u32 %v3337, %v3340
        %v3342 = vsel %vm3254, %v3333, %v3341
        %v3343 = vrot.slane %v3341, 4
        %v3345 = vshrl.u32 %v3251, 16
        %v3347 = vrot.slane %v3345, 6
        %v3348 = vshll.u32 %v3251, 16
        %v3350 = vrot.slane %v3348, 7
        %v3351 = vor.u32 %v3347, %v3350
        %v3352 = vsel %vm3254, %v3343, %v3351
        %3353 = vrot.lane.b32.xlu0 %v3272, 64
        %v3354 = vpop.permute.xlu0 %3353
        %3355 = vrot.lane.b32.xlu0 %v3282, 64
        %v3356 = vpop.permute.xlu0 %3355
        %3357 = vrot.lane.b32.xlu0 %v3292, 64
        %v3358 = vpop.permute.xlu0 %3357
        %3359 = vrot.lane.b32.xlu0 %v3302, 64
        %v3360 = vpop.permute.xlu0 %3359
        %3361 = vrot.lane.b32.xlu0 %v3312, 64
        %v3362 = vpop.permute.xlu0 %3361
        %3363 = vrot.lane.b32.xlu0 %v3322, 64
        %v3364 = vpop.permute.xlu0 %3363
        %3365 = vrot.lane.b32.xlu0 %v3332, 64
        %v3366 = vpop.permute.xlu0 %3365
        %3367 = vrot.lane.b32.xlu0 %v3342, 64
        %v3368 = vpop.permute.xlu0 %3367
        %3369 = vrot.lane.b32.xlu0 %v3352, 64
        %v3370 = vpop.permute.xlu0 %3369
        %3380 = vst.msk [vmem:[#allocation4 + $0xc] sm:$0xf] %vm2724, %v3354
        %3381 = vst.msk [vmem:[#allocation4 + $0x20] sm:$0xf] %vm2724, %v3356
        %3382 = vst.msk [vmem:[#allocation4 + $0x34] sm:$0xf] %vm2724, %v3358
        %3383 = vst.msk [vmem:[#allocation4 + $0x48] sm:$0xf] %vm2724, %v3360
        %3384 = vst.msk [vmem:[#allocation4 + $0x5c] sm:$0xf] %vm2724, %v3362
        %3385 = vst.msk [vmem:[#allocation4 + $0x70] sm:$0xf] %vm2724, %v3364
        %3386 = vst.msk [vmem:[#allocation4 + $0x84] sm:$0xf] %vm2724, %v3366
        %3387 = vst.msk [vmem:[#allocation4 + $0x98] sm:$0xf] %vm2724, %v3368
        %3388 = vst.msk [vmem:[#allocation4 + $0xac] sm:$0x7] %vm2733, %v3370
        %v3389 = vld [vmem:[#allocation3 + $0x8] sm:$0xf8]
        %v3390 = vld [vmem:[#allocation3 + $0x10] sm:$0xff]
        %v3391 = vld [vmem:[#allocation3 + $0x18] sm:$0xff]
        %v3392 = vld [vmem:[#allocation3 + $0x20] sm:$0xff]
        %v3393 = vld [vmem:[#allocation3 + $0x28] sm:$0x3f]
        %v3399 = vunpack.c.l.b16 %v3389
        %v3400 = vunpack.c.h.b16 %v3389
        %v3401 = vunpack.c.l.b16 %v3390
        %v3402 = vunpack.c.h.b16 %v3390
        %v3403 = vunpack.c.l.b16 %v3391
        %v3404 = vunpack.c.h.b16 %v3391
        %v3405 = vunpack.c.l.b16 %v3392
        %v3406 = vunpack.c.h.b16 %v3392
        %v3407 = vunpack.c.l.b16 %v3393
        %v3408 = vunpack.c.h.b16 %v3393
        %v3409 = vpack.c.b16 %v3399, %v3399
        %v3410 = vpack.c.b16 %v3400, %v3400
        %v3411 = vpack.c.b16 %v3401, %v3401
        %v3412 = vpack.c.b16 %v3402, %v3402
        %v3413 = vpack.c.b16 %v3403, %v3403
        %v3414 = vpack.c.b16 %v3404, %v3404
        %v3415 = vpack.c.b16 %v3405, %v3405
        %v3416 = vpack.c.b16 %v3406, %v3406
        %v3417 = vpack.c.b16 %v3407, %v3407
        %v3418 = vpack.c.b16 %v3408, %v3408
        %vm3419 = vcmask 1040384
        %vm3420 = vcmask 1044484
        %vm3421 = vmor %vm3419, %vm3420
        %v3422 = vrot.slane %v3409, 7
        %v3423 = vrot.slane %v3422, 4
        %v3424 = vrot.slane %v3410, 7
        %v3425 = vsel %vm3421, %v3423, %v3424
        %v3426 = vrot.slane %v3424, 4
        %v3427 = vrot.slane %v3411, 7
        %v3428 = vsel %vm3421, %v3426, %v3427
        %v3429 = vrot.slane %v3427, 4
        %v3430 = vrot.slane %v3412, 7
        %v3431 = vsel %vm3421, %v3429, %v3430
        %v3432 = vrot.slane %v3430, 4
        %v3433 = vrot.slane %v3413, 7
        %v3434 = vsel %vm3421, %v3432, %v3433
        %v3435 = vrot.slane %v3433, 4
        %v3436 = vrot.slane %v3414, 7
        %v3437 = vsel %vm3421, %v3435, %v3436
        %v3438 = vrot.slane %v3436, 4
        %v3439 = vrot.slane %v3415, 7
        %v3440 = vsel %vm3421, %v3438, %v3439
        %v3441 = vrot.slane %v3439, 4
        %v3442 = vrot.slane %v3416, 7
        %v3443 = vsel %vm3421, %v3441, %v3442
        %v3444 = vrot.slane %v3442, 4
        %v3445 = vrot.slane %v3417, 7
        %v3446 = vsel %vm3421, %v3444, %v3445
        %v3447 = vrot.slane %v3445, 4
        %v3448 = vrot.slane %v3418, 7
        %v3449 = vsel %vm3421, %v3447, %v3448
        %3459 = vst.msk [vmem:[#allocation4 + $0x10] sm:$0xf] %vm2566, %v3425
        %3460 = vst.msk [vmem:[#allocation4 + $0x24] sm:$0xf] %vm2566, %v3428
        %3461 = vst.msk [vmem:[#allocation4 + $0x38] sm:$0xf] %vm2566, %v3431
        %3462 = vst.msk [vmem:[#allocation4 + $0x4c] sm:$0xf] %vm2566, %v3434
        %3463 = vst.msk [vmem:[#allocation4 + $0x60] sm:$0xf] %vm2566, %v3437
        %3464 = vst.msk [vmem:[#allocation4 + $0x74] sm:$0xf] %vm2566, %v3440
        %3465 = vst.msk [vmem:[#allocation4 + $0x88] sm:$0xf] %vm2566, %v3443
        %3466 = vst.msk [vmem:[#allocation4 + $0x9c] sm:$0xf] %vm2566, %v3446
        %3467 = vst.msk [vmem:[#allocation4 + $0xb0] sm:$0x7] %vm2575, %v3449
        %v3468 = vld [vmem:[#allocation4] sm:$0xff]
        %v3469 = vld [vmem:[#allocation4 + $0x8] sm:$0xff]
        %v3470 = vld [vmem:[#allocation4 + $0x10] sm:$0xf]
        %v3471 = vld [vmem:[#allocation4 + $0x14] sm:$0xff]
        %v3472 = vld [vmem:[#allocation4 + $0x1c] sm:$0xff]
        %v3473 = vld [vmem:[#allocation4 + $0x24] sm:$0xf]
        %v3474 = vld [vmem:[#allocation4 + $0x28] sm:$0xff]
        %v3475 = vld [vmem:[#allocation4 + $0x30] sm:$0xff]
        %v3476 = vld [vmem:[#allocation4 + $0x38] sm:$0xf]
        %v3477 = vld [vmem:[#allocation4 + $0x3c] sm:$0xff]
        %v3478 = vld [vmem:[#allocation4 + $0x44] sm:$0xff]
        %v3479 = vld [vmem:[#allocation4 + $0x4c] sm:$0xf]
        %v3480 = vld [vmem:[#allocation4 + $0x50] sm:$0xff]
        %v3481 = vld [vmem:[#allocation4 + $0x58] sm:$0xff]
        %v3482 = vld [vmem:[#allocation4 + $0x60] sm:$0xf]
        %v3483 = vld [vmem:[#allocation4 + $0x64] sm:$0xff]
        %v3484 = vld [vmem:[#allocation4 + $0x6c] sm:$0xff]
        %v3485 = vld [vmem:[#allocation4 + $0x74] sm:$0xf]
        %v3486 = vld [vmem:[#allocation4 + $0x78] sm:$0xff]
        %v3487 = vld [vmem:[#allocation4 + $0x80] sm:$0xff]
        %v3488 = vld [vmem:[#allocation4 + $0x88] sm:$0xf]
        %v3489 = vld [vmem:[#allocation4 + $0x8c] sm:$0xff]
        %v3490 = vld [vmem:[#allocation4 + $0x94] sm:$0xff]
        %v3491 = vld [vmem:[#allocation4 + $0x9c] sm:$0xf]
        %v3492 = vld [vmem:[#allocation4 + $0xa0] sm:$0x77]
        %v3493 = vld [vmem:[#allocation4 + $0xa8] sm:$0x77]
        %v3494 = vld [vmem:[#allocation4 + $0xb0] sm:$0x7]
        %v3495 = vld [vmem:[%s5] sm:$0xf]
        %v3496 = vld [vmem:[%s5 + $0x4] sm:$0xf]
        %v3497 = vld [vmem:[%s5 + $0x8] sm:$0xf]
        %v3498 = vld [vmem:[%s5 + $0xc] sm:$0xf]
        %v3499 = vld [vmem:[%s5 + $0x10] sm:$0xf]
        %v3500 = vld [vmem:[%s5 + $0x14] sm:$0xf]
        %v3501 = vld [vmem:[%s5 + $0x18] sm:$0xf]
        %v3502 = vld [vmem:[%s5 + $0x1c] sm:$0xf]
        %v3503 = vld [vmem:[%s5 + $0x20] sm:$0xf]
        %v3504 = vld [vmem:[%s5 + $0x24] sm:$0xf]
        %v3505 = vld [vmem:[%s5 + $0x28] sm:$0xf]
        %v3506 = vld [vmem:[%s5 + $0x2c] sm:$0xf]
        %v3507 = vld [vmem:[%s5 + $0x30] sm:$0xf]
        %v3508 = vld [vmem:[%s5 + $0x34] sm:$0xf]
        %v3509 = vld [vmem:[%s5 + $0x38] sm:$0xf]
        %v3510 = vld [vmem:[%s5 + $0x3c] sm:$0xf]
        %v3511 = vld [vmem:[%s5 + $0x40] sm:$0xf]
        %v3512 = vld [vmem:[%s5 + $0x44] sm:$0xf]
        %v3513 = vld [vmem:[%s5 + $0x48] sm:$0xf]
        %v3514 = vld [vmem:[%s5 + $0x4c] sm:$0xf]
        %v3515 = vld [vmem:[%s5 + $0x50] sm:$0xf]
        %v3516 = vld [vmem:[%s5 + $0x54] sm:$0xf]
        %v3517 = vld [vmem:[%s5 + $0x58] sm:$0xf]
        %v3518 = vld [vmem:[%s5 + $0x5c] sm:$0xf]
        %v3519 = vld [vmem:[%s5 + $0x60] sm:$0xf]
        %v3520 = vld [vmem:[%s5 + $0x64] sm:$0xf]
        %v3521 = vld [vmem:[%s5 + $0x68] sm:$0xf]
        %v3522 = vld [vmem:[%s5 + $0x6c] sm:$0xf]
        %v3523 = vld [vmem:[%s5 + $0x70] sm:$0xf]
        %v3524 = vld [vmem:[%s5 + $0x74] sm:$0xf]
        %v3525 = vld [vmem:[%s5 + $0x78] sm:$0xf]
        %v3526 = vld [vmem:[%s5 + $0x7c] sm:$0xf]
        %v3527 = vld [vmem:[%s5 + $0x80] sm:$0xf]
        %v3528 = vld [vmem:[%s5 + $0x84] sm:$0xf]
        %v3529 = vld [vmem:[%s5 + $0x88] sm:$0xf]
        %v3530 = vld [vmem:[%s5 + $0x8c] sm:$0xf]
        %v3531 = vld [vmem:[%s5 + $0x90] sm:$0xf]
        %v3532 = vld [vmem:[%s5 + $0x94] sm:$0xf]
        %v3533 = vld [vmem:[%s5 + $0x98] sm:$0xf]
        %v3534 = vld [vmem:[%s5 + $0x9c] sm:$0xf]
        %v3535 = vld [vmem:[%s5 + $0xa0] sm:$0xf]
        %v3536 = vld [vmem:[%s5 + $0xa4] sm:$0xf]
        %v3537 = vld [vmem:[%s5 + $0xa8] sm:$0xf]
        %v3538 = vld [vmem:[%s5 + $0xac] sm:$0xf]
        %v3539 = vld [vmem:[%s5 + $0xb0] sm:$0xf]
        %v3540 = vld [vmem:[%s5 + $0xb4] sm:$0xf]
        %v3541 = vld [vmem:[%s5 + $0xb8] sm:$0xf]
        %v3542 = vld [vmem:[%s5 + $0xbc] sm:$0xf]
        %v3543 = vld [vmem:[%s5 + $0xc0] sm:$0xf]
        %v3544 = vld [vmem:[%s5 + $0xc4] sm:$0xf]
        %v3545 = vld [vmem:[%s5 + $0xc8] sm:$0xf]
        %v3546 = vld [vmem:[%s5 + $0xcc] sm:$0xf]
        %v3547 = vld [vmem:[%s5 + $0xd0] sm:$0xf]
        %v3548 = vld [vmem:[%s5 + $0xd4] sm:$0xf]
        %v3549 = vld [vmem:[%s5 + $0xd8] sm:$0xf]
        %v3550 = vld [vmem:[%s5 + $0xdc] sm:$0xf]
        %v3551 = vld [vmem:[%s5 + $0xe0] sm:$0xf]
        %v3552 = vld [vmem:[%s5 + $0xe4] sm:$0xf]
        %v3553 = vld [vmem:[%s5 + $0xe8] sm:$0xf]
        %v3554 = vld [vmem:[%s5 + $0xec] sm:$0xf]
        %v3555 = vld [vmem:[%s5 + $0xf0] sm:$0xf]
        %v3556 = vld [vmem:[%s5 + $0xf4] sm:$0xf]
        %v3557 = vld [vmem:[%s5 + $0xf8] sm:$0xf]
        %v3558 = vld [vmem:[%s5 + $0xfc] sm:$0xf]
        %v3559 = vld [vmem:[%s5 + $0x100] sm:$0xf]
        %v3560 = vld [vmem:[%s5 + $0x104] sm:$0xf]
        %v3561 = vld [vmem:[%s5 + $0x108] sm:$0xf]
        %v3562 = vld [vmem:[%s5 + $0x10c] sm:$0xf]
        %v3563 = vld [vmem:[%s5 + $0x110] sm:$0xf]
        %v3564 = vld [vmem:[%s5 + $0x114] sm:$0xf]
        %v3565 = vld [vmem:[%s5 + $0x118] sm:$0xf]
        %v3566 = vld [vmem:[%s5 + $0x11c] sm:$0xf]
        %v3567 = vld [vmem:[%s6] sm:$0x1]
        %v3569 = vlaneseq
        %v3570 = vshrl.u32 %v3569, 7
        %v3571 = vsub.s32 0, %v3570
        %v3572 = vrot.slane %v3567, %v3571
        %v3601 = vunpack.c.l.b16 %v3468
        %v3602 = vunpack.c.h.b16 %v3468
        %v3603 = vunpack.c.l.b16 %v3469
        %v3604 = vunpack.c.h.b16 %v3469
        %v3605 = vunpack.c.l.b16 %v3470
        %v3606 = vunpack.c.l.b16 %v3471
        %v3607 = vunpack.c.h.b16 %v3471
        %v3608 = vunpack.c.l.b16 %v3472
        %v3609 = vunpack.c.h.b16 %v3472
        %v3610 = vunpack.c.l.b16 %v3473
        %v3611 = vunpack.c.l.b16 %v3474
        %v3612 = vunpack.c.h.b16 %v3474
        %v3613 = vunpack.c.l.b16 %v3475
        %v3614 = vunpack.c.h.b16 %v3475
        %v3615 = vunpack.c.l.b16 %v3476
        %v3616 = vunpack.c.l.b16 %v3477
        %v3617 = vunpack.c.h.b16 %v3477
        %v3618 = vunpack.c.l.b16 %v3478
        %v3619 = vunpack.c.h.b16 %v3478
        %v3620 = vunpack.c.l.b16 %v3479
        %v3621 = vunpack.c.l.b16 %v3480
        %v3622 = vunpack.c.h.b16 %v3480
        %v3623 = vunpack.c.l.b16 %v3481
        %v3624 = vunpack.c.h.b16 %v3481
        %v3625 = vunpack.c.l.b16 %v3482
        %v3626 = vunpack.c.l.b16 %v3483
        %v3627 = vunpack.c.h.b16 %v3483
        %v3628 = vunpack.c.l.b16 %v3484
        %v3629 = vunpack.c.h.b16 %v3484
        %v3630 = vunpack.c.l.b16 %v3485
        %v3631 = vunpack.c.l.b16 %v3486
        %v3632 = vunpack.c.h.b16 %v3486
        %v3633 = vunpack.c.l.b16 %v3487
        %v3634 = vunpack.c.h.b16 %v3487
        %v3635 = vunpack.c.l.b16 %v3488
        %v3636 = vunpack.c.l.b16 %v3489
        %v3637 = vunpack.c.h.b16 %v3489
        %v3638 = vunpack.c.l.b16 %v3490
        %v3639 = vunpack.c.h.b16 %v3490
        %v3640 = vunpack.c.l.b16 %v3491
        %v3641 = vunpack.c.l.b16 %v3492
        %v3642 = vunpack.c.h.b16 %v3492
        %v3643 = vunpack.c.l.b16 %v3493
        %v3644 = vunpack.c.h.b16 %v3493
        %v3645 = vunpack.c.l.b16 %v3494
        %v3646 = vpack.c.b16 %v3606, %v3601
        %v3647 = vpack.c.b16 %v3607, %v3602
        %v3648 = vpack.c.b16 %v3608, %v3603
        %v3649 = vpack.c.b16 %v3609, %v3604
        %v3650 = vpack.c.b16 %v3610, %v3605
        %v3651 = vpack.c.b16 %v3616, %v3611
        %v3652 = vpack.c.b16 %v3617, %v3612
        %v3653 = vpack.c.b16 %v3618, %v3613
        %v3654 = vpack.c.b16 %v3619, %v3614
        %v3655 = vpack.c.b16 %v3620, %v3615
        %v3656 = vpack.c.b16 %v3626, %v3621
        %v3657 = vpack.c.b16 %v3627, %v3622
        %v3658 = vpack.c.b16 %v3628, %v3623
        %v3659 = vpack.c.b16 %v3629, %v3624
        %v3660 = vpack.c.b16 %v3630, %v3625
        %v3661 = vpack.c.b16 %v3636, %v3631
        %v3662 = vpack.c.b16 %v3637, %v3632
        %v3663 = vpack.c.b16 %v3638, %v3633
        %v3664 = vpack.c.b16 %v3639, %v3634
        %v3665 = vpack.c.b16 %v3640, %v3635
        %v3666 = vpack.c.b16 %v3641, %v3641
        %v3667 = vpack.c.b16 %v3642, %v3642
        %v3668 = vpack.c.b16 %v3643, %v3643
        %v3669 = vpack.c.b16 %v3644, %v3644
        %v3670 = vpack.c.b16 %v3645, %v3645
        %v3763 = vunpack.c.l.b16 %v3495
        %v3764 = vunpack.c.l.b16 %v3496
        %v3765 = vunpack.c.l.b16 %v3497
        %v3766 = vunpack.c.l.b16 %v3498
        %v3767 = vunpack.c.l.b16 %v3499
        %v3768 = vunpack.c.l.b16 %v3500
        %v3769 = vunpack.c.l.b16 %v3501
        %v3770 = vunpack.c.l.b16 %v3502
        %v3771 = vunpack.c.l.b16 %v3503
        %v3772 = vunpack.c.l.b16 %v3504
        %v3773 = vunpack.c.l.b16 %v3505
        %v3774 = vunpack.c.l.b16 %v3506
        %v3775 = vunpack.c.l.b16 %v3507
        %v3776 = vunpack.c.l.b16 %v3508
        %v3777 = vunpack.c.l.b16 %v3509
        %v3778 = vunpack.c.l.b16 %v3510
        %v3779 = vunpack.c.l.b16 %v3511
        %v3780 = vunpack.c.l.b16 %v3512
        %v3781 = vunpack.c.l.b16 %v3513
        %v3782 = vunpack.c.l.b16 %v3514
        %v3783 = vunpack.c.l.b16 %v3515
        %v3784 = vunpack.c.l.b16 %v3516
        %v3785 = vunpack.c.l.b16 %v3517
        %v3786 = vunpack.c.l.b16 %v3518
        %v3787 = vunpack.c.l.b16 %v3519
        %v3788 = vunpack.c.l.b16 %v3520
        %v3789 = vunpack.c.l.b16 %v3521
        %v3790 = vunpack.c.l.b16 %v3522
        %v3791 = vunpack.c.l.b16 %v3523
        %v3792 = vunpack.c.l.b16 %v3524
        %v3793 = vunpack.c.l.b16 %v3525
        %v3794 = vunpack.c.l.b16 %v3526
        %v3795 = vunpack.c.l.b16 %v3527
        %v3796 = vunpack.c.l.b16 %v3528
        %v3797 = vunpack.c.l.b16 %v3529
        %v3798 = vunpack.c.l.b16 %v3530
        %v3799 = vunpack.c.l.b16 %v3531
        %v3800 = vunpack.c.l.b16 %v3532
        %v3801 = vunpack.c.l.b16 %v3533
        %v3802 = vunpack.c.l.b16 %v3534
        %v3803 = vunpack.c.l.b16 %v3535
        %v3804 = vunpack.c.l.b16 %v3536
        %v3805 = vunpack.c.l.b16 %v3537
        %v3806 = vunpack.c.l.b16 %v3538
        %v3807 = vunpack.c.l.b16 %v3539
        %v3808 = vunpack.c.l.b16 %v3540
        %v3809 = vunpack.c.l.b16 %v3541
        %v3810 = vunpack.c.l.b16 %v3542
        %v3811 = vunpack.c.l.b16 %v3543
        %v3812 = vunpack.c.l.b16 %v3544
        %v3813 = vunpack.c.l.b16 %v3545
        %v3814 = vunpack.c.l.b16 %v3546
        %v3815 = vunpack.c.l.b16 %v3547
        %v3816 = vunpack.c.l.b16 %v3548
        %v3817 = vunpack.c.l.b16 %v3549
        %v3818 = vunpack.c.l.b16 %v3550
        %v3819 = vunpack.c.l.b16 %v3551
        %v3820 = vunpack.c.l.b16 %v3552
        %v3821 = vunpack.c.l.b16 %v3553
        %v3822 = vunpack.c.l.b16 %v3554
        %v3823 = vunpack.c.l.b16 %v3555
        %v3824 = vunpack.c.l.b16 %v3556
        %v3825 = vunpack.c.l.b16 %v3557
        %v3826 = vunpack.c.l.b16 %v3558
        %v3827 = vunpack.c.l.b16 %v3559
        %v3828 = vunpack.c.l.b16 %v3560
        %v3829 = vunpack.c.l.b16 %v3561
        %v3830 = vunpack.c.l.b16 %v3562
        %v3831 = vunpack.c.l.b16 %v3563
        %v3832 = vunpack.c.l.b16 %v3564
        %v3833 = vunpack.c.l.b16 %v3565
        %v3834 = vunpack.c.l.b16 %v3566
        %v3835 = vpack.c.b16 %v3764, %v3763
        %v3836 = vpack.c.b16 %v3766, %v3765
        %v3837 = vpack.c.b16 %v3768, %v3767
        %v3838 = vpack.c.b16 %v3770, %v3769
        %v3839 = vpack.c.b16 %v3772, %v3771
        %v3840 = vpack.c.b16 %v3774, %v3773
        %v3841 = vpack.c.b16 %v3776, %v3775
        %v3842 = vpack.c.b16 %v3778, %v3777
        %v3843 = vpack.c.b16 %v3780, %v3779
        %v3844 = vpack.c.b16 %v3782, %v3781
        %v3845 = vpack.c.b16 %v3784, %v3783
        %v3846 = vpack.c.b16 %v3786, %v3785
        %v3847 = vpack.c.b16 %v3788, %v3787
        %v3848 = vpack.c.b16 %v3790, %v3789
        %v3849 = vpack.c.b16 %v3792, %v3791
        %v3850 = vpack.c.b16 %v3794, %v3793
        %v3851 = vpack.c.b16 %v3796, %v3795
        %v3852 = vpack.c.b16 %v3798, %v3797
        %v3853 = vpack.c.b16 %v3800, %v3799
        %v3854 = vpack.c.b16 %v3802, %v3801
        %v3855 = vpack.c.b16 %v3804, %v3803
        %v3856 = vpack.c.b16 %v3806, %v3805
        %v3857 = vpack.c.b16 %v3808, %v3807
        %v3858 = vpack.c.b16 %v3810, %v3809
        %v3859 = vpack.c.b16 %v3812, %v3811
        %v3860 = vpack.c.b16 %v3814, %v3813
        %v3861 = vpack.c.b16 %v3816, %v3815
        %v3862 = vpack.c.b16 %v3818, %v3817
        %v3863 = vpack.c.b16 %v3820, %v3819
        %v3864 = vpack.c.b16 %v3822, %v3821
        %v3865 = vpack.c.b16 %v3824, %v3823
        %v3866 = vpack.c.b16 %v3826, %v3825
        %v3867 = vpack.c.b16 %v3828, %v3827
        %v3868 = vpack.c.b16 %v3830, %v3829
        %v3869 = vpack.c.b16 %v3832, %v3831
        %v3870 = vpack.c.b16 %v3834, %v3833
        %v3908 = vsel %vm2519, %v3650, 0
        %v3911 = vsel %vm2519, %v3655, 0
        %v3914 = vsel %vm2519, %v3660, 0
        %v3917 = vsel %vm2519, %v3665, 0
        %v3920 = vsel %vm2519, %v3670, 0
        %3922 = vmatprep.subr.bf16.mxu0 0
        %3923 = vmatpush1.bf16.msra.mxu0 %v3835
        %3924 = vmatprep.subr.bf16.mxu0 0
        %3925 = vmatpush1.bf16.msra.mxu0 %v3836
        %3926 = vmatprep.subr.bf16.mxu0 0
        %3927 = vmatpush1.bf16.msra.mxu0 %v3837
        %3928 = vmatprep.subr.bf16.mxu0 0
        %3929 = vmatpush1.bf16.msra.mxu0 %v3838
        %3930 = vmatprep.subr.bf16.mxu0 0
        %3931 = vmatpush1.bf16.msra.mxu0 %v3839
        %3932 = vmatprep.subr.bf16.mxu0 0
        %3933 = vmatpush1.bf16.msra.mxu0 %v3840
        %3934 = vmatprep.subr.bf16.mxu0 0
        %3935 = vmatpush1.bf16.msra.mxu0 %v3841
        %3936 = vmatprep.subr.bf16.mxu0 0
        %3937 = vmatpush1.bf16.msra.mxu0 %v3842
        %3938 = vmatprep.subr.bf16.mxu0 0
        %3939 = vmatpush1.bf16.msra.mxu0 %v3843
        %3940 = vmatprep.subr.bf16.mxu0 0
        %3941 = vmatpush1.bf16.msra.mxu0 %v3844
        %3942 = vmatprep.subr.bf16.mxu0 0
        %3943 = vmatpush1.bf16.msra.mxu0 %v3845
        %3944 = vmatprep.subr.bf16.mxu0 0
        %3945 = vmatpush1.bf16.msra.mxu0 %v3846
        %3946 = vmatprep.subr.bf16.mxu0 0
        %3947 = vmatpush1.bf16.msra.mxu0 %v3847
        %3948 = vmatprep.subr.bf16.mxu0 0
        %3949 = vmatpush1.bf16.msra.mxu0 %v3848
        %3950 = vmatprep.subr.bf16.mxu0 0
        %3951 = vmatpush1.bf16.msra.mxu0 %v3849
        %3952 = vmatprep.subr.bf16.mxu0 0
        %3953 = vmatpush1.bf16.msra.mxu0 %v3850
        %3954 = vmatprep.mubr.bf16.mxu0 %v3647
        %3955 = vmatmul.mubr.bf16.gmra.mrb[0].mxu0 %v3646
        %v3956 = vpop.f32.mrb[0].mxu0
        %v3957 = vadd.f32 %v3572, %v3956
        %v3958 = vpop.f32.mrb[0].mxu0
        %v3959 = vpop.f32.mrb[0].mxu0
        %v3960 = vadd.f32 %v3572, %v3959
        %v3961 = vpop.f32.mrb[0].mxu0
        %3962 = vmatprep.mubr.bf16.mxu0 %v3652
        %3963 = vmatmul.mubr.bf16.gmra.mrb[0].mxu0 %v3651
        %v3964 = vpop.f32.mrb[0].mxu0
        %v3965 = vadd.f32 %v3572, %v3964
        %v3966 = vpop.f32.mrb[0].mxu0
        %v3967 = vpop.f32.mrb[0].mxu0
        %v3968 = vadd.f32 %v3572, %v3967
        %v3969 = vpop.f32.mrb[0].mxu0
        %3970 = vmatprep.mubr.bf16.mxu0 %v3657
        %3971 = vmatmul.mubr.bf16.gmra.mrb[0].mxu0 %v3656
        %v3972 = vpop.f32.mrb[0].mxu0
        %v3973 = vadd.f32 %v3572, %v3972
        %v3974 = vpop.f32.mrb[0].mxu0
        %v3975 = vpop.f32.mrb[0].mxu0
        %v3976 = vadd.f32 %v3572, %v3975
        %v3977 = vpop.f32.mrb[0].mxu0
        %3978 = vmatprep.mubr.bf16.mxu0 %v3662
        %3979 = vmatmul.mubr.bf16.gmra.mrb[0].mxu0 %v3661
        %v3980 = vpop.f32.mrb[0].mxu0
        %v3981 = vadd.f32 %v3572, %v3980
        %v3982 = vpop.f32.mrb[0].mxu0
        %v3983 = vpop.f32.mrb[0].mxu0
        %v3984 = vadd.f32 %v3572, %v3983
        %v3985 = vpop.f32.mrb[0].mxu0
        %3986 = vmatprep.mubr.bf16.mxu0 %v3667
        %3987 = vmatmul.mubr.bf16.gmra.mrb[0].mxu0 %v3666
        %v3988 = vpop.f32.mrb[0].mxu0
        %v3989 = vadd.f32 %v3572, %v3988
        %v3990 = vpop.f32.mrb[0].mxu0
        %v3991 = vpop.f32.mrb[0].mxu0
        %v3992 = vpop.f32.mrb[0].mxu0
        %3993 = vdwg.mxu0
        %3994 = vmatprep.subr.bf16.mxu0 0
        %3995 = vmatpush1.bf16.msra.mxu0 %v3851
        %3996 = vmatprep.subr.bf16.mxu0 0
        %3997 = vmatpush1.bf16.msra.mxu0 %v3852
        %3998 = vmatprep.subr.bf16.mxu0 0
        %3999 = vmatpush1.bf16.msra.mxu0 %v3853
        %4000 = vmatprep.subr.bf16.mxu0 0
        %4001 = vmatpush1.bf16.msra.mxu0 %v3854
        %4002 = vmatprep.subr.bf16.mxu0 0
        %4003 = vmatpush1.bf16.msra.mxu0 %v3855
        %4004 = vmatprep.subr.bf16.mxu0 0
        %4005 = vmatpush1.bf16.msra.mxu0 %v3856
        %4006 = vmatprep.subr.bf16.mxu0 0
        %4007 = vmatpush1.bf16.msra.mxu0 %v3857
        %4008 = vmatprep.subr.bf16.mxu0 0
        %4009 = vmatpush1.bf16.msra.mxu0 %v3858
        %4010 = vmatprep.subr.bf16.mxu0 0
        %4011 = vmatpush1.bf16.msra.mxu0 %v3859
        %4012 = vmatprep.subr.bf16.mxu0 0
        %4013 = vmatpush1.bf16.msra.mxu0 %v3860
        %4014 = vmatprep.subr.bf16.mxu0 0
        %4015 = vmatpush1.bf16.msra.mxu0 %v3861
        %4016 = vmatprep.subr.bf16.mxu0 0
        %4017 = vmatpush1.bf16.msra.mxu0 %v3862
        %4018 = vmatprep.subr.bf16.mxu0 0
        %4019 = vmatpush1.bf16.msra.mxu0 %v3863
        %4020 = vmatprep.subr.bf16.mxu0 0
        %4021 = vmatpush1.bf16.msra.mxu0 %v3864
        %4022 = vmatprep.subr.bf16.mxu0 0
        %4023 = vmatpush1.bf16.msra.mxu0 %v3865
        %4024 = vmatprep.subr.bf16.mxu0 0
        %4025 = vmatpush1.bf16.msra.mxu0 %v3866
        %4026 = vmatprep.mubr.bf16.mxu0 %v3649
        %4027 = vmatmul.mubr.bf16.gmra.mrb[0].mxu0 %v3648
        %v4028 = vpop.f32.mrb[0].mxu0
        %v4029 = vadd.f32 %v3957, %v4028
        %v4030 = vpop.f32.mrb[0].mxu0
        %v4031 = vpop.f32.mrb[0].mxu0
        %v4032 = vadd.f32 %v3960, %v4031
        %v4033 = vpop.f32.mrb[0].mxu0
        %4034 = vmatprep.mubr.bf16.mxu0 %v3654
        %4035 = vmatmul.mubr.bf16.gmra.mrb[0].mxu0 %v3653
        %v4036 = vpop.f32.mrb[0].mxu0
        %v4037 = vadd.f32 %v3965, %v4036
        %v4038 = vpop.f32.mrb[0].mxu0
        %v4039 = vpop.f32.mrb[0].mxu0
        %v4040 = vadd.f32 %v3968, %v4039
        %v4041 = vpop.f32.mrb[0].mxu0
        %4042 = vmatprep.mubr.bf16.mxu0 %v3659
        %4043 = vmatmul.mubr.bf16.gmra.mrb[0].mxu0 %v3658
        %v4044 = vpop.f32.mrb[0].mxu0
        %v4045 = vadd.f32 %v3973, %v4044
        %v4046 = vpop.f32.mrb[0].mxu0
        %v4047 = vpop.f32.mrb[0].mxu0
        %v4048 = vadd.f32 %v3976, %v4047
        %v4049 = vpop.f32.mrb[0].mxu0
        %4050 = vmatprep.mubr.bf16.mxu0 %v3664
        %4051 = vmatmul.mubr.bf16.gmra.mrb[0].mxu0 %v3663
        %v4052 = vpop.f32.mrb[0].mxu0
        %v4053 = vadd.f32 %v3981, %v4052
        %v4054 = vpop.f32.mrb[0].mxu0
        %v4055 = vpop.f32.mrb[0].mxu0
        %v4056 = vadd.f32 %v3984, %v4055
        %v4057 = vpop.f32.mrb[0].mxu0
        %4058 = vmatprep.mubr.bf16.mxu0 %v3669
        %4059 = vmatmul.mubr.bf16.gmra.mrb[0].mxu0 %v3668
        %v4060 = vpop.f32.mrb[0].mxu0
        %v4061 = vadd.f32 %v3989, %v4060
        %v4062 = vpop.f32.mrb[0].mxu0
        %v4063 = vpop.f32.mrb[0].mxu0
        %v4064 = vpop.f32.mrb[0].mxu0
        %4065 = vdwg.mxu0
        %4066 = vmatprep.subr.bf16.mxu0 0
        %4067 = vmatpush1.bf16.msra.mxu0 %v3867
        %4068 = vmatprep.subr.bf16.mxu0 0
        %4069 = vmatpush1.bf16.msra.mxu0 %v3868
        %4070 = vmatprep.subr.bf16.mxu0 0
        %4071 = vmatpush1.bf16.msra.mxu0 %v3869
        %4072 = vmatprep.subr.bf16.mxu0 0
        %4073 = vmatpush1.bf16.msra.mxu0 %v3870
        %4074 = vmatprep.subr.bf16.mxu0 0
        %4075 = vmatpush1.bf16.msra.mxu0 0
        %4076 = vmatprep.subr.bf16.mxu0 0
        %4077 = vmatpush1.bf16.msra.mxu0 0
        %4078 = vmatprep.subr.bf16.mxu0 0
        %4079 = vmatpush1.bf16.msra.mxu0 0
        %4080 = vmatprep.subr.bf16.mxu0 0
        %4081 = vmatpush1.bf16.msra.mxu0 0
        %4082 = vmatprep.subr.bf16.mxu0 0
        %4083 = vmatpush1.bf16.msra.mxu0 0
        %4084 = vmatprep.subr.bf16.mxu0 0
        %4085 = vmatpush1.bf16.msra.mxu0 0
        %4086 = vmatprep.subr.bf16.mxu0 0
        %4087 = vmatpush1.bf16.msra.mxu0 0
        %4088 = vmatprep.subr.bf16.mxu0 0
        %4089 = vmatpush1.bf16.msra.mxu0 0
        %4090 = vmatprep.subr.bf16.mxu0 0
        %4091 = vmatpush1.bf16.msra.mxu0 0
        %4092 = vmatprep.subr.bf16.mxu0 0
        %4093 = vmatpush1.bf16.msra.mxu0 0
        %4094 = vmatprep.subr.bf16.mxu0 0
        %4095 = vmatpush1.bf16.msra.mxu0 0
        %4096 = vmatprep.subr.bf16.mxu0 0
        %4097 = vmatpush1.bf16.msra.mxu0 0
        %4098 = vmatprep.mubr.bf16.mxu0 0
        %4099 = vmatmul.mubr.bf16.gmra.mrb[0].mxu0 %v3908
        %v4100 = vpop.f32.mrb[0].mxu0
        %v4101 = vadd.f32 %v4029, %v4100
        %v4102 = vpop.f32.mrb[0].mxu0
        %v4103 = vpop.f32.mrb[0].mxu0
        %v4104 = vadd.f32 %v4032, %v4103
        %v4105 = vpop.f32.mrb[0].mxu0
        %4106 = vmatprep.mubr.bf16.mxu0 0
        %4107 = vmatmul.mubr.bf16.gmra.mrb[0].mxu0 %v3911
        %v4108 = vpop.f32.mrb[0].mxu0
        %v4109 = vadd.f32 %v4037, %v4108
        %v4110 = vpop.f32.mrb[0].mxu0
        %v4111 = vpop.f32.mrb[0].mxu0
        %v4112 = vadd.f32 %v4040, %v4111
        %v4113 = vpop.f32.mrb[0].mxu0
        %4114 = vmatprep.mubr.bf16.mxu0 0
        %4115 = vmatmul.mubr.bf16.gmra.mrb[0].mxu0 %v3914
        %v4116 = vpop.f32.mrb[0].mxu0
        %v4117 = vadd.f32 %v4045, %v4116
        %v4118 = vpop.f32.mrb[0].mxu0
        %v4119 = vpop.f32.mrb[0].mxu0
        %v4120 = vadd.f32 %v4048, %v4119
        %v4121 = vpop.f32.mrb[0].mxu0
        %4122 = vmatprep.mubr.bf16.mxu0 0
        %4123 = vmatmul.mubr.bf16.gmra.mrb[0].mxu0 %v3917
        %v4124 = vpop.f32.mrb[0].mxu0
        %v4125 = vadd.f32 %v4053, %v4124
        %v4126 = vpop.f32.mrb[0].mxu0
        %v4127 = vpop.f32.mrb[0].mxu0
        %v4128 = vadd.f32 %v4056, %v4127
        %v4129 = vpop.f32.mrb[0].mxu0
        %4130 = vmatprep.mubr.bf16.mxu0 0
        %4131 = vmatmul.mubr.bf16.gmra.mrb[0].mxu0 %v3920
        %v4132 = vpop.f32.mrb[0].mxu0
        %v4133 = vadd.f32 %v4061, %v4132
        %v4134 = vpop.f32.mrb[0].mxu0
        %v4135 = vpop.f32.mrb[0].mxu0
        %v4136 = vpop.f32.mrb[0].mxu0
        %4137 = vdwg.mxu0
        %v4138 = vmax.f32 %v4101, 0.0
        %v4139 = vmax.f32 %v4104, 0.0
        %v4140 = vmax.f32 %v4109, 0.0
        %v4141 = vmax.f32 %v4112, 0.0
        %v4142 = vmax.f32 %v4117, 0.0
        %v4143 = vmax.f32 %v4120, 0.0
        %v4144 = vmax.f32 %v4125, 0.0
        %v4145 = vmax.f32 %v4128, 0.0
        %v4146 = vmax.f32 %v4133, 0.0
        %4147 = vst.msk [vmem:[#allocation5] sm:$0xff] %vm2519, %v4138
        %4148 = vst.msk [vmem:[#allocation5 + $0x8] sm:$0xff] %vm2519, %v4139
        %4149 = vst.msk [vmem:[#allocation5 + $0x10] sm:$0xff] %vm2519, %v4140
        %4150 = vst.msk [vmem:[#allocation5 + $0x18] sm:$0xff] %vm2519, %v4141
        %4151 = vst.msk [vmem:[#allocation5 + $0x20] sm:$0xff] %vm2519, %v4142
        %4152 = vst.msk [vmem:[#allocation5 + $0x28] sm:$0xff] %vm2519, %v4143
        %4153 = vst.msk [vmem:[#allocation5 + $0x30] sm:$0xff] %vm2519, %v4144
        %4154 = vst.msk [vmem:[#allocation5 + $0x38] sm:$0xff] %vm2519, %v4145
        %vm4155 = vcmask 521216
        %4156 = vst.msk [vmem:[#allocation5 + $0x40] sm:$0x3f] %vm4155, %v4146
        %v4157 = vld [vmem:[#allocation5] sm:$0x1]
        %v4158 = vlaneseq
        %vm4159 = vcmp.ge.s32.totalorder %v4158, 0
        %vm4160 = vcmp.lt.s32.totalorder %v4158, 64
        %vm4161 = vmand %vm4159, %vm4160
        %4162 = vst.msk [vmem:[#allocation6] sm:$0x1] %vm4161, %v4157
        %v4163 = vld [vmem:[#allocation5 + $0x1] sm:$0x1]
        %v4166 = vunpack.c.l.s4 1966171168
        %v4167 = vunpack.c.0.s8 %v4166
        %v4168 = vlaneseq
        %v4169 = vshrl.u32 %v4168, 7
        %v4170 = vsub.s32 %v4167, %v4169
        %v4171 = vrot.slane %v4163, %v4170
        %v4173 = vunpack.c.l.s4 1966171168
        %v4174 = vunpack.c.0.s8 %v4173
        %v4175 = vlaneseq
        %v4176 = vshrl.u32 %v4175, 7
        %v4177 = vsub.s32 %v4174, %v4176
        %v4178 = vrot.slane %v4171, %v4177
        %4179 = vrot.lane.b32.xlu0 %v4178, 64
        %v4180 = vpop.permute.xlu0 %4179
        %vm4182 = vcmp.ge.s32.totalorder %v4158, 64
        %vm4183 = vcmp.lt.s32.totalorder %v4158, 128
        %vm4184 = vmand %vm4182, %vm4183
        %4185 = vst.msk [vmem:[#allocation6] sm:$0x1] %vm4184, %v4180
        %v4186 = vld [vmem:[#allocation5 + $0x2] sm:$0x1]
        %4187 = vst.msk [vmem:[#allocation6 + $0x1] sm:$0x1] %vm4161, %v4186
        %v4188 = vld [vmem:[#allocation5 + $0x3] sm:$0x1]
        %v4191 = vunpack.c.l.s4 1966171168
        %v4192 = vunpack.c.0.s8 %v4191
        %v4193 = vlaneseq
        %v4194 = vshrl.u32 %v4193, 7
        %v4195 = vsub.s32 %v4192, %v4194
        %v4196 = vrot.slane %v4188, %v4195
        %v4198 = vunpack.c.l.s4 1966171168
        %v4199 = vunpack.c.0.s8 %v4198
        %v4200 = vlaneseq
        %v4201 = vshrl.u32 %v4200, 7
        %v4202 = vsub.s32 %v4199, %v4201
        %v4203 = vrot.slane %v4196, %v4202
        %4204 = vrot.lane.b32.xlu0 %v4203, 64
        %v4205 = vpop.permute.xlu0 %4204
        %4207 = vst.msk [vmem:[#allocation6 + $0x1] sm:$0x1] %vm4184, %v4205
        %v4208 = vld [vmem:[#allocation5 + $0x4] sm:$0x1]
        %4209 = vst.msk [vmem:[#allocation6 + $0x2] sm:$0x1] %vm4161, %v4208
        %v4210 = vld [vmem:[#allocation5 + $0x5] sm:$0x1]
        %v4213 = vunpack.c.l.s4 1966171168
        %v4214 = vunpack.c.0.s8 %v4213
        %v4215 = vlaneseq
        %v4216 = vshrl.u32 %v4215, 7
        %v4217 = vsub.s32 %v4214, %v4216
        %v4218 = vrot.slane %v4210, %v4217
        %v4220 = vunpack.c.l.s4 1966171168
        %v4221 = vunpack.c.0.s8 %v4220
        %v4222 = vlaneseq
        %v4223 = vshrl.u32 %v4222, 7
        %v4224 = vsub.s32 %v4221, %v4223
        %v4225 = vrot.slane %v4218, %v4224
        %4226 = vrot.lane.b32.xlu0 %v4225, 64
        %v4227 = vpop.permute.xlu0 %4226
        %4229 = vst.msk [vmem:[#allocation6 + $0x2] sm:$0x1] %vm4184, %v4227
        %v4230 = vld [vmem:[#allocation5 + $0x6] sm:$0x1]
        %4231 = vst.msk [vmem:[#allocation6 + $0x3] sm:$0x1] %vm4161, %v4230
        %v4232 = vld [vmem:[#allocation5 + $0xa] sm:$0x1]
        %v4235 = vunpack.c.l.s4 1966171168
        %v4236 = vunpack.c.0.s8 %v4235
        %v4237 = vlaneseq
        %v4238 = vshrl.u32 %v4237, 7
        %v4239 = vsub.s32 %v4236, %v4238
        %v4240 = vrot.slane %v4232, %v4239
        %v4242 = vunpack.c.l.s4 1966171168
        %v4243 = vunpack.c.0.s8 %v4242
        %v4244 = vlaneseq
        %v4245 = vshrl.u32 %v4244, 7
        %v4246 = vsub.s32 %v4243, %v4245
        %v4247 = vrot.slane %v4240, %v4246
        %4248 = vrot.lane.b32.xlu0 %v4247, 64
        %v4249 = vpop.permute.xlu0 %4248
        %4251 = vst.msk [vmem:[#allocation6 + $0x3] sm:$0x1] %vm4184, %v4249
        %v4252 = vld [vmem:[#allocation5 + $0xb] sm:$0x1]
        %4253 = vst.msk [vmem:[#allocation6 + $0x4] sm:$0x1] %vm4161, %v4252
        %v4254 = vld [vmem:[#allocation5 + $0xc] sm:$0x1]
        %v4257 = vunpack.c.l.s4 1966171168
        %v4258 = vunpack.c.0.s8 %v4257
        %v4259 = vlaneseq
        %v4260 = vshrl.u32 %v4259, 7
        %v4261 = vsub.s32 %v4258, %v4260
        %v4262 = vrot.slane %v4254, %v4261
        %v4264 = vunpack.c.l.s4 1966171168
        %v4265 = vunpack.c.0.s8 %v4264
        %v4266 = vlaneseq
        %v4267 = vshrl.u32 %v4266, 7
        %v4268 = vsub.s32 %v4265, %v4267
        %v4269 = vrot.slane %v4262, %v4268
        %4270 = vrot.lane.b32.xlu0 %v4269, 64
        %v4271 = vpop.permute.xlu0 %4270
        %4273 = vst.msk [vmem:[#allocation6 + $0x4] sm:$0x1] %vm4184, %v4271
        %v4274 = vld [vmem:[#allocation5 + $0xd] sm:$0x1]
        %4275 = vst.msk [vmem:[#allocation6 + $0x5] sm:$0x1] %vm4161, %v4274
        %v4276 = vld [vmem:[#allocation5 + $0xe] sm:$0x1]
        %v4279 = vunpack.c.l.s4 1966171168
        %v4280 = vunpack.c.0.s8 %v4279
        %v4281 = vlaneseq
        %v4282 = vshrl.u32 %v4281, 7
        %v4283 = vsub.s32 %v4280, %v4282
        %v4284 = vrot.slane %v4276, %v4283
        %v4286 = vunpack.c.l.s4 1966171168
        %v4287 = vunpack.c.0.s8 %v4286
        %v4288 = vlaneseq
        %v4289 = vshrl.u32 %v4288, 7
        %v4290 = vsub.s32 %v4287, %v4289
        %v4291 = vrot.slane %v4284, %v4290
        %4292 = vrot.lane.b32.xlu0 %v4291, 64
        %v4293 = vpop.permute.xlu0 %4292
        %4295 = vst.msk [vmem:[#allocation6 + $0x5] sm:$0x1] %vm4184, %v4293
        %v4296 = vld [vmem:[#allocation5 + $0xf] sm:$0x1]
        %4297 = vst.msk [vmem:[#allocation6 + $0x6] sm:$0x1] %vm4161, %v4296
        %v4298 = vld [vmem:[#allocation5 + $0x10] sm:$0x1]
        %v4301 = vunpack.c.l.s4 1966171168
        %v4302 = vunpack.c.0.s8 %v4301
        %v4303 = vlaneseq
        %v4304 = vshrl.u32 %v4303, 7
        %v4305 = vsub.s32 %v4302, %v4304
        %v4306 = vrot.slane %v4298, %v4305
        %v4308 = vunpack.c.l.s4 1966171168
        %v4309 = vunpack.c.0.s8 %v4308
        %v4310 = vlaneseq
        %v4311 = vshrl.u32 %v4310, 7
        %v4312 = vsub.s32 %v4309, %v4311
        %v4313 = vrot.slane %v4306, %v4312
        %4314 = vrot.lane.b32.xlu0 %v4313, 64
        %v4315 = vpop.permute.xlu0 %4314
        %4317 = vst.msk [vmem:[#allocation6 + $0x6] sm:$0x1] %vm4184, %v4315
        %v4318 = vld [vmem:[#allocation5 + $0x14] sm:$0x1]
        %4319 = vst.msk [vmem:[#allocation6 + $0x7] sm:$0x1] %vm4161, %v4318
        %v4320 = vld [vmem:[#allocation5 + $0x15] sm:$0x1]
        %v4323 = vunpack.c.l.s4 1966171168
        %v4324 = vunpack.c.0.s8 %v4323
        %v4325 = vlaneseq
        %v4326 = vshrl.u32 %v4325, 7
        %v4327 = vsub.s32 %v4324, %v4326
        %v4328 = vrot.slane %v4320, %v4327
        %v4330 = vunpack.c.l.s4 1966171168
        %v4331 = vunpack.c.0.s8 %v4330
        %v4332 = vlaneseq
        %v4333 = vshrl.u32 %v4332, 7
        %v4334 = vsub.s32 %v4331, %v4333
        %v4335 = vrot.slane %v4328, %v4334
        %4336 = vrot.lane.b32.xlu0 %v4335, 64
        %v4337 = vpop.permute.xlu0 %4336
        %4339 = vst.msk [vmem:[#allocation6 + $0x7] sm:$0x1] %vm4184, %v4337
        %v4340 = vld [vmem:[#allocation5 + $0x16] sm:$0x1]
        %4341 = vst.msk [vmem:[#allocation6 + $0x8] sm:$0x1] %vm4161, %v4340
        %v4342 = vld [vmem:[#allocation5 + $0x17] sm:$0x1]
        %v4345 = vunpack.c.l.s4 1966171168
        %v4346 = vunpack.c.0.s8 %v4345
        %v4347 = vlaneseq
        %v4348 = vshrl.u32 %v4347, 7
        %v4349 = vsub.s32 %v4346, %v4348
        %v4350 = vrot.slane %v4342, %v4349
        %v4352 = vunpack.c.l.s4 1966171168
        %v4353 = vunpack.c.0.s8 %v4352
        %v4354 = vlaneseq
        %v4355 = vshrl.u32 %v4354, 7
        %v4356 = vsub.s32 %v4353, %v4355
        %v4357 = vrot.slane %v4350, %v4356
        %4358 = vrot.lane.b32.xlu0 %v4357, 64
        %v4359 = vpop.permute.xlu0 %4358
        %4361 = vst.msk [vmem:[#allocation6 + $0x8] sm:$0x1] %vm4184, %v4359
        %v4362 = vld [vmem:[#allocation5 + $0x18] sm:$0x1]
        %4363 = vst.msk [vmem:[#allocation6 + $0x9] sm:$0x1] %vm4161, %v4362
        %v4364 = vld [vmem:[#allocation5 + $0x19] sm:$0x1]
        %v4367 = vunpack.c.l.s4 1966171168
        %v4368 = vunpack.c.0.s8 %v4367
        %v4369 = vlaneseq
        %v4370 = vshrl.u32 %v4369, 7
        %v4371 = vsub.s32 %v4368, %v4370
        %v4372 = vrot.slane %v4364, %v4371
        %v4374 = vunpack.c.l.s4 1966171168
        %v4375 = vunpack.c.0.s8 %v4374
        %v4376 = vlaneseq
        %v4377 = vshrl.u32 %v4376, 7
        %v4378 = vsub.s32 %v4375, %v4377
        %v4379 = vrot.slane %v4372, %v4378
        %4380 = vrot.lane.b32.xlu0 %v4379, 64
        %v4381 = vpop.permute.xlu0 %4380
        %4383 = vst.msk [vmem:[#allocation6 + $0x9] sm:$0x1] %vm4184, %v4381
        %v4384 = vld [vmem:[#allocation5 + $0x1a] sm:$0x1]
        %4385 = vst.msk [vmem:[#allocation6 + $0xa] sm:$0x1] %vm4161, %v4384
        %v4386 = vld [vmem:[#allocation5 + $0x1e] sm:$0x1]
        %v4389 = vunpack.c.l.s4 1966171168
        %v4390 = vunpack.c.0.s8 %v4389
        %v4391 = vlaneseq
        %v4392 = vshrl.u32 %v4391, 7
        %v4393 = vsub.s32 %v4390, %v4392
        %v4394 = vrot.slane %v4386, %v4393
        %v4396 = vunpack.c.l.s4 1966171168
        %v4397 = vunpack.c.0.s8 %v4396
        %v4398 = vlaneseq
        %v4399 = vshrl.u32 %v4398, 7
        %v4400 = vsub.s32 %v4397, %v4399
        %v4401 = vrot.slane %v4394, %v4400
        %4402 = vrot.lane.b32.xlu0 %v4401, 64
        %v4403 = vpop.permute.xlu0 %4402
        %4405 = vst.msk [vmem:[#allocation6 + $0xa] sm:$0x1] %vm4184, %v4403
        %v4406 = vld [vmem:[#allocation5 + $0x1f] sm:$0x1]
        %4407 = vst.msk [vmem:[#allocation6 + $0xb] sm:$0x1] %vm4161, %v4406
        %v4408 = vld [vmem:[#allocation5 + $0x20] sm:$0x1]
        %v4411 = vunpack.c.l.s4 1966171168
        %v4412 = vunpack.c.0.s8 %v4411
        %v4413 = vlaneseq
        %v4414 = vshrl.u32 %v4413, 7
        %v4415 = vsub.s32 %v4412, %v4414
        %v4416 = vrot.slane %v4408, %v4415
        %v4418 = vunpack.c.l.s4 1966171168
        %v4419 = vunpack.c.0.s8 %v4418
        %v4420 = vlaneseq
        %v4421 = vshrl.u32 %v4420, 7
        %v4422 = vsub.s32 %v4419, %v4421
        %v4423 = vrot.slane %v4416, %v4422
        %4424 = vrot.lane.b32.xlu0 %v4423, 64
        %v4425 = vpop.permute.xlu0 %4424
        %4427 = vst.msk [vmem:[#allocation6 + $0xb] sm:$0x1] %vm4184, %v4425
        %v4428 = vld [vmem:[#allocation5 + $0x21] sm:$0x1]
        %4429 = vst.msk [vmem:[#allocation6 + $0xc] sm:$0x1] %vm4161, %v4428
        %v4430 = vld [vmem:[#allocation5 + $0x22] sm:$0x1]
        %v4433 = vunpack.c.l.s4 1966171168
        %v4434 = vunpack.c.0.s8 %v4433
        %v4435 = vlaneseq
        %v4436 = vshrl.u32 %v4435, 7
        %v4437 = vsub.s32 %v4434, %v4436
        %v4438 = vrot.slane %v4430, %v4437
        %v4440 = vunpack.c.l.s4 1966171168
        %v4441 = vunpack.c.0.s8 %v4440
        %v4442 = vlaneseq
        %v4443 = vshrl.u32 %v4442, 7
        %v4444 = vsub.s32 %v4441, %v4443
        %v4445 = vrot.slane %v4438, %v4444
        %4446 = vrot.lane.b32.xlu0 %v4445, 64
        %v4447 = vpop.permute.xlu0 %4446
        %4449 = vst.msk [vmem:[#allocation6 + $0xc] sm:$0x1] %vm4184, %v4447
        %v4450 = vld [vmem:[#allocation5 + $0x23] sm:$0x1]
        %4451 = vst.msk [vmem:[#allocation6 + $0xd] sm:$0x1] %vm4161, %v4450
        %v4452 = vld [vmem:[#allocation5 + $0x24] sm:$0x1]
        %v4455 = vunpack.c.l.s4 1966171168
        %v4456 = vunpack.c.0.s8 %v4455
        %v4457 = vlaneseq
        %v4458 = vshrl.u32 %v4457, 7
        %v4459 = vsub.s32 %v4456, %v4458
        %v4460 = vrot.slane %v4452, %v4459
        %v4462 = vunpack.c.l.s4 1966171168
        %v4463 = vunpack.c.0.s8 %v4462
        %v4464 = vlaneseq
        %v4465 = vshrl.u32 %v4464, 7
        %v4466 = vsub.s32 %v4463, %v4465
        %v4467 = vrot.slane %v4460, %v4466
        %4468 = vrot.lane.b32.xlu0 %v4467, 64
        %v4469 = vpop.permute.xlu0 %4468
        %4471 = vst.msk [vmem:[#allocation6 + $0xd] sm:$0x1] %vm4184, %v4469
        %v4472 = vld [vmem:[#allocation5 + $0x28] sm:$0x1]
        %4473 = vst.msk [vmem:[#allocation6 + $0xe] sm:$0x1] %vm4161, %v4472
        %v4474 = vld [vmem:[#allocation5 + $0x29] sm:$0x1]
        %v4477 = vunpack.c.l.s4 1966171168
        %v4478 = vunpack.c.0.s8 %v4477
        %v4479 = vlaneseq
        %v4480 = vshrl.u32 %v4479, 7
        %v4481 = vsub.s32 %v4478, %v4480
        %v4482 = vrot.slane %v4474, %v4481
        %v4484 = vunpack.c.l.s4 1966171168
        %v4485 = vunpack.c.0.s8 %v4484
        %v4486 = vlaneseq
        %v4487 = vshrl.u32 %v4486, 7
        %v4488 = vsub.s32 %v4485, %v4487
        %v4489 = vrot.slane %v4482, %v4488
        %4490 = vrot.lane.b32.xlu0 %v4489, 64
        %v4491 = vpop.permute.xlu0 %4490
        %4493 = vst.msk [vmem:[#allocation6 + $0xe] sm:$0x1] %vm4184, %v4491
        %v4494 = vld [vmem:[#allocation5 + $0x2a] sm:$0x1]
        %4495 = vst.msk [vmem:[#allocation6 + $0xf] sm:$0x1] %vm4161, %v4494
        %v4496 = vld [vmem:[#allocation5 + $0x2b] sm:$0x1]
        %v4499 = vunpack.c.l.s4 1966171168
        %v4500 = vunpack.c.0.s8 %v4499
        %v4501 = vlaneseq
        %v4502 = vshrl.u32 %v4501, 7
        %v4503 = vsub.s32 %v4500, %v4502
        %v4504 = vrot.slane %v4496, %v4503
        %v4506 = vunpack.c.l.s4 1966171168
        %v4507 = vunpack.c.0.s8 %v4506
        %v4508 = vlaneseq
        %v4509 = vshrl.u32 %v4508, 7
        %v4510 = vsub.s32 %v4507, %v4509
        %v4511 = vrot.slane %v4504, %v4510
        %4512 = vrot.lane.b32.xlu0 %v4511, 64
        %v4513 = vpop.permute.xlu0 %4512
        %4515 = vst.msk [vmem:[#allocation6 + $0xf] sm:$0x1] %vm4184, %v4513
        %v4516 = vld [vmem:[#allocation5 + $0x2c] sm:$0x1]
        %4517 = vst.msk [vmem:[#allocation6 + $0x10] sm:$0x1] %vm4161, %v4516
        %v4518 = vld [vmem:[#allocation5 + $0x2d] sm:$0x1]
        %v4521 = vunpack.c.l.s4 1966171168
        %v4522 = vunpack.c.0.s8 %v4521
        %v4523 = vlaneseq
        %v4524 = vshrl.u32 %v4523, 7
        %v4525 = vsub.s32 %v4522, %v4524
        %v4526 = vrot.slane %v4518, %v4525
        %v4528 = vunpack.c.l.s4 1966171168
        %v4529 = vunpack.c.0.s8 %v4528
        %v4530 = vlaneseq
        %v4531 = vshrl.u32 %v4530, 7
        %v4532 = vsub.s32 %v4529, %v4531
        %v4533 = vrot.slane %v4526, %v4532
        %4534 = vrot.lane.b32.xlu0 %v4533, 64
        %v4535 = vpop.permute.xlu0 %4534
        %4537 = vst.msk [vmem:[#allocation6 + $0x10] sm:$0x1] %vm4184, %v4535
        %v4538 = vld [vmem:[#allocation5 + $0x2e] sm:$0x1]
        %4539 = vst.msk [vmem:[#allocation6 + $0x11] sm:$0x1] %vm4161, %v4538
        %v4540 = vld [vmem:[#allocation5 + $0x32] sm:$0x1]
        %v4543 = vunpack.c.l.s4 1966171168
        %v4544 = vunpack.c.0.s8 %v4543
        %v4545 = vlaneseq
        %v4546 = vshrl.u32 %v4545, 7
        %v4547 = vsub.s32 %v4544, %v4546
        %v4548 = vrot.slane %v4540, %v4547
        %v4550 = vunpack.c.l.s4 1966171168
        %v4551 = vunpack.c.0.s8 %v4550
        %v4552 = vlaneseq
        %v4553 = vshrl.u32 %v4552, 7
        %v4554 = vsub.s32 %v4551, %v4553
        %v4555 = vrot.slane %v4548, %v4554
        %4556 = vrot.lane.b32.xlu0 %v4555, 64
        %v4557 = vpop.permute.xlu0 %4556
        %4559 = vst.msk [vmem:[#allocation6 + $0x11] sm:$0x1] %vm4184, %v4557
        %v4560 = vld [vmem:[#allocation5 + $0x33] sm:$0x1]
        %4561 = vst.msk [vmem:[#allocation6 + $0x12] sm:$0x1] %vm4161, %v4560
        %v4562 = vld [vmem:[#allocation5 + $0x34] sm:$0x1]
        %v4565 = vunpack.c.l.s4 1966171168
        %v4566 = vunpack.c.0.s8 %v4565
        %v4567 = vlaneseq
        %v4568 = vshrl.u32 %v4567, 7
        %v4569 = vsub.s32 %v4566, %v4568
        %v4570 = vrot.slane %v4562, %v4569
        %v4572 = vunpack.c.l.s4 1966171168
        %v4573 = vunpack.c.0.s8 %v4572
        %v4574 = vlaneseq
        %v4575 = vshrl.u32 %v4574, 7
        %v4576 = vsub.s32 %v4573, %v4575
        %v4577 = vrot.slane %v4570, %v4576
        %4578 = vrot.lane.b32.xlu0 %v4577, 64
        %v4579 = vpop.permute.xlu0 %4578
        %4581 = vst.msk [vmem:[#allocation6 + $0x12] sm:$0x1] %vm4184, %v4579
        %v4582 = vld [vmem:[#allocation5 + $0x35] sm:$0x1]
        %4583 = vst.msk [vmem:[#allocation6 + $0x13] sm:$0x1] %vm4161, %v4582
        %v4584 = vld [vmem:[#allocation5 + $0x36] sm:$0x1]
        %v4587 = vunpack.c.l.s4 1966171168
        %v4588 = vunpack.c.0.s8 %v4587
        %v4589 = vlaneseq
        %v4590 = vshrl.u32 %v4589, 7
        %v4591 = vsub.s32 %v4588, %v4590
        %v4592 = vrot.slane %v4584, %v4591
        %v4594 = vunpack.c.l.s4 1966171168
        %v4595 = vunpack.c.0.s8 %v4594
        %v4596 = vlaneseq
        %v4597 = vshrl.u32 %v4596, 7
        %v4598 = vsub.s32 %v4595, %v4597
        %v4599 = vrot.slane %v4592, %v4598
        %4600 = vrot.lane.b32.xlu0 %v4599, 64
        %v4601 = vpop.permute.xlu0 %4600
        %4603 = vst.msk [vmem:[#allocation6 + $0x13] sm:$0x1] %vm4184, %v4601
        %v4604 = vld [vmem:[#allocation5 + $0x37] sm:$0x1]
        %4605 = vst.msk [vmem:[#allocation6 + $0x14] sm:$0x1] %vm4161, %v4604
        %v4606 = vld [vmem:[#allocation5 + $0x38] sm:$0x1]
        %v4609 = vunpack.c.l.s4 1966171168
        %v4610 = vunpack.c.0.s8 %v4609
        %v4611 = vlaneseq
        %v4612 = vshrl.u32 %v4611, 7
        %v4613 = vsub.s32 %v4610, %v4612
        %v4614 = vrot.slane %v4606, %v4613
        %v4616 = vunpack.c.l.s4 1966171168
        %v4617 = vunpack.c.0.s8 %v4616
        %v4618 = vlaneseq
        %v4619 = vshrl.u32 %v4618, 7
        %v4620 = vsub.s32 %v4617, %v4619
        %v4621 = vrot.slane %v4614, %v4620
        %4622 = vrot.lane.b32.xlu0 %v4621, 64
        %v4623 = vpop.permute.xlu0 %4622
        %4625 = vst.msk [vmem:[#allocation6 + $0x14] sm:$0x1] %vm4184, %v4623
        %v4626 = vld [vmem:[#allocation5 + $0x3c] sm:$0x1]
        %4627 = vst.msk [vmem:[#allocation6 + $0x15] sm:$0x1] %vm4161, %v4626
        %v4628 = vld [vmem:[#allocation5 + $0x3d] sm:$0x1]
        %v4631 = vunpack.c.l.s4 1966171168
        %v4632 = vunpack.c.0.s8 %v4631
        %v4633 = vlaneseq
        %v4634 = vshrl.u32 %v4633, 7
        %v4635 = vsub.s32 %v4632, %v4634
        %v4636 = vrot.slane %v4628, %v4635
        %v4638 = vunpack.c.l.s4 1966171168
        %v4639 = vunpack.c.0.s8 %v4638
        %v4640 = vlaneseq
        %v4641 = vshrl.u32 %v4640, 7
        %v4642 = vsub.s32 %v4639, %v4641
        %v4643 = vrot.slane %v4636, %v4642
        %4644 = vrot.lane.b32.xlu0 %v4643, 64
        %v4645 = vpop.permute.xlu0 %4644
        %4647 = vst.msk [vmem:[#allocation6 + $0x15] sm:$0x1] %vm4184, %v4645
        %v4648 = vld [vmem:[#allocation5 + $0x3e] sm:$0x1]
        %4649 = vst.msk [vmem:[#allocation6 + $0x16] sm:$0x1] %vm4161, %v4648
        %v4650 = vld [vmem:[#allocation5 + $0x3f] sm:$0x1]
        %v4653 = vunpack.c.l.s4 1966171168
        %v4654 = vunpack.c.0.s8 %v4653
        %v4655 = vlaneseq
        %v4656 = vshrl.u32 %v4655, 7
        %v4657 = vsub.s32 %v4654, %v4656
        %v4658 = vrot.slane %v4650, %v4657
        %v4660 = vunpack.c.l.s4 1966171168
        %v4661 = vunpack.c.0.s8 %v4660
        %v4662 = vlaneseq
        %v4663 = vshrl.u32 %v4662, 7
        %v4664 = vsub.s32 %v4661, %v4663
        %v4665 = vrot.slane %v4658, %v4664
        %4666 = vrot.lane.b32.xlu0 %v4665, 64
        %v4667 = vpop.permute.xlu0 %4666
        %4669 = vst.msk [vmem:[#allocation6 + $0x16] sm:$0x1] %vm4184, %v4667
        %v4670 = vld [vmem:[#allocation5 + $0x40] sm:$0x1]
        %4671 = vst.msk [vmem:[#allocation6 + $0x17] sm:$0x1] %vm4161, %v4670
        %v4672 = vld [vmem:[#allocation5 + $0x41] sm:$0x1]
        %v4675 = vunpack.c.l.s4 1966171168
        %v4676 = vunpack.c.0.s8 %v4675
        %v4677 = vlaneseq
        %v4678 = vshrl.u32 %v4677, 7
        %v4679 = vsub.s32 %v4676, %v4678
        %v4680 = vrot.slane %v4672, %v4679
        %v4682 = vunpack.c.l.s4 1966171168
        %v4683 = vunpack.c.0.s8 %v4682
        %v4684 = vlaneseq
        %v4685 = vshrl.u32 %v4684, 7
        %v4686 = vsub.s32 %v4683, %v4685
        %v4687 = vrot.slane %v4680, %v4686
        %4688 = vrot.lane.b32.xlu0 %v4687, 64
        %v4689 = vpop.permute.xlu0 %4688
        %4691 = vst.msk [vmem:[#allocation6 + $0x17] sm:$0x1] %vm4184, %v4689
        %v4692 = vld [vmem:[#allocation5 + $0x42] sm:$0x1]
        %4693 = vst.msk [vmem:[#allocation6 + $0x18] sm:$0x1] %vm4161, %v4692
        %v4694 = vld [vmem:[#allocation6] sm:$0xff]
        %v4695 = vld [vmem:[#allocation6 + $0x8] sm:$0xff]
        %v4696 = vld [vmem:[#allocation6 + $0x10] sm:$0xff]
        %v4697 = vld [vmem:[#allocation6 + $0x18] sm:$0x1]
        %v4702 = vlaneseq
        %v4703 = vshrl.u32 %v4702, 7
        %v4704 = vsub.s32 0, %v4703
        %v4705 = vrot.slane %v4694, %v4704
        %v4706 = vlaneseq
        %v4707 = vshrl.u32 %v4706, 7
        %v4708 = vsub.s32 1, %v4707
        %v4709 = vrot.slane %v4694, %v4708
        %v4710 = vlaneseq
        %v4711 = vshrl.u32 %v4710, 7
        %v4712 = vsub.s32 2, %v4711
        %v4713 = vrot.slane %v4694, %v4712
        %v4714 = vlaneseq
        %v4715 = vshrl.u32 %v4714, 7
        %v4716 = vsub.s32 3, %v4715
        %v4717 = vrot.slane %v4694, %v4716
        %v4718 = vlaneseq
        %v4719 = vshrl.u32 %v4718, 7
        %v4720 = vsub.s32 4, %v4719
        %v4721 = vrot.slane %v4694, %v4720
        %v4722 = vlaneseq
        %v4723 = vshrl.u32 %v4722, 7
        %v4724 = vsub.s32 5, %v4723
        %v4725 = vrot.slane %v4694, %v4724
        %v4726 = vlaneseq
        %v4727 = vshrl.u32 %v4726, 7
        %v4728 = vsub.s32 6, %v4727
        %v4729 = vrot.slane %v4694, %v4728
        %v4730 = vlaneseq
        %v4731 = vshrl.u32 %v4730, 7
        %v4732 = vsub.s32 7, %v4731
        %v4733 = vrot.slane %v4694, %v4732
        %v4734 = vlaneseq
        %v4735 = vshrl.u32 %v4734, 7
        %v4736 = vsub.s32 0, %v4735
        %v4737 = vrot.slane %v4695, %v4736
        %v4738 = vlaneseq
        %v4739 = vshrl.u32 %v4738, 7
        %v4740 = vsub.s32 1, %v4739
        %v4741 = vrot.slane %v4695, %v4740
        %v4742 = vlaneseq
        %v4743 = vshrl.u32 %v4742, 7
        %v4744 = vsub.s32 2, %v4743
        %v4745 = vrot.slane %v4695, %v4744
        %v4746 = vlaneseq
        %v4747 = vshrl.u32 %v4746, 7
        %v4748 = vsub.s32 3, %v4747
        %v4749 = vrot.slane %v4695, %v4748
        %v4750 = vlaneseq
        %v4751 = vshrl.u32 %v4750, 7
        %v4752 = vsub.s32 4, %v4751
        %v4753 = vrot.slane %v4695, %v4752
        %v4754 = vlaneseq
        %v4755 = vshrl.u32 %v4754, 7
        %v4756 = vsub.s32 5, %v4755
        %v4757 = vrot.slane %v4695, %v4756
        %v4758 = vlaneseq
        %v4759 = vshrl.u32 %v4758, 7
        %v4760 = vsub.s32 6, %v4759
        %v4761 = vrot.slane %v4695, %v4760
        %v4762 = vlaneseq
        %v4763 = vshrl.u32 %v4762, 7
        %v4764 = vsub.s32 7, %v4763
        %v4765 = vrot.slane %v4695, %v4764
        %v4766 = vlaneseq
        %v4767 = vshrl.u32 %v4766, 7
        %v4768 = vsub.s32 0, %v4767
        %v4769 = vrot.slane %v4696, %v4768
        %v4770 = vlaneseq
        %v4771 = vshrl.u32 %v4770, 7
        %v4772 = vsub.s32 1, %v4771
        %v4773 = vrot.slane %v4696, %v4772
        %v4774 = vlaneseq
        %v4775 = vshrl.u32 %v4774, 7
        %v4776 = vsub.s32 2, %v4775
        %v4777 = vrot.slane %v4696, %v4776
        %v4778 = vlaneseq
        %v4779 = vshrl.u32 %v4778, 7
        %v4780 = vsub.s32 3, %v4779
        %v4781 = vrot.slane %v4696, %v4780
        %v4782 = vlaneseq
        %v4783 = vshrl.u32 %v4782, 7
        %v4784 = vsub.s32 4, %v4783
        %v4785 = vrot.slane %v4696, %v4784
        %v4786 = vlaneseq
        %v4787 = vshrl.u32 %v4786, 7
        %v4788 = vsub.s32 5, %v4787
        %v4789 = vrot.slane %v4696, %v4788
        %v4790 = vlaneseq
        %v4791 = vshrl.u32 %v4790, 7
        %v4792 = vsub.s32 6, %v4791
        %v4793 = vrot.slane %v4696, %v4792
        %v4794 = vlaneseq
        %v4795 = vshrl.u32 %v4794, 7
        %v4796 = vsub.s32 7, %v4795
        %v4797 = vrot.slane %v4696, %v4796
        %v4798 = vlaneseq
        %v4799 = vshrl.u32 %v4798, 7
        %v4800 = vsub.s32 0, %v4799
        %v4801 = vrot.slane %v4697, %v4800
        %v4827 = vpack.c.bf16 %v4705, %v4705
        %v4828 = vpack.c.bf16 %v4709, %v4709
        %v4829 = vpack.c.bf16 %v4713, %v4713
        %v4830 = vpack.c.bf16 %v4717, %v4717
        %v4831 = vpack.c.bf16 %v4721, %v4721
        %v4832 = vpack.c.bf16 %v4725, %v4725
        %v4833 = vpack.c.bf16 %v4729, %v4729
        %v4834 = vpack.c.bf16 %v4733, %v4733
        %v4835 = vpack.c.bf16 %v4737, %v4737
        %v4836 = vpack.c.bf16 %v4741, %v4741
        %v4837 = vpack.c.bf16 %v4745, %v4745
        %v4838 = vpack.c.bf16 %v4749, %v4749
        %v4839 = vpack.c.bf16 %v4753, %v4753
        %v4840 = vpack.c.bf16 %v4757, %v4757
        %v4841 = vpack.c.bf16 %v4761, %v4761
        %v4842 = vpack.c.bf16 %v4765, %v4765
        %v4843 = vpack.c.bf16 %v4769, %v4769
        %v4844 = vpack.c.bf16 %v4773, %v4773
        %v4845 = vpack.c.bf16 %v4777, %v4777
        %v4846 = vpack.c.bf16 %v4781, %v4781
        %v4847 = vpack.c.bf16 %v4785, %v4785
        %v4848 = vpack.c.bf16 %v4789, %v4789
        %v4849 = vpack.c.bf16 %v4793, %v4793
        %v4850 = vpack.c.bf16 %v4797, %v4797
        %v4851 = vpack.c.bf16 %v4801, %v4801
        %v4852 = vld [vmem:[%s7] sm:$0xff]
        %v4853 = vld [vmem:[%s7 + $0x8] sm:$0xff]
        %v4854 = vld [vmem:[%s7 + $0x10] sm:$0xff]
        %v4855 = vld [vmem:[%s7 + $0x18] sm:$0xff]
        %v4856 = vld [vmem:[%s7 + $0x20] sm:$0xff]
        %v4857 = vld [vmem:[%s7 + $0x28] sm:$0xff]
        %v4858 = vld [vmem:[%s7 + $0x30] sm:$0xff]
        %v4859 = vld [vmem:[%s7 + $0x38] sm:$0xff]
        %v4860 = vld [vmem:[%s7 + $0x40] sm:$0xff]
        %v4861 = vld [vmem:[%s7 + $0x48] sm:$0xff]
        %v4862 = vld [vmem:[%s7 + $0x50] sm:$0xff]
        %v4863 = vld [vmem:[%s7 + $0x58] sm:$0xff]
        %v4864 = vld [vmem:[%s7 + $0x60] sm:$0xff]
        %v4865 = vld [vmem:[%s7 + $0x68] sm:$0xff]
        %v4866 = vld [vmem:[%s7 + $0x70] sm:$0xff]
        %v4867 = vld [vmem:[%s7 + $0x78] sm:$0xff]
        %v4868 = vld [vmem:[%s7 + $0x80] sm:$0xff]
        %v4869 = vld [vmem:[%s7 + $0x88] sm:$0xff]
        %v4870 = vld [vmem:[%s7 + $0x90] sm:$0xff]
        %v4871 = vld [vmem:[%s7 + $0x98] sm:$0xff]
        %v4872 = vld [vmem:[%s7 + $0xa0] sm:$0xff]
        %v4873 = vld [vmem:[%s7 + $0xa8] sm:$0xff]
        %v4874 = vld [vmem:[%s7 + $0xb0] sm:$0xff]
        %v4875 = vld [vmem:[%s7 + $0xb8] sm:$0xff]
        %v4876 = vld [vmem:[%s7 + $0xc0] sm:$0xff]
        %v4877 = vld [vmem:[%s7 + $0xc8] sm:$0xff]
        %v4878 = vld [vmem:[%s7 + $0xd0] sm:$0xff]
        %v4879 = vld [vmem:[%s7 + $0xd8] sm:$0xff]
        %v4880 = vld [vmem:[%s7 + $0xe0] sm:$0xff]
        %v4881 = vld [vmem:[%s7 + $0xe8] sm:$0xff]
        %v4882 = vld [vmem:[%s7 + $0xf0] sm:$0xff]
        %v4883 = vld [vmem:[%s7 + $0xf8] sm:$0xff]
        %v4884 = vld [vmem:[%s7 + $0x100] sm:$0xff]
        %v4885 = vld [vmem:[%s7 + $0x108] sm:$0xff]
        %v4886 = vld [vmem:[%s7 + $0x110] sm:$0xff]
        %v4887 = vld [vmem:[%s7 + $0x118] sm:$0xff]
        %v4888 = vld [vmem:[%s7 + $0x120] sm:$0xff]
        %v4889 = vld [vmem:[%s7 + $0x128] sm:$0xff]
        %v4890 = vld [vmem:[%s7 + $0x130] sm:$0xff]
        %v4891 = vld [vmem:[%s7 + $0x138] sm:$0xff]
        %v4892 = vld [vmem:[%s7 + $0x140] sm:$0xff]
        %v4893 = vld [vmem:[%s7 + $0x148] sm:$0xff]
        %v4894 = vld [vmem:[%s7 + $0x150] sm:$0xff]
        %v4895 = vld [vmem:[%s7 + $0x158] sm:$0xff]
        %v4896 = vld [vmem:[%s7 + $0x160] sm:$0xff]
        %v4897 = vld [vmem:[%s7 + $0x168] sm:$0xff]
        %v4898 = vld [vmem:[%s7 + $0x170] sm:$0xff]
        %v4899 = vld [vmem:[%s7 + $0x178] sm:$0xff]
        %v4900 = vld [vmem:[%s7 + $0x180] sm:$0xff]
        %v4901 = vld [vmem:[%s7 + $0x188] sm:$0xff]
        %v4902 = vld [vmem:[%s7 + $0x190] sm:$0xff]
        %v4903 = vld [vmem:[%s7 + $0x198] sm:$0xff]
        %v4904 = vld [vmem:[%s7 + $0x1a0] sm:$0xff]
        %v4905 = vld [vmem:[%s7 + $0x1a8] sm:$0xff]
        %v4906 = vld [vmem:[%s7 + $0x1b0] sm:$0xff]
        %v4907 = vld [vmem:[%s7 + $0x1b8] sm:$0xff]
        %v4908 = vld [vmem:[%s7 + $0x1c0] sm:$0xff]
        %v4909 = vld [vmem:[%s7 + $0x1c8] sm:$0xff]
        %v4910 = vld [vmem:[%s7 + $0x1d0] sm:$0xff]
        %v4911 = vld [vmem:[%s7 + $0x1d8] sm:$0xff]
        %v4912 = vld [vmem:[%s7 + $0x1e0] sm:$0xff]
        %v4913 = vld [vmem:[%s7 + $0x1e8] sm:$0xff]
        %v4914 = vld [vmem:[%s7 + $0x1f0] sm:$0xff]
        %v4915 = vld [vmem:[%s7 + $0x1f8] sm:$0xff]
        %v4916 = vld [vmem:[%s7 + $0x200] sm:$0xff]
        %v4917 = vld [vmem:[%s7 + $0x208] sm:$0xff]
        %v4918 = vld [vmem:[%s7 + $0x210] sm:$0xff]
        %v4919 = vld [vmem:[%s7 + $0x218] sm:$0xff]
        %v4920 = vld [vmem:[%s7 + $0x220] sm:$0xff]
        %v4921 = vld [vmem:[%s7 + $0x228] sm:$0xff]
        %v4922 = vld [vmem:[%s7 + $0x230] sm:$0xff]
        %v4923 = vld [vmem:[%s7 + $0x238] sm:$0xff]
        %v4924 = vld [vmem:[%s7 + $0x240] sm:$0xff]
        %v4925 = vld [vmem:[%s7 + $0x248] sm:$0xff]
        %v4926 = vld [vmem:[%s7 + $0x250] sm:$0xff]
        %v4927 = vld [vmem:[%s7 + $0x258] sm:$0xff]
        %v4928 = vld [vmem:[%s7 + $0x260] sm:$0xff]
        %v4929 = vld [vmem:[%s7 + $0x268] sm:$0xff]
        %v4930 = vld [vmem:[%s7 + $0x270] sm:$0xff]
        %v4931 = vld [vmem:[%s7 + $0x278] sm:$0xff]
        %v4932 = vld [vmem:[%s7 + $0x280] sm:$0xff]
        %v4933 = vld [vmem:[%s7 + $0x288] sm:$0xff]
        %v4934 = vld [vmem:[%s7 + $0x290] sm:$0xff]
        %v4935 = vld [vmem:[%s7 + $0x298] sm:$0xff]
        %v4936 = vld [vmem:[%s7 + $0x2a0] sm:$0xff]
        %v4937 = vld [vmem:[%s7 + $0x2a8] sm:$0xff]
        %v4938 = vld [vmem:[%s7 + $0x2b0] sm:$0xff]
        %v4939 = vld [vmem:[%s7 + $0x2b8] sm:$0xff]
        %v4940 = vld [vmem:[%s7 + $0x2c0] sm:$0xff]
        %v4941 = vld [vmem:[%s7 + $0x2c8] sm:$0xff]
        %v4942 = vld [vmem:[%s7 + $0x2d0] sm:$0xff]
        %v4943 = vld [vmem:[%s7 + $0x2d8] sm:$0xff]
        %v4944 = vld [vmem:[%s7 + $0x2e0] sm:$0xff]
        %v4945 = vld [vmem:[%s7 + $0x2e8] sm:$0xff]
        %v4946 = vld [vmem:[%s7 + $0x2f0] sm:$0xff]
        %v4947 = vld [vmem:[%s7 + $0x2f8] sm:$0xff]
        %v4948 = vld [vmem:[%s7 + $0x300] sm:$0xff]
        %v4949 = vld [vmem:[%s7 + $0x308] sm:$0xff]
        %v4950 = vld [vmem:[%s7 + $0x310] sm:$0xff]
        %v4951 = vld [vmem:[%s7 + $0x318] sm:$0xff]
        %v4952 = vld [vmem:[%s7 + $0x320] sm:$0xff]
        %v4953 = vld [vmem:[%s7 + $0x328] sm:$0xff]
        %v4954 = vld [vmem:[%s7 + $0x330] sm:$0xff]
        %v4955 = vld [vmem:[%s7 + $0x338] sm:$0xff]
        %v4956 = vld [vmem:[%s7 + $0x340] sm:$0xff]
        %v4957 = vld [vmem:[%s7 + $0x348] sm:$0xff]
        %v4958 = vld [vmem:[%s7 + $0x350] sm:$0xff]
        %v4959 = vld [vmem:[%s7 + $0x358] sm:$0xff]
        %v4960 = vld [vmem:[%s7 + $0x360] sm:$0xff]
        %v4961 = vld [vmem:[%s7 + $0x368] sm:$0xff]
        %v4962 = vld [vmem:[%s7 + $0x370] sm:$0xff]
        %v4963 = vld [vmem:[%s7 + $0x378] sm:$0xff]
        %v4964 = vld [vmem:[%s7 + $0x380] sm:$0xff]
        %v4965 = vld [vmem:[%s7 + $0x388] sm:$0xff]
        %v4966 = vld [vmem:[%s7 + $0x390] sm:$0xff]
        %v4967 = vld [vmem:[%s7 + $0x398] sm:$0xff]
        %v4968 = vld [vmem:[%s7 + $0x3a0] sm:$0xff]
        %v4969 = vld [vmem:[%s7 + $0x3a8] sm:$0xff]
        %v4970 = vld [vmem:[%s7 + $0x3b0] sm:$0xff]
        %v4971 = vld [vmem:[%s7 + $0x3b8] sm:$0xff]
        %v4972 = vld [vmem:[%s7 + $0x3c0] sm:$0xff]
        %v4973 = vld [vmem:[%s7 + $0x3c8] sm:$0xff]
        %v4974 = vld [vmem:[%s7 + $0x3d0] sm:$0xff]
        %v4975 = vld [vmem:[%s7 + $0x3d8] sm:$0xff]
        %v4976 = vld [vmem:[%s7 + $0x3e0] sm:$0xff]
        %v4977 = vld [vmem:[%s7 + $0x3e8] sm:$0xff]
        %v4978 = vld [vmem:[%s7 + $0x3f0] sm:$0xff]
        %v4979 = vld [vmem:[%s7 + $0x3f8] sm:$0xff]
        %v4980 = vld [vmem:[%s7 + $0x400] sm:$0xff]
        %v4981 = vld [vmem:[%s7 + $0x408] sm:$0xff]
        %v4982 = vld [vmem:[%s7 + $0x410] sm:$0xff]
        %v4983 = vld [vmem:[%s7 + $0x418] sm:$0xff]
        %v4984 = vld [vmem:[%s7 + $0x420] sm:$0xff]
        %v4985 = vld [vmem:[%s7 + $0x428] sm:$0xff]
        %v4986 = vld [vmem:[%s7 + $0x430] sm:$0xff]
        %v4987 = vld [vmem:[%s7 + $0x438] sm:$0xff]
        %v4988 = vld [vmem:[%s7 + $0x440] sm:$0xff]
        %v4989 = vld [vmem:[%s7 + $0x448] sm:$0xff]
        %v4990 = vld [vmem:[%s7 + $0x450] sm:$0xff]
        %v4991 = vld [vmem:[%s7 + $0x458] sm:$0xff]
        %v4992 = vld [vmem:[%s7 + $0x460] sm:$0xff]
        %v4993 = vld [vmem:[%s7 + $0x468] sm:$0xff]
        %v4994 = vld [vmem:[%s7 + $0x470] sm:$0xff]
        %v4995 = vld [vmem:[%s7 + $0x478] sm:$0xff]
        %v4996 = vld [vmem:[%s7 + $0x480] sm:$0xff]
        %v4997 = vld [vmem:[%s7 + $0x488] sm:$0xff]
        %v4998 = vld [vmem:[%s7 + $0x490] sm:$0xff]
        %v4999 = vld [vmem:[%s7 + $0x498] sm:$0xff]
        %v5000 = vld [vmem:[%s7 + $0x4a0] sm:$0xff]
        %v5001 = vld [vmem:[%s7 + $0x4a8] sm:$0xff]
        %v5002 = vld [vmem:[%s7 + $0x4b0] sm:$0xff]
        %v5003 = vld [vmem:[%s7 + $0x4b8] sm:$0xff]
        %v5004 = vld [vmem:[%s7 + $0x4c0] sm:$0xff]
        %v5005 = vld [vmem:[%s7 + $0x4c8] sm:$0xff]
        %v5006 = vld [vmem:[%s7 + $0x4d0] sm:$0xff]
        %v5007 = vld [vmem:[%s7 + $0x4d8] sm:$0xff]
        %v5008 = vld [vmem:[%s7 + $0x4e0] sm:$0xff]
        %v5009 = vld [vmem:[%s7 + $0x4e8] sm:$0xff]
        %v5010 = vld [vmem:[%s7 + $0x4f0] sm:$0xff]
        %v5011 = vld [vmem:[%s7 + $0x4f8] sm:$0xff]
        %v5012 = vld [vmem:[%s7 + $0x500] sm:$0xff]
        %v5013 = vld [vmem:[%s7 + $0x508] sm:$0xff]
        %v5014 = vld [vmem:[%s7 + $0x510] sm:$0xff]
        %v5015 = vld [vmem:[%s7 + $0x518] sm:$0xff]
        %v5016 = vld [vmem:[%s7 + $0x520] sm:$0xff]
        %v5017 = vld [vmem:[%s7 + $0x528] sm:$0xff]
        %v5018 = vld [vmem:[%s7 + $0x530] sm:$0xff]
        %v5019 = vld [vmem:[%s7 + $0x538] sm:$0xff]
        %v5020 = vld [vmem:[%s7 + $0x540] sm:$0xff]
        %v5021 = vld [vmem:[%s7 + $0x548] sm:$0xff]
        %v5022 = vld [vmem:[%s7 + $0x550] sm:$0xff]
        %v5023 = vld [vmem:[%s7 + $0x558] sm:$0xff]
        %v5024 = vld [vmem:[%s7 + $0x560] sm:$0xff]
        %v5025 = vld [vmem:[%s7 + $0x568] sm:$0xff]
        %v5026 = vld [vmem:[%s7 + $0x570] sm:$0xff]
        %v5027 = vld [vmem:[%s7 + $0x578] sm:$0xff]
        %v5028 = vld [vmem:[%s7 + $0x580] sm:$0xff]
        %v5029 = vld [vmem:[%s7 + $0x588] sm:$0xff]
        %v5030 = vld [vmem:[%s7 + $0x590] sm:$0xff]
        %v5031 = vld [vmem:[%s7 + $0x598] sm:$0xff]
        %v5032 = vld [vmem:[%s7 + $0x5a0] sm:$0xff]
        %v5033 = vld [vmem:[%s7 + $0x5a8] sm:$0xff]
        %v5034 = vld [vmem:[%s7 + $0x5b0] sm:$0xff]
        %v5035 = vld [vmem:[%s7 + $0x5b8] sm:$0xff]
        %v5036 = vld [vmem:[%s7 + $0x5c0] sm:$0xff]
        %v5037 = vld [vmem:[%s7 + $0x5c8] sm:$0xff]
        %v5038 = vld [vmem:[%s7 + $0x5d0] sm:$0xff]
        %v5039 = vld [vmem:[%s7 + $0x5d8] sm:$0xff]
        %v5040 = vld [vmem:[%s7 + $0x5e0] sm:$0xff]
        %v5041 = vld [vmem:[%s7 + $0x5e8] sm:$0xff]
        %v5042 = vld [vmem:[%s7 + $0x5f0] sm:$0xff]
        %v5043 = vld [vmem:[%s7 + $0x5f8] sm:$0xff]
        %v5044 = vld [vmem:[%s7 + $0x600] sm:$0xff]
        %v5045 = vld [vmem:[%s7 + $0x608] sm:$0xff]
        %v5046 = vld [vmem:[%s7 + $0x610] sm:$0xff]
        %v5047 = vld [vmem:[%s7 + $0x618] sm:$0xff]
        %v5048 = vld [vmem:[%s7 + $0x620] sm:$0xff]
        %v5049 = vld [vmem:[%s7 + $0x628] sm:$0xff]
        %v5050 = vld [vmem:[%s7 + $0x630] sm:$0xff]
        %v5051 = vld [vmem:[%s7 + $0x638] sm:$0xff]
        %v5052 = vld [vmem:[%s7 + $0x640] sm:$0xff]
        %v5053 = vld [vmem:[%s7 + $0x648] sm:$0xff]
        %v5054 = vld [vmem:[%s7 + $0x650] sm:$0xff]
        %v5055 = vld [vmem:[%s7 + $0x658] sm:$0xff]
        %v5056 = vld [vmem:[%s7 + $0x660] sm:$0xff]
        %v5057 = vld [vmem:[%s7 + $0x668] sm:$0xff]
        %v5058 = vld [vmem:[%s7 + $0x670] sm:$0xff]
        %v5059 = vld [vmem:[%s7 + $0x678] sm:$0xff]
        %v5060 = vld [vmem:[%s7 + $0x680] sm:$0xff]
        %v5061 = vld [vmem:[%s7 + $0x688] sm:$0xff]
        %v5062 = vld [vmem:[%s7 + $0x690] sm:$0xff]
        %v5063 = vld [vmem:[%s7 + $0x698] sm:$0xff]
        %v5064 = vld [vmem:[%s7 + $0x6a0] sm:$0xff]
        %v5065 = vld [vmem:[%s7 + $0x6a8] sm:$0xff]
        %v5066 = vld [vmem:[%s7 + $0x6b0] sm:$0xff]
        %v5067 = vld [vmem:[%s7 + $0x6b8] sm:$0xff]
        %v5068 = vld [vmem:[%s7 + $0x6c0] sm:$0xff]
        %v5069 = vld [vmem:[%s7 + $0x6c8] sm:$0xff]
        %v5070 = vld [vmem:[%s7 + $0x6d0] sm:$0xff]
        %v5071 = vld [vmem:[%s7 + $0x6d8] sm:$0xff]
        %v5072 = vld [vmem:[%s7 + $0x6e0] sm:$0xff]
        %v5073 = vld [vmem:[%s7 + $0x6e8] sm:$0xff]
        %v5074 = vld [vmem:[%s7 + $0x6f0] sm:$0xff]
        %v5075 = vld [vmem:[%s7 + $0x6f8] sm:$0xff]
        %v5076 = vld [vmem:[%s7 + $0x700] sm:$0xff]
        %v5077 = vld [vmem:[%s7 + $0x708] sm:$0xff]
        %v5078 = vld [vmem:[%s7 + $0x710] sm:$0xff]
        %v5079 = vld [vmem:[%s7 + $0x718] sm:$0xff]
        %v5080 = vld [vmem:[%s7 + $0x720] sm:$0xff]
        %v5081 = vld [vmem:[%s7 + $0x728] sm:$0xff]
        %v5082 = vld [vmem:[%s7 + $0x730] sm:$0xff]
        %v5083 = vld [vmem:[%s7 + $0x738] sm:$0xff]
        %v5084 = vld [vmem:[%s7 + $0x740] sm:$0xff]
        %v5085 = vld [vmem:[%s7 + $0x748] sm:$0xff]
        %v5086 = vld [vmem:[%s7 + $0x750] sm:$0xff]
        %v5087 = vld [vmem:[%s7 + $0x758] sm:$0xff]
        %v5088 = vld [vmem:[%s7 + $0x760] sm:$0xff]
        %v5089 = vld [vmem:[%s7 + $0x768] sm:$0xff]
        %v5090 = vld [vmem:[%s7 + $0x770] sm:$0xff]
        %v5091 = vld [vmem:[%s7 + $0x778] sm:$0xff]
        %v5092 = vld [vmem:[%s7 + $0x780] sm:$0xff]
        %v5093 = vld [vmem:[%s7 + $0x788] sm:$0xff]
        %v5094 = vld [vmem:[%s7 + $0x790] sm:$0xff]
        %v5095 = vld [vmem:[%s7 + $0x798] sm:$0xff]
        %v5096 = vld [vmem:[%s7 + $0x7a0] sm:$0xff]
        %v5097 = vld [vmem:[%s7 + $0x7a8] sm:$0xff]
        %v5098 = vld [vmem:[%s7 + $0x7b0] sm:$0xff]
        %v5099 = vld [vmem:[%s7 + $0x7b8] sm:$0xff]
        %v5100 = vld [vmem:[%s7 + $0x7c0] sm:$0xff]
        %v5101 = vld [vmem:[%s7 + $0x7c8] sm:$0xff]
        %v5102 = vld [vmem:[%s7 + $0x7d0] sm:$0xff]
        %v5103 = vld [vmem:[%s7 + $0x7d8] sm:$0xff]
        %v5104 = vld [vmem:[%s7 + $0x7e0] sm:$0xff]
        %v5105 = vld [vmem:[%s7 + $0x7e8] sm:$0xff]
        %v5106 = vld [vmem:[%s7 + $0x7f0] sm:$0xff]
        %v5107 = vld [vmem:[%s7 + $0x7f8] sm:$0xff]
        %v5108 = vld [vmem:[%s7 + $0x800] sm:$0xff]
        %v5109 = vld [vmem:[%s7 + $0x808] sm:$0xff]
        %v5110 = vld [vmem:[%s7 + $0x810] sm:$0xff]
        %v5111 = vld [vmem:[%s7 + $0x818] sm:$0xff]
        %v5112 = vld [vmem:[%s7 + $0x820] sm:$0xff]
        %v5113 = vld [vmem:[%s7 + $0x828] sm:$0xff]
        %v5114 = vld [vmem:[%s7 + $0x830] sm:$0xff]
        %v5115 = vld [vmem:[%s7 + $0x838] sm:$0xff]
        %v5116 = vld [vmem:[%s7 + $0x840] sm:$0xff]
        %v5117 = vld [vmem:[%s7 + $0x848] sm:$0xff]
        %v5118 = vld [vmem:[%s7 + $0x850] sm:$0xff]
        %v5119 = vld [vmem:[%s7 + $0x858] sm:$0xff]
        %v5120 = vld [vmem:[%s7 + $0x860] sm:$0xff]
        %v5121 = vld [vmem:[%s7 + $0x868] sm:$0xff]
        %v5122 = vld [vmem:[%s7 + $0x870] sm:$0xff]
        %v5123 = vld [vmem:[%s7 + $0x878] sm:$0xff]
        %v5124 = vld [vmem:[%s7 + $0x880] sm:$0xff]
        %v5125 = vld [vmem:[%s7 + $0x888] sm:$0xff]
        %v5126 = vld [vmem:[%s7 + $0x890] sm:$0xff]
        %v5127 = vld [vmem:[%s7 + $0x898] sm:$0xff]
        %v5128 = vld [vmem:[%s7 + $0x8a0] sm:$0xff]
        %v5129 = vld [vmem:[%s7 + $0x8a8] sm:$0xff]
        %v5130 = vld [vmem:[%s7 + $0x8b0] sm:$0xff]
        %v5131 = vld [vmem:[%s7 + $0x8b8] sm:$0xff]
        %v5132 = vld [vmem:[%s7 + $0x8c0] sm:$0xff]
        %v5133 = vld [vmem:[%s7 + $0x8c8] sm:$0xff]
        %v5134 = vld [vmem:[%s7 + $0x8d0] sm:$0xff]
        %v5135 = vld [vmem:[%s7 + $0x8d8] sm:$0xff]
        %v5136 = vld [vmem:[%s7 + $0x8e0] sm:$0xff]
        %v5137 = vld [vmem:[%s7 + $0x8e8] sm:$0xff]
        %v5138 = vld [vmem:[%s7 + $0x8f0] sm:$0xff]
        %v5139 = vld [vmem:[%s7 + $0x8f8] sm:$0xff]
        %v5140 = vld [vmem:[%s7 + $0x900] sm:$0xff]
        %v5141 = vld [vmem:[%s7 + $0x908] sm:$0xff]
        %v5142 = vld [vmem:[%s7 + $0x910] sm:$0xff]
        %v5143 = vld [vmem:[%s7 + $0x918] sm:$0xff]
        %v5144 = vld [vmem:[%s7 + $0x920] sm:$0xff]
        %v5145 = vld [vmem:[%s7 + $0x928] sm:$0xff]
        %v5146 = vld [vmem:[%s7 + $0x930] sm:$0xff]
        %v5147 = vld [vmem:[%s7 + $0x938] sm:$0xff]
        %v5148 = vld [vmem:[%s7 + $0x940] sm:$0xff]
        %v5149 = vld [vmem:[%s7 + $0x948] sm:$0xff]
        %v5150 = vld [vmem:[%s7 + $0x950] sm:$0xff]
        %v5151 = vld [vmem:[%s7 + $0x958] sm:$0xff]
        %v5152 = vld [vmem:[%s7 + $0x960] sm:$0xff]
        %v5153 = vld [vmem:[%s7 + $0x968] sm:$0xff]
        %v5154 = vld [vmem:[%s7 + $0x970] sm:$0xff]
        %v5155 = vld [vmem:[%s7 + $0x978] sm:$0xff]
        %v5156 = vld [vmem:[%s7 + $0x980] sm:$0xff]
        %v5157 = vld [vmem:[%s7 + $0x988] sm:$0xff]
        %v5158 = vld [vmem:[%s7 + $0x990] sm:$0xff]
        %v5159 = vld [vmem:[%s7 + $0x998] sm:$0xff]
        %v5160 = vld [vmem:[%s7 + $0x9a0] sm:$0xff]
        %v5161 = vld [vmem:[%s7 + $0x9a8] sm:$0xff]
        %v5162 = vld [vmem:[%s7 + $0x9b0] sm:$0xff]
        %v5163 = vld [vmem:[%s7 + $0x9b8] sm:$0xff]
        %v5164 = vld [vmem:[%s7 + $0x9c0] sm:$0xff]
        %v5165 = vld [vmem:[%s7 + $0x9c8] sm:$0xff]
        %v5166 = vld [vmem:[%s7 + $0x9d0] sm:$0xff]
        %v5167 = vld [vmem:[%s7 + $0x9d8] sm:$0xff]
        %v5168 = vld [vmem:[%s7 + $0x9e0] sm:$0xff]
        %v5169 = vld [vmem:[%s7 + $0x9e8] sm:$0xff]
        %v5170 = vld [vmem:[%s7 + $0x9f0] sm:$0xff]
        %v5171 = vld [vmem:[%s7 + $0x9f8] sm:$0xff]
        %v5172 = vld [vmem:[%s7 + $0xa00] sm:$0xff]
        %v5173 = vld [vmem:[%s7 + $0xa08] sm:$0xff]
        %v5174 = vld [vmem:[%s7 + $0xa10] sm:$0xff]
        %v5175 = vld [vmem:[%s7 + $0xa18] sm:$0xff]
        %v5176 = vld [vmem:[%s7 + $0xa20] sm:$0xff]
        %v5177 = vld [vmem:[%s7 + $0xa28] sm:$0xff]
        %v5178 = vld [vmem:[%s7 + $0xa30] sm:$0xff]
        %v5179 = vld [vmem:[%s7 + $0xa38] sm:$0xff]
        %v5180 = vld [vmem:[%s7 + $0xa40] sm:$0xff]
        %v5181 = vld [vmem:[%s7 + $0xa48] sm:$0xff]
        %v5182 = vld [vmem:[%s7 + $0xa50] sm:$0xff]
        %v5183 = vld [vmem:[%s7 + $0xa58] sm:$0xff]
        %v5184 = vld [vmem:[%s7 + $0xa60] sm:$0xff]
        %v5185 = vld [vmem:[%s7 + $0xa68] sm:$0xff]
        %v5186 = vld [vmem:[%s7 + $0xa70] sm:$0xff]
        %v5187 = vld [vmem:[%s7 + $0xa78] sm:$0xff]
        %v5188 = vld [vmem:[%s7 + $0xa80] sm:$0xff]
        %v5189 = vld [vmem:[%s7 + $0xa88] sm:$0xff]
        %v5190 = vld [vmem:[%s7 + $0xa90] sm:$0xff]
        %v5191 = vld [vmem:[%s7 + $0xa98] sm:$0xff]
        %v5192 = vld [vmem:[%s7 + $0xaa0] sm:$0xff]
        %v5193 = vld [vmem:[%s7 + $0xaa8] sm:$0xff]
        %v5194 = vld [vmem:[%s7 + $0xab0] sm:$0xff]
        %v5195 = vld [vmem:[%s7 + $0xab8] sm:$0xff]
        %v5196 = vld [vmem:[%s7 + $0xac0] sm:$0xff]
        %v5197 = vld [vmem:[%s7 + $0xac8] sm:$0xff]
        %v5198 = vld [vmem:[%s7 + $0xad0] sm:$0xff]
        %v5199 = vld [vmem:[%s7 + $0xad8] sm:$0xff]
        %v5200 = vld [vmem:[%s7 + $0xae0] sm:$0xff]
        %v5201 = vld [vmem:[%s7 + $0xae8] sm:$0xff]
        %v5202 = vld [vmem:[%s7 + $0xaf0] sm:$0xff]
        %v5203 = vld [vmem:[%s7 + $0xaf8] sm:$0xff]
        %v5204 = vld [vmem:[%s7 + $0xb00] sm:$0xff]
        %v5205 = vld [vmem:[%s7 + $0xb08] sm:$0xff]
        %v5206 = vld [vmem:[%s7 + $0xb10] sm:$0xff]
        %v5207 = vld [vmem:[%s7 + $0xb18] sm:$0xff]
        %v5208 = vld [vmem:[%s7 + $0xb20] sm:$0xff]
        %v5209 = vld [vmem:[%s7 + $0xb28] sm:$0xff]
        %v5210 = vld [vmem:[%s7 + $0xb30] sm:$0xff]
        %v5211 = vld [vmem:[%s7 + $0xb38] sm:$0xff]
        %v5212 = vld [vmem:[%s7 + $0xb40] sm:$0xff]
        %v5213 = vld [vmem:[%s7 + $0xb48] sm:$0xff]
        %v5214 = vld [vmem:[%s7 + $0xb50] sm:$0xff]
        %v5215 = vld [vmem:[%s7 + $0xb58] sm:$0xff]
        %v5216 = vld [vmem:[%s7 + $0xb60] sm:$0xff]
        %v5217 = vld [vmem:[%s7 + $0xb68] sm:$0xff]
        %v5218 = vld [vmem:[%s7 + $0xb70] sm:$0xff]
        %v5219 = vld [vmem:[%s7 + $0xb78] sm:$0xff]
        %v5220 = vld [vmem:[%s7 + $0xb80] sm:$0xff]
        %v5221 = vld [vmem:[%s7 + $0xb88] sm:$0xff]
        %v5222 = vld [vmem:[%s7 + $0xb90] sm:$0xff]
        %v5223 = vld [vmem:[%s7 + $0xb98] sm:$0xff]
        %v5224 = vld [vmem:[%s7 + $0xba0] sm:$0xff]
        %v5225 = vld [vmem:[%s7 + $0xba8] sm:$0xff]
        %v5226 = vld [vmem:[%s7 + $0xbb0] sm:$0xff]
        %v5227 = vld [vmem:[%s7 + $0xbb8] sm:$0xff]
        %v5228 = vld [vmem:[%s7 + $0xbc0] sm:$0xff]
        %v5229 = vld [vmem:[%s7 + $0xbc8] sm:$0xff]
        %v5230 = vld [vmem:[%s7 + $0xbd0] sm:$0xff]
        %v5231 = vld [vmem:[%s7 + $0xbd8] sm:$0xff]
        %v5232 = vld [vmem:[%s7 + $0xbe0] sm:$0xff]
        %v5233 = vld [vmem:[%s7 + $0xbe8] sm:$0xff]
        %v5234 = vld [vmem:[%s7 + $0xbf0] sm:$0xff]
        %v5235 = vld [vmem:[%s7 + $0xbf8] sm:$0xff]
        %v5236 = vld [vmem:[%s7 + $0xc00] sm:$0xff]
        %v5237 = vld [vmem:[%s7 + $0xc08] sm:$0xff]
        %v5238 = vld [vmem:[%s7 + $0xc10] sm:$0xff]
        %v5239 = vld [vmem:[%s7 + $0xc18] sm:$0xff]
        %v5240 = vld [vmem:[%s7 + $0xc20] sm:$0xff]
        %v5241 = vld [vmem:[%s7 + $0xc28] sm:$0xff]
        %v5242 = vld [vmem:[%s7 + $0xc30] sm:$0xff]
        %v5243 = vld [vmem:[%s7 + $0xc38] sm:$0xff]
        %v5244 = vld [vmem:[%s7 + $0xc40] sm:$0xff]
        %v5245 = vld [vmem:[%s7 + $0xc48] sm:$0xff]
        %v5246 = vld [vmem:[%s7 + $0xc50] sm:$0xff]
        %v5247 = vld [vmem:[%s7 + $0xc58] sm:$0xff]
        %v5248 = vld [vmem:[%s7 + $0xc60] sm:$0xff]
        %v5249 = vld [vmem:[%s7 + $0xc68] sm:$0xff]
        %v5250 = vld [vmem:[%s7 + $0xc70] sm:$0xff]
        %v5251 = vld [vmem:[%s7 + $0xc78] sm:$0xff]
        %v5252 = vld [vmem:[%s7 + $0xc80] sm:$0xff]
        %v5253 = vld [vmem:[%s7 + $0xc88] sm:$0xff]
        %v5254 = vld [vmem:[%s7 + $0xc90] sm:$0xff]
        %v5255 = vld [vmem:[%s7 + $0xc98] sm:$0xff]
        %v5256 = vld [vmem:[%s7 + $0xca0] sm:$0xff]
        %v5257 = vld [vmem:[%s7 + $0xca8] sm:$0xff]
        %v5258 = vld [vmem:[%s7 + $0xcb0] sm:$0xff]
        %v5259 = vld [vmem:[%s7 + $0xcb8] sm:$0xff]
        %v5260 = vld [vmem:[%s7 + $0xcc0] sm:$0xff]
        %v5261 = vld [vmem:[%s7 + $0xcc8] sm:$0xff]
        %v5262 = vld [vmem:[%s7 + $0xcd0] sm:$0xff]
        %v5263 = vld [vmem:[%s7 + $0xcd8] sm:$0xff]
        %v5264 = vld [vmem:[%s7 + $0xce0] sm:$0xff]
        %v5265 = vld [vmem:[%s7 + $0xce8] sm:$0xff]
        %v5266 = vld [vmem:[%s7 + $0xcf0] sm:$0xff]
        %v5267 = vld [vmem:[%s7 + $0xcf8] sm:$0xff]
        %v5268 = vld [vmem:[%s7 + $0xd00] sm:$0xff]
        %v5269 = vld [vmem:[%s7 + $0xd08] sm:$0xff]
        %v5270 = vld [vmem:[%s7 + $0xd10] sm:$0xff]
        %v5271 = vld [vmem:[%s7 + $0xd18] sm:$0xff]
        %v5272 = vld [vmem:[%s7 + $0xd20] sm:$0xff]
        %v5273 = vld [vmem:[%s7 + $0xd28] sm:$0xff]
        %v5274 = vld [vmem:[%s7 + $0xd30] sm:$0xff]
        %v5275 = vld [vmem:[%s7 + $0xd38] sm:$0xff]
        %v5276 = vld [vmem:[%s7 + $0xd40] sm:$0xff]
        %v5277 = vld [vmem:[%s7 + $0xd48] sm:$0xff]
        %v5278 = vld [vmem:[%s7 + $0xd50] sm:$0xff]
        %v5279 = vld [vmem:[%s7 + $0xd58] sm:$0xff]
        %v5280 = vld [vmem:[%s7 + $0xd60] sm:$0xff]
        %v5281 = vld [vmem:[%s7 + $0xd68] sm:$0xff]
        %v5282 = vld [vmem:[%s7 + $0xd70] sm:$0xff]
        %v5283 = vld [vmem:[%s7 + $0xd78] sm:$0xff]
        %v5284 = vld [vmem:[%s7 + $0xd80] sm:$0xff]
        %v5285 = vld [vmem:[%s7 + $0xd88] sm:$0xff]
        %v5286 = vld [vmem:[%s7 + $0xd90] sm:$0xff]
        %v5287 = vld [vmem:[%s7 + $0xd98] sm:$0xff]
        %v5288 = vld [vmem:[%s7 + $0xda0] sm:$0xff]
        %v5289 = vld [vmem:[%s7 + $0xda8] sm:$0xff]
        %v5290 = vld [vmem:[%s7 + $0xdb0] sm:$0xff]
        %v5291 = vld [vmem:[%s7 + $0xdb8] sm:$0xff]
        %v5292 = vld [vmem:[%s7 + $0xdc0] sm:$0xff]
        %v5293 = vld [vmem:[%s7 + $0xdc8] sm:$0xff]
        %v5294 = vld [vmem:[%s7 + $0xdd0] sm:$0xff]
        %v5295 = vld [vmem:[%s7 + $0xdd8] sm:$0xff]
        %v5296 = vld [vmem:[%s7 + $0xde0] sm:$0xff]
        %v5297 = vld [vmem:[%s7 + $0xde8] sm:$0xff]
        %v5298 = vld [vmem:[%s7 + $0xdf0] sm:$0xff]
        %v5299 = vld [vmem:[%s7 + $0xdf8] sm:$0xff]
        %v5300 = vld [vmem:[%s7 + $0xe00] sm:$0xff]
        %v5301 = vld [vmem:[%s7 + $0xe08] sm:$0xff]
        %v5302 = vld [vmem:[%s7 + $0xe10] sm:$0xff]
        %v5303 = vld [vmem:[%s7 + $0xe18] sm:$0xff]
        %v5304 = vld [vmem:[%s7 + $0xe20] sm:$0xff]
        %v5305 = vld [vmem:[%s7 + $0xe28] sm:$0xff]
        %v5306 = vld [vmem:[%s7 + $0xe30] sm:$0xff]
        %v5307 = vld [vmem:[%s7 + $0xe38] sm:$0xff]
        %v5308 = vld [vmem:[%s7 + $0xe40] sm:$0xff]
        %v5309 = vld [vmem:[%s7 + $0xe48] sm:$0xff]
        %v5310 = vld [vmem:[%s7 + $0xe50] sm:$0xff]
        %v5311 = vld [vmem:[%s7 + $0xe58] sm:$0xff]
        %v5312 = vld [vmem:[%s7 + $0xe60] sm:$0xff]
        %v5313 = vld [vmem:[%s7 + $0xe68] sm:$0xff]
        %v5314 = vld [vmem:[%s7 + $0xe70] sm:$0xff]
        %v5315 = vld [vmem:[%s7 + $0xe78] sm:$0xff]
        %v5316 = vld [vmem:[%s7 + $0xe80] sm:$0xff]
        %v5317 = vld [vmem:[%s7 + $0xe88] sm:$0xff]
        %v5318 = vld [vmem:[%s7 + $0xe90] sm:$0xff]
        %v5319 = vld [vmem:[%s7 + $0xe98] sm:$0xff]
        %v5320 = vld [vmem:[%s7 + $0xea0] sm:$0xff]
        %v5321 = vld [vmem:[%s7 + $0xea8] sm:$0xff]
        %v5322 = vld [vmem:[%s7 + $0xeb0] sm:$0xff]
        %v5323 = vld [vmem:[%s7 + $0xeb8] sm:$0xff]
        %v5324 = vld [vmem:[%s7 + $0xec0] sm:$0xff]
        %v5325 = vld [vmem:[%s7 + $0xec8] sm:$0xff]
        %v5326 = vld [vmem:[%s7 + $0xed0] sm:$0xff]
        %v5327 = vld [vmem:[%s7 + $0xed8] sm:$0xff]
        %v5328 = vld [vmem:[%s7 + $0xee0] sm:$0xff]
        %v5329 = vld [vmem:[%s7 + $0xee8] sm:$0xff]
        %v5330 = vld [vmem:[%s7 + $0xef0] sm:$0xff]
        %v5331 = vld [vmem:[%s7 + $0xef8] sm:$0xff]
        %v5332 = vld [vmem:[%s7 + $0xf00] sm:$0xff]
        %v5333 = vld [vmem:[%s7 + $0xf08] sm:$0xff]
        %v5334 = vld [vmem:[%s7 + $0xf10] sm:$0xff]
        %v5335 = vld [vmem:[%s7 + $0xf18] sm:$0xff]
        %v5336 = vld [vmem:[%s7 + $0xf20] sm:$0xff]
        %v5337 = vld [vmem:[%s7 + $0xf28] sm:$0xff]
        %v5338 = vld [vmem:[%s7 + $0xf30] sm:$0xff]
        %v5339 = vld [vmem:[%s7 + $0xf38] sm:$0xff]
        %v5340 = vld [vmem:[%s7 + $0xf40] sm:$0xff]
        %v5341 = vld [vmem:[%s7 + $0xf48] sm:$0xff]
        %v5342 = vld [vmem:[%s7 + $0xf50] sm:$0xff]
        %v5343 = vld [vmem:[%s7 + $0xf58] sm:$0xff]
        %v5344 = vld [vmem:[%s7 + $0xf60] sm:$0xff]
        %v5345 = vld [vmem:[%s7 + $0xf68] sm:$0xff]
        %v5346 = vld [vmem:[%s7 + $0xf70] sm:$0xff]
        %v5347 = vld [vmem:[%s7 + $0xf78] sm:$0xff]
        %v5348 = vld [vmem:[%s7 + $0xf80] sm:$0xff]
        %v5349 = vld [vmem:[%s7 + $0xf88] sm:$0xff]
        %v5350 = vld [vmem:[%s7 + $0xf90] sm:$0xff]
        %v5351 = vld [vmem:[%s7 + $0xf98] sm:$0xff]
        %v5352 = vld [vmem:[%s7 + $0xfa0] sm:$0xff]
        %v5353 = vld [vmem:[%s7 + $0xfa8] sm:$0xff]
        %v5354 = vld [vmem:[%s7 + $0xfb0] sm:$0xff]
        %v5355 = vld [vmem:[%s7 + $0xfb8] sm:$0xff]
        %v5356 = vld [vmem:[%s7 + $0xfc0] sm:$0xff]
        %v5357 = vld [vmem:[%s7 + $0xfc8] sm:$0xff]
        %v5358 = vld [vmem:[%s7 + $0xfd0] sm:$0xff]
        %v5359 = vld [vmem:[%s7 + $0xfd8] sm:$0xff]
        %v5360 = vld [vmem:[%s7 + $0xfe0] sm:$0xff]
        %v5361 = vld [vmem:[%s7 + $0xfe8] sm:$0xff]
        %v5362 = vld [vmem:[%s7 + $0xff0] sm:$0xff]
        %v5363 = vld [vmem:[%s7 + $0xff8] sm:$0xff]
        %v5364 = vld [vmem:[%s7 + $0x1000] sm:$0xff]
        %v5365 = vld [vmem:[%s7 + $0x1008] sm:$0xff]
        %v5366 = vld [vmem:[%s7 + $0x1010] sm:$0xff]
        %v5367 = vld [vmem:[%s7 + $0x1018] sm:$0xff]
        %v5368 = vld [vmem:[%s7 + $0x1020] sm:$0xff]
        %v5369 = vld [vmem:[%s7 + $0x1028] sm:$0xff]
        %v5370 = vld [vmem:[%s7 + $0x1030] sm:$0xff]
        %v5371 = vld [vmem:[%s7 + $0x1038] sm:$0xff]
        %v5372 = vld [vmem:[%s7 + $0x1040] sm:$0xff]
        %v5373 = vld [vmem:[%s7 + $0x1048] sm:$0xff]
        %v5374 = vld [vmem:[%s7 + $0x1050] sm:$0xff]
        %v5375 = vld [vmem:[%s7 + $0x1058] sm:$0xff]
        %v5376 = vld [vmem:[%s7 + $0x1060] sm:$0xff]
        %v5377 = vld [vmem:[%s7 + $0x1068] sm:$0xff]
        %v5378 = vld [vmem:[%s7 + $0x1070] sm:$0xff]
        %v5379 = vld [vmem:[%s7 + $0x1078] sm:$0xff]
        %v5380 = vld [vmem:[%s7 + $0x1080] sm:$0xff]
        %v5381 = vld [vmem:[%s7 + $0x1088] sm:$0xff]
        %v5382 = vld [vmem:[%s7 + $0x1090] sm:$0xff]
        %v5383 = vld [vmem:[%s7 + $0x1098] sm:$0xff]
        %v5384 = vld [vmem:[%s7 + $0x10a0] sm:$0xff]
        %v5385 = vld [vmem:[%s7 + $0x10a8] sm:$0xff]
        %v5386 = vld [vmem:[%s7 + $0x10b0] sm:$0xff]
        %v5387 = vld [vmem:[%s7 + $0x10b8] sm:$0xff]
        %v5388 = vld [vmem:[%s7 + $0x10c0] sm:$0xff]
        %v5389 = vld [vmem:[%s7 + $0x10c8] sm:$0xff]
        %v5390 = vld [vmem:[%s7 + $0x10d0] sm:$0xff]
        %v5391 = vld [vmem:[%s7 + $0x10d8] sm:$0xff]
        %v5392 = vld [vmem:[%s7 + $0x10e0] sm:$0xff]
        %v5393 = vld [vmem:[%s7 + $0x10e8] sm:$0xff]
        %v5394 = vld [vmem:[%s7 + $0x10f0] sm:$0xff]
        %v5395 = vld [vmem:[%s7 + $0x10f8] sm:$0xff]
        %v5396 = vld [vmem:[%s7 + $0x1100] sm:$0xff]
        %v5397 = vld [vmem:[%s7 + $0x1108] sm:$0xff]
        %v5398 = vld [vmem:[%s7 + $0x1110] sm:$0xff]
        %v5399 = vld [vmem:[%s7 + $0x1118] sm:$0xff]
        %v5400 = vld [vmem:[%s7 + $0x1120] sm:$0xff]
        %v5401 = vld [vmem:[%s7 + $0x1128] sm:$0xff]
        %v5402 = vld [vmem:[%s7 + $0x1130] sm:$0xff]
        %v5403 = vld [vmem:[%s7 + $0x1138] sm:$0xff]
        %v5404 = vld [vmem:[%s7 + $0x1140] sm:$0xff]
        %v5405 = vld [vmem:[%s7 + $0x1148] sm:$0xff]
        %v5406 = vld [vmem:[%s7 + $0x1150] sm:$0xff]
        %v5407 = vld [vmem:[%s7 + $0x1158] sm:$0xff]
        %v5408 = vld [vmem:[%s7 + $0x1160] sm:$0xff]
        %v5409 = vld [vmem:[%s7 + $0x1168] sm:$0xff]
        %v5410 = vld [vmem:[%s7 + $0x1170] sm:$0xff]
        %v5411 = vld [vmem:[%s7 + $0x1178] sm:$0xff]
        %v5412 = vld [vmem:[%s7 + $0x1180] sm:$0xff]
        %v5413 = vld [vmem:[%s7 + $0x1188] sm:$0xff]
        %v5414 = vld [vmem:[%s7 + $0x1190] sm:$0xff]
        %v5415 = vld [vmem:[%s7 + $0x1198] sm:$0xff]
        %v5416 = vld [vmem:[%s7 + $0x11a0] sm:$0xff]
        %v5417 = vld [vmem:[%s7 + $0x11a8] sm:$0xff]
        %v5418 = vld [vmem:[%s7 + $0x11b0] sm:$0xff]
        %v5419 = vld [vmem:[%s7 + $0x11b8] sm:$0xff]
        %v5420 = vld [vmem:[%s7 + $0x11c0] sm:$0xff]
        %v5421 = vld [vmem:[%s7 + $0x11c8] sm:$0xff]
        %v5422 = vld [vmem:[%s7 + $0x11d0] sm:$0xff]
        %v5423 = vld [vmem:[%s7 + $0x11d8] sm:$0xff]
        %v5424 = vld [vmem:[%s7 + $0x11e0] sm:$0xff]
        %v5425 = vld [vmem:[%s7 + $0x11e8] sm:$0xff]
        %v5426 = vld [vmem:[%s7 + $0x11f0] sm:$0xff]
        %v5427 = vld [vmem:[%s7 + $0x11f8] sm:$0xff]
        %v5428 = vld [vmem:[%s7 + $0x1200] sm:$0xff]
        %v5429 = vld [vmem:[%s7 + $0x1208] sm:$0xff]
        %v5430 = vld [vmem:[%s7 + $0x1210] sm:$0xff]
        %v5431 = vld [vmem:[%s7 + $0x1218] sm:$0xff]
        %v5432 = vld [vmem:[%s7 + $0x1220] sm:$0xff]
        %v5433 = vld [vmem:[%s7 + $0x1228] sm:$0xff]
        %v5434 = vld [vmem:[%s7 + $0x1230] sm:$0xff]
        %v5435 = vld [vmem:[%s7 + $0x1238] sm:$0xff]
        %v5436 = vld [vmem:[%s7 + $0x1240] sm:$0xff]
        %v5437 = vld [vmem:[%s7 + $0x1248] sm:$0xff]
        %v5438 = vld [vmem:[%s7 + $0x1250] sm:$0xff]
        %v5439 = vld [vmem:[%s7 + $0x1258] sm:$0xff]
        %v5440 = vld [vmem:[%s7 + $0x1260] sm:$0xff]
        %v5441 = vld [vmem:[%s7 + $0x1268] sm:$0xff]
        %v5442 = vld [vmem:[%s7 + $0x1270] sm:$0xff]
        %v5443 = vld [vmem:[%s7 + $0x1278] sm:$0xff]
        %v5444 = vld [vmem:[%s7 + $0x1280] sm:$0xff]
        %v5445 = vld [vmem:[%s7 + $0x1288] sm:$0xff]
        %v5446 = vld [vmem:[%s7 + $0x1290] sm:$0xff]
        %v5447 = vld [vmem:[%s7 + $0x1298] sm:$0xff]
        %v5448 = vld [vmem:[%s7 + $0x12a0] sm:$0xff]
        %v5449 = vld [vmem:[%s7 + $0x12a8] sm:$0xff]
        %v5450 = vld [vmem:[%s7 + $0x12b0] sm:$0xff]
        %v5451 = vld [vmem:[%s7 + $0x12b8] sm:$0xff]
        %v5452 = vld [vmem:[%s7 + $0x12c0] sm:$0xff]
        %v5453 = vld [vmem:[%s7 + $0x12c8] sm:$0xff]
        %v5454 = vld [vmem:[%s7 + $0x12d0] sm:$0xff]
        %v5455 = vld [vmem:[%s7 + $0x12d8] sm:$0xff]
        %v5456 = vld [vmem:[%s7 + $0x12e0] sm:$0xff]
        %v5457 = vld [vmem:[%s7 + $0x12e8] sm:$0xff]
        %v5458 = vld [vmem:[%s7 + $0x12f0] sm:$0xff]
        %v5459 = vld [vmem:[%s7 + $0x12f8] sm:$0xff]
        %v5460 = vld [vmem:[%s7 + $0x1300] sm:$0xff]
        %v5461 = vld [vmem:[%s7 + $0x1308] sm:$0xff]
        %v5462 = vld [vmem:[%s7 + $0x1310] sm:$0xff]
        %v5463 = vld [vmem:[%s7 + $0x1318] sm:$0xff]
        %v5464 = vld [vmem:[%s7 + $0x1320] sm:$0xff]
        %v5465 = vld [vmem:[%s7 + $0x1328] sm:$0xff]
        %v5466 = vld [vmem:[%s7 + $0x1330] sm:$0xff]
        %v5467 = vld [vmem:[%s7 + $0x1338] sm:$0xff]
        %v5468 = vld [vmem:[%s7 + $0x1340] sm:$0xff]
        %v5469 = vld [vmem:[%s7 + $0x1348] sm:$0xff]
        %v5470 = vld [vmem:[%s7 + $0x1350] sm:$0xff]
        %v5471 = vld [vmem:[%s7 + $0x1358] sm:$0xff]
        %v5472 = vld [vmem:[%s7 + $0x1360] sm:$0xff]
        %v5473 = vld [vmem:[%s7 + $0x1368] sm:$0xff]
        %v5474 = vld [vmem:[%s7 + $0x1370] sm:$0xff]
        %v5475 = vld [vmem:[%s7 + $0x1378] sm:$0xff]
        %v5476 = vld [vmem:[%s7 + $0x1380] sm:$0xff]
        %v5477 = vld [vmem:[%s7 + $0x1388] sm:$0xff]
        %v5478 = vld [vmem:[%s7 + $0x1390] sm:$0xff]
        %v5479 = vld [vmem:[%s7 + $0x1398] sm:$0xff]
        %v5480 = vld [vmem:[%s7 + $0x13a0] sm:$0xff]
        %v5481 = vld [vmem:[%s7 + $0x13a8] sm:$0xff]
        %v5482 = vld [vmem:[%s7 + $0x13b0] sm:$0xff]
        %v5483 = vld [vmem:[%s7 + $0x13b8] sm:$0xff]
        %v5484 = vld [vmem:[%s7 + $0x13c0] sm:$0xff]
        %v5485 = vld [vmem:[%s7 + $0x13c8] sm:$0xff]
        %v5486 = vld [vmem:[%s7 + $0x13d0] sm:$0xff]
        %v5487 = vld [vmem:[%s7 + $0x13d8] sm:$0xff]
        %v5488 = vld [vmem:[%s7 + $0x13e0] sm:$0xff]
        %v5489 = vld [vmem:[%s7 + $0x13e8] sm:$0xff]
        %v5490 = vld [vmem:[%s7 + $0x13f0] sm:$0xff]
        %v5491 = vld [vmem:[%s7 + $0x13f8] sm:$0xff]
        %v5492 = vld [vmem:[%s7 + $0x1400] sm:$0xff]
        %v5493 = vld [vmem:[%s7 + $0x1408] sm:$0xff]
        %v5494 = vld [vmem:[%s7 + $0x1410] sm:$0xff]
        %v5495 = vld [vmem:[%s7 + $0x1418] sm:$0xff]
        %v5496 = vld [vmem:[%s7 + $0x1420] sm:$0xff]
        %v5497 = vld [vmem:[%s7 + $0x1428] sm:$0xff]
        %v5498 = vld [vmem:[%s7 + $0x1430] sm:$0xff]
        %v5499 = vld [vmem:[%s7 + $0x1438] sm:$0xff]
        %v5500 = vld [vmem:[%s7 + $0x1440] sm:$0xff]
        %v5501 = vld [vmem:[%s7 + $0x1448] sm:$0xff]
        %v5502 = vld [vmem:[%s7 + $0x1450] sm:$0xff]
        %v5503 = vld [vmem:[%s7 + $0x1458] sm:$0xff]
        %v5504 = vld [vmem:[%s7 + $0x1460] sm:$0xff]
        %v5505 = vld [vmem:[%s7 + $0x1468] sm:$0xff]
        %v5506 = vld [vmem:[%s7 + $0x1470] sm:$0xff]
        %v5507 = vld [vmem:[%s7 + $0x1478] sm:$0xff]
        %v5508 = vld [vmem:[%s7 + $0x1480] sm:$0xff]
        %v5509 = vld [vmem:[%s7 + $0x1488] sm:$0xff]
        %v5510 = vld [vmem:[%s7 + $0x1490] sm:$0xff]
        %v5511 = vld [vmem:[%s7 + $0x1498] sm:$0xff]
        %v5512 = vld [vmem:[%s7 + $0x14a0] sm:$0xff]
        %v5513 = vld [vmem:[%s7 + $0x14a8] sm:$0xff]
        %v5514 = vld [vmem:[%s7 + $0x14b0] sm:$0xff]
        %v5515 = vld [vmem:[%s7 + $0x14b8] sm:$0xff]
        %v5516 = vld [vmem:[%s7 + $0x14c0] sm:$0xff]
        %v5517 = vld [vmem:[%s7 + $0x14c8] sm:$0xff]
        %v5518 = vld [vmem:[%s7 + $0x14d0] sm:$0xff]
        %v5519 = vld [vmem:[%s7 + $0x14d8] sm:$0xff]
        %v5520 = vld [vmem:[%s7 + $0x14e0] sm:$0xff]
        %v5521 = vld [vmem:[%s7 + $0x14e8] sm:$0xff]
        %v5522 = vld [vmem:[%s7 + $0x14f0] sm:$0xff]
        %v5523 = vld [vmem:[%s7 + $0x14f8] sm:$0xff]
        %v5524 = vld [vmem:[%s7 + $0x1500] sm:$0xff]
        %v5525 = vld [vmem:[%s7 + $0x1508] sm:$0xff]
        %v5526 = vld [vmem:[%s7 + $0x1510] sm:$0xff]
        %v5527 = vld [vmem:[%s7 + $0x1518] sm:$0xff]
        %v5528 = vld [vmem:[%s7 + $0x1520] sm:$0xff]
        %v5529 = vld [vmem:[%s7 + $0x1528] sm:$0xff]
        %v5530 = vld [vmem:[%s7 + $0x1530] sm:$0xff]
        %v5531 = vld [vmem:[%s7 + $0x1538] sm:$0xff]
        %v5532 = vld [vmem:[%s7 + $0x1540] sm:$0xff]
        %v5533 = vld [vmem:[%s7 + $0x1548] sm:$0xff]
        %v5534 = vld [vmem:[%s7 + $0x1550] sm:$0xff]
        %v5535 = vld [vmem:[%s7 + $0x1558] sm:$0xff]
        %v5536 = vld [vmem:[%s7 + $0x1560] sm:$0xff]
        %v5537 = vld [vmem:[%s7 + $0x1568] sm:$0xff]
        %v5538 = vld [vmem:[%s7 + $0x1570] sm:$0xff]
        %v5539 = vld [vmem:[%s7 + $0x1578] sm:$0xff]
        %v5540 = vld [vmem:[%s7 + $0x1580] sm:$0xff]
        %v5541 = vld [vmem:[%s7 + $0x1588] sm:$0xff]
        %v5542 = vld [vmem:[%s7 + $0x1590] sm:$0xff]
        %v5543 = vld [vmem:[%s7 + $0x1598] sm:$0xff]
        %v5544 = vld [vmem:[%s7 + $0x15a0] sm:$0xff]
        %v5545 = vld [vmem:[%s7 + $0x15a8] sm:$0xff]
        %v5546 = vld [vmem:[%s7 + $0x15b0] sm:$0xff]
        %v5547 = vld [vmem:[%s7 + $0x15b8] sm:$0xff]
        %v5548 = vld [vmem:[%s7 + $0x15c0] sm:$0xff]
        %v5549 = vld [vmem:[%s7 + $0x15c8] sm:$0xff]
        %v5550 = vld [vmem:[%s7 + $0x15d0] sm:$0xff]
        %v5551 = vld [vmem:[%s7 + $0x15d8] sm:$0xff]
        %v5552 = vld [vmem:[%s7 + $0x15e0] sm:$0xff]
        %v5553 = vld [vmem:[%s7 + $0x15e8] sm:$0xff]
        %v5554 = vld [vmem:[%s7 + $0x15f0] sm:$0xff]
        %v5555 = vld [vmem:[%s7 + $0x15f8] sm:$0xff]
        %v5556 = vld [vmem:[%s7 + $0x1600] sm:$0xff]
        %v5557 = vld [vmem:[%s7 + $0x1608] sm:$0xff]
        %v5558 = vld [vmem:[%s7 + $0x1610] sm:$0xff]
        %v5559 = vld [vmem:[%s7 + $0x1618] sm:$0xff]
        %v5560 = vld [vmem:[%s7 + $0x1620] sm:$0xff]
        %v5561 = vld [vmem:[%s7 + $0x1628] sm:$0xff]
        %v5562 = vld [vmem:[%s7 + $0x1630] sm:$0xff]
        %v5563 = vld [vmem:[%s7 + $0x1638] sm:$0xff]
        %v5564 = vld [vmem:[%s7 + $0x1640] sm:$0xff]
        %v5565 = vld [vmem:[%s7 + $0x1648] sm:$0xff]
        %v5566 = vld [vmem:[%s7 + $0x1650] sm:$0xff]
        %v5567 = vld [vmem:[%s7 + $0x1658] sm:$0xff]
        %v5568 = vld [vmem:[%s7 + $0x1660] sm:$0xff]
        %v5569 = vld [vmem:[%s7 + $0x1668] sm:$0xff]
        %v5570 = vld [vmem:[%s7 + $0x1670] sm:$0xff]
        %v5571 = vld [vmem:[%s7 + $0x1678] sm:$0xff]
        %v5572 = vld [vmem:[%s7 + $0x1680] sm:$0xff]
        %v5573 = vld [vmem:[%s7 + $0x1688] sm:$0xff]
        %v5574 = vld [vmem:[%s7 + $0x1690] sm:$0xff]
        %v5575 = vld [vmem:[%s7 + $0x1698] sm:$0xff]
        %v5576 = vld [vmem:[%s7 + $0x16a0] sm:$0xff]
        %v5577 = vld [vmem:[%s7 + $0x16a8] sm:$0xff]
        %v5578 = vld [vmem:[%s7 + $0x16b0] sm:$0xff]
        %v5579 = vld [vmem:[%s7 + $0x16b8] sm:$0xff]
        %v5580 = vld [vmem:[%s7 + $0x16c0] sm:$0xff]
        %v5581 = vld [vmem:[%s7 + $0x16c8] sm:$0xff]
        %v5582 = vld [vmem:[%s7 + $0x16d0] sm:$0xff]
        %v5583 = vld [vmem:[%s7 + $0x16d8] sm:$0xff]
        %v5584 = vld [vmem:[%s7 + $0x16e0] sm:$0xff]
        %v5585 = vld [vmem:[%s7 + $0x16e8] sm:$0xff]
        %v5586 = vld [vmem:[%s7 + $0x16f0] sm:$0xff]
        %v5587 = vld [vmem:[%s7 + $0x16f8] sm:$0xff]
        %v5588 = vld [vmem:[%s7 + $0x1700] sm:$0xff]
        %v5589 = vld [vmem:[%s7 + $0x1708] sm:$0xff]
        %v5590 = vld [vmem:[%s7 + $0x1710] sm:$0xff]
        %v5591 = vld [vmem:[%s7 + $0x1718] sm:$0xff]
        %v5592 = vld [vmem:[%s7 + $0x1720] sm:$0xff]
        %v5593 = vld [vmem:[%s7 + $0x1728] sm:$0xff]
        %v5594 = vld [vmem:[%s7 + $0x1730] sm:$0xff]
        %v5595 = vld [vmem:[%s7 + $0x1738] sm:$0xff]
        %v5596 = vld [vmem:[%s7 + $0x1740] sm:$0xff]
        %v5597 = vld [vmem:[%s7 + $0x1748] sm:$0xff]
        %v5598 = vld [vmem:[%s7 + $0x1750] sm:$0xff]
        %v5599 = vld [vmem:[%s7 + $0x1758] sm:$0xff]
        %v5600 = vld [vmem:[%s7 + $0x1760] sm:$0xff]
        %v5601 = vld [vmem:[%s7 + $0x1768] sm:$0xff]
        %v5602 = vld [vmem:[%s7 + $0x1770] sm:$0xff]
        %v5603 = vld [vmem:[%s7 + $0x1778] sm:$0xff]
        %v5604 = vld [vmem:[%s7 + $0x1780] sm:$0xff]
        %v5605 = vld [vmem:[%s7 + $0x1788] sm:$0xff]
        %v5606 = vld [vmem:[%s7 + $0x1790] sm:$0xff]
        %v5607 = vld [vmem:[%s7 + $0x1798] sm:$0xff]
        %v5608 = vld [vmem:[%s7 + $0x17a0] sm:$0xff]
        %v5609 = vld [vmem:[%s7 + $0x17a8] sm:$0xff]
        %v5610 = vld [vmem:[%s7 + $0x17b0] sm:$0xff]
        %v5611 = vld [vmem:[%s7 + $0x17b8] sm:$0xff]
        %v5612 = vld [vmem:[%s7 + $0x17c0] sm:$0xff]
        %v5613 = vld [vmem:[%s7 + $0x17c8] sm:$0xff]
        %v5614 = vld [vmem:[%s7 + $0x17d0] sm:$0xff]
        %v5615 = vld [vmem:[%s7 + $0x17d8] sm:$0xff]
        %v5616 = vld [vmem:[%s7 + $0x17e0] sm:$0xff]
        %v5617 = vld [vmem:[%s7 + $0x17e8] sm:$0xff]
        %v5618 = vld [vmem:[%s7 + $0x17f0] sm:$0xff]
        %v5619 = vld [vmem:[%s7 + $0x17f8] sm:$0xff]
        %v5620 = vld [vmem:[%s7 + $0x1800] sm:$0xff]
        %v5621 = vld [vmem:[%s7 + $0x1808] sm:$0xff]
        %v5622 = vld [vmem:[%s7 + $0x1810] sm:$0xff]
        %v5623 = vld [vmem:[%s7 + $0x1818] sm:$0xff]
        %v5624 = vld [vmem:[%s7 + $0x1820] sm:$0xff]
        %v5625 = vld [vmem:[%s7 + $0x1828] sm:$0xff]
        %v5626 = vld [vmem:[%s7 + $0x1830] sm:$0xff]
        %v5627 = vld [vmem:[%s7 + $0x1838] sm:$0xff]
        %v5628 = vld [vmem:[%s7 + $0x1840] sm:$0xff]
        %v5629 = vld [vmem:[%s7 + $0x1848] sm:$0xff]
        %v5630 = vld [vmem:[%s7 + $0x1850] sm:$0xff]
        %v5631 = vld [vmem:[%s7 + $0x1858] sm:$0xff]
        %v5632 = vld [vmem:[%s7 + $0x1860] sm:$0xff]
        %v5633 = vld [vmem:[%s7 + $0x1868] sm:$0xff]
        %v5634 = vld [vmem:[%s7 + $0x1870] sm:$0xff]
        %v5635 = vld [vmem:[%s7 + $0x1878] sm:$0xff]
        %v5636 = vld [vmem:[%s8] sm:$0xf]
        %v6421 = vunpack.c.l.b16 %v4852
        %v6422 = vunpack.c.h.b16 %v4852
        %v6423 = vunpack.c.l.b16 %v4853
        %v6424 = vunpack.c.h.b16 %v4853
        %v6425 = vunpack.c.l.b16 %v4854
        %v6426 = vunpack.c.h.b16 %v4854
        %v6427 = vunpack.c.l.b16 %v4855
        %v6428 = vunpack.c.h.b16 %v4855
        %v6429 = vunpack.c.l.b16 %v4856
        %v6430 = vunpack.c.h.b16 %v4856
        %v6431 = vunpack.c.l.b16 %v4857
        %v6432 = vunpack.c.h.b16 %v4857
        %v6433 = vunpack.c.l.b16 %v4858
        %v6434 = vunpack.c.h.b16 %v4858
        %v6435 = vunpack.c.l.b16 %v4859
        %v6436 = vunpack.c.h.b16 %v4859
        %v6437 = vunpack.c.l.b16 %v4860
        %v6438 = vunpack.c.h.b16 %v4860
        %v6439 = vunpack.c.l.b16 %v4861
        %v6440 = vunpack.c.h.b16 %v4861
        %v6441 = vunpack.c.l.b16 %v4862
        %v6442 = vunpack.c.h.b16 %v4862
        %v6443 = vunpack.c.l.b16 %v4863
        %v6444 = vunpack.c.h.b16 %v4863
        %v6445 = vunpack.c.l.b16 %v4864
        %v6446 = vunpack.c.h.b16 %v4864
        %v6447 = vunpack.c.l.b16 %v4865
        %v6448 = vunpack.c.h.b16 %v4865
        %v6449 = vunpack.c.l.b16 %v4866
        %v6450 = vunpack.c.h.b16 %v4866
        %v6451 = vunpack.c.l.b16 %v4867
        %v6452 = vunpack.c.h.b16 %v4867
        %v6453 = vunpack.c.l.b16 %v4868
        %v6454 = vunpack.c.h.b16 %v4868
        %v6455 = vunpack.c.l.b16 %v4869
        %v6456 = vunpack.c.h.b16 %v4869
        %v6457 = vunpack.c.l.b16 %v4870
        %v6458 = vunpack.c.h.b16 %v4870
        %v6459 = vunpack.c.l.b16 %v4871
        %v6460 = vunpack.c.h.b16 %v4871
        %v6461 = vunpack.c.l.b16 %v4872
        %v6462 = vunpack.c.h.b16 %v4872
        %v6463 = vunpack.c.l.b16 %v4873
        %v6464 = vunpack.c.h.b16 %v4873
        %v6465 = vunpack.c.l.b16 %v4874
        %v6466 = vunpack.c.h.b16 %v4874
        %v6467 = vunpack.c.l.b16 %v4875
        %v6468 = vunpack.c.h.b16 %v4875
        %v6469 = vunpack.c.l.b16 %v4876
        %v6470 = vunpack.c.h.b16 %v4876
        %v6471 = vunpack.c.l.b16 %v4877
        %v6472 = vunpack.c.h.b16 %v4877
        %v6473 = vunpack.c.l.b16 %v4878
        %v6474 = vunpack.c.h.b16 %v4878
        %v6475 = vunpack.c.l.b16 %v4879
        %v6476 = vunpack.c.h.b16 %v4879
        %v6477 = vunpack.c.l.b16 %v4880
        %v6478 = vunpack.c.h.b16 %v4880
        %v6479 = vunpack.c.l.b16 %v4881
        %v6480 = vunpack.c.h.b16 %v4881
        %v6481 = vunpack.c.l.b16 %v4882
        %v6482 = vunpack.c.h.b16 %v4882
        %v6483 = vunpack.c.l.b16 %v4883
        %v6484 = vunpack.c.h.b16 %v4883
        %v6485 = vunpack.c.l.b16 %v4884
        %v6486 = vunpack.c.h.b16 %v4884
        %v6487 = vunpack.c.l.b16 %v4885
        %v6488 = vunpack.c.h.b16 %v4885
        %v6489 = vunpack.c.l.b16 %v4886
        %v6490 = vunpack.c.h.b16 %v4886
        %v6491 = vunpack.c.l.b16 %v4887
        %v6492 = vunpack.c.h.b16 %v4887
        %v6493 = vunpack.c.l.b16 %v4888
        %v6494 = vunpack.c.h.b16 %v4888
        %v6495 = vunpack.c.l.b16 %v4889
        %v6496 = vunpack.c.h.b16 %v4889
        %v6497 = vunpack.c.l.b16 %v4890
        %v6498 = vunpack.c.h.b16 %v4890
        %v6499 = vunpack.c.l.b16 %v4891
        %v6500 = vunpack.c.h.b16 %v4891
        %v6501 = vunpack.c.l.b16 %v4892
        %v6502 = vunpack.c.h.b16 %v4892
        %v6503 = vunpack.c.l.b16 %v4893
        %v6504 = vunpack.c.h.b16 %v4893
        %v6505 = vunpack.c.l.b16 %v4894
        %v6506 = vunpack.c.h.b16 %v4894
        %v6507 = vunpack.c.l.b16 %v4895
        %v6508 = vunpack.c.h.b16 %v4895
        %v6509 = vunpack.c.l.b16 %v4896
        %v6510 = vunpack.c.h.b16 %v4896
        %v6511 = vunpack.c.l.b16 %v4897
        %v6512 = vunpack.c.h.b16 %v4897
        %v6513 = vunpack.c.l.b16 %v4898
        %v6514 = vunpack.c.h.b16 %v4898
        %v6515 = vunpack.c.l.b16 %v4899
        %v6516 = vunpack.c.h.b16 %v4899
        %v6517 = vunpack.c.l.b16 %v4900
        %v6518 = vunpack.c.h.b16 %v4900
        %v6519 = vunpack.c.l.b16 %v4901
        %v6520 = vunpack.c.h.b16 %v4901
        %v6521 = vunpack.c.l.b16 %v4902
        %v6522 = vunpack.c.h.b16 %v4902
        %v6523 = vunpack.c.l.b16 %v4903
        %v6524 = vunpack.c.h.b16 %v4903
        %v6525 = vunpack.c.l.b16 %v4904
        %v6526 = vunpack.c.h.b16 %v4904
        %v6527 = vunpack.c.l.b16 %v4905
        %v6528 = vunpack.c.h.b16 %v4905
        %v6529 = vunpack.c.l.b16 %v4906
        %v6530 = vunpack.c.h.b16 %v4906
        %v6531 = vunpack.c.l.b16 %v4907
        %v6532 = vunpack.c.h.b16 %v4907
        %v6533 = vunpack.c.l.b16 %v4908
        %v6534 = vunpack.c.h.b16 %v4908
        %v6535 = vunpack.c.l.b16 %v4909
        %v6536 = vunpack.c.h.b16 %v4909
        %v6537 = vunpack.c.l.b16 %v4910
        %v6538 = vunpack.c.h.b16 %v4910
        %v6539 = vunpack.c.l.b16 %v4911
        %v6540 = vunpack.c.h.b16 %v4911
        %v6541 = vunpack.c.l.b16 %v4912
        %v6542 = vunpack.c.h.b16 %v4912
        %v6543 = vunpack.c.l.b16 %v4913
        %v6544 = vunpack.c.h.b16 %v4913
        %v6545 = vunpack.c.l.b16 %v4914
        %v6546 = vunpack.c.h.b16 %v4914
        %v6547 = vunpack.c.l.b16 %v4915
        %v6548 = vunpack.c.h.b16 %v4915
        %v6549 = vunpack.c.l.b16 %v4916
        %v6550 = vunpack.c.h.b16 %v4916
        %v6551 = vunpack.c.l.b16 %v4917
        %v6552 = vunpack.c.h.b16 %v4917
        %v6553 = vunpack.c.l.b16 %v4918
        %v6554 = vunpack.c.h.b16 %v4918
        %v6555 = vunpack.c.l.b16 %v4919
        %v6556 = vunpack.c.h.b16 %v4919
        %v6557 = vunpack.c.l.b16 %v4920
        %v6558 = vunpack.c.h.b16 %v4920
        %v6559 = vunpack.c.l.b16 %v4921
        %v6560 = vunpack.c.h.b16 %v4921
        %v6561 = vunpack.c.l.b16 %v4922
        %v6562 = vunpack.c.h.b16 %v4922
        %v6563 = vunpack.c.l.b16 %v4923
        %v6564 = vunpack.c.h.b16 %v4923
        %v6565 = vunpack.c.l.b16 %v4924
        %v6566 = vunpack.c.h.b16 %v4924
        %v6567 = vunpack.c.l.b16 %v4925
        %v6568 = vunpack.c.h.b16 %v4925
        %v6569 = vunpack.c.l.b16 %v4926
        %v6570 = vunpack.c.h.b16 %v4926
        %v6571 = vunpack.c.l.b16 %v4927
        %v6572 = vunpack.c.h.b16 %v4927
        %v6573 = vunpack.c.l.b16 %v4928
        %v6574 = vunpack.c.h.b16 %v4928
        %v6575 = vunpack.c.l.b16 %v4929
        %v6576 = vunpack.c.h.b16 %v4929
        %v6577 = vunpack.c.l.b16 %v4930
        %v6578 = vunpack.c.h.b16 %v4930
        %v6579 = vunpack.c.l.b16 %v4931
        %v6580 = vunpack.c.h.b16 %v4931
        %v6581 = vunpack.c.l.b16 %v4932
        %v6582 = vunpack.c.h.b16 %v4932
        %v6583 = vunpack.c.l.b16 %v4933
        %v6584 = vunpack.c.h.b16 %v4933
        %v6585 = vunpack.c.l.b16 %v4934
        %v6586 = vunpack.c.h.b16 %v4934
        %v6587 = vunpack.c.l.b16 %v4935
        %v6588 = vunpack.c.h.b16 %v4935
        %v6589 = vunpack.c.l.b16 %v4936
        %v6590 = vunpack.c.h.b16 %v4936
        %v6591 = vunpack.c.l.b16 %v4937
        %v6592 = vunpack.c.h.b16 %v4937
        %v6593 = vunpack.c.l.b16 %v4938
        %v6594 = vunpack.c.h.b16 %v4938
        %v6595 = vunpack.c.l.b16 %v4939
        %v6596 = vunpack.c.h.b16 %v4939
        %v6597 = vunpack.c.l.b16 %v4940
        %v6598 = vunpack.c.h.b16 %v4940
        %v6599 = vunpack.c.l.b16 %v4941
        %v6600 = vunpack.c.h.b16 %v4941
        %v6601 = vunpack.c.l.b16 %v4942
        %v6602 = vunpack.c.h.b16 %v4942
        %v6603 = vunpack.c.l.b16 %v4943
        %v6604 = vunpack.c.h.b16 %v4943
        %v6605 = vunpack.c.l.b16 %v4944
        %v6606 = vunpack.c.h.b16 %v4944
        %v6607 = vunpack.c.l.b16 %v4945
        %v6608 = vunpack.c.h.b16 %v4945
        %v6609 = vunpack.c.l.b16 %v4946
        %v6610 = vunpack.c.h.b16 %v4946
        %v6611 = vunpack.c.l.b16 %v4947
        %v6612 = vunpack.c.h.b16 %v4947
        %v6613 = vunpack.c.l.b16 %v4948
        %v6614 = vunpack.c.h.b16 %v4948
        %v6615 = vunpack.c.l.b16 %v4949
        %v6616 = vunpack.c.h.b16 %v4949
        %v6617 = vunpack.c.l.b16 %v4950
        %v6618 = vunpack.c.h.b16 %v4950
        %v6619 = vunpack.c.l.b16 %v4951
        %v6620 = vunpack.c.h.b16 %v4951
        %v6621 = vunpack.c.l.b16 %v4952
        %v6622 = vunpack.c.h.b16 %v4952
        %v6623 = vunpack.c.l.b16 %v4953
        %v6624 = vunpack.c.h.b16 %v4953
        %v6625 = vunpack.c.l.b16 %v4954
        %v6626 = vunpack.c.h.b16 %v4954
        %v6627 = vunpack.c.l.b16 %v4955
        %v6628 = vunpack.c.h.b16 %v4955
        %v6629 = vunpack.c.l.b16 %v4956
        %v6630 = vunpack.c.h.b16 %v4956
        %v6631 = vunpack.c.l.b16 %v4957
        %v6632 = vunpack.c.h.b16 %v4957
        %v6633 = vunpack.c.l.b16 %v4958
        %v6634 = vunpack.c.h.b16 %v4958
        %v6635 = vunpack.c.l.b16 %v4959
        %v6636 = vunpack.c.h.b16 %v4959
        %v6637 = vunpack.c.l.b16 %v4960
        %v6638 = vunpack.c.h.b16 %v4960
        %v6639 = vunpack.c.l.b16 %v4961
        %v6640 = vunpack.c.h.b16 %v4961
        %v6641 = vunpack.c.l.b16 %v4962
        %v6642 = vunpack.c.h.b16 %v4962
        %v6643 = vunpack.c.l.b16 %v4963
        %v6644 = vunpack.c.h.b16 %v4963
        %v6645 = vunpack.c.l.b16 %v4964
        %v6646 = vunpack.c.h.b16 %v4964
        %v6647 = vunpack.c.l.b16 %v4965
        %v6648 = vunpack.c.h.b16 %v4965
        %v6649 = vunpack.c.l.b16 %v4966
        %v6650 = vunpack.c.h.b16 %v4966
        %v6651 = vunpack.c.l.b16 %v4967
        %v6652 = vunpack.c.h.b16 %v4967
        %v6653 = vunpack.c.l.b16 %v4968
        %v6654 = vunpack.c.h.b16 %v4968
        %v6655 = vunpack.c.l.b16 %v4969
        %v6656 = vunpack.c.h.b16 %v4969
        %v6657 = vunpack.c.l.b16 %v4970
        %v6658 = vunpack.c.h.b16 %v4970
        %v6659 = vunpack.c.l.b16 %v4971
        %v6660 = vunpack.c.h.b16 %v4971
        %v6661 = vunpack.c.l.b16 %v4972
        %v6662 = vunpack.c.h.b16 %v4972
        %v6663 = vunpack.c.l.b16 %v4973
        %v6664 = vunpack.c.h.b16 %v4973
        %v6665 = vunpack.c.l.b16 %v4974
        %v6666 = vunpack.c.h.b16 %v4974
        %v6667 = vunpack.c.l.b16 %v4975
        %v6668 = vunpack.c.h.b16 %v4975
        %v6669 = vunpack.c.l.b16 %v4976
        %v6670 = vunpack.c.h.b16 %v4976
        %v6671 = vunpack.c.l.b16 %v4977
        %v6672 = vunpack.c.h.b16 %v4977
        %v6673 = vunpack.c.l.b16 %v4978
        %v6674 = vunpack.c.h.b16 %v4978
        %v6675 = vunpack.c.l.b16 %v4979
        %v6676 = vunpack.c.h.b16 %v4979
        %v6677 = vunpack.c.l.b16 %v4980
        %v6678 = vunpack.c.h.b16 %v4980
        %v6679 = vunpack.c.l.b16 %v4981
        %v6680 = vunpack.c.h.b16 %v4981
        %v6681 = vunpack.c.l.b16 %v4982
        %v6682 = vunpack.c.h.b16 %v4982
        %v6683 = vunpack.c.l.b16 %v4983
        %v6684 = vunpack.c.h.b16 %v4983
        %v6685 = vunpack.c.l.b16 %v4984
        %v6686 = vunpack.c.h.b16 %v4984
        %v6687 = vunpack.c.l.b16 %v4985
        %v6688 = vunpack.c.h.b16 %v4985
        %v6689 = vunpack.c.l.b16 %v4986
        %v6690 = vunpack.c.h.b16 %v4986
        %v6691 = vunpack.c.l.b16 %v4987
        %v6692 = vunpack.c.h.b16 %v4987
        %v6693 = vunpack.c.l.b16 %v4988
        %v6694 = vunpack.c.h.b16 %v4988
        %v6695 = vunpack.c.l.b16 %v4989
        %v6696 = vunpack.c.h.b16 %v4989
        %v6697 = vunpack.c.l.b16 %v4990
        %v6698 = vunpack.c.h.b16 %v4990
        %v6699 = vunpack.c.l.b16 %v4991
        %v6700 = vunpack.c.h.b16 %v4991
        %v6701 = vunpack.c.l.b16 %v4992
        %v6702 = vunpack.c.h.b16 %v4992
        %v6703 = vunpack.c.l.b16 %v4993
        %v6704 = vunpack.c.h.b16 %v4993
        %v6705 = vunpack.c.l.b16 %v4994
        %v6706 = vunpack.c.h.b16 %v4994
        %v6707 = vunpack.c.l.b16 %v4995
        %v6708 = vunpack.c.h.b16 %v4995
        %v6709 = vunpack.c.l.b16 %v4996
        %v6710 = vunpack.c.h.b16 %v4996
        %v6711 = vunpack.c.l.b16 %v4997
        %v6712 = vunpack.c.h.b16 %v4997
        %v6713 = vunpack.c.l.b16 %v4998
        %v6714 = vunpack.c.h.b16 %v4998
        %v6715 = vunpack.c.l.b16 %v4999
        %v6716 = vunpack.c.h.b16 %v4999
        %v6717 = vunpack.c.l.b16 %v5000
        %v6718 = vunpack.c.h.b16 %v5000
        %v6719 = vunpack.c.l.b16 %v5001
        %v6720 = vunpack.c.h.b16 %v5001
        %v6721 = vunpack.c.l.b16 %v5002
        %v6722 = vunpack.c.h.b16 %v5002
        %v6723 = vunpack.c.l.b16 %v5003
        %v6724 = vunpack.c.h.b16 %v5003
        %v6725 = vunpack.c.l.b16 %v5004
        %v6726 = vunpack.c.h.b16 %v5004
        %v6727 = vunpack.c.l.b16 %v5005
        %v6728 = vunpack.c.h.b16 %v5005
        %v6729 = vunpack.c.l.b16 %v5006
        %v6730 = vunpack.c.h.b16 %v5006
        %v6731 = vunpack.c.l.b16 %v5007
        %v6732 = vunpack.c.h.b16 %v5007
        %v6733 = vunpack.c.l.b16 %v5008
        %v6734 = vunpack.c.h.b16 %v5008
        %v6735 = vunpack.c.l.b16 %v5009
        %v6736 = vunpack.c.h.b16 %v5009
        %v6737 = vunpack.c.l.b16 %v5010
        %v6738 = vunpack.c.h.b16 %v5010
        %v6739 = vunpack.c.l.b16 %v5011
        %v6740 = vunpack.c.h.b16 %v5011
        %v6741 = vunpack.c.l.b16 %v5012
        %v6742 = vunpack.c.h.b16 %v5012
        %v6743 = vunpack.c.l.b16 %v5013
        %v6744 = vunpack.c.h.b16 %v5013
        %v6745 = vunpack.c.l.b16 %v5014
        %v6746 = vunpack.c.h.b16 %v5014
        %v6747 = vunpack.c.l.b16 %v5015
        %v6748 = vunpack.c.h.b16 %v5015
        %v6749 = vunpack.c.l.b16 %v5016
        %v6750 = vunpack.c.h.b16 %v5016
        %v6751 = vunpack.c.l.b16 %v5017
        %v6752 = vunpack.c.h.b16 %v5017
        %v6753 = vunpack.c.l.b16 %v5018
        %v6754 = vunpack.c.h.b16 %v5018
        %v6755 = vunpack.c.l.b16 %v5019
        %v6756 = vunpack.c.h.b16 %v5019
        %v6757 = vunpack.c.l.b16 %v5020
        %v6758 = vunpack.c.h.b16 %v5020
        %v6759 = vunpack.c.l.b16 %v5021
        %v6760 = vunpack.c.h.b16 %v5021
        %v6761 = vunpack.c.l.b16 %v5022
        %v6762 = vunpack.c.h.b16 %v5022
        %v6763 = vunpack.c.l.b16 %v5023
        %v6764 = vunpack.c.h.b16 %v5023
        %v6765 = vunpack.c.l.b16 %v5024
        %v6766 = vunpack.c.h.b16 %v5024
        %v6767 = vunpack.c.l.b16 %v5025
        %v6768 = vunpack.c.h.b16 %v5025
        %v6769 = vunpack.c.l.b16 %v5026
        %v6770 = vunpack.c.h.b16 %v5026
        %v6771 = vunpack.c.l.b16 %v5027
        %v6772 = vunpack.c.h.b16 %v5027
        %v6773 = vunpack.c.l.b16 %v5028
        %v6774 = vunpack.c.h.b16 %v5028
        %v6775 = vunpack.c.l.b16 %v5029
        %v6776 = vunpack.c.h.b16 %v5029
        %v6777 = vunpack.c.l.b16 %v5030
        %v6778 = vunpack.c.h.b16 %v5030
        %v6779 = vunpack.c.l.b16 %v5031
        %v6780 = vunpack.c.h.b16 %v5031
        %v6781 = vunpack.c.l.b16 %v5032
        %v6782 = vunpack.c.h.b16 %v5032
        %v6783 = vunpack.c.l.b16 %v5033
        %v6784 = vunpack.c.h.b16 %v5033
        %v6785 = vunpack.c.l.b16 %v5034
        %v6786 = vunpack.c.h.b16 %v5034
        %v6787 = vunpack.c.l.b16 %v5035
        %v6788 = vunpack.c.h.b16 %v5035
        %v6789 = vunpack.c.l.b16 %v5036
        %v6790 = vunpack.c.h.b16 %v5036
        %v6791 = vunpack.c.l.b16 %v5037
        %v6792 = vunpack.c.h.b16 %v5037
        %v6793 = vunpack.c.l.b16 %v5038
        %v6794 = vunpack.c.h.b16 %v5038
        %v6795 = vunpack.c.l.b16 %v5039
        %v6796 = vunpack.c.h.b16 %v5039
        %v6797 = vunpack.c.l.b16 %v5040
        %v6798 = vunpack.c.h.b16 %v5040
        %v6799 = vunpack.c.l.b16 %v5041
        %v6800 = vunpack.c.h.b16 %v5041
        %v6801 = vunpack.c.l.b16 %v5042
        %v6802 = vunpack.c.h.b16 %v5042
        %v6803 = vunpack.c.l.b16 %v5043
        %v6804 = vunpack.c.h.b16 %v5043
        %v6805 = vunpack.c.l.b16 %v5044
        %v6806 = vunpack.c.h.b16 %v5044
        %v6807 = vunpack.c.l.b16 %v5045
        %v6808 = vunpack.c.h.b16 %v5045
        %v6809 = vunpack.c.l.b16 %v5046
        %v6810 = vunpack.c.h.b16 %v5046
        %v6811 = vunpack.c.l.b16 %v5047
        %v6812 = vunpack.c.h.b16 %v5047
        %v6813 = vunpack.c.l.b16 %v5048
        %v6814 = vunpack.c.h.b16 %v5048
        %v6815 = vunpack.c.l.b16 %v5049
        %v6816 = vunpack.c.h.b16 %v5049
        %v6817 = vunpack.c.l.b16 %v5050
        %v6818 = vunpack.c.h.b16 %v5050
        %v6819 = vunpack.c.l.b16 %v5051
        %v6820 = vunpack.c.h.b16 %v5051
        %v6821 = vunpack.c.l.b16 %v5052
        %v6822 = vunpack.c.h.b16 %v5052
        %v6823 = vunpack.c.l.b16 %v5053
        %v6824 = vunpack.c.h.b16 %v5053
        %v6825 = vunpack.c.l.b16 %v5054
        %v6826 = vunpack.c.h.b16 %v5054
        %v6827 = vunpack.c.l.b16 %v5055
        %v6828 = vunpack.c.h.b16 %v5055
        %v6829 = vunpack.c.l.b16 %v5056
        %v6830 = vunpack.c.h.b16 %v5056
        %v6831 = vunpack.c.l.b16 %v5057
        %v6832 = vunpack.c.h.b16 %v5057
        %v6833 = vunpack.c.l.b16 %v5058
        %v6834 = vunpack.c.h.b16 %v5058
        %v6835 = vunpack.c.l.b16 %v5059
        %v6836 = vunpack.c.h.b16 %v5059
        %v6837 = vunpack.c.l.b16 %v5060
        %v6838 = vunpack.c.h.b16 %v5060
        %v6839 = vunpack.c.l.b16 %v5061
        %v6840 = vunpack.c.h.b16 %v5061
        %v6841 = vunpack.c.l.b16 %v5062
        %v6842 = vunpack.c.h.b16 %v5062
        %v6843 = vunpack.c.l.b16 %v5063
        %v6844 = vunpack.c.h.b16 %v5063
        %v6845 = vunpack.c.l.b16 %v5064
        %v6846 = vunpack.c.h.b16 %v5064
        %v6847 = vunpack.c.l.b16 %v5065
        %v6848 = vunpack.c.h.b16 %v5065
        %v6849 = vunpack.c.l.b16 %v5066
        %v6850 = vunpack.c.h.b16 %v5066
        %v6851 = vunpack.c.l.b16 %v5067
        %v6852 = vunpack.c.h.b16 %v5067
        %v6853 = vunpack.c.l.b16 %v5068
        %v6854 = vunpack.c.h.b16 %v5068
        %v6855 = vunpack.c.l.b16 %v5069
        %v6856 = vunpack.c.h.b16 %v5069
        %v6857 = vunpack.c.l.b16 %v5070
        %v6858 = vunpack.c.h.b16 %v5070
        %v6859 = vunpack.c.l.b16 %v5071
        %v6860 = vunpack.c.h.b16 %v5071
        %v6861 = vunpack.c.l.b16 %v5072
        %v6862 = vunpack.c.h.b16 %v5072
        %v6863 = vunpack.c.l.b16 %v5073
        %v6864 = vunpack.c.h.b16 %v5073
        %v6865 = vunpack.c.l.b16 %v5074
        %v6866 = vunpack.c.h.b16 %v5074
        %v6867 = vunpack.c.l.b16 %v5075
        %v6868 = vunpack.c.h.b16 %v5075
        %v6869 = vunpack.c.l.b16 %v5076
        %v6870 = vunpack.c.h.b16 %v5076
        %v6871 = vunpack.c.l.b16 %v5077
        %v6872 = vunpack.c.h.b16 %v5077
        %v6873 = vunpack.c.l.b16 %v5078
        %v6874 = vunpack.c.h.b16 %v5078
        %v6875 = vunpack.c.l.b16 %v5079
        %v6876 = vunpack.c.h.b16 %v5079
        %v6877 = vunpack.c.l.b16 %v5080
        %v6878 = vunpack.c.h.b16 %v5080
        %v6879 = vunpack.c.l.b16 %v5081
        %v6880 = vunpack.c.h.b16 %v5081
        %v6881 = vunpack.c.l.b16 %v5082
        %v6882 = vunpack.c.h.b16 %v5082
        %v6883 = vunpack.c.l.b16 %v5083
        %v6884 = vunpack.c.h.b16 %v5083
        %v6885 = vunpack.c.l.b16 %v5084
        %v6886 = vunpack.c.h.b16 %v5084
        %v6887 = vunpack.c.l.b16 %v5085
        %v6888 = vunpack.c.h.b16 %v5085
        %v6889 = vunpack.c.l.b16 %v5086
        %v6890 = vunpack.c.h.b16 %v5086
        %v6891 = vunpack.c.l.b16 %v5087
        %v6892 = vunpack.c.h.b16 %v5087
        %v6893 = vunpack.c.l.b16 %v5088
        %v6894 = vunpack.c.h.b16 %v5088
        %v6895 = vunpack.c.l.b16 %v5089
        %v6896 = vunpack.c.h.b16 %v5089
        %v6897 = vunpack.c.l.b16 %v5090
        %v6898 = vunpack.c.h.b16 %v5090
        %v6899 = vunpack.c.l.b16 %v5091
        %v6900 = vunpack.c.h.b16 %v5091
        %v6901 = vunpack.c.l.b16 %v5092
        %v6902 = vunpack.c.h.b16 %v5092
        %v6903 = vunpack.c.l.b16 %v5093
        %v6904 = vunpack.c.h.b16 %v5093
        %v6905 = vunpack.c.l.b16 %v5094
        %v6906 = vunpack.c.h.b16 %v5094
        %v6907 = vunpack.c.l.b16 %v5095
        %v6908 = vunpack.c.h.b16 %v5095
        %v6909 = vunpack.c.l.b16 %v5096
        %v6910 = vunpack.c.h.b16 %v5096
        %v6911 = vunpack.c.l.b16 %v5097
        %v6912 = vunpack.c.h.b16 %v5097
        %v6913 = vunpack.c.l.b16 %v5098
        %v6914 = vunpack.c.h.b16 %v5098
        %v6915 = vunpack.c.l.b16 %v5099
        %v6916 = vunpack.c.h.b16 %v5099
        %v6917 = vunpack.c.l.b16 %v5100
        %v6918 = vunpack.c.h.b16 %v5100
        %v6919 = vunpack.c.l.b16 %v5101
        %v6920 = vunpack.c.h.b16 %v5101
        %v6921 = vunpack.c.l.b16 %v5102
        %v6922 = vunpack.c.h.b16 %v5102
        %v6923 = vunpack.c.l.b16 %v5103
        %v6924 = vunpack.c.h.b16 %v5103
        %v6925 = vunpack.c.l.b16 %v5104
        %v6926 = vunpack.c.h.b16 %v5104
        %v6927 = vunpack.c.l.b16 %v5105
        %v6928 = vunpack.c.h.b16 %v5105
        %v6929 = vunpack.c.l.b16 %v5106
        %v6930 = vunpack.c.h.b16 %v5106
        %v6931 = vunpack.c.l.b16 %v5107
        %v6932 = vunpack.c.h.b16 %v5107
        %v6933 = vunpack.c.l.b16 %v5108
        %v6934 = vunpack.c.h.b16 %v5108
        %v6935 = vunpack.c.l.b16 %v5109
        %v6936 = vunpack.c.h.b16 %v5109
        %v6937 = vunpack.c.l.b16 %v5110
        %v6938 = vunpack.c.h.b16 %v5110
        %v6939 = vunpack.c.l.b16 %v5111
        %v6940 = vunpack.c.h.b16 %v5111
        %v6941 = vunpack.c.l.b16 %v5112
        %v6942 = vunpack.c.h.b16 %v5112
        %v6943 = vunpack.c.l.b16 %v5113
        %v6944 = vunpack.c.h.b16 %v5113
        %v6945 = vunpack.c.l.b16 %v5114
        %v6946 = vunpack.c.h.b16 %v5114
        %v6947 = vunpack.c.l.b16 %v5115
        %v6948 = vunpack.c.h.b16 %v5115
        %v6949 = vunpack.c.l.b16 %v5116
        %v6950 = vunpack.c.h.b16 %v5116
        %v6951 = vunpack.c.l.b16 %v5117
        %v6952 = vunpack.c.h.b16 %v5117
        %v6953 = vunpack.c.l.b16 %v5118
        %v6954 = vunpack.c.h.b16 %v5118
        %v6955 = vunpack.c.l.b16 %v5119
        %v6956 = vunpack.c.h.b16 %v5119
        %v6957 = vunpack.c.l.b16 %v5120
        %v6958 = vunpack.c.h.b16 %v5120
        %v6959 = vunpack.c.l.b16 %v5121
        %v6960 = vunpack.c.h.b16 %v5121
        %v6961 = vunpack.c.l.b16 %v5122
        %v6962 = vunpack.c.h.b16 %v5122
        %v6963 = vunpack.c.l.b16 %v5123
        %v6964 = vunpack.c.h.b16 %v5123
        %v6965 = vunpack.c.l.b16 %v5124
        %v6966 = vunpack.c.h.b16 %v5124
        %v6967 = vunpack.c.l.b16 %v5125
        %v6968 = vunpack.c.h.b16 %v5125
        %v6969 = vunpack.c.l.b16 %v5126
        %v6970 = vunpack.c.h.b16 %v5126
        %v6971 = vunpack.c.l.b16 %v5127
        %v6972 = vunpack.c.h.b16 %v5127
        %v6973 = vunpack.c.l.b16 %v5128
        %v6974 = vunpack.c.h.b16 %v5128
        %v6975 = vunpack.c.l.b16 %v5129
        %v6976 = vunpack.c.h.b16 %v5129
        %v6977 = vunpack.c.l.b16 %v5130
        %v6978 = vunpack.c.h.b16 %v5130
        %v6979 = vunpack.c.l.b16 %v5131
        %v6980 = vunpack.c.h.b16 %v5131
        %v6981 = vunpack.c.l.b16 %v5132
        %v6982 = vunpack.c.h.b16 %v5132
        %v6983 = vunpack.c.l.b16 %v5133
        %v6984 = vunpack.c.h.b16 %v5133
        %v6985 = vunpack.c.l.b16 %v5134
        %v6986 = vunpack.c.h.b16 %v5134
        %v6987 = vunpack.c.l.b16 %v5135
        %v6988 = vunpack.c.h.b16 %v5135
        %v6989 = vunpack.c.l.b16 %v5136
        %v6990 = vunpack.c.h.b16 %v5136
        %v6991 = vunpack.c.l.b16 %v5137
        %v6992 = vunpack.c.h.b16 %v5137
        %v6993 = vunpack.c.l.b16 %v5138
        %v6994 = vunpack.c.h.b16 %v5138
        %v6995 = vunpack.c.l.b16 %v5139
        %v6996 = vunpack.c.h.b16 %v5139
        %v6997 = vunpack.c.l.b16 %v5140
        %v6998 = vunpack.c.h.b16 %v5140
        %v6999 = vunpack.c.l.b16 %v5141
        %v7000 = vunpack.c.h.b16 %v5141
        %v7001 = vunpack.c.l.b16 %v5142
        %v7002 = vunpack.c.h.b16 %v5142
        %v7003 = vunpack.c.l.b16 %v5143
        %v7004 = vunpack.c.h.b16 %v5143
        %v7005 = vunpack.c.l.b16 %v5144
        %v7006 = vunpack.c.h.b16 %v5144
        %v7007 = vunpack.c.l.b16 %v5145
        %v7008 = vunpack.c.h.b16 %v5145
        %v7009 = vunpack.c.l.b16 %v5146
        %v7010 = vunpack.c.h.b16 %v5146
        %v7011 = vunpack.c.l.b16 %v5147
        %v7012 = vunpack.c.h.b16 %v5147
        %v7013 = vunpack.c.l.b16 %v5148
        %v7014 = vunpack.c.h.b16 %v5148
        %v7015 = vunpack.c.l.b16 %v5149
        %v7016 = vunpack.c.h.b16 %v5149
        %v7017 = vunpack.c.l.b16 %v5150
        %v7018 = vunpack.c.h.b16 %v5150
        %v7019 = vunpack.c.l.b16 %v5151
        %v7020 = vunpack.c.h.b16 %v5151
        %v7021 = vunpack.c.l.b16 %v5152
        %v7022 = vunpack.c.h.b16 %v5152
        %v7023 = vunpack.c.l.b16 %v5153
        %v7024 = vunpack.c.h.b16 %v5153
        %v7025 = vunpack.c.l.b16 %v5154
        %v7026 = vunpack.c.h.b16 %v5154
        %v7027 = vunpack.c.l.b16 %v5155
        %v7028 = vunpack.c.h.b16 %v5155
        %v7029 = vunpack.c.l.b16 %v5156
        %v7030 = vunpack.c.h.b16 %v5156
        %v7031 = vunpack.c.l.b16 %v5157
        %v7032 = vunpack.c.h.b16 %v5157
        %v7033 = vunpack.c.l.b16 %v5158
        %v7034 = vunpack.c.h.b16 %v5158
        %v7035 = vunpack.c.l.b16 %v5159
        %v7036 = vunpack.c.h.b16 %v5159
        %v7037 = vunpack.c.l.b16 %v5160
        %v7038 = vunpack.c.h.b16 %v5160
        %v7039 = vunpack.c.l.b16 %v5161
        %v7040 = vunpack.c.h.b16 %v5161
        %v7041 = vunpack.c.l.b16 %v5162
        %v7042 = vunpack.c.h.b16 %v5162
        %v7043 = vunpack.c.l.b16 %v5163
        %v7044 = vunpack.c.h.b16 %v5163
        %v7045 = vunpack.c.l.b16 %v5164
        %v7046 = vunpack.c.h.b16 %v5164
        %v7047 = vunpack.c.l.b16 %v5165
        %v7048 = vunpack.c.h.b16 %v5165
        %v7049 = vunpack.c.l.b16 %v5166
        %v7050 = vunpack.c.h.b16 %v5166
        %v7051 = vunpack.c.l.b16 %v5167
        %v7052 = vunpack.c.h.b16 %v5167
        %v7053 = vunpack.c.l.b16 %v5168
        %v7054 = vunpack.c.h.b16 %v5168
        %v7055 = vunpack.c.l.b16 %v5169
        %v7056 = vunpack.c.h.b16 %v5169
        %v7057 = vunpack.c.l.b16 %v5170
        %v7058 = vunpack.c.h.b16 %v5170
        %v7059 = vunpack.c.l.b16 %v5171
        %v7060 = vunpack.c.h.b16 %v5171
        %v7061 = vunpack.c.l.b16 %v5172
        %v7062 = vunpack.c.h.b16 %v5172
        %v7063 = vunpack.c.l.b16 %v5173
        %v7064 = vunpack.c.h.b16 %v5173
        %v7065 = vunpack.c.l.b16 %v5174
        %v7066 = vunpack.c.h.b16 %v5174
        %v7067 = vunpack.c.l.b16 %v5175
        %v7068 = vunpack.c.h.b16 %v5175
        %v7069 = vunpack.c.l.b16 %v5176
        %v7070 = vunpack.c.h.b16 %v5176
        %v7071 = vunpack.c.l.b16 %v5177
        %v7072 = vunpack.c.h.b16 %v5177
        %v7073 = vunpack.c.l.b16 %v5178
        %v7074 = vunpack.c.h.b16 %v5178
        %v7075 = vunpack.c.l.b16 %v5179
        %v7076 = vunpack.c.h.b16 %v5179
        %v7077 = vunpack.c.l.b16 %v5180
        %v7078 = vunpack.c.h.b16 %v5180
        %v7079 = vunpack.c.l.b16 %v5181
        %v7080 = vunpack.c.h.b16 %v5181
        %v7081 = vunpack.c.l.b16 %v5182
        %v7082 = vunpack.c.h.b16 %v5182
        %v7083 = vunpack.c.l.b16 %v5183
        %v7084 = vunpack.c.h.b16 %v5183
        %v7085 = vunpack.c.l.b16 %v5184
        %v7086 = vunpack.c.h.b16 %v5184
        %v7087 = vunpack.c.l.b16 %v5185
        %v7088 = vunpack.c.h.b16 %v5185
        %v7089 = vunpack.c.l.b16 %v5186
        %v7090 = vunpack.c.h.b16 %v5186
        %v7091 = vunpack.c.l.b16 %v5187
        %v7092 = vunpack.c.h.b16 %v5187
        %v7093 = vunpack.c.l.b16 %v5188
        %v7094 = vunpack.c.h.b16 %v5188
        %v7095 = vunpack.c.l.b16 %v5189
        %v7096 = vunpack.c.h.b16 %v5189
        %v7097 = vunpack.c.l.b16 %v5190
        %v7098 = vunpack.c.h.b16 %v5190
        %v7099 = vunpack.c.l.b16 %v5191
        %v7100 = vunpack.c.h.b16 %v5191
        %v7101 = vunpack.c.l.b16 %v5192
        %v7102 = vunpack.c.h.b16 %v5192
        %v7103 = vunpack.c.l.b16 %v5193
        %v7104 = vunpack.c.h.b16 %v5193
        %v7105 = vunpack.c.l.b16 %v5194
        %v7106 = vunpack.c.h.b16 %v5194
        %v7107 = vunpack.c.l.b16 %v5195
        %v7108 = vunpack.c.h.b16 %v5195
        %v7109 = vunpack.c.l.b16 %v5196
        %v7110 = vunpack.c.h.b16 %v5196
        %v7111 = vunpack.c.l.b16 %v5197
        %v7112 = vunpack.c.h.b16 %v5197
        %v7113 = vunpack.c.l.b16 %v5198
        %v7114 = vunpack.c.h.b16 %v5198
        %v7115 = vunpack.c.l.b16 %v5199
        %v7116 = vunpack.c.h.b16 %v5199
        %v7117 = vunpack.c.l.b16 %v5200
        %v7118 = vunpack.c.h.b16 %v5200
        %v7119 = vunpack.c.l.b16 %v5201
        %v7120 = vunpack.c.h.b16 %v5201
        %v7121 = vunpack.c.l.b16 %v5202
        %v7122 = vunpack.c.h.b16 %v5202
        %v7123 = vunpack.c.l.b16 %v5203
        %v7124 = vunpack.c.h.b16 %v5203
        %v7125 = vunpack.c.l.b16 %v5204
        %v7126 = vunpack.c.h.b16 %v5204
        %v7127 = vunpack.c.l.b16 %v5205
        %v7128 = vunpack.c.h.b16 %v5205
        %v7129 = vunpack.c.l.b16 %v5206
        %v7130 = vunpack.c.h.b16 %v5206
        %v7131 = vunpack.c.l.b16 %v5207
        %v7132 = vunpack.c.h.b16 %v5207
        %v7133 = vunpack.c.l.b16 %v5208
        %v7134 = vunpack.c.h.b16 %v5208
        %v7135 = vunpack.c.l.b16 %v5209
        %v7136 = vunpack.c.h.b16 %v5209
        %v7137 = vunpack.c.l.b16 %v5210
        %v7138 = vunpack.c.h.b16 %v5210
        %v7139 = vunpack.c.l.b16 %v5211
        %v7140 = vunpack.c.h.b16 %v5211
        %v7141 = vunpack.c.l.b16 %v5212
        %v7142 = vunpack.c.h.b16 %v5212
        %v7143 = vunpack.c.l.b16 %v5213
        %v7144 = vunpack.c.h.b16 %v5213
        %v7145 = vunpack.c.l.b16 %v5214
        %v7146 = vunpack.c.h.b16 %v5214
        %v7147 = vunpack.c.l.b16 %v5215
        %v7148 = vunpack.c.h.b16 %v5215
        %v7149 = vunpack.c.l.b16 %v5216
        %v7150 = vunpack.c.h.b16 %v5216
        %v7151 = vunpack.c.l.b16 %v5217
        %v7152 = vunpack.c.h.b16 %v5217
        %v7153 = vunpack.c.l.b16 %v5218
        %v7154 = vunpack.c.h.b16 %v5218
        %v7155 = vunpack.c.l.b16 %v5219
        %v7156 = vunpack.c.h.b16 %v5219
        %v7157 = vunpack.c.l.b16 %v5220
        %v7158 = vunpack.c.h.b16 %v5220
        %v7159 = vunpack.c.l.b16 %v5221
        %v7160 = vunpack.c.h.b16 %v5221
        %v7161 = vunpack.c.l.b16 %v5222
        %v7162 = vunpack.c.h.b16 %v5222
        %v7163 = vunpack.c.l.b16 %v5223
        %v7164 = vunpack.c.h.b16 %v5223
        %v7165 = vunpack.c.l.b16 %v5224
        %v7166 = vunpack.c.h.b16 %v5224
        %v7167 = vunpack.c.l.b16 %v5225
        %v7168 = vunpack.c.h.b16 %v5225
        %v7169 = vunpack.c.l.b16 %v5226
        %v7170 = vunpack.c.h.b16 %v5226
        %v7171 = vunpack.c.l.b16 %v5227
        %v7172 = vunpack.c.h.b16 %v5227
        %v7173 = vunpack.c.l.b16 %v5228
        %v7174 = vunpack.c.h.b16 %v5228
        %v7175 = vunpack.c.l.b16 %v5229
        %v7176 = vunpack.c.h.b16 %v5229
        %v7177 = vunpack.c.l.b16 %v5230
        %v7178 = vunpack.c.h.b16 %v5230
        %v7179 = vunpack.c.l.b16 %v5231
        %v7180 = vunpack.c.h.b16 %v5231
        %v7181 = vunpack.c.l.b16 %v5232
        %v7182 = vunpack.c.h.b16 %v5232
        %v7183 = vunpack.c.l.b16 %v5233
        %v7184 = vunpack.c.h.b16 %v5233
        %v7185 = vunpack.c.l.b16 %v5234
        %v7186 = vunpack.c.h.b16 %v5234
        %v7187 = vunpack.c.l.b16 %v5235
        %v7188 = vunpack.c.h.b16 %v5235
        %v7189 = vunpack.c.l.b16 %v5236
        %v7190 = vunpack.c.h.b16 %v5236
        %v7191 = vunpack.c.l.b16 %v5237
        %v7192 = vunpack.c.h.b16 %v5237
        %v7193 = vunpack.c.l.b16 %v5238
        %v7194 = vunpack.c.h.b16 %v5238
        %v7195 = vunpack.c.l.b16 %v5239
        %v7196 = vunpack.c.h.b16 %v5239
        %v7197 = vunpack.c.l.b16 %v5240
        %v7198 = vunpack.c.h.b16 %v5240
        %v7199 = vunpack.c.l.b16 %v5241
        %v7200 = vunpack.c.h.b16 %v5241
        %v7201 = vunpack.c.l.b16 %v5242
        %v7202 = vunpack.c.h.b16 %v5242
        %v7203 = vunpack.c.l.b16 %v5243
        %v7204 = vunpack.c.h.b16 %v5243
        %v7205 = vunpack.c.l.b16 %v5244
        %v7206 = vunpack.c.h.b16 %v5244
        %v7207 = vunpack.c.l.b16 %v5245
        %v7208 = vunpack.c.h.b16 %v5245
        %v7209 = vunpack.c.l.b16 %v5246
        %v7210 = vunpack.c.h.b16 %v5246
        %v7211 = vunpack.c.l.b16 %v5247
        %v7212 = vunpack.c.h.b16 %v5247
        %v7213 = vunpack.c.l.b16 %v5248
        %v7214 = vunpack.c.h.b16 %v5248
        %v7215 = vunpack.c.l.b16 %v5249
        %v7216 = vunpack.c.h.b16 %v5249
        %v7217 = vunpack.c.l.b16 %v5250
        %v7218 = vunpack.c.h.b16 %v5250
        %v7219 = vunpack.c.l.b16 %v5251
        %v7220 = vunpack.c.h.b16 %v5251
        %v7221 = vunpack.c.l.b16 %v5252
        %v7222 = vunpack.c.h.b16 %v5252
        %v7223 = vunpack.c.l.b16 %v5253
        %v7224 = vunpack.c.h.b16 %v5253
        %v7225 = vunpack.c.l.b16 %v5254
        %v7226 = vunpack.c.h.b16 %v5254
        %v7227 = vunpack.c.l.b16 %v5255
        %v7228 = vunpack.c.h.b16 %v5255
        %v7229 = vunpack.c.l.b16 %v5256
        %v7230 = vunpack.c.h.b16 %v5256
        %v7231 = vunpack.c.l.b16 %v5257
        %v7232 = vunpack.c.h.b16 %v5257
        %v7233 = vunpack.c.l.b16 %v5258
        %v7234 = vunpack.c.h.b16 %v5258
        %v7235 = vunpack.c.l.b16 %v5259
        %v7236 = vunpack.c.h.b16 %v5259
        %v7237 = vunpack.c.l.b16 %v5260
        %v7238 = vunpack.c.h.b16 %v5260
        %v7239 = vunpack.c.l.b16 %v5261
        %v7240 = vunpack.c.h.b16 %v5261
        %v7241 = vunpack.c.l.b16 %v5262
        %v7242 = vunpack.c.h.b16 %v5262
        %v7243 = vunpack.c.l.b16 %v5263
        %v7244 = vunpack.c.h.b16 %v5263
        %v7245 = vunpack.c.l.b16 %v5264
        %v7246 = vunpack.c.h.b16 %v5264
        %v7247 = vunpack.c.l.b16 %v5265
        %v7248 = vunpack.c.h.b16 %v5265
        %v7249 = vunpack.c.l.b16 %v5266
        %v7250 = vunpack.c.h.b16 %v5266
        %v7251 = vunpack.c.l.b16 %v5267
        %v7252 = vunpack.c.h.b16 %v5267
        %v7253 = vunpack.c.l.b16 %v5268
        %v7254 = vunpack.c.h.b16 %v5268
        %v7255 = vunpack.c.l.b16 %v5269
        %v7256 = vunpack.c.h.b16 %v5269
        %v7257 = vunpack.c.l.b16 %v5270
        %v7258 = vunpack.c.h.b16 %v5270
        %v7259 = vunpack.c.l.b16 %v5271
        %v7260 = vunpack.c.h.b16 %v5271
        %v7261 = vunpack.c.l.b16 %v5272
        %v7262 = vunpack.c.h.b16 %v5272
        %v7263 = vunpack.c.l.b16 %v5273
        %v7264 = vunpack.c.h.b16 %v5273
        %v7265 = vunpack.c.l.b16 %v5274
        %v7266 = vunpack.c.h.b16 %v5274
        %v7267 = vunpack.c.l.b16 %v5275
        %v7268 = vunpack.c.h.b16 %v5275
        %v7269 = vunpack.c.l.b16 %v5276
        %v7270 = vunpack.c.h.b16 %v5276
        %v7271 = vunpack.c.l.b16 %v5277
        %v7272 = vunpack.c.h.b16 %v5277
        %v7273 = vunpack.c.l.b16 %v5278
        %v7274 = vunpack.c.h.b16 %v5278
        %v7275 = vunpack.c.l.b16 %v5279
        %v7276 = vunpack.c.h.b16 %v5279
        %v7277 = vunpack.c.l.b16 %v5280
        %v7278 = vunpack.c.h.b16 %v5280
        %v7279 = vunpack.c.l.b16 %v5281
        %v7280 = vunpack.c.h.b16 %v5281
        %v7281 = vunpack.c.l.b16 %v5282
        %v7282 = vunpack.c.h.b16 %v5282
        %v7283 = vunpack.c.l.b16 %v5283
        %v7284 = vunpack.c.h.b16 %v5283
        %v7285 = vunpack.c.l.b16 %v5284
        %v7286 = vunpack.c.h.b16 %v5284
        %v7287 = vunpack.c.l.b16 %v5285
        %v7288 = vunpack.c.h.b16 %v5285
        %v7289 = vunpack.c.l.b16 %v5286
        %v7290 = vunpack.c.h.b16 %v5286
        %v7291 = vunpack.c.l.b16 %v5287
        %v7292 = vunpack.c.h.b16 %v5287
        %v7293 = vunpack.c.l.b16 %v5288
        %v7294 = vunpack.c.h.b16 %v5288
        %v7295 = vunpack.c.l.b16 %v5289
        %v7296 = vunpack.c.h.b16 %v5289
        %v7297 = vunpack.c.l.b16 %v5290
        %v7298 = vunpack.c.h.b16 %v5290
        %v7299 = vunpack.c.l.b16 %v5291
        %v7300 = vunpack.c.h.b16 %v5291
        %v7301 = vunpack.c.l.b16 %v5292
        %v7302 = vunpack.c.h.b16 %v5292
        %v7303 = vunpack.c.l.b16 %v5293
        %v7304 = vunpack.c.h.b16 %v5293
        %v7305 = vunpack.c.l.b16 %v5294
        %v7306 = vunpack.c.h.b16 %v5294
        %v7307 = vunpack.c.l.b16 %v5295
        %v7308 = vunpack.c.h.b16 %v5295
        %v7309 = vunpack.c.l.b16 %v5296
        %v7310 = vunpack.c.h.b16 %v5296
        %v7311 = vunpack.c.l.b16 %v5297
        %v7312 = vunpack.c.h.b16 %v5297
        %v7313 = vunpack.c.l.b16 %v5298
        %v7314 = vunpack.c.h.b16 %v5298
        %v7315 = vunpack.c.l.b16 %v5299
        %v7316 = vunpack.c.h.b16 %v5299
        %v7317 = vunpack.c.l.b16 %v5300
        %v7318 = vunpack.c.h.b16 %v5300
        %v7319 = vunpack.c.l.b16 %v5301
        %v7320 = vunpack.c.h.b16 %v5301
        %v7321 = vunpack.c.l.b16 %v5302
        %v7322 = vunpack.c.h.b16 %v5302
        %v7323 = vunpack.c.l.b16 %v5303
        %v7324 = vunpack.c.h.b16 %v5303
        %v7325 = vunpack.c.l.b16 %v5304
        %v7326 = vunpack.c.h.b16 %v5304
        %v7327 = vunpack.c.l.b16 %v5305
        %v7328 = vunpack.c.h.b16 %v5305
        %v7329 = vunpack.c.l.b16 %v5306
        %v7330 = vunpack.c.h.b16 %v5306
        %v7331 = vunpack.c.l.b16 %v5307
        %v7332 = vunpack.c.h.b16 %v5307
        %v7333 = vunpack.c.l.b16 %v5308
        %v7334 = vunpack.c.h.b16 %v5308
        %v7335 = vunpack.c.l.b16 %v5309
        %v7336 = vunpack.c.h.b16 %v5309
        %v7337 = vunpack.c.l.b16 %v5310
        %v7338 = vunpack.c.h.b16 %v5310
        %v7339 = vunpack.c.l.b16 %v5311
        %v7340 = vunpack.c.h.b16 %v5311
        %v7341 = vunpack.c.l.b16 %v5312
        %v7342 = vunpack.c.h.b16 %v5312
        %v7343 = vunpack.c.l.b16 %v5313
        %v7344 = vunpack.c.h.b16 %v5313
        %v7345 = vunpack.c.l.b16 %v5314
        %v7346 = vunpack.c.h.b16 %v5314
        %v7347 = vunpack.c.l.b16 %v5315
        %v7348 = vunpack.c.h.b16 %v5315
        %v7349 = vunpack.c.l.b16 %v5316
        %v7350 = vunpack.c.h.b16 %v5316
        %v7351 = vunpack.c.l.b16 %v5317
        %v7352 = vunpack.c.h.b16 %v5317
        %v7353 = vunpack.c.l.b16 %v5318
        %v7354 = vunpack.c.h.b16 %v5318
        %v7355 = vunpack.c.l.b16 %v5319
        %v7356 = vunpack.c.h.b16 %v5319
        %v7357 = vunpack.c.l.b16 %v5320
        %v7358 = vunpack.c.h.b16 %v5320
        %v7359 = vunpack.c.l.b16 %v5321
        %v7360 = vunpack.c.h.b16 %v5321
        %v7361 = vunpack.c.l.b16 %v5322
        %v7362 = vunpack.c.h.b16 %v5322
        %v7363 = vunpack.c.l.b16 %v5323
        %v7364 = vunpack.c.h.b16 %v5323
        %v7365 = vunpack.c.l.b16 %v5324
        %v7366 = vunpack.c.h.b16 %v5324
        %v7367 = vunpack.c.l.b16 %v5325
        %v7368 = vunpack.c.h.b16 %v5325
        %v7369 = vunpack.c.l.b16 %v5326
        %v7370 = vunpack.c.h.b16 %v5326
        %v7371 = vunpack.c.l.b16 %v5327
        %v7372 = vunpack.c.h.b16 %v5327
        %v7373 = vunpack.c.l.b16 %v5328
        %v7374 = vunpack.c.h.b16 %v5328
        %v7375 = vunpack.c.l.b16 %v5329
        %v7376 = vunpack.c.h.b16 %v5329
        %v7377 = vunpack.c.l.b16 %v5330
        %v7378 = vunpack.c.h.b16 %v5330
        %v7379 = vunpack.c.l.b16 %v5331
        %v7380 = vunpack.c.h.b16 %v5331
        %v7381 = vunpack.c.l.b16 %v5332
        %v7382 = vunpack.c.h.b16 %v5332
        %v7383 = vunpack.c.l.b16 %v5333
        %v7384 = vunpack.c.h.b16 %v5333
        %v7385 = vunpack.c.l.b16 %v5334
        %v7386 = vunpack.c.h.b16 %v5334
        %v7387 = vunpack.c.l.b16 %v5335
        %v7388 = vunpack.c.h.b16 %v5335
        %v7389 = vunpack.c.l.b16 %v5336
        %v7390 = vunpack.c.h.b16 %v5336
        %v7391 = vunpack.c.l.b16 %v5337
        %v7392 = vunpack.c.h.b16 %v5337
        %v7393 = vunpack.c.l.b16 %v5338
        %v7394 = vunpack.c.h.b16 %v5338
        %v7395 = vunpack.c.l.b16 %v5339
        %v7396 = vunpack.c.h.b16 %v5339
        %v7397 = vunpack.c.l.b16 %v5340
        %v7398 = vunpack.c.h.b16 %v5340
        %v7399 = vunpack.c.l.b16 %v5341
        %v7400 = vunpack.c.h.b16 %v5341
        %v7401 = vunpack.c.l.b16 %v5342
        %v7402 = vunpack.c.h.b16 %v5342
        %v7403 = vunpack.c.l.b16 %v5343
        %v7404 = vunpack.c.h.b16 %v5343
        %v7405 = vunpack.c.l.b16 %v5344
        %v7406 = vunpack.c.h.b16 %v5344
        %v7407 = vunpack.c.l.b16 %v5345
        %v7408 = vunpack.c.h.b16 %v5345
        %v7409 = vunpack.c.l.b16 %v5346
        %v7410 = vunpack.c.h.b16 %v5346
        %v7411 = vunpack.c.l.b16 %v5347
        %v7412 = vunpack.c.h.b16 %v5347
        %v7413 = vunpack.c.l.b16 %v5348
        %v7414 = vunpack.c.h.b16 %v5348
        %v7415 = vunpack.c.l.b16 %v5349
        %v7416 = vunpack.c.h.b16 %v5349
        %v7417 = vunpack.c.l.b16 %v5350
        %v7418 = vunpack.c.h.b16 %v5350
        %v7419 = vunpack.c.l.b16 %v5351
        %v7420 = vunpack.c.h.b16 %v5351
        %v7421 = vunpack.c.l.b16 %v5352
        %v7422 = vunpack.c.h.b16 %v5352
        %v7423 = vunpack.c.l.b16 %v5353
        %v7424 = vunpack.c.h.b16 %v5353
        %v7425 = vunpack.c.l.b16 %v5354
        %v7426 = vunpack.c.h.b16 %v5354
        %v7427 = vunpack.c.l.b16 %v5355
        %v7428 = vunpack.c.h.b16 %v5355
        %v7429 = vunpack.c.l.b16 %v5356
        %v7430 = vunpack.c.h.b16 %v5356
        %v7431 = vunpack.c.l.b16 %v5357
        %v7432 = vunpack.c.h.b16 %v5357
        %v7433 = vunpack.c.l.b16 %v5358
        %v7434 = vunpack.c.h.b16 %v5358
        %v7435 = vunpack.c.l.b16 %v5359
        %v7436 = vunpack.c.h.b16 %v5359
        %v7437 = vunpack.c.l.b16 %v5360
        %v7438 = vunpack.c.h.b16 %v5360
        %v7439 = vunpack.c.l.b16 %v5361
        %v7440 = vunpack.c.h.b16 %v5361
        %v7441 = vunpack.c.l.b16 %v5362
        %v7442 = vunpack.c.h.b16 %v5362
        %v7443 = vunpack.c.l.b16 %v5363
        %v7444 = vunpack.c.h.b16 %v5363
        %v7445 = vunpack.c.l.b16 %v5364
        %v7446 = vunpack.c.h.b16 %v5364
        %v7447 = vunpack.c.l.b16 %v5365
        %v7448 = vunpack.c.h.b16 %v5365
        %v7449 = vunpack.c.l.b16 %v5366
        %v7450 = vunpack.c.h.b16 %v5366
        %v7451 = vunpack.c.l.b16 %v5367
        %v7452 = vunpack.c.h.b16 %v5367
        %v7453 = vunpack.c.l.b16 %v5368
        %v7454 = vunpack.c.h.b16 %v5368
        %v7455 = vunpack.c.l.b16 %v5369
        %v7456 = vunpack.c.h.b16 %v5369
        %v7457 = vunpack.c.l.b16 %v5370
        %v7458 = vunpack.c.h.b16 %v5370
        %v7459 = vunpack.c.l.b16 %v5371
        %v7460 = vunpack.c.h.b16 %v5371
        %v7461 = vunpack.c.l.b16 %v5372
        %v7462 = vunpack.c.h.b16 %v5372
        %v7463 = vunpack.c.l.b16 %v5373
        %v7464 = vunpack.c.h.b16 %v5373
        %v7465 = vunpack.c.l.b16 %v5374
        %v7466 = vunpack.c.h.b16 %v5374
        %v7467 = vunpack.c.l.b16 %v5375
        %v7468 = vunpack.c.h.b16 %v5375
        %v7469 = vunpack.c.l.b16 %v5376
        %v7470 = vunpack.c.h.b16 %v5376
        %v7471 = vunpack.c.l.b16 %v5377
        %v7472 = vunpack.c.h.b16 %v5377
        %v7473 = vunpack.c.l.b16 %v5378
        %v7474 = vunpack.c.h.b16 %v5378
        %v7475 = vunpack.c.l.b16 %v5379
        %v7476 = vunpack.c.h.b16 %v5379
        %v7477 = vunpack.c.l.b16 %v5380
        %v7478 = vunpack.c.h.b16 %v5380
        %v7479 = vunpack.c.l.b16 %v5381
        %v7480 = vunpack.c.h.b16 %v5381
        %v7481 = vunpack.c.l.b16 %v5382
        %v7482 = vunpack.c.h.b16 %v5382
        %v7483 = vunpack.c.l.b16 %v5383
        %v7484 = vunpack.c.h.b16 %v5383
        %v7485 = vunpack.c.l.b16 %v5384
        %v7486 = vunpack.c.h.b16 %v5384
        %v7487 = vunpack.c.l.b16 %v5385
        %v7488 = vunpack.c.h.b16 %v5385
        %v7489 = vunpack.c.l.b16 %v5386
        %v7490 = vunpack.c.h.b16 %v5386
        %v7491 = vunpack.c.l.b16 %v5387
        %v7492 = vunpack.c.h.b16 %v5387
        %v7493 = vunpack.c.l.b16 %v5388
        %v7494 = vunpack.c.h.b16 %v5388
        %v7495 = vunpack.c.l.b16 %v5389
        %v7496 = vunpack.c.h.b16 %v5389
        %v7497 = vunpack.c.l.b16 %v5390
        %v7498 = vunpack.c.h.b16 %v5390
        %v7499 = vunpack.c.l.b16 %v5391
        %v7500 = vunpack.c.h.b16 %v5391
        %v7501 = vunpack.c.l.b16 %v5392
        %v7502 = vunpack.c.h.b16 %v5392
        %v7503 = vunpack.c.l.b16 %v5393
        %v7504 = vunpack.c.h.b16 %v5393
        %v7505 = vunpack.c.l.b16 %v5394
        %v7506 = vunpack.c.h.b16 %v5394
        %v7507 = vunpack.c.l.b16 %v5395
        %v7508 = vunpack.c.h.b16 %v5395
        %v7509 = vunpack.c.l.b16 %v5396
        %v7510 = vunpack.c.h.b16 %v5396
        %v7511 = vunpack.c.l.b16 %v5397
        %v7512 = vunpack.c.h.b16 %v5397
        %v7513 = vunpack.c.l.b16 %v5398
        %v7514 = vunpack.c.h.b16 %v5398
        %v7515 = vunpack.c.l.b16 %v5399
        %v7516 = vunpack.c.h.b16 %v5399
        %v7517 = vunpack.c.l.b16 %v5400
        %v7518 = vunpack.c.h.b16 %v5400
        %v7519 = vunpack.c.l.b16 %v5401
        %v7520 = vunpack.c.h.b16 %v5401
        %v7521 = vunpack.c.l.b16 %v5402
        %v7522 = vunpack.c.h.b16 %v5402
        %v7523 = vunpack.c.l.b16 %v5403
        %v7524 = vunpack.c.h.b16 %v5403
        %v7525 = vunpack.c.l.b16 %v5404
        %v7526 = vunpack.c.h.b16 %v5404
        %v7527 = vunpack.c.l.b16 %v5405
        %v7528 = vunpack.c.h.b16 %v5405
        %v7529 = vunpack.c.l.b16 %v5406
        %v7530 = vunpack.c.h.b16 %v5406
        %v7531 = vunpack.c.l.b16 %v5407
        %v7532 = vunpack.c.h.b16 %v5407
        %v7533 = vunpack.c.l.b16 %v5408
        %v7534 = vunpack.c.h.b16 %v5408
        %v7535 = vunpack.c.l.b16 %v5409
        %v7536 = vunpack.c.h.b16 %v5409
        %v7537 = vunpack.c.l.b16 %v5410
        %v7538 = vunpack.c.h.b16 %v5410
        %v7539 = vunpack.c.l.b16 %v5411
        %v7540 = vunpack.c.h.b16 %v5411
        %v7541 = vunpack.c.l.b16 %v5412
        %v7542 = vunpack.c.h.b16 %v5412
        %v7543 = vunpack.c.l.b16 %v5413
        %v7544 = vunpack.c.h.b16 %v5413
        %v7545 = vunpack.c.l.b16 %v5414
        %v7546 = vunpack.c.h.b16 %v5414
        %v7547 = vunpack.c.l.b16 %v5415
        %v7548 = vunpack.c.h.b16 %v5415
        %v7549 = vunpack.c.l.b16 %v5416
        %v7550 = vunpack.c.h.b16 %v5416
        %v7551 = vunpack.c.l.b16 %v5417
        %v7552 = vunpack.c.h.b16 %v5417
        %v7553 = vunpack.c.l.b16 %v5418
        %v7554 = vunpack.c.h.b16 %v5418
        %v7555 = vunpack.c.l.b16 %v5419
        %v7556 = vunpack.c.h.b16 %v5419
        %v7557 = vunpack.c.l.b16 %v5420
        %v7558 = vunpack.c.h.b16 %v5420
        %v7559 = vunpack.c.l.b16 %v5421
        %v7560 = vunpack.c.h.b16 %v5421
        %v7561 = vunpack.c.l.b16 %v5422
        %v7562 = vunpack.c.h.b16 %v5422
        %v7563 = vunpack.c.l.b16 %v5423
        %v7564 = vunpack.c.h.b16 %v5423
        %v7565 = vunpack.c.l.b16 %v5424
        %v7566 = vunpack.c.h.b16 %v5424
        %v7567 = vunpack.c.l.b16 %v5425
        %v7568 = vunpack.c.h.b16 %v5425
        %v7569 = vunpack.c.l.b16 %v5426
        %v7570 = vunpack.c.h.b16 %v5426
        %v7571 = vunpack.c.l.b16 %v5427
        %v7572 = vunpack.c.h.b16 %v5427
        %v7573 = vunpack.c.l.b16 %v5428
        %v7574 = vunpack.c.h.b16 %v5428
        %v7575 = vunpack.c.l.b16 %v5429
        %v7576 = vunpack.c.h.b16 %v5429
        %v7577 = vunpack.c.l.b16 %v5430
        %v7578 = vunpack.c.h.b16 %v5430
        %v7579 = vunpack.c.l.b16 %v5431
        %v7580 = vunpack.c.h.b16 %v5431
        %v7581 = vunpack.c.l.b16 %v5432
        %v7582 = vunpack.c.h.b16 %v5432
        %v7583 = vunpack.c.l.b16 %v5433
        %v7584 = vunpack.c.h.b16 %v5433
        %v7585 = vunpack.c.l.b16 %v5434
        %v7586 = vunpack.c.h.b16 %v5434
        %v7587 = vunpack.c.l.b16 %v5435
        %v7588 = vunpack.c.h.b16 %v5435
        %v7589 = vunpack.c.l.b16 %v5436
        %v7590 = vunpack.c.h.b16 %v5436
        %v7591 = vunpack.c.l.b16 %v5437
        %v7592 = vunpack.c.h.b16 %v5437
        %v7593 = vunpack.c.l.b16 %v5438
        %v7594 = vunpack.c.h.b16 %v5438
        %v7595 = vunpack.c.l.b16 %v5439
        %v7596 = vunpack.c.h.b16 %v5439
        %v7597 = vunpack.c.l.b16 %v5440
        %v7598 = vunpack.c.h.b16 %v5440
        %v7599 = vunpack.c.l.b16 %v5441
        %v7600 = vunpack.c.h.b16 %v5441
        %v7601 = vunpack.c.l.b16 %v5442
        %v7602 = vunpack.c.h.b16 %v5442
        %v7603 = vunpack.c.l.b16 %v5443
        %v7604 = vunpack.c.h.b16 %v5443
        %v7605 = vunpack.c.l.b16 %v5444
        %v7606 = vunpack.c.h.b16 %v5444
        %v7607 = vunpack.c.l.b16 %v5445
        %v7608 = vunpack.c.h.b16 %v5445
        %v7609 = vunpack.c.l.b16 %v5446
        %v7610 = vunpack.c.h.b16 %v5446
        %v7611 = vunpack.c.l.b16 %v5447
        %v7612 = vunpack.c.h.b16 %v5447
        %v7613 = vunpack.c.l.b16 %v5448
        %v7614 = vunpack.c.h.b16 %v5448
        %v7615 = vunpack.c.l.b16 %v5449
        %v7616 = vunpack.c.h.b16 %v5449
        %v7617 = vunpack.c.l.b16 %v5450
        %v7618 = vunpack.c.h.b16 %v5450
        %v7619 = vunpack.c.l.b16 %v5451
        %v7620 = vunpack.c.h.b16 %v5451
        %v7621 = vunpack.c.l.b16 %v5452
        %v7622 = vunpack.c.h.b16 %v5452
        %v7623 = vunpack.c.l.b16 %v5453
        %v7624 = vunpack.c.h.b16 %v5453
        %v7625 = vunpack.c.l.b16 %v5454
        %v7626 = vunpack.c.h.b16 %v5454
        %v7627 = vunpack.c.l.b16 %v5455
        %v7628 = vunpack.c.h.b16 %v5455
        %v7629 = vunpack.c.l.b16 %v5456
        %v7630 = vunpack.c.h.b16 %v5456
        %v7631 = vunpack.c.l.b16 %v5457
        %v7632 = vunpack.c.h.b16 %v5457
        %v7633 = vunpack.c.l.b16 %v5458
        %v7634 = vunpack.c.h.b16 %v5458
        %v7635 = vunpack.c.l.b16 %v5459
        %v7636 = vunpack.c.h.b16 %v5459
        %v7637 = vunpack.c.l.b16 %v5460
        %v7638 = vunpack.c.h.b16 %v5460
        %v7639 = vunpack.c.l.b16 %v5461
        %v7640 = vunpack.c.h.b16 %v5461
        %v7641 = vunpack.c.l.b16 %v5462
        %v7642 = vunpack.c.h.b16 %v5462
        %v7643 = vunpack.c.l.b16 %v5463
        %v7644 = vunpack.c.h.b16 %v5463
        %v7645 = vunpack.c.l.b16 %v5464
        %v7646 = vunpack.c.h.b16 %v5464
        %v7647 = vunpack.c.l.b16 %v5465
        %v7648 = vunpack.c.h.b16 %v5465
        %v7649 = vunpack.c.l.b16 %v5466
        %v7650 = vunpack.c.h.b16 %v5466
        %v7651 = vunpack.c.l.b16 %v5467
        %v7652 = vunpack.c.h.b16 %v5467
        %v7653 = vunpack.c.l.b16 %v5468
        %v7654 = vunpack.c.h.b16 %v5468
        %v7655 = vunpack.c.l.b16 %v5469
        %v7656 = vunpack.c.h.b16 %v5469
        %v7657 = vunpack.c.l.b16 %v5470
        %v7658 = vunpack.c.h.b16 %v5470
        %v7659 = vunpack.c.l.b16 %v5471
        %v7660 = vunpack.c.h.b16 %v5471
        %v7661 = vunpack.c.l.b16 %v5472
        %v7662 = vunpack.c.h.b16 %v5472
        %v7663 = vunpack.c.l.b16 %v5473
        %v7664 = vunpack.c.h.b16 %v5473
        %v7665 = vunpack.c.l.b16 %v5474
        %v7666 = vunpack.c.h.b16 %v5474
        %v7667 = vunpack.c.l.b16 %v5475
        %v7668 = vunpack.c.h.b16 %v5475
        %v7669 = vunpack.c.l.b16 %v5476
        %v7670 = vunpack.c.h.b16 %v5476
        %v7671 = vunpack.c.l.b16 %v5477
        %v7672 = vunpack.c.h.b16 %v5477
        %v7673 = vunpack.c.l.b16 %v5478
        %v7674 = vunpack.c.h.b16 %v5478
        %v7675 = vunpack.c.l.b16 %v5479
        %v7676 = vunpack.c.h.b16 %v5479
        %v7677 = vunpack.c.l.b16 %v5480
        %v7678 = vunpack.c.h.b16 %v5480
        %v7679 = vunpack.c.l.b16 %v5481
        %v7680 = vunpack.c.h.b16 %v5481
        %v7681 = vunpack.c.l.b16 %v5482
        %v7682 = vunpack.c.h.b16 %v5482
        %v7683 = vunpack.c.l.b16 %v5483
        %v7684 = vunpack.c.h.b16 %v5483
        %v7685 = vunpack.c.l.b16 %v5484
        %v7686 = vunpack.c.h.b16 %v5484
        %v7687 = vunpack.c.l.b16 %v5485
        %v7688 = vunpack.c.h.b16 %v5485
        %v7689 = vunpack.c.l.b16 %v5486
        %v7690 = vunpack.c.h.b16 %v5486
        %v7691 = vunpack.c.l.b16 %v5487
        %v7692 = vunpack.c.h.b16 %v5487
        %v7693 = vunpack.c.l.b16 %v5488
        %v7694 = vunpack.c.h.b16 %v5488
        %v7695 = vunpack.c.l.b16 %v5489
        %v7696 = vunpack.c.h.b16 %v5489
        %v7697 = vunpack.c.l.b16 %v5490
        %v7698 = vunpack.c.h.b16 %v5490
        %v7699 = vunpack.c.l.b16 %v5491
        %v7700 = vunpack.c.h.b16 %v5491
        %v7701 = vunpack.c.l.b16 %v5492
        %v7702 = vunpack.c.h.b16 %v5492
        %v7703 = vunpack.c.l.b16 %v5493
        %v7704 = vunpack.c.h.b16 %v5493
        %v7705 = vunpack.c.l.b16 %v5494
        %v7706 = vunpack.c.h.b16 %v5494
        %v7707 = vunpack.c.l.b16 %v5495
        %v7708 = vunpack.c.h.b16 %v5495
        %v7709 = vunpack.c.l.b16 %v5496
        %v7710 = vunpack.c.h.b16 %v5496
        %v7711 = vunpack.c.l.b16 %v5497
        %v7712 = vunpack.c.h.b16 %v5497
        %v7713 = vunpack.c.l.b16 %v5498
        %v7714 = vunpack.c.h.b16 %v5498
        %v7715 = vunpack.c.l.b16 %v5499
        %v7716 = vunpack.c.h.b16 %v5499
        %v7717 = vunpack.c.l.b16 %v5500
        %v7718 = vunpack.c.h.b16 %v5500
        %v7719 = vunpack.c.l.b16 %v5501
        %v7720 = vunpack.c.h.b16 %v5501
        %v7721 = vunpack.c.l.b16 %v5502
        %v7722 = vunpack.c.h.b16 %v5502
        %v7723 = vunpack.c.l.b16 %v5503
        %v7724 = vunpack.c.h.b16 %v5503
        %v7725 = vunpack.c.l.b16 %v5504
        %v7726 = vunpack.c.h.b16 %v5504
        %v7727 = vunpack.c.l.b16 %v5505
        %v7728 = vunpack.c.h.b16 %v5505
        %v7729 = vunpack.c.l.b16 %v5506
        %v7730 = vunpack.c.h.b16 %v5506
        %v7731 = vunpack.c.l.b16 %v5507
        %v7732 = vunpack.c.h.b16 %v5507
        %v7733 = vunpack.c.l.b16 %v5508
        %v7734 = vunpack.c.h.b16 %v5508
        %v7735 = vunpack.c.l.b16 %v5509
        %v7736 = vunpack.c.h.b16 %v5509
        %v7737 = vunpack.c.l.b16 %v5510
        %v7738 = vunpack.c.h.b16 %v5510
        %v7739 = vunpack.c.l.b16 %v5511
        %v7740 = vunpack.c.h.b16 %v5511
        %v7741 = vunpack.c.l.b16 %v5512
        %v7742 = vunpack.c.h.b16 %v5512
        %v7743 = vunpack.c.l.b16 %v5513
        %v7744 = vunpack.c.h.b16 %v5513
        %v7745 = vunpack.c.l.b16 %v5514
        %v7746 = vunpack.c.h.b16 %v5514
        %v7747 = vunpack.c.l.b16 %v5515
        %v7748 = vunpack.c.h.b16 %v5515
        %v7749 = vunpack.c.l.b16 %v5516
        %v7750 = vunpack.c.h.b16 %v5516
        %v7751 = vunpack.c.l.b16 %v5517
        %v7752 = vunpack.c.h.b16 %v5517
        %v7753 = vunpack.c.l.b16 %v5518
        %v7754 = vunpack.c.h.b16 %v5518
        %v7755 = vunpack.c.l.b16 %v5519
        %v7756 = vunpack.c.h.b16 %v5519
        %v7757 = vunpack.c.l.b16 %v5520
        %v7758 = vunpack.c.h.b16 %v5520
        %v7759 = vunpack.c.l.b16 %v5521
        %v7760 = vunpack.c.h.b16 %v5521
        %v7761 = vunpack.c.l.b16 %v5522
        %v7762 = vunpack.c.h.b16 %v5522
        %v7763 = vunpack.c.l.b16 %v5523
        %v7764 = vunpack.c.h.b16 %v5523
        %v7765 = vunpack.c.l.b16 %v5524
        %v7766 = vunpack.c.h.b16 %v5524
        %v7767 = vunpack.c.l.b16 %v5525
        %v7768 = vunpack.c.h.b16 %v5525
        %v7769 = vunpack.c.l.b16 %v5526
        %v7770 = vunpack.c.h.b16 %v5526
        %v7771 = vunpack.c.l.b16 %v5527
        %v7772 = vunpack.c.h.b16 %v5527
        %v7773 = vunpack.c.l.b16 %v5528
        %v7774 = vunpack.c.h.b16 %v5528
        %v7775 = vunpack.c.l.b16 %v5529
        %v7776 = vunpack.c.h.b16 %v5529
        %v7777 = vunpack.c.l.b16 %v5530
        %v7778 = vunpack.c.h.b16 %v5530
        %v7779 = vunpack.c.l.b16 %v5531
        %v7780 = vunpack.c.h.b16 %v5531
        %v7781 = vunpack.c.l.b16 %v5532
        %v7782 = vunpack.c.h.b16 %v5532
        %v7783 = vunpack.c.l.b16 %v5533
        %v7784 = vunpack.c.h.b16 %v5533
        %v7785 = vunpack.c.l.b16 %v5534
        %v7786 = vunpack.c.h.b16 %v5534
        %v7787 = vunpack.c.l.b16 %v5535
        %v7788 = vunpack.c.h.b16 %v5535
        %v7789 = vunpack.c.l.b16 %v5536
        %v7790 = vunpack.c.h.b16 %v5536
        %v7791 = vunpack.c.l.b16 %v5537
        %v7792 = vunpack.c.h.b16 %v5537
        %v7793 = vunpack.c.l.b16 %v5538
        %v7794 = vunpack.c.h.b16 %v5538
        %v7795 = vunpack.c.l.b16 %v5539
        %v7796 = vunpack.c.h.b16 %v5539
        %v7797 = vunpack.c.l.b16 %v5540
        %v7798 = vunpack.c.h.b16 %v5540
        %v7799 = vunpack.c.l.b16 %v5541
        %v7800 = vunpack.c.h.b16 %v5541
        %v7801 = vunpack.c.l.b16 %v5542
        %v7802 = vunpack.c.h.b16 %v5542
        %v7803 = vunpack.c.l.b16 %v5543
        %v7804 = vunpack.c.h.b16 %v5543
        %v7805 = vunpack.c.l.b16 %v5544
        %v7806 = vunpack.c.h.b16 %v5544
        %v7807 = vunpack.c.l.b16 %v5545
        %v7808 = vunpack.c.h.b16 %v5545
        %v7809 = vunpack.c.l.b16 %v5546
        %v7810 = vunpack.c.h.b16 %v5546
        %v7811 = vunpack.c.l.b16 %v5547
        %v7812 = vunpack.c.h.b16 %v5547
        %v7813 = vunpack.c.l.b16 %v5548
        %v7814 = vunpack.c.h.b16 %v5548
        %v7815 = vunpack.c.l.b16 %v5549
        %v7816 = vunpack.c.h.b16 %v5549
        %v7817 = vunpack.c.l.b16 %v5550
        %v7818 = vunpack.c.h.b16 %v5550
        %v7819 = vunpack.c.l.b16 %v5551
        %v7820 = vunpack.c.h.b16 %v5551
        %v7821 = vunpack.c.l.b16 %v5552
        %v7822 = vunpack.c.h.b16 %v5552
        %v7823 = vunpack.c.l.b16 %v5553
        %v7824 = vunpack.c.h.b16 %v5553
        %v7825 = vunpack.c.l.b16 %v5554
        %v7826 = vunpack.c.h.b16 %v5554
        %v7827 = vunpack.c.l.b16 %v5555
        %v7828 = vunpack.c.h.b16 %v5555
        %v7829 = vunpack.c.l.b16 %v5556
        %v7830 = vunpack.c.h.b16 %v5556
        %v7831 = vunpack.c.l.b16 %v5557
        %v7832 = vunpack.c.h.b16 %v5557
        %v7833 = vunpack.c.l.b16 %v5558
        %v7834 = vunpack.c.h.b16 %v5558
        %v7835 = vunpack.c.l.b16 %v5559
        %v7836 = vunpack.c.h.b16 %v5559
        %v7837 = vunpack.c.l.b16 %v5560
        %v7838 = vunpack.c.h.b16 %v5560
        %v7839 = vunpack.c.l.b16 %v5561
        %v7840 = vunpack.c.h.b16 %v5561
        %v7841 = vunpack.c.l.b16 %v5562
        %v7842 = vunpack.c.h.b16 %v5562
        %v7843 = vunpack.c.l.b16 %v5563
        %v7844 = vunpack.c.h.b16 %v5563
        %v7845 = vunpack.c.l.b16 %v5564
        %v7846 = vunpack.c.h.b16 %v5564
        %v7847 = vunpack.c.l.b16 %v5565
        %v7848 = vunpack.c.h.b16 %v5565
        %v7849 = vunpack.c.l.b16 %v5566
        %v7850 = vunpack.c.h.b16 %v5566
        %v7851 = vunpack.c.l.b16 %v5567
        %v7852 = vunpack.c.h.b16 %v5567
        %v7853 = vunpack.c.l.b16 %v5568
        %v7854 = vunpack.c.h.b16 %v5568
        %v7855 = vunpack.c.l.b16 %v5569
        %v7856 = vunpack.c.h.b16 %v5569
        %v7857 = vunpack.c.l.b16 %v5570
        %v7858 = vunpack.c.h.b16 %v5570
        %v7859 = vunpack.c.l.b16 %v5571
        %v7860 = vunpack.c.h.b16 %v5571
        %v7861 = vunpack.c.l.b16 %v5572
        %v7862 = vunpack.c.h.b16 %v5572
        %v7863 = vunpack.c.l.b16 %v5573
        %v7864 = vunpack.c.h.b16 %v5573
        %v7865 = vunpack.c.l.b16 %v5574
        %v7866 = vunpack.c.h.b16 %v5574
        %v7867 = vunpack.c.l.b16 %v5575
        %v7868 = vunpack.c.h.b16 %v5575
        %v7869 = vunpack.c.l.b16 %v5576
        %v7870 = vunpack.c.h.b16 %v5576
        %v7871 = vunpack.c.l.b16 %v5577
        %v7872 = vunpack.c.h.b16 %v5577
        %v7873 = vunpack.c.l.b16 %v5578
        %v7874 = vunpack.c.h.b16 %v5578
        %v7875 = vunpack.c.l.b16 %v5579
        %v7876 = vunpack.c.h.b16 %v5579
        %v7877 = vunpack.c.l.b16 %v5580
        %v7878 = vunpack.c.h.b16 %v5580
        %v7879 = vunpack.c.l.b16 %v5581
        %v7880 = vunpack.c.h.b16 %v5581
        %v7881 = vunpack.c.l.b16 %v5582
        %v7882 = vunpack.c.h.b16 %v5582
        %v7883 = vunpack.c.l.b16 %v5583
        %v7884 = vunpack.c.h.b16 %v5583
        %v7885 = vunpack.c.l.b16 %v5584
        %v7886 = vunpack.c.h.b16 %v5584
        %v7887 = vunpack.c.l.b16 %v5585
        %v7888 = vunpack.c.h.b16 %v5585
        %v7889 = vunpack.c.l.b16 %v5586
        %v7890 = vunpack.c.h.b16 %v5586
        %v7891 = vunpack.c.l.b16 %v5587
        %v7892 = vunpack.c.h.b16 %v5587
        %v7893 = vunpack.c.l.b16 %v5588
        %v7894 = vunpack.c.h.b16 %v5588
        %v7895 = vunpack.c.l.b16 %v5589
        %v7896 = vunpack.c.h.b16 %v5589
        %v7897 = vunpack.c.l.b16 %v5590
        %v7898 = vunpack.c.h.b16 %v5590
        %v7899 = vunpack.c.l.b16 %v5591
        %v7900 = vunpack.c.h.b16 %v5591
        %v7901 = vunpack.c.l.b16 %v5592
        %v7902 = vunpack.c.h.b16 %v5592
        %v7903 = vunpack.c.l.b16 %v5593
        %v7904 = vunpack.c.h.b16 %v5593
        %v7905 = vunpack.c.l.b16 %v5594
        %v7906 = vunpack.c.h.b16 %v5594
        %v7907 = vunpack.c.l.b16 %v5595
        %v7908 = vunpack.c.h.b16 %v5595
        %v7909 = vunpack.c.l.b16 %v5596
        %v7910 = vunpack.c.h.b16 %v5596
        %v7911 = vunpack.c.l.b16 %v5597
        %v7912 = vunpack.c.h.b16 %v5597
        %v7913 = vunpack.c.l.b16 %v5598
        %v7914 = vunpack.c.h.b16 %v5598
        %v7915 = vunpack.c.l.b16 %v5599
        %v7916 = vunpack.c.h.b16 %v5599
        %v7917 = vunpack.c.l.b16 %v5600
        %v7918 = vunpack.c.h.b16 %v5600
        %v7919 = vunpack.c.l.b16 %v5601
        %v7920 = vunpack.c.h.b16 %v5601
        %v7921 = vunpack.c.l.b16 %v5602
        %v7922 = vunpack.c.h.b16 %v5602
        %v7923 = vunpack.c.l.b16 %v5603
        %v7924 = vunpack.c.h.b16 %v5603
        %v7925 = vunpack.c.l.b16 %v5604
        %v7926 = vunpack.c.h.b16 %v5604
        %v7927 = vunpack.c.l.b16 %v5605
        %v7928 = vunpack.c.h.b16 %v5605
        %v7929 = vunpack.c.l.b16 %v5606
        %v7930 = vunpack.c.h.b16 %v5606
        %v7931 = vunpack.c.l.b16 %v5607
        %v7932 = vunpack.c.h.b16 %v5607
        %v7933 = vunpack.c.l.b16 %v5608
        %v7934 = vunpack.c.h.b16 %v5608
        %v7935 = vunpack.c.l.b16 %v5609
        %v7936 = vunpack.c.h.b16 %v5609
        %v7937 = vunpack.c.l.b16 %v5610
        %v7938 = vunpack.c.h.b16 %v5610
        %v7939 = vunpack.c.l.b16 %v5611
        %v7940 = vunpack.c.h.b16 %v5611
        %v7941 = vunpack.c.l.b16 %v5612
        %v7942 = vunpack.c.h.b16 %v5612
        %v7943 = vunpack.c.l.b16 %v5613
        %v7944 = vunpack.c.h.b16 %v5613
        %v7945 = vunpack.c.l.b16 %v5614
        %v7946 = vunpack.c.h.b16 %v5614
        %v7947 = vunpack.c.l.b16 %v5615
        %v7948 = vunpack.c.h.b16 %v5615
        %v7949 = vunpack.c.l.b16 %v5616
        %v7950 = vunpack.c.h.b16 %v5616
        %v7951 = vunpack.c.l.b16 %v5617
        %v7952 = vunpack.c.h.b16 %v5617
        %v7953 = vunpack.c.l.b16 %v5618
        %v7954 = vunpack.c.h.b16 %v5618
        %v7955 = vunpack.c.l.b16 %v5619
        %v7956 = vunpack.c.h.b16 %v5619
        %v7957 = vunpack.c.l.b16 %v5620
        %v7958 = vunpack.c.h.b16 %v5620
        %v7959 = vunpack.c.l.b16 %v5621
        %v7960 = vunpack.c.h.b16 %v5621
        %v7961 = vunpack.c.l.b16 %v5622
        %v7962 = vunpack.c.h.b16 %v5622
        %v7963 = vunpack.c.l.b16 %v5623
        %v7964 = vunpack.c.h.b16 %v5623
        %v7965 = vunpack.c.l.b16 %v5624
        %v7966 = vunpack.c.h.b16 %v5624
        %v7967 = vunpack.c.l.b16 %v5625
        %v7968 = vunpack.c.h.b16 %v5625
        %v7969 = vunpack.c.l.b16 %v5626
        %v7970 = vunpack.c.h.b16 %v5626
        %v7971 = vunpack.c.l.b16 %v5627
        %v7972 = vunpack.c.h.b16 %v5627
        %v7973 = vunpack.c.l.b16 %v5628
        %v7974 = vunpack.c.h.b16 %v5628
        %v7975 = vunpack.c.l.b16 %v5629
        %v7976 = vunpack.c.h.b16 %v5629
        %v7977 = vunpack.c.l.b16 %v5630
        %v7978 = vunpack.c.h.b16 %v5630
        %v7979 = vunpack.c.l.b16 %v5631
        %v7980 = vunpack.c.h.b16 %v5631
        %v7981 = vunpack.c.l.b16 %v5632
        %v7982 = vunpack.c.h.b16 %v5632
        %v7983 = vunpack.c.l.b16 %v5633
        %v7984 = vunpack.c.h.b16 %v5633
        %v7985 = vunpack.c.l.b16 %v5634
        %v7986 = vunpack.c.h.b16 %v5634
        %v7987 = vunpack.c.l.b16 %v5635
        %v7988 = vunpack.c.h.b16 %v5635
        %v7989 = vpack.c.b16 %v6425, %v6421
        %v7990 = vpack.c.b16 %v6426, %v6422
        %v7991 = vpack.c.b16 %v6427, %v6423
        %v7992 = vpack.c.b16 %v6428, %v6424
        %v7993 = vpack.c.b16 %v6433, %v6429
        %v7994 = vpack.c.b16 %v6434, %v6430
        %v7995 = vpack.c.b16 %v6435, %v6431
        %v7996 = vpack.c.b16 %v6436, %v6432
        %v7997 = vpack.c.b16 %v6441, %v6437
        %v7998 = vpack.c.b16 %v6442, %v6438
        %v7999 = vpack.c.b16 %v6443, %v6439
        %v8000 = vpack.c.b16 %v6444, %v6440
        %v8001 = vpack.c.b16 %v6449, %v6445
        %v8002 = vpack.c.b16 %v6450, %v6446
        %v8003 = vpack.c.b16 %v6451, %v6447
        %v8004 = vpack.c.b16 %v6452, %v6448
        %v8005 = vpack.c.b16 %v6457, %v6453
        %v8006 = vpack.c.b16 %v6458, %v6454
        %v8007 = vpack.c.b16 %v6459, %v6455
        %v8008 = vpack.c.b16 %v6460, %v6456
        %v8009 = vpack.c.b16 %v6465, %v6461
        %v8010 = vpack.c.b16 %v6466, %v6462
        %v8011 = vpack.c.b16 %v6467, %v6463
        %v8012 = vpack.c.b16 %v6468, %v6464
        %v8013 = vpack.c.b16 %v6473, %v6469
        %v8014 = vpack.c.b16 %v6474, %v6470
        %v8015 = vpack.c.b16 %v6475, %v6471
        %v8016 = vpack.c.b16 %v6476, %v6472
        %v8017 = vpack.c.b16 %v6481, %v6477
        %v8018 = vpack.c.b16 %v6482, %v6478
        %v8019 = vpack.c.b16 %v6483, %v6479
        %v8020 = vpack.c.b16 %v6484, %v6480
        %v8021 = vpack.c.b16 %v6489, %v6485
        %v8022 = vpack.c.b16 %v6490, %v6486
        %v8023 = vpack.c.b16 %v6491, %v6487
        %v8024 = vpack.c.b16 %v6492, %v6488
        %v8025 = vpack.c.b16 %v6497, %v6493
        %v8026 = vpack.c.b16 %v6498, %v6494
        %v8027 = vpack.c.b16 %v6499, %v6495
        %v8028 = vpack.c.b16 %v6500, %v6496
        %v8029 = vpack.c.b16 %v6505, %v6501
        %v8030 = vpack.c.b16 %v6506, %v6502
        %v8031 = vpack.c.b16 %v6507, %v6503
        %v8032 = vpack.c.b16 %v6508, %v6504
        %v8033 = vpack.c.b16 %v6513, %v6509
        %v8034 = vpack.c.b16 %v6514, %v6510
        %v8035 = vpack.c.b16 %v6515, %v6511
        %v8036 = vpack.c.b16 %v6516, %v6512
        %v8037 = vpack.c.b16 %v6521, %v6517
        %v8038 = vpack.c.b16 %v6522, %v6518
        %v8039 = vpack.c.b16 %v6523, %v6519
        %v8040 = vpack.c.b16 %v6524, %v6520
        %v8041 = vpack.c.b16 %v6529, %v6525
        %v8042 = vpack.c.b16 %v6530, %v6526
        %v8043 = vpack.c.b16 %v6531, %v6527
        %v8044 = vpack.c.b16 %v6532, %v6528
        %v8045 = vpack.c.b16 %v6537, %v6533
        %v8046 = vpack.c.b16 %v6538, %v6534
        %v8047 = vpack.c.b16 %v6539, %v6535
        %v8048 = vpack.c.b16 %v6540, %v6536
        %v8049 = vpack.c.b16 %v6545, %v6541
        %v8050 = vpack.c.b16 %v6546, %v6542
        %v8051 = vpack.c.b16 %v6547, %v6543
        %v8052 = vpack.c.b16 %v6548, %v6544
        %v8053 = vpack.c.b16 %v6553, %v6549
        %v8054 = vpack.c.b16 %v6554, %v6550
        %v8055 = vpack.c.b16 %v6555, %v6551
        %v8056 = vpack.c.b16 %v6556, %v6552
        %v8057 = vpack.c.b16 %v6561, %v6557
        %v8058 = vpack.c.b16 %v6562, %v6558
        %v8059 = vpack.c.b16 %v6563, %v6559
        %v8060 = vpack.c.b16 %v6564, %v6560
        %v8061 = vpack.c.b16 %v6569, %v6565
        %v8062 = vpack.c.b16 %v6570, %v6566
        %v8063 = vpack.c.b16 %v6571, %v6567
        %v8064 = vpack.c.b16 %v6572, %v6568
        %v8065 = vpack.c.b16 %v6577, %v6573
        %v8066 = vpack.c.b16 %v6578, %v6574
        %v8067 = vpack.c.b16 %v6579, %v6575
        %v8068 = vpack.c.b16 %v6580, %v6576
        %v8069 = vpack.c.b16 %v6585, %v6581
        %v8070 = vpack.c.b16 %v6586, %v6582
        %v8071 = vpack.c.b16 %v6587, %v6583
        %v8072 = vpack.c.b16 %v6588, %v6584
        %v8073 = vpack.c.b16 %v6593, %v6589
        %v8074 = vpack.c.b16 %v6594, %v6590
        %v8075 = vpack.c.b16 %v6595, %v6591
        %v8076 = vpack.c.b16 %v6596, %v6592
        %v8077 = vpack.c.b16 %v6601, %v6597
        %v8078 = vpack.c.b16 %v6602, %v6598
        %v8079 = vpack.c.b16 %v6603, %v6599
        %v8080 = vpack.c.b16 %v6604, %v6600
        %v8081 = vpack.c.b16 %v6609, %v6605
        %v8082 = vpack.c.b16 %v6610, %v6606
        %v8083 = vpack.c.b16 %v6611, %v6607
        %v8084 = vpack.c.b16 %v6612, %v6608
        %v8085 = vpack.c.b16 %v6617, %v6613
        %v8086 = vpack.c.b16 %v6618, %v6614
        %v8087 = vpack.c.b16 %v6619, %v6615
        %v8088 = vpack.c.b16 %v6620, %v6616
        %v8089 = vpack.c.b16 %v6625, %v6621
        %v8090 = vpack.c.b16 %v6626, %v6622
        %v8091 = vpack.c.b16 %v6627, %v6623
        %v8092 = vpack.c.b16 %v6628, %v6624
        %v8093 = vpack.c.b16 %v6633, %v6629
        %v8094 = vpack.c.b16 %v6634, %v6630
        %v8095 = vpack.c.b16 %v6635, %v6631
        %v8096 = vpack.c.b16 %v6636, %v6632
        %v8097 = vpack.c.b16 %v6641, %v6637
        %v8098 = vpack.c.b16 %v6642, %v6638
        %v8099 = vpack.c.b16 %v6643, %v6639
        %v8100 = vpack.c.b16 %v6644, %v6640
        %v8101 = vpack.c.b16 %v6649, %v6645
        %v8102 = vpack.c.b16 %v6650, %v6646
        %v8103 = vpack.c.b16 %v6651, %v6647
        %v8104 = vpack.c.b16 %v6652, %v6648
        %v8105 = vpack.c.b16 %v6657, %v6653
        %v8106 = vpack.c.b16 %v6658, %v6654
        %v8107 = vpack.c.b16 %v6659, %v6655
        %v8108 = vpack.c.b16 %v6660, %v6656
        %v8109 = vpack.c.b16 %v6665, %v6661
        %v8110 = vpack.c.b16 %v6666, %v6662
        %v8111 = vpack.c.b16 %v6667, %v6663
        %v8112 = vpack.c.b16 %v6668, %v6664
        %v8113 = vpack.c.b16 %v6673, %v6669
        %v8114 = vpack.c.b16 %v6674, %v6670
        %v8115 = vpack.c.b16 %v6675, %v6671
        %v8116 = vpack.c.b16 %v6676, %v6672
        %v8117 = vpack.c.b16 %v6681, %v6677
        %v8118 = vpack.c.b16 %v6682, %v6678
        %v8119 = vpack.c.b16 %v6683, %v6679
        %v8120 = vpack.c.b16 %v6684, %v6680
        %v8121 = vpack.c.b16 %v6689, %v6685
        %v8122 = vpack.c.b16 %v6690, %v6686
        %v8123 = vpack.c.b16 %v6691, %v6687
        %v8124 = vpack.c.b16 %v6692, %v6688
        %v8125 = vpack.c.b16 %v6697, %v6693
        %v8126 = vpack.c.b16 %v6698, %v6694
        %v8127 = vpack.c.b16 %v6699, %v6695
        %v8128 = vpack.c.b16 %v6700, %v6696
        %v8129 = vpack.c.b16 %v6705, %v6701
        %v8130 = vpack.c.b16 %v6706, %v6702
        %v8131 = vpack.c.b16 %v6707, %v6703
        %v8132 = vpack.c.b16 %v6708, %v6704
        %v8133 = vpack.c.b16 %v6713, %v6709
        %v8134 = vpack.c.b16 %v6714, %v6710
        %v8135 = vpack.c.b16 %v6715, %v6711
        %v8136 = vpack.c.b16 %v6716, %v6712
        %v8137 = vpack.c.b16 %v6721, %v6717
        %v8138 = vpack.c.b16 %v6722, %v6718
        %v8139 = vpack.c.b16 %v6723, %v6719
        %v8140 = vpack.c.b16 %v6724, %v6720
        %v8141 = vpack.c.b16 %v6729, %v6725
        %v8142 = vpack.c.b16 %v6730, %v6726
        %v8143 = vpack.c.b16 %v6731, %v6727
        %v8144 = vpack.c.b16 %v6732, %v6728
        %v8145 = vpack.c.b16 %v6737, %v6733
        %v8146 = vpack.c.b16 %v6738, %v6734
        %v8147 = vpack.c.b16 %v6739, %v6735
        %v8148 = vpack.c.b16 %v6740, %v6736
        %v8149 = vpack.c.b16 %v6745, %v6741
        %v8150 = vpack.c.b16 %v6746, %v6742
        %v8151 = vpack.c.b16 %v6747, %v6743
        %v8152 = vpack.c.b16 %v6748, %v6744
        %v8153 = vpack.c.b16 %v6753, %v6749
        %v8154 = vpack.c.b16 %v6754, %v6750
        %v8155 = vpack.c.b16 %v6755, %v6751
        %v8156 = vpack.c.b16 %v6756, %v6752
        %v8157 = vpack.c.b16 %v6761, %v6757
        %v8158 = vpack.c.b16 %v6762, %v6758
        %v8159 = vpack.c.b16 %v6763, %v6759
        %v8160 = vpack.c.b16 %v6764, %v6760
        %v8161 = vpack.c.b16 %v6769, %v6765
        %v8162 = vpack.c.b16 %v6770, %v6766
        %v8163 = vpack.c.b16 %v6771, %v6767
        %v8164 = vpack.c.b16 %v6772, %v6768
        %v8165 = vpack.c.b16 %v6777, %v6773
        %v8166 = vpack.c.b16 %v6778, %v6774
        %v8167 = vpack.c.b16 %v6779, %v6775
        %v8168 = vpack.c.b16 %v6780, %v6776
        %v8169 = vpack.c.b16 %v6785, %v6781
        %v8170 = vpack.c.b16 %v6786, %v6782
        %v8171 = vpack.c.b16 %v6787, %v6783
        %v8172 = vpack.c.b16 %v6788, %v6784
        %v8173 = vpack.c.b16 %v6793, %v6789
        %v8174 = vpack.c.b16 %v6794, %v6790
        %v8175 = vpack.c.b16 %v6795, %v6791
        %v8176 = vpack.c.b16 %v6796, %v6792
        %v8177 = vpack.c.b16 %v6801, %v6797
        %v8178 = vpack.c.b16 %v6802, %v6798
        %v8179 = vpack.c.b16 %v6803, %v6799
        %v8180 = vpack.c.b16 %v6804, %v6800
        %v8181 = vpack.c.b16 %v6809, %v6805
        %v8182 = vpack.c.b16 %v6810, %v6806
        %v8183 = vpack.c.b16 %v6811, %v6807
        %v8184 = vpack.c.b16 %v6812, %v6808
        %v8185 = vpack.c.b16 %v6817, %v6813
        %v8186 = vpack.c.b16 %v6818, %v6814
        %v8187 = vpack.c.b16 %v6819, %v6815
        %v8188 = vpack.c.b16 %v6820, %v6816
        %v8189 = vpack.c.b16 %v6825, %v6821
        %v8190 = vpack.c.b16 %v6826, %v6822
        %v8191 = vpack.c.b16 %v6827, %v6823
        %v8192 = vpack.c.b16 %v6828, %v6824
        %v8193 = vpack.c.b16 %v6833, %v6829
        %v8194 = vpack.c.b16 %v6834, %v6830
        %v8195 = vpack.c.b16 %v6835, %v6831
        %v8196 = vpack.c.b16 %v6836, %v6832
        %v8197 = vpack.c.b16 %v6841, %v6837
        %v8198 = vpack.c.b16 %v6842, %v6838
        %v8199 = vpack.c.b16 %v6843, %v6839
        %v8200 = vpack.c.b16 %v6844, %v6840
        %v8201 = vpack.c.b16 %v6849, %v6845
        %v8202 = vpack.c.b16 %v6850, %v6846
        %v8203 = vpack.c.b16 %v6851, %v6847
        %v8204 = vpack.c.b16 %v6852, %v6848
        %v8205 = vpack.c.b16 %v6857, %v6853
        %v8206 = vpack.c.b16 %v6858, %v6854
        %v8207 = vpack.c.b16 %v6859, %v6855
        %v8208 = vpack.c.b16 %v6860, %v6856
        %v8209 = vpack.c.b16 %v6865, %v6861
        %v8210 = vpack.c.b16 %v6866, %v6862
        %v8211 = vpack.c.b16 %v6867, %v6863
        %v8212 = vpack.c.b16 %v6868, %v6864
        %v8213 = vpack.c.b16 %v6873, %v6869
        %v8214 = vpack.c.b16 %v6874, %v6870
        %v8215 = vpack.c.b16 %v6875, %v6871
        %v8216 = vpack.c.b16 %v6876, %v6872
        %v8217 = vpack.c.b16 %v6881, %v6877
        %v8218 = vpack.c.b16 %v6882, %v6878
        %v8219 = vpack.c.b16 %v6883, %v6879
        %v8220 = vpack.c.b16 %v6884, %v6880
        %v8221 = vpack.c.b16 %v6889, %v6885
        %v8222 = vpack.c.b16 %v6890, %v6886
        %v8223 = vpack.c.b16 %v6891, %v6887
        %v8224 = vpack.c.b16 %v6892, %v6888
        %v8225 = vpack.c.b16 %v6897, %v6893
        %v8226 = vpack.c.b16 %v6898, %v6894
        %v8227 = vpack.c.b16 %v6899, %v6895
        %v8228 = vpack.c.b16 %v6900, %v6896
        %v8229 = vpack.c.b16 %v6905, %v6901
        %v8230 = vpack.c.b16 %v6906, %v6902
        %v8231 = vpack.c.b16 %v6907, %v6903
        %v8232 = vpack.c.b16 %v6908, %v6904
        %v8233 = vpack.c.b16 %v6913, %v6909
        %v8234 = vpack.c.b16 %v6914, %v6910
        %v8235 = vpack.c.b16 %v6915, %v6911
        %v8236 = vpack.c.b16 %v6916, %v6912
        %v8237 = vpack.c.b16 %v6921, %v6917
        %v8238 = vpack.c.b16 %v6922, %v6918
        %v8239 = vpack.c.b16 %v6923, %v6919
        %v8240 = vpack.c.b16 %v6924, %v6920
        %v8241 = vpack.c.b16 %v6929, %v6925
        %v8242 = vpack.c.b16 %v6930, %v6926
        %v8243 = vpack.c.b16 %v6931, %v6927
        %v8244 = vpack.c.b16 %v6932, %v6928
        %v8245 = vpack.c.b16 %v6937, %v6933
        %v8246 = vpack.c.b16 %v6938, %v6934
        %v8247 = vpack.c.b16 %v6939, %v6935
        %v8248 = vpack.c.b16 %v6940, %v6936
        %v8249 = vpack.c.b16 %v6945, %v6941
        %v8250 = vpack.c.b16 %v6946, %v6942
        %v8251 = vpack.c.b16 %v6947, %v6943
        %v8252 = vpack.c.b16 %v6948, %v6944
        %v8253 = vpack.c.b16 %v6953, %v6949
        %v8254 = vpack.c.b16 %v6954, %v6950
        %v8255 = vpack.c.b16 %v6955, %v6951
        %v8256 = vpack.c.b16 %v6956, %v6952
        %v8257 = vpack.c.b16 %v6961, %v6957
        %v8258 = vpack.c.b16 %v6962, %v6958
        %v8259 = vpack.c.b16 %v6963, %v6959
        %v8260 = vpack.c.b16 %v6964, %v6960
        %v8261 = vpack.c.b16 %v6969, %v6965
        %v8262 = vpack.c.b16 %v6970, %v6966
        %v8263 = vpack.c.b16 %v6971, %v6967
        %v8264 = vpack.c.b16 %v6972, %v6968
        %v8265 = vpack.c.b16 %v6977, %v6973
        %v8266 = vpack.c.b16 %v6978, %v6974
        %v8267 = vpack.c.b16 %v6979, %v6975
        %v8268 = vpack.c.b16 %v6980, %v6976
        %v8269 = vpack.c.b16 %v6985, %v6981
        %v8270 = vpack.c.b16 %v6986, %v6982
        %v8271 = vpack.c.b16 %v6987, %v6983
        %v8272 = vpack.c.b16 %v6988, %v6984
        %v8273 = vpack.c.b16 %v6993, %v6989
        %v8274 = vpack.c.b16 %v6994, %v6990
        %v8275 = vpack.c.b16 %v6995, %v6991
        %v8276 = vpack.c.b16 %v6996, %v6992
        %v8277 = vpack.c.b16 %v7001, %v6997
        %v8278 = vpack.c.b16 %v7002, %v6998
        %v8279 = vpack.c.b16 %v7003, %v6999
        %v8280 = vpack.c.b16 %v7004, %v7000
        %v8281 = vpack.c.b16 %v7009, %v7005
        %v8282 = vpack.c.b16 %v7010, %v7006
        %v8283 = vpack.c.b16 %v7011, %v7007
        %v8284 = vpack.c.b16 %v7012, %v7008
        %v8285 = vpack.c.b16 %v7017, %v7013
        %v8286 = vpack.c.b16 %v7018, %v7014
        %v8287 = vpack.c.b16 %v7019, %v7015
        %v8288 = vpack.c.b16 %v7020, %v7016
        %v8289 = vpack.c.b16 %v7025, %v7021
        %v8290 = vpack.c.b16 %v7026, %v7022
        %v8291 = vpack.c.b16 %v7027, %v7023
        %v8292 = vpack.c.b16 %v7028, %v7024
        %v8293 = vpack.c.b16 %v7033, %v7029
        %v8294 = vpack.c.b16 %v7034, %v7030
        %v8295 = vpack.c.b16 %v7035, %v7031
        %v8296 = vpack.c.b16 %v7036, %v7032
        %v8297 = vpack.c.b16 %v7041, %v7037
        %v8298 = vpack.c.b16 %v7042, %v7038
        %v8299 = vpack.c.b16 %v7043, %v7039
        %v8300 = vpack.c.b16 %v7044, %v7040
        %v8301 = vpack.c.b16 %v7049, %v7045
        %v8302 = vpack.c.b16 %v7050, %v7046
        %v8303 = vpack.c.b16 %v7051, %v7047
        %v8304 = vpack.c.b16 %v7052, %v7048
        %v8305 = vpack.c.b16 %v7057, %v7053
        %v8306 = vpack.c.b16 %v7058, %v7054
        %v8307 = vpack.c.b16 %v7059, %v7055
        %v8308 = vpack.c.b16 %v7060, %v7056
        %v8309 = vpack.c.b16 %v7065, %v7061
        %v8310 = vpack.c.b16 %v7066, %v7062
        %v8311 = vpack.c.b16 %v7067, %v7063
        %v8312 = vpack.c.b16 %v7068, %v7064
        %v8313 = vpack.c.b16 %v7073, %v7069
        %v8314 = vpack.c.b16 %v7074, %v7070
        %v8315 = vpack.c.b16 %v7075, %v7071
        %v8316 = vpack.c.b16 %v7076, %v7072
        %v8317 = vpack.c.b16 %v7081, %v7077
        %v8318 = vpack.c.b16 %v7082, %v7078
        %v8319 = vpack.c.b16 %v7083, %v7079
        %v8320 = vpack.c.b16 %v7084, %v7080
        %v8321 = vpack.c.b16 %v7089, %v7085
        %v8322 = vpack.c.b16 %v7090, %v7086
        %v8323 = vpack.c.b16 %v7091, %v7087
        %v8324 = vpack.c.b16 %v7092, %v7088
        %v8325 = vpack.c.b16 %v7097, %v7093
        %v8326 = vpack.c.b16 %v7098, %v7094
        %v8327 = vpack.c.b16 %v7099, %v7095
        %v8328 = vpack.c.b16 %v7100, %v7096
        %v8329 = vpack.c.b16 %v7105, %v7101
        %v8330 = vpack.c.b16 %v7106, %v7102
        %v8331 = vpack.c.b16 %v7107, %v7103
        %v8332 = vpack.c.b16 %v7108, %v7104
        %v8333 = vpack.c.b16 %v7113, %v7109
        %v8334 = vpack.c.b16 %v7114, %v7110
        %v8335 = vpack.c.b16 %v7115, %v7111
        %v8336 = vpack.c.b16 %v7116, %v7112
        %v8337 = vpack.c.b16 %v7121, %v7117
        %v8338 = vpack.c.b16 %v7122, %v7118
        %v8339 = vpack.c.b16 %v7123, %v7119
        %v8340 = vpack.c.b16 %v7124, %v7120
        %v8341 = vpack.c.b16 %v7129, %v7125
        %v8342 = vpack.c.b16 %v7130, %v7126
        %v8343 = vpack.c.b16 %v7131, %v7127
        %v8344 = vpack.c.b16 %v7132, %v7128
        %v8345 = vpack.c.b16 %v7137, %v7133
        %v8346 = vpack.c.b16 %v7138, %v7134
        %v8347 = vpack.c.b16 %v7139, %v7135
        %v8348 = vpack.c.b16 %v7140, %v7136
        %v8349 = vpack.c.b16 %v7145, %v7141
        %v8350 = vpack.c.b16 %v7146, %v7142
        %v8351 = vpack.c.b16 %v7147, %v7143
        %v8352 = vpack.c.b16 %v7148, %v7144
        %v8353 = vpack.c.b16 %v7153, %v7149
        %v8354 = vpack.c.b16 %v7154, %v7150
        %v8355 = vpack.c.b16 %v7155, %v7151
        %v8356 = vpack.c.b16 %v7156, %v7152
        %v8357 = vpack.c.b16 %v7161, %v7157
        %v8358 = vpack.c.b16 %v7162, %v7158
        %v8359 = vpack.c.b16 %v7163, %v7159
        %v8360 = vpack.c.b16 %v7164, %v7160
        %v8361 = vpack.c.b16 %v7169, %v7165
        %v8362 = vpack.c.b16 %v7170, %v7166
        %v8363 = vpack.c.b16 %v7171, %v7167
        %v8364 = vpack.c.b16 %v7172, %v7168
        %v8365 = vpack.c.b16 %v7177, %v7173
        %v8366 = vpack.c.b16 %v7178, %v7174
        %v8367 = vpack.c.b16 %v7179, %v7175
        %v8368 = vpack.c.b16 %v7180, %v7176
        %v8369 = vpack.c.b16 %v7185, %v7181
        %v8370 = vpack.c.b16 %v7186, %v7182
        %v8371 = vpack.c.b16 %v7187, %v7183
        %v8372 = vpack.c.b16 %v7188, %v7184
        %v8373 = vpack.c.b16 %v7193, %v7189
        %v8374 = vpack.c.b16 %v7194, %v7190
        %v8375 = vpack.c.b16 %v7195, %v7191
        %v8376 = vpack.c.b16 %v7196, %v7192
        %v8377 = vpack.c.b16 %v7201, %v7197
        %v8378 = vpack.c.b16 %v7202, %v7198
        %v8379 = vpack.c.b16 %v7203, %v7199
        %v8380 = vpack.c.b16 %v7204, %v7200
        %v8381 = vpack.c.b16 %v7209, %v7205
        %v8382 = vpack.c.b16 %v7210, %v7206
        %v8383 = vpack.c.b16 %v7211, %v7207
        %v8384 = vpack.c.b16 %v7212, %v7208
        %v8385 = vpack.c.b16 %v7217, %v7213
        %v8386 = vpack.c.b16 %v7218, %v7214
        %v8387 = vpack.c.b16 %v7219, %v7215
        %v8388 = vpack.c.b16 %v7220, %v7216
        %v8389 = vpack.c.b16 %v7225, %v7221
        %v8390 = vpack.c.b16 %v7226, %v7222
        %v8391 = vpack.c.b16 %v7227, %v7223
        %v8392 = vpack.c.b16 %v7228, %v7224
        %v8393 = vpack.c.b16 %v7233, %v7229
        %v8394 = vpack.c.b16 %v7234, %v7230
        %v8395 = vpack.c.b16 %v7235, %v7231
        %v8396 = vpack.c.b16 %v7236, %v7232
        %v8397 = vpack.c.b16 %v7241, %v7237
        %v8398 = vpack.c.b16 %v7242, %v7238
        %v8399 = vpack.c.b16 %v7243, %v7239
        %v8400 = vpack.c.b16 %v7244, %v7240
        %v8401 = vpack.c.b16 %v7249, %v7245
        %v8402 = vpack.c.b16 %v7250, %v7246
        %v8403 = vpack.c.b16 %v7251, %v7247
        %v8404 = vpack.c.b16 %v7252, %v7248
        %v8405 = vpack.c.b16 %v7257, %v7253
        %v8406 = vpack.c.b16 %v7258, %v7254
        %v8407 = vpack.c.b16 %v7259, %v7255
        %v8408 = vpack.c.b16 %v7260, %v7256
        %v8409 = vpack.c.b16 %v7265, %v7261
        %v8410 = vpack.c.b16 %v7266, %v7262
        %v8411 = vpack.c.b16 %v7267, %v7263
        %v8412 = vpack.c.b16 %v7268, %v7264
        %v8413 = vpack.c.b16 %v7273, %v7269
        %v8414 = vpack.c.b16 %v7274, %v7270
        %v8415 = vpack.c.b16 %v7275, %v7271
        %v8416 = vpack.c.b16 %v7276, %v7272
        %v8417 = vpack.c.b16 %v7281, %v7277
        %v8418 = vpack.c.b16 %v7282, %v7278
        %v8419 = vpack.c.b16 %v7283, %v7279
        %v8420 = vpack.c.b16 %v7284, %v7280
        %v8421 = vpack.c.b16 %v7289, %v7285
        %v8422 = vpack.c.b16 %v7290, %v7286
        %v8423 = vpack.c.b16 %v7291, %v7287
        %v8424 = vpack.c.b16 %v7292, %v7288
        %v8425 = vpack.c.b16 %v7297, %v7293
        %v8426 = vpack.c.b16 %v7298, %v7294
        %v8427 = vpack.c.b16 %v7299, %v7295
        %v8428 = vpack.c.b16 %v7300, %v7296
        %v8429 = vpack.c.b16 %v7305, %v7301
        %v8430 = vpack.c.b16 %v7306, %v7302
        %v8431 = vpack.c.b16 %v7307, %v7303
        %v8432 = vpack.c.b16 %v7308, %v7304
        %v8433 = vpack.c.b16 %v7313, %v7309
        %v8434 = vpack.c.b16 %v7314, %v7310
        %v8435 = vpack.c.b16 %v7315, %v7311
        %v8436 = vpack.c.b16 %v7316, %v7312
        %v8437 = vpack.c.b16 %v7321, %v7317
        %v8438 = vpack.c.b16 %v7322, %v7318
        %v8439 = vpack.c.b16 %v7323, %v7319
        %v8440 = vpack.c.b16 %v7324, %v7320
        %v8441 = vpack.c.b16 %v7329, %v7325
        %v8442 = vpack.c.b16 %v7330, %v7326
        %v8443 = vpack.c.b16 %v7331, %v7327
        %v8444 = vpack.c.b16 %v7332, %v7328
        %v8445 = vpack.c.b16 %v7337, %v7333
        %v8446 = vpack.c.b16 %v7338, %v7334
        %v8447 = vpack.c.b16 %v7339, %v7335
        %v8448 = vpack.c.b16 %v7340, %v7336
        %v8449 = vpack.c.b16 %v7345, %v7341
        %v8450 = vpack.c.b16 %v7346, %v7342
        %v8451 = vpack.c.b16 %v7347, %v7343
        %v8452 = vpack.c.b16 %v7348, %v7344
        %v8453 = vpack.c.b16 %v7353, %v7349
        %v8454 = vpack.c.b16 %v7354, %v7350
        %v8455 = vpack.c.b16 %v7355, %v7351
        %v8456 = vpack.c.b16 %v7356, %v7352
        %v8457 = vpack.c.b16 %v7361, %v7357
        %v8458 = vpack.c.b16 %v7362, %v7358
        %v8459 = vpack.c.b16 %v7363, %v7359
        %v8460 = vpack.c.b16 %v7364, %v7360
        %v8461 = vpack.c.b16 %v7369, %v7365
        %v8462 = vpack.c.b16 %v7370, %v7366
        %v8463 = vpack.c.b16 %v7371, %v7367
        %v8464 = vpack.c.b16 %v7372, %v7368
        %v8465 = vpack.c.b16 %v7377, %v7373
        %v8466 = vpack.c.b16 %v7378, %v7374
        %v8467 = vpack.c.b16 %v7379, %v7375
        %v8468 = vpack.c.b16 %v7380, %v7376
        %v8469 = vpack.c.b16 %v7385, %v7381
        %v8470 = vpack.c.b16 %v7386, %v7382
        %v8471 = vpack.c.b16 %v7387, %v7383
        %v8472 = vpack.c.b16 %v7388, %v7384
        %v8473 = vpack.c.b16 %v7393, %v7389
        %v8474 = vpack.c.b16 %v7394, %v7390
        %v8475 = vpack.c.b16 %v7395, %v7391
        %v8476 = vpack.c.b16 %v7396, %v7392
        %v8477 = vpack.c.b16 %v7401, %v7397
        %v8478 = vpack.c.b16 %v7402, %v7398
        %v8479 = vpack.c.b16 %v7403, %v7399
        %v8480 = vpack.c.b16 %v7404, %v7400
        %v8481 = vpack.c.b16 %v7409, %v7405
        %v8482 = vpack.c.b16 %v7410, %v7406
        %v8483 = vpack.c.b16 %v7411, %v7407
        %v8484 = vpack.c.b16 %v7412, %v7408
        %v8485 = vpack.c.b16 %v7417, %v7413
        %v8486 = vpack.c.b16 %v7418, %v7414
        %v8487 = vpack.c.b16 %v7419, %v7415
        %v8488 = vpack.c.b16 %v7420, %v7416
        %v8489 = vpack.c.b16 %v7425, %v7421
        %v8490 = vpack.c.b16 %v7426, %v7422
        %v8491 = vpack.c.b16 %v7427, %v7423
        %v8492 = vpack.c.b16 %v7428, %v7424
        %v8493 = vpack.c.b16 %v7433, %v7429
        %v8494 = vpack.c.b16 %v7434, %v7430
        %v8495 = vpack.c.b16 %v7435, %v7431
        %v8496 = vpack.c.b16 %v7436, %v7432
        %v8497 = vpack.c.b16 %v7441, %v7437
        %v8498 = vpack.c.b16 %v7442, %v7438
        %v8499 = vpack.c.b16 %v7443, %v7439
        %v8500 = vpack.c.b16 %v7444, %v7440
        %v8501 = vpack.c.b16 %v7449, %v7445
        %v8502 = vpack.c.b16 %v7450, %v7446
        %v8503 = vpack.c.b16 %v7451, %v7447
        %v8504 = vpack.c.b16 %v7452, %v7448
        %v8505 = vpack.c.b16 %v7457, %v7453
        %v8506 = vpack.c.b16 %v7458, %v7454
        %v8507 = vpack.c.b16 %v7459, %v7455
        %v8508 = vpack.c.b16 %v7460, %v7456
        %v8509 = vpack.c.b16 %v7465, %v7461
        %v8510 = vpack.c.b16 %v7466, %v7462
        %v8511 = vpack.c.b16 %v7467, %v7463
        %v8512 = vpack.c.b16 %v7468, %v7464
        %v8513 = vpack.c.b16 %v7473, %v7469
        %v8514 = vpack.c.b16 %v7474, %v7470
        %v8515 = vpack.c.b16 %v7475, %v7471
        %v8516 = vpack.c.b16 %v7476, %v7472
        %v8517 = vpack.c.b16 %v7481, %v7477
        %v8518 = vpack.c.b16 %v7482, %v7478
        %v8519 = vpack.c.b16 %v7483, %v7479
        %v8520 = vpack.c.b16 %v7484, %v7480
        %v8521 = vpack.c.b16 %v7489, %v7485
        %v8522 = vpack.c.b16 %v7490, %v7486
        %v8523 = vpack.c.b16 %v7491, %v7487
        %v8524 = vpack.c.b16 %v7492, %v7488
        %v8525 = vpack.c.b16 %v7497, %v7493
        %v8526 = vpack.c.b16 %v7498, %v7494
        %v8527 = vpack.c.b16 %v7499, %v7495
        %v8528 = vpack.c.b16 %v7500, %v7496
        %v8529 = vpack.c.b16 %v7505, %v7501
        %v8530 = vpack.c.b16 %v7506, %v7502
        %v8531 = vpack.c.b16 %v7507, %v7503
        %v8532 = vpack.c.b16 %v7508, %v7504
        %v8533 = vpack.c.b16 %v7513, %v7509
        %v8534 = vpack.c.b16 %v7514, %v7510
        %v8535 = vpack.c.b16 %v7515, %v7511
        %v8536 = vpack.c.b16 %v7516, %v7512
        %v8537 = vpack.c.b16 %v7521, %v7517
        %v8538 = vpack.c.b16 %v7522, %v7518
        %v8539 = vpack.c.b16 %v7523, %v7519
        %v8540 = vpack.c.b16 %v7524, %v7520
        %v8541 = vpack.c.b16 %v7529, %v7525
        %v8542 = vpack.c.b16 %v7530, %v7526
        %v8543 = vpack.c.b16 %v7531, %v7527
        %v8544 = vpack.c.b16 %v7532, %v7528
        %v8545 = vpack.c.b16 %v7537, %v7533
        %v8546 = vpack.c.b16 %v7538, %v7534
        %v8547 = vpack.c.b16 %v7539, %v7535
        %v8548 = vpack.c.b16 %v7540, %v7536
        %v8549 = vpack.c.b16 %v7545, %v7541
        %v8550 = vpack.c.b16 %v7546, %v7542
        %v8551 = vpack.c.b16 %v7547, %v7543
        %v8552 = vpack.c.b16 %v7548, %v7544
        %v8553 = vpack.c.b16 %v7553, %v7549
        %v8554 = vpack.c.b16 %v7554, %v7550
        %v8555 = vpack.c.b16 %v7555, %v7551
        %v8556 = vpack.c.b16 %v7556, %v7552
        %v8557 = vpack.c.b16 %v7561, %v7557
        %v8558 = vpack.c.b16 %v7562, %v7558
        %v8559 = vpack.c.b16 %v7563, %v7559
        %v8560 = vpack.c.b16 %v7564, %v7560
        %v8561 = vpack.c.b16 %v7569, %v7565
        %v8562 = vpack.c.b16 %v7570, %v7566
        %v8563 = vpack.c.b16 %v7571, %v7567
        %v8564 = vpack.c.b16 %v7572, %v7568
        %v8565 = vpack.c.b16 %v7577, %v7573
        %v8566 = vpack.c.b16 %v7578, %v7574
        %v8567 = vpack.c.b16 %v7579, %v7575
        %v8568 = vpack.c.b16 %v7580, %v7576
        %v8569 = vpack.c.b16 %v7585, %v7581
        %v8570 = vpack.c.b16 %v7586, %v7582
        %v8571 = vpack.c.b16 %v7587, %v7583
        %v8572 = vpack.c.b16 %v7588, %v7584
        %v8573 = vpack.c.b16 %v7593, %v7589
        %v8574 = vpack.c.b16 %v7594, %v7590
        %v8575 = vpack.c.b16 %v7595, %v7591
        %v8576 = vpack.c.b16 %v7596, %v7592
        %v8577 = vpack.c.b16 %v7601, %v7597
        %v8578 = vpack.c.b16 %v7602, %v7598
        %v8579 = vpack.c.b16 %v7603, %v7599
        %v8580 = vpack.c.b16 %v7604, %v7600
        %v8581 = vpack.c.b16 %v7609, %v7605
        %v8582 = vpack.c.b16 %v7610, %v7606
        %v8583 = vpack.c.b16 %v7611, %v7607
        %v8584 = vpack.c.b16 %v7612, %v7608
        %v8585 = vpack.c.b16 %v7617, %v7613
        %v8586 = vpack.c.b16 %v7618, %v7614
        %v8587 = vpack.c.b16 %v7619, %v7615
        %v8588 = vpack.c.b16 %v7620, %v7616
        %v8589 = vpack.c.b16 %v7625, %v7621
        %v8590 = vpack.c.b16 %v7626, %v7622
        %v8591 = vpack.c.b16 %v7627, %v7623
        %v8592 = vpack.c.b16 %v7628, %v7624
        %v8593 = vpack.c.b16 %v7633, %v7629
        %v8594 = vpack.c.b16 %v7634, %v7630
        %v8595 = vpack.c.b16 %v7635, %v7631
        %v8596 = vpack.c.b16 %v7636, %v7632
        %v8597 = vpack.c.b16 %v7641, %v7637
        %v8598 = vpack.c.b16 %v7642, %v7638
        %v8599 = vpack.c.b16 %v7643, %v7639
        %v8600 = vpack.c.b16 %v7644, %v7640
        %v8601 = vpack.c.b16 %v7649, %v7645
        %v8602 = vpack.c.b16 %v7650, %v7646
        %v8603 = vpack.c.b16 %v7651, %v7647
        %v8604 = vpack.c.b16 %v7652, %v7648
        %v8605 = vpack.c.b16 %v7657, %v7653
        %v8606 = vpack.c.b16 %v7658, %v7654
        %v8607 = vpack.c.b16 %v7659, %v7655
        %v8608 = vpack.c.b16 %v7660, %v7656
        %v8609 = vpack.c.b16 %v7665, %v7661
        %v8610 = vpack.c.b16 %v7666, %v7662
        %v8611 = vpack.c.b16 %v7667, %v7663
        %v8612 = vpack.c.b16 %v7668, %v7664
        %v8613 = vpack.c.b16 %v7673, %v7669
        %v8614 = vpack.c.b16 %v7674, %v7670
        %v8615 = vpack.c.b16 %v7675, %v7671
        %v8616 = vpack.c.b16 %v7676, %v7672
        %v8617 = vpack.c.b16 %v7681, %v7677
        %v8618 = vpack.c.b16 %v7682, %v7678
        %v8619 = vpack.c.b16 %v7683, %v7679
        %v8620 = vpack.c.b16 %v7684, %v7680
        %v8621 = vpack.c.b16 %v7689, %v7685
        %v8622 = vpack.c.b16 %v7690, %v7686
        %v8623 = vpack.c.b16 %v7691, %v7687
        %v8624 = vpack.c.b16 %v7692, %v7688
        %v8625 = vpack.c.b16 %v7697, %v7693
        %v8626 = vpack.c.b16 %v7698, %v7694
        %v8627 = vpack.c.b16 %v7699, %v7695
        %v8628 = vpack.c.b16 %v7700, %v7696
        %v8629 = vpack.c.b16 %v7705, %v7701
        %v8630 = vpack.c.b16 %v7706, %v7702
        %v8631 = vpack.c.b16 %v7707, %v7703
        %v8632 = vpack.c.b16 %v7708, %v7704
        %v8633 = vpack.c.b16 %v7713, %v7709
        %v8634 = vpack.c.b16 %v7714, %v7710
        %v8635 = vpack.c.b16 %v7715, %v7711
        %v8636 = vpack.c.b16 %v7716, %v7712
        %v8637 = vpack.c.b16 %v7721, %v7717
        %v8638 = vpack.c.b16 %v7722, %v7718
        %v8639 = vpack.c.b16 %v7723, %v7719
        %v8640 = vpack.c.b16 %v7724, %v7720
        %v8641 = vpack.c.b16 %v7729, %v7725
        %v8642 = vpack.c.b16 %v7730, %v7726
        %v8643 = vpack.c.b16 %v7731, %v7727
        %v8644 = vpack.c.b16 %v7732, %v7728
        %v8645 = vpack.c.b16 %v7737, %v7733
        %v8646 = vpack.c.b16 %v7738, %v7734
        %v8647 = vpack.c.b16 %v7739, %v7735
        %v8648 = vpack.c.b16 %v7740, %v7736
        %v8649 = vpack.c.b16 %v7745, %v7741
        %v8650 = vpack.c.b16 %v7746, %v7742
        %v8651 = vpack.c.b16 %v7747, %v7743
        %v8652 = vpack.c.b16 %v7748, %v7744
        %v8653 = vpack.c.b16 %v7753, %v7749
        %v8654 = vpack.c.b16 %v7754, %v7750
        %v8655 = vpack.c.b16 %v7755, %v7751
        %v8656 = vpack.c.b16 %v7756, %v7752
        %v8657 = vpack.c.b16 %v7761, %v7757
        %v8658 = vpack.c.b16 %v7762, %v7758
        %v8659 = vpack.c.b16 %v7763, %v7759
        %v8660 = vpack.c.b16 %v7764, %v7760
        %v8661 = vpack.c.b16 %v7769, %v7765
        %v8662 = vpack.c.b16 %v7770, %v7766
        %v8663 = vpack.c.b16 %v7771, %v7767
        %v8664 = vpack.c.b16 %v7772, %v7768
        %v8665 = vpack.c.b16 %v7777, %v7773
        %v8666 = vpack.c.b16 %v7778, %v7774
        %v8667 = vpack.c.b16 %v7779, %v7775
        %v8668 = vpack.c.b16 %v7780, %v7776
        %v8669 = vpack.c.b16 %v7785, %v7781
        %v8670 = vpack.c.b16 %v7786, %v7782
        %v8671 = vpack.c.b16 %v7787, %v7783
        %v8672 = vpack.c.b16 %v7788, %v7784
        %v8673 = vpack.c.b16 %v7793, %v7789
        %v8674 = vpack.c.b16 %v7794, %v7790
        %v8675 = vpack.c.b16 %v7795, %v7791
        %v8676 = vpack.c.b16 %v7796, %v7792
        %v8677 = vpack.c.b16 %v7801, %v7797
        %v8678 = vpack.c.b16 %v7802, %v7798
        %v8679 = vpack.c.b16 %v7803, %v7799
        %v8680 = vpack.c.b16 %v7804, %v7800
        %v8681 = vpack.c.b16 %v7809, %v7805
        %v8682 = vpack.c.b16 %v7810, %v7806
        %v8683 = vpack.c.b16 %v7811, %v7807
        %v8684 = vpack.c.b16 %v7812, %v7808
        %v8685 = vpack.c.b16 %v7817, %v7813
        %v8686 = vpack.c.b16 %v7818, %v7814
        %v8687 = vpack.c.b16 %v7819, %v7815
        %v8688 = vpack.c.b16 %v7820, %v7816
        %v8689 = vpack.c.b16 %v7825, %v7821
        %v8690 = vpack.c.b16 %v7826, %v7822
        %v8691 = vpack.c.b16 %v7827, %v7823
        %v8692 = vpack.c.b16 %v7828, %v7824
        %v8693 = vpack.c.b16 %v7833, %v7829
        %v8694 = vpack.c.b16 %v7834, %v7830
        %v8695 = vpack.c.b16 %v7835, %v7831
        %v8696 = vpack.c.b16 %v7836, %v7832
        %v8697 = vpack.c.b16 %v7841, %v7837
        %v8698 = vpack.c.b16 %v7842, %v7838
        %v8699 = vpack.c.b16 %v7843, %v7839
        %v8700 = vpack.c.b16 %v7844, %v7840
        %v8701 = vpack.c.b16 %v7849, %v7845
        %v8702 = vpack.c.b16 %v7850, %v7846
        %v8703 = vpack.c.b16 %v7851, %v7847
        %v8704 = vpack.c.b16 %v7852, %v7848
        %v8705 = vpack.c.b16 %v7857, %v7853
        %v8706 = vpack.c.b16 %v7858, %v7854
        %v8707 = vpack.c.b16 %v7859, %v7855
        %v8708 = vpack.c.b16 %v7860, %v7856
        %v8709 = vpack.c.b16 %v7865, %v7861
        %v8710 = vpack.c.b16 %v7866, %v7862
        %v8711 = vpack.c.b16 %v7867, %v7863
        %v8712 = vpack.c.b16 %v7868, %v7864
        %v8713 = vpack.c.b16 %v7873, %v7869
        %v8714 = vpack.c.b16 %v7874, %v7870
        %v8715 = vpack.c.b16 %v7875, %v7871
        %v8716 = vpack.c.b16 %v7876, %v7872
        %v8717 = vpack.c.b16 %v7881, %v7877
        %v8718 = vpack.c.b16 %v7882, %v7878
        %v8719 = vpack.c.b16 %v7883, %v7879
        %v8720 = vpack.c.b16 %v7884, %v7880
        %v8721 = vpack.c.b16 %v7889, %v7885
        %v8722 = vpack.c.b16 %v7890, %v7886
        %v8723 = vpack.c.b16 %v7891, %v7887
        %v8724 = vpack.c.b16 %v7892, %v7888
        %v8725 = vpack.c.b16 %v7897, %v7893
        %v8726 = vpack.c.b16 %v7898, %v7894
        %v8727 = vpack.c.b16 %v7899, %v7895
        %v8728 = vpack.c.b16 %v7900, %v7896
        %v8729 = vpack.c.b16 %v7905, %v7901
        %v8730 = vpack.c.b16 %v7906, %v7902
        %v8731 = vpack.c.b16 %v7907, %v7903
        %v8732 = vpack.c.b16 %v7908, %v7904
        %v8733 = vpack.c.b16 %v7913, %v7909
        %v8734 = vpack.c.b16 %v7914, %v7910
        %v8735 = vpack.c.b16 %v7915, %v7911
        %v8736 = vpack.c.b16 %v7916, %v7912
        %v8737 = vpack.c.b16 %v7921, %v7917
        %v8738 = vpack.c.b16 %v7922, %v7918
        %v8739 = vpack.c.b16 %v7923, %v7919
        %v8740 = vpack.c.b16 %v7924, %v7920
        %v8741 = vpack.c.b16 %v7929, %v7925
        %v8742 = vpack.c.b16 %v7930, %v7926
        %v8743 = vpack.c.b16 %v7931, %v7927
        %v8744 = vpack.c.b16 %v7932, %v7928
        %v8745 = vpack.c.b16 %v7937, %v7933
        %v8746 = vpack.c.b16 %v7938, %v7934
        %v8747 = vpack.c.b16 %v7939, %v7935
        %v8748 = vpack.c.b16 %v7940, %v7936
        %v8749 = vpack.c.b16 %v7945, %v7941
        %v8750 = vpack.c.b16 %v7946, %v7942
        %v8751 = vpack.c.b16 %v7947, %v7943
        %v8752 = vpack.c.b16 %v7948, %v7944
        %v8753 = vpack.c.b16 %v7953, %v7949
        %v8754 = vpack.c.b16 %v7954, %v7950
        %v8755 = vpack.c.b16 %v7955, %v7951
        %v8756 = vpack.c.b16 %v7956, %v7952
        %v8757 = vpack.c.b16 %v7961, %v7957
        %v8758 = vpack.c.b16 %v7962, %v7958
        %v8759 = vpack.c.b16 %v7963, %v7959
        %v8760 = vpack.c.b16 %v7964, %v7960
        %v8761 = vpack.c.b16 %v7969, %v7965
        %v8762 = vpack.c.b16 %v7970, %v7966
        %v8763 = vpack.c.b16 %v7971, %v7967
        %v8764 = vpack.c.b16 %v7972, %v7968
        %v8765 = vpack.c.b16 %v7977, %v7973
        %v8766 = vpack.c.b16 %v7978, %v7974
        %v8767 = vpack.c.b16 %v7979, %v7975
        %v8768 = vpack.c.b16 %v7980, %v7976
        %v8769 = vpack.c.b16 %v7985, %v7981
        %v8770 = vpack.c.b16 %v7986, %v7982
        %v8771 = vpack.c.b16 %v7987, %v7983
        %v8772 = vpack.c.b16 %v7988, %v7984
        %v9558 = vlaneseq
        %v9559 = vshrl.u32 %v9558, 7
        %v9560 = vsub.s32 0, %v9559
        %v9561 = vrot.slane %v5636, %v9560
        %v9562 = vlaneseq
        %v9563 = vshrl.u32 %v9562, 7
        %v9564 = vsub.s32 1, %v9563
        %v9565 = vrot.slane %v5636, %v9564
        %v9566 = vlaneseq
        %v9567 = vshrl.u32 %v9566, 7
        %v9568 = vsub.s32 2, %v9567
        %v9569 = vrot.slane %v5636, %v9568
        %v9570 = vlaneseq
        %v9571 = vshrl.u32 %v9570, 7
        %v9572 = vsub.s32 3, %v9571
        %v9573 = vrot.slane %v5636, %v9572
        %v9579 = vsel %vm2519, %v4851, 0
        %9581 = vmatprep.subr.bf16.mxu0 %v7990
        %9582 = vmatpush1.bf16.msra.mxu0 %v7989
        %9583 = vmatprep.subr.bf16.mxu0 %v7994
        %9584 = vmatpush1.bf16.msra.mxu0 %v7993
        %9585 = vmatprep.subr.bf16.mxu0 %v7998
        %9586 = vmatpush1.bf16.msra.mxu0 %v7997
        %9587 = vmatprep.subr.bf16.mxu0 %v8002
        %9588 = vmatpush1.bf16.msra.mxu0 %v8001
        %9589 = vmatprep.subr.bf16.mxu0 %v8006
        %9590 = vmatpush1.bf16.msra.mxu0 %v8005
        %9591 = vmatprep.subr.bf16.mxu0 %v8010
        %9592 = vmatpush1.bf16.msra.mxu0 %v8009
        %9593 = vmatprep.subr.bf16.mxu0 %v8014
        %9594 = vmatpush1.bf16.msra.mxu0 %v8013
        %9595 = vmatprep.subr.bf16.mxu0 %v8018
        %9596 = vmatpush1.bf16.msra.mxu0 %v8017
        %9597 = vmatprep.subr.bf16.mxu0 %v8022
        %9598 = vmatpush1.bf16.msra.mxu0 %v8021
        %9599 = vmatprep.subr.bf16.mxu0 %v8026
        %9600 = vmatpush1.bf16.msra.mxu0 %v8025
        %9601 = vmatprep.subr.bf16.mxu0 %v8030
        %9602 = vmatpush1.bf16.msra.mxu0 %v8029
        %9603 = vmatprep.subr.bf16.mxu0 %v8034
        %9604 = vmatpush1.bf16.msra.mxu0 %v8033
        %9605 = vmatprep.subr.bf16.mxu0 %v8038
        %9606 = vmatpush1.bf16.msra.mxu0 %v8037
        %9607 = vmatprep.subr.bf16.mxu0 %v8042
        %9608 = vmatpush1.bf16.msra.mxu0 %v8041
        %9609 = vmatprep.subr.bf16.mxu0 %v8046
        %9610 = vmatpush1.bf16.msra.mxu0 %v8045
        %9611 = vmatprep.subr.bf16.mxu0 %v8050
        %9612 = vmatpush1.bf16.msra.mxu0 %v8049
        %9613 = vmatprep.mubr.bf16.mxu0 %v4828
        %9614 = vmatmul.mubr.bf16.gmra.mrb[0].mxu0 %v4827
        %v9615 = vpop.f32.mrb[0].mxu0
        %v9616 = vadd.f32 %v9561, %v9615
        %v9617 = vpop.f32.mrb[0].mxu0
        %v9618 = vadd.f32 %v9565, %v9617
        %v9619 = vpop.f32.mrb[0].mxu0
        %v9620 = vpop.f32.mrb[0].mxu0
        %9621 = vdwg.mxu0
        %9622 = vmatprep.subr.bf16.mxu0 %v8054
        %9623 = vmatpush1.bf16.msra.mxu0 %v8053
        %9624 = vmatprep.subr.bf16.mxu0 %v8058
        %9625 = vmatpush1.bf16.msra.mxu0 %v8057
        %9626 = vmatprep.subr.bf16.mxu0 %v8062
        %9627 = vmatpush1.bf16.msra.mxu0 %v8061
        %9628 = vmatprep.subr.bf16.mxu0 %v8066
        %9629 = vmatpush1.bf16.msra.mxu0 %v8065
        %9630 = vmatprep.subr.bf16.mxu0 %v8070
        %9631 = vmatpush1.bf16.msra.mxu0 %v8069
        %9632 = vmatprep.subr.bf16.mxu0 %v8074
        %9633 = vmatpush1.bf16.msra.mxu0 %v8073
        %9634 = vmatprep.subr.bf16.mxu0 %v8078
        %9635 = vmatpush1.bf16.msra.mxu0 %v8077
        %9636 = vmatprep.subr.bf16.mxu0 %v8082
        %9637 = vmatpush1.bf16.msra.mxu0 %v8081
        %9638 = vmatprep.subr.bf16.mxu0 %v8086
        %9639 = vmatpush1.bf16.msra.mxu0 %v8085
        %9640 = vmatprep.subr.bf16.mxu0 %v8090
        %9641 = vmatpush1.bf16.msra.mxu0 %v8089
        %9642 = vmatprep.subr.bf16.mxu0 %v8094
        %9643 = vmatpush1.bf16.msra.mxu0 %v8093
        %9644 = vmatprep.subr.bf16.mxu0 %v8098
        %9645 = vmatpush1.bf16.msra.mxu0 %v8097
        %9646 = vmatprep.subr.bf16.mxu0 %v8102
        %9647 = vmatpush1.bf16.msra.mxu0 %v8101
        %9648 = vmatprep.subr.bf16.mxu0 %v8106
        %9649 = vmatpush1.bf16.msra.mxu0 %v8105
        %9650 = vmatprep.subr.bf16.mxu0 %v8110
        %9651 = vmatpush1.bf16.msra.mxu0 %v8109
        %9652 = vmatprep.subr.bf16.mxu0 %v8114
        %9653 = vmatpush1.bf16.msra.mxu0 %v8113
        %9654 = vmatprep.mubr.bf16.mxu0 %v4830
        %9655 = vmatmul.mubr.bf16.gmra.mrb[0].mxu0 %v4829
        %v9656 = vpop.f32.mrb[0].mxu0
        %v9657 = vadd.f32 %v9616, %v9656
        %v9658 = vpop.f32.mrb[0].mxu0
        %v9659 = vadd.f32 %v9618, %v9658
        %v9660 = vpop.f32.mrb[0].mxu0
        %v9661 = vpop.f32.mrb[0].mxu0
        %9662 = vdwg.mxu0
        %9663 = vmatprep.subr.bf16.mxu0 %v8118
        %9664 = vmatpush1.bf16.msra.mxu0 %v8117
        %9665 = vmatprep.subr.bf16.mxu0 %v8122
        %9666 = vmatpush1.bf16.msra.mxu0 %v8121
        %9667 = vmatprep.subr.bf16.mxu0 %v8126
        %9668 = vmatpush1.bf16.msra.mxu0 %v8125
        %9669 = vmatprep.subr.bf16.mxu0 %v8130
        %9670 = vmatpush1.bf16.msra.mxu0 %v8129
        %9671 = vmatprep.subr.bf16.mxu0 %v8134
        %9672 = vmatpush1.bf16.msra.mxu0 %v8133
        %9673 = vmatprep.subr.bf16.mxu0 %v8138
        %9674 = vmatpush1.bf16.msra.mxu0 %v8137
        %9675 = vmatprep.subr.bf16.mxu0 %v8142
        %9676 = vmatpush1.bf16.msra.mxu0 %v8141
        %9677 = vmatprep.subr.bf16.mxu0 %v8146
        %9678 = vmatpush1.bf16.msra.mxu0 %v8145
        %9679 = vmatprep.subr.bf16.mxu0 %v8150
        %9680 = vmatpush1.bf16.msra.mxu0 %v8149
        %9681 = vmatprep.subr.bf16.mxu0 %v8154
        %9682 = vmatpush1.bf16.msra.mxu0 %v8153
        %9683 = vmatprep.subr.bf16.mxu0 %v8158
        %9684 = vmatpush1.bf16.msra.mxu0 %v8157
        %9685 = vmatprep.subr.bf16.mxu0 %v8162
        %9686 = vmatpush1.bf16.msra.mxu0 %v8161
        %9687 = vmatprep.subr.bf16.mxu0 %v8166
        %9688 = vmatpush1.bf16.msra.mxu0 %v8165
        %9689 = vmatprep.subr.bf16.mxu0 %v8170
        %9690 = vmatpush1.bf16.msra.mxu0 %v8169
        %9691 = vmatprep.subr.bf16.mxu0 %v8174
        %9692 = vmatpush1.bf16.msra.mxu0 %v8173
        %9693 = vmatprep.subr.bf16.mxu0 %v8178
        %9694 = vmatpush1.bf16.msra.mxu0 %v8177
        %9695 = vmatprep.mubr.bf16.mxu0 %v4832
        %9696 = vmatmul.mubr.bf16.gmra.mrb[0].mxu0 %v4831
        %v9697 = vpop.f32.mrb[0].mxu0
        %v9698 = vadd.f32 %v9657, %v9697
        %v9699 = vpop.f32.mrb[0].mxu0
        %v9700 = vadd.f32 %v9659, %v9699
        %v9701 = vpop.f32.mrb[0].mxu0
        %v9702 = vpop.f32.mrb[0].mxu0
        %9703 = vdwg.mxu0
        %9704 = vmatprep.subr.bf16.mxu0 %v8182
        %9705 = vmatpush1.bf16.msra.mxu0 %v8181
        %9706 = vmatprep.subr.bf16.mxu0 %v8186
        %9707 = vmatpush1.bf16.msra.mxu0 %v8185
        %9708 = vmatprep.subr.bf16.mxu0 %v8190
        %9709 = vmatpush1.bf16.msra.mxu0 %v8189
        %9710 = vmatprep.subr.bf16.mxu0 %v8194
        %9711 = vmatpush1.bf16.msra.mxu0 %v8193
        %9712 = vmatprep.subr.bf16.mxu0 %v8198
        %9713 = vmatpush1.bf16.msra.mxu0 %v8197
        %9714 = vmatprep.subr.bf16.mxu0 %v8202
        %9715 = vmatpush1.bf16.msra.mxu0 %v8201
        %9716 = vmatprep.subr.bf16.mxu0 %v8206
        %9717 = vmatpush1.bf16.msra.mxu0 %v8205
        %9718 = vmatprep.subr.bf16.mxu0 %v8210
        %9719 = vmatpush1.bf16.msra.mxu0 %v8209
        %9720 = vmatprep.subr.bf16.mxu0 %v8214
        %9721 = vmatpush1.bf16.msra.mxu0 %v8213
        %9722 = vmatprep.subr.bf16.mxu0 %v8218
        %9723 = vmatpush1.bf16.msra.mxu0 %v8217
        %9724 = vmatprep.subr.bf16.mxu0 %v8222
        %9725 = vmatpush1.bf16.msra.mxu0 %v8221
        %9726 = vmatprep.subr.bf16.mxu0 %v8226
        %9727 = vmatpush1.bf16.msra.mxu0 %v8225
        %9728 = vmatprep.subr.bf16.mxu0 %v8230
        %9729 = vmatpush1.bf16.msra.mxu0 %v8229
        %9730 = vmatprep.subr.bf16.mxu0 %v8234
        %9731 = vmatpush1.bf16.msra.mxu0 %v8233
        %9732 = vmatprep.subr.bf16.mxu0 %v8238
        %9733 = vmatpush1.bf16.msra.mxu0 %v8237
        %9734 = vmatprep.subr.bf16.mxu0 %v8242
        %9735 = vmatpush1.bf16.msra.mxu0 %v8241
        %9736 = vmatprep.mubr.bf16.mxu0 %v4834
        %9737 = vmatmul.mubr.bf16.gmra.mrb[0].mxu0 %v4833
        %v9738 = vpop.f32.mrb[0].mxu0
        %v9739 = vadd.f32 %v9698, %v9738
        %v9740 = vpop.f32.mrb[0].mxu0
        %v9741 = vadd.f32 %v9700, %v9740
        %v9742 = vpop.f32.mrb[0].mxu0
        %v9743 = vpop.f32.mrb[0].mxu0
        %9744 = vdwg.mxu0
        %9745 = vmatprep.subr.bf16.mxu0 %v8246
        %9746 = vmatpush1.bf16.msra.mxu0 %v8245
        %9747 = vmatprep.subr.bf16.mxu0 %v8250
        %9748 = vmatpush1.bf16.msra.mxu0 %v8249
        %9749 = vmatprep.subr.bf16.mxu0 %v8254
        %9750 = vmatpush1.bf16.msra.mxu0 %v8253
        %9751 = vmatprep.subr.bf16.mxu0 %v8258
        %9752 = vmatpush1.bf16.msra.mxu0 %v8257
        %9753 = vmatprep.subr.bf16.mxu0 %v8262
        %9754 = vmatpush1.bf16.msra.mxu0 %v8261
        %9755 = vmatprep.subr.bf16.mxu0 %v8266
        %9756 = vmatpush1.bf16.msra.mxu0 %v8265
        %9757 = vmatprep.subr.bf16.mxu0 %v8270
        %9758 = vmatpush1.bf16.msra.mxu0 %v8269
        %9759 = vmatprep.subr.bf16.mxu0 %v8274
        %9760 = vmatpush1.bf16.msra.mxu0 %v8273
        %9761 = vmatprep.subr.bf16.mxu0 %v8278
        %9762 = vmatpush1.bf16.msra.mxu0 %v8277
        %9763 = vmatprep.subr.bf16.mxu0 %v8282
        %9764 = vmatpush1.bf16.msra.mxu0 %v8281
        %9765 = vmatprep.subr.bf16.mxu0 %v8286
        %9766 = vmatpush1.bf16.msra.mxu0 %v8285
        %9767 = vmatprep.subr.bf16.mxu0 %v8290
        %9768 = vmatpush1.bf16.msra.mxu0 %v8289
        %9769 = vmatprep.subr.bf16.mxu0 %v8294
        %9770 = vmatpush1.bf16.msra.mxu0 %v8293
        %9771 = vmatprep.subr.bf16.mxu0 %v8298
        %9772 = vmatpush1.bf16.msra.mxu0 %v8297
        %9773 = vmatprep.subr.bf16.mxu0 %v8302
        %9774 = vmatpush1.bf16.msra.mxu0 %v8301
        %9775 = vmatprep.subr.bf16.mxu0 %v8306
        %9776 = vmatpush1.bf16.msra.mxu0 %v8305
        %9777 = vmatprep.mubr.bf16.mxu0 %v4836
        %9778 = vmatmul.mubr.bf16.gmra.mrb[0].mxu0 %v4835
        %v9779 = vpop.f32.mrb[0].mxu0
        %v9780 = vadd.f32 %v9739, %v9779
        %v9781 = vpop.f32.mrb[0].mxu0
        %v9782 = vadd.f32 %v9741, %v9781
        %v9783 = vpop.f32.mrb[0].mxu0
        %v9784 = vpop.f32.mrb[0].mxu0
        %9785 = vdwg.mxu0
        %9786 = vmatprep.subr.bf16.mxu0 %v8310
        %9787 = vmatpush1.bf16.msra.mxu0 %v8309
        %9788 = vmatprep.subr.bf16.mxu0 %v8314
        %9789 = vmatpush1.bf16.msra.mxu0 %v8313
        %9790 = vmatprep.subr.bf16.mxu0 %v8318
        %9791 = vmatpush1.bf16.msra.mxu0 %v8317
        %9792 = vmatprep.subr.bf16.mxu0 %v8322
        %9793 = vmatpush1.bf16.msra.mxu0 %v8321
        %9794 = vmatprep.subr.bf16.mxu0 %v8326
        %9795 = vmatpush1.bf16.msra.mxu0 %v8325
        %9796 = vmatprep.subr.bf16.mxu0 %v8330
        %9797 = vmatpush1.bf16.msra.mxu0 %v8329
        %9798 = vmatprep.subr.bf16.mxu0 %v8334
        %9799 = vmatpush1.bf16.msra.mxu0 %v8333
        %9800 = vmatprep.subr.bf16.mxu0 %v8338
        %9801 = vmatpush1.bf16.msra.mxu0 %v8337
        %9802 = vmatprep.subr.bf16.mxu0 %v8342
        %9803 = vmatpush1.bf16.msra.mxu0 %v8341
        %9804 = vmatprep.subr.bf16.mxu0 %v8346
        %9805 = vmatpush1.bf16.msra.mxu0 %v8345
        %9806 = vmatprep.subr.bf16.mxu0 %v8350
        %9807 = vmatpush1.bf16.msra.mxu0 %v8349
        %9808 = vmatprep.subr.bf16.mxu0 %v8354
        %9809 = vmatpush1.bf16.msra.mxu0 %v8353
        %9810 = vmatprep.subr.bf16.mxu0 %v8358
        %9811 = vmatpush1.bf16.msra.mxu0 %v8357
        %9812 = vmatprep.subr.bf16.mxu0 %v8362
        %9813 = vmatpush1.bf16.msra.mxu0 %v8361
        %9814 = vmatprep.subr.bf16.mxu0 %v8366
        %9815 = vmatpush1.bf16.msra.mxu0 %v8365
        %9816 = vmatprep.subr.bf16.mxu0 %v8370
        %9817 = vmatpush1.bf16.msra.mxu0 %v8369
        %9818 = vmatprep.mubr.bf16.mxu0 %v4838
        %9819 = vmatmul.mubr.bf16.gmra.mrb[0].mxu0 %v4837
        %v9820 = vpop.f32.mrb[0].mxu0
        %v9821 = vadd.f32 %v9780, %v9820
        %v9822 = vpop.f32.mrb[0].mxu0
        %v9823 = vadd.f32 %v9782, %v9822
        %v9824 = vpop.f32.mrb[0].mxu0
        %v9825 = vpop.f32.mrb[0].mxu0
        %9826 = vdwg.mxu0
        %9827 = vmatprep.subr.bf16.mxu0 %v8374
        %9828 = vmatpush1.bf16.msra.mxu0 %v8373
        %9829 = vmatprep.subr.bf16.mxu0 %v8378
        %9830 = vmatpush1.bf16.msra.mxu0 %v8377
        %9831 = vmatprep.subr.bf16.mxu0 %v8382
        %9832 = vmatpush1.bf16.msra.mxu0 %v8381
        %9833 = vmatprep.subr.bf16.mxu0 %v8386
        %9834 = vmatpush1.bf16.msra.mxu0 %v8385
        %9835 = vmatprep.subr.bf16.mxu0 %v8390
        %9836 = vmatpush1.bf16.msra.mxu0 %v8389
        %9837 = vmatprep.subr.bf16.mxu0 %v8394
        %9838 = vmatpush1.bf16.msra.mxu0 %v8393
        %9839 = vmatprep.subr.bf16.mxu0 %v8398
        %9840 = vmatpush1.bf16.msra.mxu0 %v8397
        %9841 = vmatprep.subr.bf16.mxu0 %v8402
        %9842 = vmatpush1.bf16.msra.mxu0 %v8401
        %9843 = vmatprep.subr.bf16.mxu0 %v8406
        %9844 = vmatpush1.bf16.msra.mxu0 %v8405
        %9845 = vmatprep.subr.bf16.mxu0 %v8410
        %9846 = vmatpush1.bf16.msra.mxu0 %v8409
        %9847 = vmatprep.subr.bf16.mxu0 %v8414
        %9848 = vmatpush1.bf16.msra.mxu0 %v8413
        %9849 = vmatprep.subr.bf16.mxu0 %v8418
        %9850 = vmatpush1.bf16.msra.mxu0 %v8417
        %9851 = vmatprep.subr.bf16.mxu0 %v8422
        %9852 = vmatpush1.bf16.msra.mxu0 %v8421
        %9853 = vmatprep.subr.bf16.mxu0 %v8426
        %9854 = vmatpush1.bf16.msra.mxu0 %v8425
        %9855 = vmatprep.subr.bf16.mxu0 %v8430
        %9856 = vmatpush1.bf16.msra.mxu0 %v8429
        %9857 = vmatprep.subr.bf16.mxu0 %v8434
        %9858 = vmatpush1.bf16.msra.mxu0 %v8433
        %9859 = vmatprep.mubr.bf16.mxu0 %v4840
        %9860 = vmatmul.mubr.bf16.gmra.mrb[0].mxu0 %v4839
        %v9861 = vpop.f32.mrb[0].mxu0
        %v9862 = vadd.f32 %v9821, %v9861
        %v9863 = vpop.f32.mrb[0].mxu0
        %v9864 = vadd.f32 %v9823, %v9863
        %v9865 = vpop.f32.mrb[0].mxu0
        %v9866 = vpop.f32.mrb[0].mxu0
        %9867 = vdwg.mxu0
        %9868 = vmatprep.subr.bf16.mxu0 %v8438
        %9869 = vmatpush1.bf16.msra.mxu0 %v8437
        %9870 = vmatprep.subr.bf16.mxu0 %v8442
        %9871 = vmatpush1.bf16.msra.mxu0 %v8441
        %9872 = vmatprep.subr.bf16.mxu0 %v8446
        %9873 = vmatpush1.bf16.msra.mxu0 %v8445
        %9874 = vmatprep.subr.bf16.mxu0 %v8450
        %9875 = vmatpush1.bf16.msra.mxu0 %v8449
        %9876 = vmatprep.subr.bf16.mxu0 %v8454
        %9877 = vmatpush1.bf16.msra.mxu0 %v8453
        %9878 = vmatprep.subr.bf16.mxu0 %v8458
        %9879 = vmatpush1.bf16.msra.mxu0 %v8457
        %9880 = vmatprep.subr.bf16.mxu0 %v8462
        %9881 = vmatpush1.bf16.msra.mxu0 %v8461
        %9882 = vmatprep.subr.bf16.mxu0 %v8466
        %9883 = vmatpush1.bf16.msra.mxu0 %v8465
        %9884 = vmatprep.subr.bf16.mxu0 %v8470
        %9885 = vmatpush1.bf16.msra.mxu0 %v8469
        %9886 = vmatprep.subr.bf16.mxu0 %v8474
        %9887 = vmatpush1.bf16.msra.mxu0 %v8473
        %9888 = vmatprep.subr.bf16.mxu0 %v8478
        %9889 = vmatpush1.bf16.msra.mxu0 %v8477
        %9890 = vmatprep.subr.bf16.mxu0 %v8482
        %9891 = vmatpush1.bf16.msra.mxu0 %v8481
        %9892 = vmatprep.subr.bf16.mxu0 %v8486
        %9893 = vmatpush1.bf16.msra.mxu0 %v8485
        %9894 = vmatprep.subr.bf16.mxu0 %v8490
        %9895 = vmatpush1.bf16.msra.mxu0 %v8489
        %9896 = vmatprep.subr.bf16.mxu0 %v8494
        %9897 = vmatpush1.bf16.msra.mxu0 %v8493
        %9898 = vmatprep.subr.bf16.mxu0 %v8498
        %9899 = vmatpush1.bf16.msra.mxu0 %v8497
        %9900 = vmatprep.mubr.bf16.mxu0 %v4842
        %9901 = vmatmul.mubr.bf16.gmra.mrb[0].mxu0 %v4841
        %v9902 = vpop.f32.mrb[0].mxu0
        %v9903 = vadd.f32 %v9862, %v9902
        %v9904 = vpop.f32.mrb[0].mxu0
        %v9905 = vadd.f32 %v9864, %v9904
        %v9906 = vpop.f32.mrb[0].mxu0
        %v9907 = vpop.f32.mrb[0].mxu0
        %9908 = vdwg.mxu0
        %9909 = vmatprep.subr.bf16.mxu0 %v8502
        %9910 = vmatpush1.bf16.msra.mxu0 %v8501
        %9911 = vmatprep.subr.bf16.mxu0 %v8506
        %9912 = vmatpush1.bf16.msra.mxu0 %v8505
        %9913 = vmatprep.subr.bf16.mxu0 %v8510
        %9914 = vmatpush1.bf16.msra.mxu0 %v8509
        %9915 = vmatprep.subr.bf16.mxu0 %v8514
        %9916 = vmatpush1.bf16.msra.mxu0 %v8513
        %9917 = vmatprep.subr.bf16.mxu0 %v8518
        %9918 = vmatpush1.bf16.msra.mxu0 %v8517
        %9919 = vmatprep.subr.bf16.mxu0 %v8522
        %9920 = vmatpush1.bf16.msra.mxu0 %v8521
        %9921 = vmatprep.subr.bf16.mxu0 %v8526
        %9922 = vmatpush1.bf16.msra.mxu0 %v8525
        %9923 = vmatprep.subr.bf16.mxu0 %v8530
        %9924 = vmatpush1.bf16.msra.mxu0 %v8529
        %9925 = vmatprep.subr.bf16.mxu0 %v8534
        %9926 = vmatpush1.bf16.msra.mxu0 %v8533
        %9927 = vmatprep.subr.bf16.mxu0 %v8538
        %9928 = vmatpush1.bf16.msra.mxu0 %v8537
        %9929 = vmatprep.subr.bf16.mxu0 %v8542
        %9930 = vmatpush1.bf16.msra.mxu0 %v8541
        %9931 = vmatprep.subr.bf16.mxu0 %v8546
        %9932 = vmatpush1.bf16.msra.mxu0 %v8545
        %9933 = vmatprep.subr.bf16.mxu0 %v8550
        %9934 = vmatpush1.bf16.msra.mxu0 %v8549
        %9935 = vmatprep.subr.bf16.mxu0 %v8554
        %9936 = vmatpush1.bf16.msra.mxu0 %v8553
        %9937 = vmatprep.subr.bf16.mxu0 %v8558
        %9938 = vmatpush1.bf16.msra.mxu0 %v8557
        %9939 = vmatprep.subr.bf16.mxu0 %v8562
        %9940 = vmatpush1.bf16.msra.mxu0 %v8561
        %9941 = vmatprep.mubr.bf16.mxu0 %v4844
        %9942 = vmatmul.mubr.bf16.gmra.mrb[0].mxu0 %v4843
        %v9943 = vpop.f32.mrb[0].mxu0
        %v9944 = vadd.f32 %v9903, %v9943
        %v9945 = vpop.f32.mrb[0].mxu0
        %v9946 = vadd.f32 %v9905, %v9945
        %v9947 = vpop.f32.mrb[0].mxu0
        %v9948 = vpop.f32.mrb[0].mxu0
        %9949 = vdwg.mxu0
        %9950 = vmatprep.subr.bf16.mxu0 %v8566
        %9951 = vmatpush1.bf16.msra.mxu0 %v8565
        %9952 = vmatprep.subr.bf16.mxu0 %v8570
        %9953 = vmatpush1.bf16.msra.mxu0 %v8569
        %9954 = vmatprep.subr.bf16.mxu0 %v8574
        %9955 = vmatpush1.bf16.msra.mxu0 %v8573
        %9956 = vmatprep.subr.bf16.mxu0 %v8578
        %9957 = vmatpush1.bf16.msra.mxu0 %v8577
        %9958 = vmatprep.subr.bf16.mxu0 %v8582
        %9959 = vmatpush1.bf16.msra.mxu0 %v8581
        %9960 = vmatprep.subr.bf16.mxu0 %v8586
        %9961 = vmatpush1.bf16.msra.mxu0 %v8585
        %9962 = vmatprep.subr.bf16.mxu0 %v8590
        %9963 = vmatpush1.bf16.msra.mxu0 %v8589
        %9964 = vmatprep.subr.bf16.mxu0 %v8594
        %9965 = vmatpush1.bf16.msra.mxu0 %v8593
        %9966 = vmatprep.subr.bf16.mxu0 %v8598
        %9967 = vmatpush1.bf16.msra.mxu0 %v8597
        %9968 = vmatprep.subr.bf16.mxu0 %v8602
        %9969 = vmatpush1.bf16.msra.mxu0 %v8601
        %9970 = vmatprep.subr.bf16.mxu0 %v8606
        %9971 = vmatpush1.bf16.msra.mxu0 %v8605
        %9972 = vmatprep.subr.bf16.mxu0 %v8610
        %9973 = vmatpush1.bf16.msra.mxu0 %v8609
        %9974 = vmatprep.subr.bf16.mxu0 %v8614
        %9975 = vmatpush1.bf16.msra.mxu0 %v8613
        %9976 = vmatprep.subr.bf16.mxu0 %v8618
        %9977 = vmatpush1.bf16.msra.mxu0 %v8617
        %9978 = vmatprep.subr.bf16.mxu0 %v8622
        %9979 = vmatpush1.bf16.msra.mxu0 %v8621
        %9980 = vmatprep.subr.bf16.mxu0 %v8626
        %9981 = vmatpush1.bf16.msra.mxu0 %v8625
        %9982 = vmatprep.mubr.bf16.mxu0 %v4846
        %9983 = vmatmul.mubr.bf16.gmra.mrb[0].mxu0 %v4845
        %v9984 = vpop.f32.mrb[0].mxu0
        %v9985 = vadd.f32 %v9944, %v9984
        %v9986 = vpop.f32.mrb[0].mxu0
        %v9987 = vadd.f32 %v9946, %v9986
        %v9988 = vpop.f32.mrb[0].mxu0
        %v9989 = vpop.f32.mrb[0].mxu0
        %9990 = vdwg.mxu0
        %9991 = vmatprep.subr.bf16.mxu0 %v8630
        %9992 = vmatpush1.bf16.msra.mxu0 %v8629
        %9993 = vmatprep.subr.bf16.mxu0 %v8634
        %9994 = vmatpush1.bf16.msra.mxu0 %v8633
        %9995 = vmatprep.subr.bf16.mxu0 %v8638
        %9996 = vmatpush1.bf16.msra.mxu0 %v8637
        %9997 = vmatprep.subr.bf16.mxu0 %v8642
        %9998 = vmatpush1.bf16.msra.mxu0 %v8641
        %9999 = vmatprep.subr.bf16.mxu0 %v8646
        %10000 = vmatpush1.bf16.msra.mxu0 %v8645
        %10001 = vmatprep.subr.bf16.mxu0 %v8650
        %10002 = vmatpush1.bf16.msra.mxu0 %v8649
        %10003 = vmatprep.subr.bf16.mxu0 %v8654
        %10004 = vmatpush1.bf16.msra.mxu0 %v8653
        %10005 = vmatprep.subr.bf16.mxu0 %v8658
        %10006 = vmatpush1.bf16.msra.mxu0 %v8657
        %10007 = vmatprep.subr.bf16.mxu0 %v8662
        %10008 = vmatpush1.bf16.msra.mxu0 %v8661
        %10009 = vmatprep.subr.bf16.mxu0 %v8666
        %10010 = vmatpush1.bf16.msra.mxu0 %v8665
        %10011 = vmatprep.subr.bf16.mxu0 %v8670
        %10012 = vmatpush1.bf16.msra.mxu0 %v8669
        %10013 = vmatprep.subr.bf16.mxu0 %v8674
        %10014 = vmatpush1.bf16.msra.mxu0 %v8673
        %10015 = vmatprep.subr.bf16.mxu0 %v8678
        %10016 = vmatpush1.bf16.msra.mxu0 %v8677
        %10017 = vmatprep.subr.bf16.mxu0 %v8682
        %10018 = vmatpush1.bf16.msra.mxu0 %v8681
        %10019 = vmatprep.subr.bf16.mxu0 %v8686
        %10020 = vmatpush1.bf16.msra.mxu0 %v8685
        %10021 = vmatprep.subr.bf16.mxu0 %v8690
        %10022 = vmatpush1.bf16.msra.mxu0 %v8689
        %10023 = vmatprep.mubr.bf16.mxu0 %v4848
        %10024 = vmatmul.mubr.bf16.gmra.mrb[0].mxu0 %v4847
        %v10025 = vpop.f32.mrb[0].mxu0
        %v10026 = vadd.f32 %v9985, %v10025
        %v10027 = vpop.f32.mrb[0].mxu0
        %v10028 = vadd.f32 %v9987, %v10027
        %v10029 = vpop.f32.mrb[0].mxu0
        %v10030 = vpop.f32.mrb[0].mxu0
        %10031 = vdwg.mxu0
        %10032 = vmatprep.subr.bf16.mxu0 %v8694
        %10033 = vmatpush1.bf16.msra.mxu0 %v8693
        %10034 = vmatprep.subr.bf16.mxu0 %v8698
        %10035 = vmatpush1.bf16.msra.mxu0 %v8697
        %10036 = vmatprep.subr.bf16.mxu0 %v8702
        %10037 = vmatpush1.bf16.msra.mxu0 %v8701
        %10038 = vmatprep.subr.bf16.mxu0 %v8706
        %10039 = vmatpush1.bf16.msra.mxu0 %v8705
        %10040 = vmatprep.subr.bf16.mxu0 %v8710
        %10041 = vmatpush1.bf16.msra.mxu0 %v8709
        %10042 = vmatprep.subr.bf16.mxu0 %v8714
        %10043 = vmatpush1.bf16.msra.mxu0 %v8713
        %10044 = vmatprep.subr.bf16.mxu0 %v8718
        %10045 = vmatpush1.bf16.msra.mxu0 %v8717
        %10046 = vmatprep.subr.bf16.mxu0 %v8722
        %10047 = vmatpush1.bf16.msra.mxu0 %v8721
        %10048 = vmatprep.subr.bf16.mxu0 %v8726
        %10049 = vmatpush1.bf16.msra.mxu0 %v8725
        %10050 = vmatprep.subr.bf16.mxu0 %v8730
        %10051 = vmatpush1.bf16.msra.mxu0 %v8729
        %10052 = vmatprep.subr.bf16.mxu0 %v8734
        %10053 = vmatpush1.bf16.msra.mxu0 %v8733
        %10054 = vmatprep.subr.bf16.mxu0 %v8738
        %10055 = vmatpush1.bf16.msra.mxu0 %v8737
        %10056 = vmatprep.subr.bf16.mxu0 %v8742
        %10057 = vmatpush1.bf16.msra.mxu0 %v8741
        %10058 = vmatprep.subr.bf16.mxu0 %v8746
        %10059 = vmatpush1.bf16.msra.mxu0 %v8745
        %10060 = vmatprep.subr.bf16.mxu0 %v8750
        %10061 = vmatpush1.bf16.msra.mxu0 %v8749
        %10062 = vmatprep.subr.bf16.mxu0 %v8754
        %10063 = vmatpush1.bf16.msra.mxu0 %v8753
        %10064 = vmatprep.mubr.bf16.mxu0 %v4850
        %10065 = vmatmul.mubr.bf16.gmra.mrb[0].mxu0 %v4849
        %v10066 = vpop.f32.mrb[0].mxu0
        %v10067 = vadd.f32 %v10026, %v10066
        %v10068 = vpop.f32.mrb[0].mxu0
        %v10069 = vadd.f32 %v10028, %v10068
        %v10070 = vpop.f32.mrb[0].mxu0
        %v10071 = vpop.f32.mrb[0].mxu0
        %10072 = vdwg.mxu0
        %10073 = vmatprep.subr.bf16.mxu0 %v8758
        %10074 = vmatpush1.bf16.msra.mxu0 %v8757
        %10075 = vmatprep.subr.bf16.mxu0 %v8762
        %10076 = vmatpush1.bf16.msra.mxu0 %v8761
        %10077 = vmatprep.subr.bf16.mxu0 %v8766
        %10078 = vmatpush1.bf16.msra.mxu0 %v8765
        %10079 = vmatprep.subr.bf16.mxu0 %v8770
        %10080 = vmatpush1.bf16.msra.mxu0 %v8769
        %10081 = vmatprep.subr.bf16.mxu0 0
        %10082 = vmatpush1.bf16.msra.mxu0 0
        %10083 = vmatprep.subr.bf16.mxu0 0
        %10084 = vmatpush1.bf16.msra.mxu0 0
        %10085 = vmatprep.subr.bf16.mxu0 0
        %10086 = vmatpush1.bf16.msra.mxu0 0
        %10087 = vmatprep.subr.bf16.mxu0 0
        %10088 = vmatpush1.bf16.msra.mxu0 0
        %10089 = vmatprep.subr.bf16.mxu0 0
        %10090 = vmatpush1.bf16.msra.mxu0 0
        %10091 = vmatprep.subr.bf16.mxu0 0
        %10092 = vmatpush1.bf16.msra.mxu0 0
        %10093 = vmatprep.subr.bf16.mxu0 0
        %10094 = vmatpush1.bf16.msra.mxu0 0
        %10095 = vmatprep.subr.bf16.mxu0 0
        %10096 = vmatpush1.bf16.msra.mxu0 0
        %10097 = vmatprep.subr.bf16.mxu0 0
        %10098 = vmatpush1.bf16.msra.mxu0 0
        %10099 = vmatprep.subr.bf16.mxu0 0
        %10100 = vmatpush1.bf16.msra.mxu0 0
        %10101 = vmatprep.subr.bf16.mxu0 0
        %10102 = vmatpush1.bf16.msra.mxu0 0
        %10103 = vmatprep.subr.bf16.mxu0 0
        %10104 = vmatpush1.bf16.msra.mxu0 0
        %10105 = vmatprep.mubr.bf16.mxu0 0
        %10106 = vmatmul.mubr.bf16.gmra.mrb[0].mxu0 %v9579
        %v10107 = vpop.f32.mrb[0].mxu0
        %v10108 = vadd.f32 %v10067, %v10107
        %v10109 = vpop.f32.mrb[0].mxu0
        %v10110 = vadd.f32 %v10069, %v10109
        %v10111 = vpop.f32.mrb[0].mxu0
        %v10112 = vpop.f32.mrb[0].mxu0
        %10113 = vdwg.mxu0
        %10114 = vmatprep.subr.bf16.mxu0 %v7992
        %10115 = vmatpush1.bf16.msra.mxu0 %v7991
        %10116 = vmatprep.subr.bf16.mxu0 %v7996
        %10117 = vmatpush1.bf16.msra.mxu0 %v7995
        %10118 = vmatprep.subr.bf16.mxu0 %v8000
        %10119 = vmatpush1.bf16.msra.mxu0 %v7999
        %10120 = vmatprep.subr.bf16.mxu0 %v8004
        %10121 = vmatpush1.bf16.msra.mxu0 %v8003
        %10122 = vmatprep.subr.bf16.mxu0 %v8008
        %10123 = vmatpush1.bf16.msra.mxu0 %v8007
        %10124 = vmatprep.subr.bf16.mxu0 %v8012
        %10125 = vmatpush1.bf16.msra.mxu0 %v8011
        %10126 = vmatprep.subr.bf16.mxu0 %v8016
        %10127 = vmatpush1.bf16.msra.mxu0 %v8015
        %10128 = vmatprep.subr.bf16.mxu0 %v8020
        %10129 = vmatpush1.bf16.msra.mxu0 %v8019
        %10130 = vmatprep.subr.bf16.mxu0 %v8024
        %10131 = vmatpush1.bf16.msra.mxu0 %v8023
        %10132 = vmatprep.subr.bf16.mxu0 %v8028
        %10133 = vmatpush1.bf16.msra.mxu0 %v8027
        %10134 = vmatprep.subr.bf16.mxu0 %v8032
        %10135 = vmatpush1.bf16.msra.mxu0 %v8031
        %10136 = vmatprep.subr.bf16.mxu0 %v8036
        %10137 = vmatpush1.bf16.msra.mxu0 %v8035
        %10138 = vmatprep.subr.bf16.mxu0 %v8040
        %10139 = vmatpush1.bf16.msra.mxu0 %v8039
        %10140 = vmatprep.subr.bf16.mxu0 %v8044
        %10141 = vmatpush1.bf16.msra.mxu0 %v8043
        %10142 = vmatprep.subr.bf16.mxu0 %v8048
        %10143 = vmatpush1.bf16.msra.mxu0 %v8047
        %10144 = vmatprep.subr.bf16.mxu0 %v8052
        %10145 = vmatpush1.bf16.msra.mxu0 %v8051
        %10146 = vmatprep.mubr.bf16.mxu0 %v4828
        %10147 = vmatmul.mubr.bf16.gmra.mrb[0].mxu0 %v4827
        %v10148 = vpop.f32.mrb[0].mxu0
        %v10149 = vadd.f32 %v9569, %v10148
        %v10150 = vpop.f32.mrb[0].mxu0
        %v10151 = vadd.f32 %v9573, %v10150
        %v10152 = vpop.f32.mrb[0].mxu0
        %v10153 = vpop.f32.mrb[0].mxu0
        %10154 = vdwg.mxu0
        %10155 = vmatprep.subr.bf16.mxu0 %v8056
        %10156 = vmatpush1.bf16.msra.mxu0 %v8055
        %10157 = vmatprep.subr.bf16.mxu0 %v8060
        %10158 = vmatpush1.bf16.msra.mxu0 %v8059
        %10159 = vmatprep.subr.bf16.mxu0 %v8064
        %10160 = vmatpush1.bf16.msra.mxu0 %v8063
        %10161 = vmatprep.subr.bf16.mxu0 %v8068
        %10162 = vmatpush1.bf16.msra.mxu0 %v8067
        %10163 = vmatprep.subr.bf16.mxu0 %v8072
        %10164 = vmatpush1.bf16.msra.mxu0 %v8071
        %10165 = vmatprep.subr.bf16.mxu0 %v8076
        %10166 = vmatpush1.bf16.msra.mxu0 %v8075
        %10167 = vmatprep.subr.bf16.mxu0 %v8080
        %10168 = vmatpush1.bf16.msra.mxu0 %v8079
        %10169 = vmatprep.subr.bf16.mxu0 %v8084
        %10170 = vmatpush1.bf16.msra.mxu0 %v8083
        %10171 = vmatprep.subr.bf16.mxu0 %v8088
        %10172 = vmatpush1.bf16.msra.mxu0 %v8087
        %10173 = vmatprep.subr.bf16.mxu0 %v8092
        %10174 = vmatpush1.bf16.msra.mxu0 %v8091
        %10175 = vmatprep.subr.bf16.mxu0 %v8096
        %10176 = vmatpush1.bf16.msra.mxu0 %v8095
        %10177 = vmatprep.subr.bf16.mxu0 %v8100
        %10178 = vmatpush1.bf16.msra.mxu0 %v8099
        %10179 = vmatprep.subr.bf16.mxu0 %v8104
        %10180 = vmatpush1.bf16.msra.mxu0 %v8103
        %10181 = vmatprep.subr.bf16.mxu0 %v8108
        %10182 = vmatpush1.bf16.msra.mxu0 %v8107
        %10183 = vmatprep.subr.bf16.mxu0 %v8112
        %10184 = vmatpush1.bf16.msra.mxu0 %v8111
        %10185 = vmatprep.subr.bf16.mxu0 %v8116
        %10186 = vmatpush1.bf16.msra.mxu0 %v8115
        %10187 = vmatprep.mubr.bf16.mxu0 %v4830
        %10188 = vmatmul.mubr.bf16.gmra.mrb[0].mxu0 %v4829
        %v10189 = vpop.f32.mrb[0].mxu0
        %v10190 = vadd.f32 %v10149, %v10189
        %v10191 = vpop.f32.mrb[0].mxu0
        %v10192 = vadd.f32 %v10151, %v10191
        %v10193 = vpop.f32.mrb[0].mxu0
        %v10194 = vpop.f32.mrb[0].mxu0
        %10195 = vdwg.mxu0
        %10196 = vmatprep.subr.bf16.mxu0 %v8120
        %10197 = vmatpush1.bf16.msra.mxu0 %v8119
        %10198 = vmatprep.subr.bf16.mxu0 %v8124
        %10199 = vmatpush1.bf16.msra.mxu0 %v8123
        %10200 = vmatprep.subr.bf16.mxu0 %v8128
        %10201 = vmatpush1.bf16.msra.mxu0 %v8127
        %10202 = vmatprep.subr.bf16.mxu0 %v8132
        %10203 = vmatpush1.bf16.msra.mxu0 %v8131
        %10204 = vmatprep.subr.bf16.mxu0 %v8136
        %10205 = vmatpush1.bf16.msra.mxu0 %v8135
        %10206 = vmatprep.subr.bf16.mxu0 %v8140
        %10207 = vmatpush1.bf16.msra.mxu0 %v8139
        %10208 = vmatprep.subr.bf16.mxu0 %v8144
        %10209 = vmatpush1.bf16.msra.mxu0 %v8143
        %10210 = vmatprep.subr.bf16.mxu0 %v8148
        %10211 = vmatpush1.bf16.msra.mxu0 %v8147
        %10212 = vmatprep.subr.bf16.mxu0 %v8152
        %10213 = vmatpush1.bf16.msra.mxu0 %v8151
        %10214 = vmatprep.subr.bf16.mxu0 %v8156
        %10215 = vmatpush1.bf16.msra.mxu0 %v8155
        %10216 = vmatprep.subr.bf16.mxu0 %v8160
        %10217 = vmatpush1.bf16.msra.mxu0 %v8159
        %10218 = vmatprep.subr.bf16.mxu0 %v8164
        %10219 = vmatpush1.bf16.msra.mxu0 %v8163
        %10220 = vmatprep.subr.bf16.mxu0 %v8168
        %10221 = vmatpush1.bf16.msra.mxu0 %v8167
        %10222 = vmatprep.subr.bf16.mxu0 %v8172
        %10223 = vmatpush1.bf16.msra.mxu0 %v8171
        %10224 = vmatprep.subr.bf16.mxu0 %v8176
        %10225 = vmatpush1.bf16.msra.mxu0 %v8175
        %10226 = vmatprep.subr.bf16.mxu0 %v8180
        %10227 = vmatpush1.bf16.msra.mxu0 %v8179
        %10228 = vmatprep.mubr.bf16.mxu0 %v4832
        %10229 = vmatmul.mubr.bf16.gmra.mrb[0].mxu0 %v4831
        %v10230 = vpop.f32.mrb[0].mxu0
        %v10231 = vadd.f32 %v10190, %v10230
        %v10232 = vpop.f32.mrb[0].mxu0
        %v10233 = vadd.f32 %v10192, %v10232
        %v10234 = vpop.f32.mrb[0].mxu0
        %v10235 = vpop.f32.mrb[0].mxu0
        %10236 = vdwg.mxu0
        %10237 = vmatprep.subr.bf16.mxu0 %v8184
        %10238 = vmatpush1.bf16.msra.mxu0 %v8183
        %10239 = vmatprep.subr.bf16.mxu0 %v8188
        %10240 = vmatpush1.bf16.msra.mxu0 %v8187
        %10241 = vmatprep.subr.bf16.mxu0 %v8192
        %10242 = vmatpush1.bf16.msra.mxu0 %v8191
        %10243 = vmatprep.subr.bf16.mxu0 %v8196
        %10244 = vmatpush1.bf16.msra.mxu0 %v8195
        %10245 = vmatprep.subr.bf16.mxu0 %v8200
        %10246 = vmatpush1.bf16.msra.mxu0 %v8199
        %10247 = vmatprep.subr.bf16.mxu0 %v8204
        %10248 = vmatpush1.bf16.msra.mxu0 %v8203
        %10249 = vmatprep.subr.bf16.mxu0 %v8208
        %10250 = vmatpush1.bf16.msra.mxu0 %v8207
        %10251 = vmatprep.subr.bf16.mxu0 %v8212
        %10252 = vmatpush1.bf16.msra.mxu0 %v8211
        %10253 = vmatprep.subr.bf16.mxu0 %v8216
        %10254 = vmatpush1.bf16.msra.mxu0 %v8215
        %10255 = vmatprep.subr.bf16.mxu0 %v8220
        %10256 = vmatpush1.bf16.msra.mxu0 %v8219
        %10257 = vmatprep.subr.bf16.mxu0 %v8224
        %10258 = vmatpush1.bf16.msra.mxu0 %v8223
        %10259 = vmatprep.subr.bf16.mxu0 %v8228
        %10260 = vmatpush1.bf16.msra.mxu0 %v8227
        %10261 = vmatprep.subr.bf16.mxu0 %v8232
        %10262 = vmatpush1.bf16.msra.mxu0 %v8231
        %10263 = vmatprep.subr.bf16.mxu0 %v8236
        %10264 = vmatpush1.bf16.msra.mxu0 %v8235
        %10265 = vmatprep.subr.bf16.mxu0 %v8240
        %10266 = vmatpush1.bf16.msra.mxu0 %v8239
        %10267 = vmatprep.subr.bf16.mxu0 %v8244
        %10268 = vmatpush1.bf16.msra.mxu0 %v8243
        %10269 = vmatprep.mubr.bf16.mxu0 %v4834
        %10270 = vmatmul.mubr.bf16.gmra.mrb[0].mxu0 %v4833
        %v10271 = vpop.f32.mrb[0].mxu0
        %v10272 = vadd.f32 %v10231, %v10271
        %v10273 = vpop.f32.mrb[0].mxu0
        %v10274 = vadd.f32 %v10233, %v10273
        %v10275 = vpop.f32.mrb[0].mxu0
        %v10276 = vpop.f32.mrb[0].mxu0
        %10277 = vdwg.mxu0
        %10278 = vmatprep.subr.bf16.mxu0 %v8248
        %10279 = vmatpush1.bf16.msra.mxu0 %v8247
        %10280 = vmatprep.subr.bf16.mxu0 %v8252
        %10281 = vmatpush1.bf16.msra.mxu0 %v8251
        %10282 = vmatprep.subr.bf16.mxu0 %v8256
        %10283 = vmatpush1.bf16.msra.mxu0 %v8255
        %10284 = vmatprep.subr.bf16.mxu0 %v8260
        %10285 = vmatpush1.bf16.msra.mxu0 %v8259
        %10286 = vmatprep.subr.bf16.mxu0 %v8264
        %10287 = vmatpush1.bf16.msra.mxu0 %v8263
        %10288 = vmatprep.subr.bf16.mxu0 %v8268
        %10289 = vmatpush1.bf16.msra.mxu0 %v8267
        %10290 = vmatprep.subr.bf16.mxu0 %v8272
        %10291 = vmatpush1.bf16.msra.mxu0 %v8271
        %10292 = vmatprep.subr.bf16.mxu0 %v8276
        %10293 = vmatpush1.bf16.msra.mxu0 %v8275
        %10294 = vmatprep.subr.bf16.mxu0 %v8280
        %10295 = vmatpush1.bf16.msra.mxu0 %v8279
        %10296 = vmatprep.subr.bf16.mxu0 %v8284
        %10297 = vmatpush1.bf16.msra.mxu0 %v8283
        %10298 = vmatprep.subr.bf16.mxu0 %v8288
        %10299 = vmatpush1.bf16.msra.mxu0 %v8287
        %10300 = vmatprep.subr.bf16.mxu0 %v8292
        %10301 = vmatpush1.bf16.msra.mxu0 %v8291
        %10302 = vmatprep.subr.bf16.mxu0 %v8296
        %10303 = vmatpush1.bf16.msra.mxu0 %v8295
        %10304 = vmatprep.subr.bf16.mxu0 %v8300
        %10305 = vmatpush1.bf16.msra.mxu0 %v8299
        %10306 = vmatprep.subr.bf16.mxu0 %v8304
        %10307 = vmatpush1.bf16.msra.mxu0 %v8303
        %10308 = vmatprep.subr.bf16.mxu0 %v8308
        %10309 = vmatpush1.bf16.msra.mxu0 %v8307
        %10310 = vmatprep.mubr.bf16.mxu0 %v4836
        %10311 = vmatmul.mubr.bf16.gmra.mrb[0].mxu0 %v4835
        %v10312 = vpop.f32.mrb[0].mxu0
        %v10313 = vadd.f32 %v10272, %v10312
        %v10314 = vpop.f32.mrb[0].mxu0
        %v10315 = vadd.f32 %v10274, %v10314
        %v10316 = vpop.f32.mrb[0].mxu0
        %v10317 = vpop.f32.mrb[0].mxu0
        %10318 = vdwg.mxu0
        %10319 = vmatprep.subr.bf16.mxu0 %v8312
        %10320 = vmatpush1.bf16.msra.mxu0 %v8311
        %10321 = vmatprep.subr.bf16.mxu0 %v8316
        %10322 = vmatpush1.bf16.msra.mxu0 %v8315
        %10323 = vmatprep.subr.bf16.mxu0 %v8320
        %10324 = vmatpush1.bf16.msra.mxu0 %v8319
        %10325 = vmatprep.subr.bf16.mxu0 %v8324
        %10326 = vmatpush1.bf16.msra.mxu0 %v8323
        %10327 = vmatprep.subr.bf16.mxu0 %v8328
        %10328 = vmatpush1.bf16.msra.mxu0 %v8327
        %10329 = vmatprep.subr.bf16.mxu0 %v8332
        %10330 = vmatpush1.bf16.msra.mxu0 %v8331
        %10331 = vmatprep.subr.bf16.mxu0 %v8336
        %10332 = vmatpush1.bf16.msra.mxu0 %v8335
        %10333 = vmatprep.subr.bf16.mxu0 %v8340
        %10334 = vmatpush1.bf16.msra.mxu0 %v8339
        %10335 = vmatprep.subr.bf16.mxu0 %v8344
        %10336 = vmatpush1.bf16.msra.mxu0 %v8343
        %10337 = vmatprep.subr.bf16.mxu0 %v8348
        %10338 = vmatpush1.bf16.msra.mxu0 %v8347
        %10339 = vmatprep.subr.bf16.mxu0 %v8352
        %10340 = vmatpush1.bf16.msra.mxu0 %v8351
        %10341 = vmatprep.subr.bf16.mxu0 %v8356
        %10342 = vmatpush1.bf16.msra.mxu0 %v8355
        %10343 = vmatprep.subr.bf16.mxu0 %v8360
        %10344 = vmatpush1.bf16.msra.mxu0 %v8359
        %10345 = vmatprep.subr.bf16.mxu0 %v8364
        %10346 = vmatpush1.bf16.msra.mxu0 %v8363
        %10347 = vmatprep.subr.bf16.mxu0 %v8368
        %10348 = vmatpush1.bf16.msra.mxu0 %v8367
        %10349 = vmatprep.subr.bf16.mxu0 %v8372
        %10350 = vmatpush1.bf16.msra.mxu0 %v8371
        %10351 = vmatprep.mubr.bf16.mxu0 %v4838
        %10352 = vmatmul.mubr.bf16.gmra.mrb[0].mxu0 %v4837
        %v10353 = vpop.f32.mrb[0].mxu0
        %v10354 = vadd.f32 %v10313, %v10353
        %v10355 = vpop.f32.mrb[0].mxu0
        %v10356 = vadd.f32 %v10315, %v10355
        %v10357 = vpop.f32.mrb[0].mxu0
        %v10358 = vpop.f32.mrb[0].mxu0
        %10359 = vdwg.mxu0
        %10360 = vmatprep.subr.bf16.mxu0 %v8376
        %10361 = vmatpush1.bf16.msra.mxu0 %v8375
        %10362 = vmatprep.subr.bf16.mxu0 %v8380
        %10363 = vmatpush1.bf16.msra.mxu0 %v8379
        %10364 = vmatprep.subr.bf16.mxu0 %v8384
        %10365 = vmatpush1.bf16.msra.mxu0 %v8383
        %10366 = vmatprep.subr.bf16.mxu0 %v8388
        %10367 = vmatpush1.bf16.msra.mxu0 %v8387
        %10368 = vmatprep.subr.bf16.mxu0 %v8392
        %10369 = vmatpush1.bf16.msra.mxu0 %v8391
        %10370 = vmatprep.subr.bf16.mxu0 %v8396
        %10371 = vmatpush1.bf16.msra.mxu0 %v8395
        %10372 = vmatprep.subr.bf16.mxu0 %v8400
        %10373 = vmatpush1.bf16.msra.mxu0 %v8399
        %10374 = vmatprep.subr.bf16.mxu0 %v8404
        %10375 = vmatpush1.bf16.msra.mxu0 %v8403
        %10376 = vmatprep.subr.bf16.mxu0 %v8408
        %10377 = vmatpush1.bf16.msra.mxu0 %v8407
        %10378 = vmatprep.subr.bf16.mxu0 %v8412
        %10379 = vmatpush1.bf16.msra.mxu0 %v8411
        %10380 = vmatprep.subr.bf16.mxu0 %v8416
        %10381 = vmatpush1.bf16.msra.mxu0 %v8415
        %10382 = vmatprep.subr.bf16.mxu0 %v8420
        %10383 = vmatpush1.bf16.msra.mxu0 %v8419
        %10384 = vmatprep.subr.bf16.mxu0 %v8424
        %10385 = vmatpush1.bf16.msra.mxu0 %v8423
        %10386 = vmatprep.subr.bf16.mxu0 %v8428
        %10387 = vmatpush1.bf16.msra.mxu0 %v8427
        %10388 = vmatprep.subr.bf16.mxu0 %v8432
        %10389 = vmatpush1.bf16.msra.mxu0 %v8431
        %10390 = vmatprep.subr.bf16.mxu0 %v8436
        %10391 = vmatpush1.bf16.msra.mxu0 %v8435
        %10392 = vmatprep.mubr.bf16.mxu0 %v4840
        %10393 = vmatmul.mubr.bf16.gmra.mrb[0].mxu0 %v4839
        %v10394 = vpop.f32.mrb[0].mxu0
        %v10395 = vadd.f32 %v10354, %v10394
        %v10396 = vpop.f32.mrb[0].mxu0
        %v10397 = vadd.f32 %v10356, %v10396
        %v10398 = vpop.f32.mrb[0].mxu0
        %v10399 = vpop.f32.mrb[0].mxu0
        %10400 = vdwg.mxu0
        %10401 = vmatprep.subr.bf16.mxu0 %v8440
        %10402 = vmatpush1.bf16.msra.mxu0 %v8439
        %10403 = vmatprep.subr.bf16.mxu0 %v8444
        %10404 = vmatpush1.bf16.msra.mxu0 %v8443
        %10405 = vmatprep.subr.bf16.mxu0 %v8448
        %10406 = vmatpush1.bf16.msra.mxu0 %v8447
        %10407 = vmatprep.subr.bf16.mxu0 %v8452
        %10408 = vmatpush1.bf16.msra.mxu0 %v8451
        %10409 = vmatprep.subr.bf16.mxu0 %v8456
        %10410 = vmatpush1.bf16.msra.mxu0 %v8455
        %10411 = vmatprep.subr.bf16.mxu0 %v8460
        %10412 = vmatpush1.bf16.msra.mxu0 %v8459
        %10413 = vmatprep.subr.bf16.mxu0 %v8464
        %10414 = vmatpush1.bf16.msra.mxu0 %v8463
        %10415 = vmatprep.subr.bf16.mxu0 %v8468
        %10416 = vmatpush1.bf16.msra.mxu0 %v8467
        %10417 = vmatprep.subr.bf16.mxu0 %v8472
        %10418 = vmatpush1.bf16.msra.mxu0 %v8471
        %10419 = vmatprep.subr.bf16.mxu0 %v8476
        %10420 = vmatpush1.bf16.msra.mxu0 %v8475
        %10421 = vmatprep.subr.bf16.mxu0 %v8480
        %10422 = vmatpush1.bf16.msra.mxu0 %v8479
        %10423 = vmatprep.subr.bf16.mxu0 %v8484
        %10424 = vmatpush1.bf16.msra.mxu0 %v8483
        %10425 = vmatprep.subr.bf16.mxu0 %v8488
        %10426 = vmatpush1.bf16.msra.mxu0 %v8487
        %10427 = vmatprep.subr.bf16.mxu0 %v8492
        %10428 = vmatpush1.bf16.msra.mxu0 %v8491
        %10429 = vmatprep.subr.bf16.mxu0 %v8496
        %10430 = vmatpush1.bf16.msra.mxu0 %v8495
        %10431 = vmatprep.subr.bf16.mxu0 %v8500
        %10432 = vmatpush1.bf16.msra.mxu0 %v8499
        %10433 = vmatprep.mubr.bf16.mxu0 %v4842
        %10434 = vmatmul.mubr.bf16.gmra.mrb[0].mxu0 %v4841
        %v10435 = vpop.f32.mrb[0].mxu0
        %v10436 = vadd.f32 %v10395, %v10435
        %v10437 = vpop.f32.mrb[0].mxu0
        %v10438 = vadd.f32 %v10397, %v10437
        %v10439 = vpop.f32.mrb[0].mxu0
        %v10440 = vpop.f32.mrb[0].mxu0
        %10441 = vdwg.mxu0
        %10442 = vmatprep.subr.bf16.mxu0 %v8504
        %10443 = vmatpush1.bf16.msra.mxu0 %v8503
        %10444 = vmatprep.subr.bf16.mxu0 %v8508
        %10445 = vmatpush1.bf16.msra.mxu0 %v8507
        %10446 = vmatprep.subr.bf16.mxu0 %v8512
        %10447 = vmatpush1.bf16.msra.mxu0 %v8511
        %10448 = vmatprep.subr.bf16.mxu0 %v8516
        %10449 = vmatpush1.bf16.msra.mxu0 %v8515
        %10450 = vmatprep.subr.bf16.mxu0 %v8520
        %10451 = vmatpush1.bf16.msra.mxu0 %v8519
        %10452 = vmatprep.subr.bf16.mxu0 %v8524
        %10453 = vmatpush1.bf16.msra.mxu0 %v8523
        %10454 = vmatprep.subr.bf16.mxu0 %v8528
        %10455 = vmatpush1.bf16.msra.mxu0 %v8527
        %10456 = vmatprep.subr.bf16.mxu0 %v8532
        %10457 = vmatpush1.bf16.msra.mxu0 %v8531
        %10458 = vmatprep.subr.bf16.mxu0 %v8536
        %10459 = vmatpush1.bf16.msra.mxu0 %v8535
        %10460 = vmatprep.subr.bf16.mxu0 %v8540
        %10461 = vmatpush1.bf16.msra.mxu0 %v8539
        %10462 = vmatprep.subr.bf16.mxu0 %v8544
        %10463 = vmatpush1.bf16.msra.mxu0 %v8543
        %10464 = vmatprep.subr.bf16.mxu0 %v8548
        %10465 = vmatpush1.bf16.msra.mxu0 %v8547
        %10466 = vmatprep.subr.bf16.mxu0 %v8552
        %10467 = vmatpush1.bf16.msra.mxu0 %v8551
        %10468 = vmatprep.subr.bf16.mxu0 %v8556
        %10469 = vmatpush1.bf16.msra.mxu0 %v8555
        %10470 = vmatprep.subr.bf16.mxu0 %v8560
        %10471 = vmatpush1.bf16.msra.mxu0 %v8559
        %10472 = vmatprep.subr.bf16.mxu0 %v8564
        %10473 = vmatpush1.bf16.msra.mxu0 %v8563
        %10474 = vmatprep.mubr.bf16.mxu0 %v4844
        %10475 = vmatmul.mubr.bf16.gmra.mrb[0].mxu0 %v4843
        %v10476 = vpop.f32.mrb[0].mxu0
        %v10477 = vadd.f32 %v10436, %v10476
        %v10478 = vpop.f32.mrb[0].mxu0
        %v10479 = vadd.f32 %v10438, %v10478
        %v10480 = vpop.f32.mrb[0].mxu0
        %v10481 = vpop.f32.mrb[0].mxu0
        %10482 = vdwg.mxu0
        %10483 = vmatprep.subr.bf16.mxu0 %v8568
        %10484 = vmatpush1.bf16.msra.mxu0 %v8567
        %10485 = vmatprep.subr.bf16.mxu0 %v8572
        %10486 = vmatpush1.bf16.msra.mxu0 %v8571
        %10487 = vmatprep.subr.bf16.mxu0 %v8576
        %10488 = vmatpush1.bf16.msra.mxu0 %v8575
        %10489 = vmatprep.subr.bf16.mxu0 %v8580
        %10490 = vmatpush1.bf16.msra.mxu0 %v8579
        %10491 = vmatprep.subr.bf16.mxu0 %v8584
        %10492 = vmatpush1.bf16.msra.mxu0 %v8583
        %10493 = vmatprep.subr.bf16.mxu0 %v8588
        %10494 = vmatpush1.bf16.msra.mxu0 %v8587
        %10495 = vmatprep.subr.bf16.mxu0 %v8592
        %10496 = vmatpush1.bf16.msra.mxu0 %v8591
        %10497 = vmatprep.subr.bf16.mxu0 %v8596
        %10498 = vmatpush1.bf16.msra.mxu0 %v8595
        %10499 = vmatprep.subr.bf16.mxu0 %v8600
        %10500 = vmatpush1.bf16.msra.mxu0 %v8599
        %10501 = vmatprep.subr.bf16.mxu0 %v8604
        %10502 = vmatpush1.bf16.msra.mxu0 %v8603
        %10503 = vmatprep.subr.bf16.mxu0 %v8608
        %10504 = vmatpush1.bf16.msra.mxu0 %v8607
        %10505 = vmatprep.subr.bf16.mxu0 %v8612
        %10506 = vmatpush1.bf16.msra.mxu0 %v8611
        %10507 = vmatprep.subr.bf16.mxu0 %v8616
        %10508 = vmatpush1.bf16.msra.mxu0 %v8615
        %10509 = vmatprep.subr.bf16.mxu0 %v8620
        %10510 = vmatpush1.bf16.msra.mxu0 %v8619
        %10511 = vmatprep.subr.bf16.mxu0 %v8624
        %10512 = vmatpush1.bf16.msra.mxu0 %v8623
        %10513 = vmatprep.subr.bf16.mxu0 %v8628
        %10514 = vmatpush1.bf16.msra.mxu0 %v8627
        %10515 = vmatprep.mubr.bf16.mxu0 %v4846
        %10516 = vmatmul.mubr.bf16.gmra.mrb[0].mxu0 %v4845
        %v10517 = vpop.f32.mrb[0].mxu0
        %v10518 = vadd.f32 %v10477, %v10517
        %v10519 = vpop.f32.mrb[0].mxu0
        %v10520 = vadd.f32 %v10479, %v10519
        %v10521 = vpop.f32.mrb[0].mxu0
        %v10522 = vpop.f32.mrb[0].mxu0
        %10523 = vdwg.mxu0
        %10524 = vmatprep.subr.bf16.mxu0 %v8632
        %10525 = vmatpush1.bf16.msra.mxu0 %v8631
        %10526 = vmatprep.subr.bf16.mxu0 %v8636
        %10527 = vmatpush1.bf16.msra.mxu0 %v8635
        %10528 = vmatprep.subr.bf16.mxu0 %v8640
        %10529 = vmatpush1.bf16.msra.mxu0 %v8639
        %10530 = vmatprep.subr.bf16.mxu0 %v8644
        %10531 = vmatpush1.bf16.msra.mxu0 %v8643
        %10532 = vmatprep.subr.bf16.mxu0 %v8648
        %10533 = vmatpush1.bf16.msra.mxu0 %v8647
        %10534 = vmatprep.subr.bf16.mxu0 %v8652
        %10535 = vmatpush1.bf16.msra.mxu0 %v8651
        %10536 = vmatprep.subr.bf16.mxu0 %v8656
        %10537 = vmatpush1.bf16.msra.mxu0 %v8655
        %10538 = vmatprep.subr.bf16.mxu0 %v8660
        %10539 = vmatpush1.bf16.msra.mxu0 %v8659
        %10540 = vmatprep.subr.bf16.mxu0 %v8664
        %10541 = vmatpush1.bf16.msra.mxu0 %v8663
        %10542 = vmatprep.subr.bf16.mxu0 %v8668
        %10543 = vmatpush1.bf16.msra.mxu0 %v8667
        %10544 = vmatprep.subr.bf16.mxu0 %v8672
        %10545 = vmatpush1.bf16.msra.mxu0 %v8671
        %10546 = vmatprep.subr.bf16.mxu0 %v8676
        %10547 = vmatpush1.bf16.msra.mxu0 %v8675
        %10548 = vmatprep.subr.bf16.mxu0 %v8680
        %10549 = vmatpush1.bf16.msra.mxu0 %v8679
        %10550 = vmatprep.subr.bf16.mxu0 %v8684
        %10551 = vmatpush1.bf16.msra.mxu0 %v8683
        %10552 = vmatprep.subr.bf16.mxu0 %v8688
        %10553 = vmatpush1.bf16.msra.mxu0 %v8687
        %10554 = vmatprep.subr.bf16.mxu0 %v8692
        %10555 = vmatpush1.bf16.msra.mxu0 %v8691
        %10556 = vmatprep.mubr.bf16.mxu0 %v4848
        %10557 = vmatmul.mubr.bf16.gmra.mrb[0].mxu0 %v4847
        %v10558 = vpop.f32.mrb[0].mxu0
        %v10559 = vadd.f32 %v10518, %v10558
        %v10560 = vpop.f32.mrb[0].mxu0
        %v10561 = vadd.f32 %v10520, %v10560
        %v10562 = vpop.f32.mrb[0].mxu0
        %v10563 = vpop.f32.mrb[0].mxu0
        %10564 = vdwg.mxu0
        %10565 = vmatprep.subr.bf16.mxu0 %v8696
        %10566 = vmatpush1.bf16.msra.mxu0 %v8695
        %10567 = vmatprep.subr.bf16.mxu0 %v8700
        %10568 = vmatpush1.bf16.msra.mxu0 %v8699
        %10569 = vmatprep.subr.bf16.mxu0 %v8704
        %10570 = vmatpush1.bf16.msra.mxu0 %v8703
        %10571 = vmatprep.subr.bf16.mxu0 %v8708
        %10572 = vmatpush1.bf16.msra.mxu0 %v8707
        %10573 = vmatprep.subr.bf16.mxu0 %v8712
        %10574 = vmatpush1.bf16.msra.mxu0 %v8711
        %10575 = vmatprep.subr.bf16.mxu0 %v8716
        %10576 = vmatpush1.bf16.msra.mxu0 %v8715
        %10577 = vmatprep.subr.bf16.mxu0 %v8720
        %10578 = vmatpush1.bf16.msra.mxu0 %v8719
        %10579 = vmatprep.subr.bf16.mxu0 %v8724
        %10580 = vmatpush1.bf16.msra.mxu0 %v8723
        %10581 = vmatprep.subr.bf16.mxu0 %v8728
        %10582 = vmatpush1.bf16.msra.mxu0 %v8727
        %10583 = vmatprep.subr.bf16.mxu0 %v8732
        %10584 = vmatpush1.bf16.msra.mxu0 %v8731
        %10585 = vmatprep.subr.bf16.mxu0 %v8736
        %10586 = vmatpush1.bf16.msra.mxu0 %v8735
        %10587 = vmatprep.subr.bf16.mxu0 %v8740
        %10588 = vmatpush1.bf16.msra.mxu0 %v8739
        %10589 = vmatprep.subr.bf16.mxu0 %v8744
        %10590 = vmatpush1.bf16.msra.mxu0 %v8743
        %10591 = vmatprep.subr.bf16.mxu0 %v8748
        %10592 = vmatpush1.bf16.msra.mxu0 %v8747
        %10593 = vmatprep.subr.bf16.mxu0 %v8752
        %10594 = vmatpush1.bf16.msra.mxu0 %v8751
        %10595 = vmatprep.subr.bf16.mxu0 %v8756
        %10596 = vmatpush1.bf16.msra.mxu0 %v8755
        %10597 = vmatprep.mubr.bf16.mxu0 %v4850
        %10598 = vmatmul.mubr.bf16.gmra.mrb[0].mxu0 %v4849
        %v10599 = vpop.f32.mrb[0].mxu0
        %v10600 = vadd.f32 %v10559, %v10599
        %v10601 = vpop.f32.mrb[0].mxu0
        %v10602 = vadd.f32 %v10561, %v10601
        %v10603 = vpop.f32.mrb[0].mxu0
        %v10604 = vpop.f32.mrb[0].mxu0
        %10605 = vdwg.mxu0
        %10606 = vmatprep.subr.bf16.mxu0 %v8760
        %10607 = vmatpush1.bf16.msra.mxu0 %v8759
        %10608 = vmatprep.subr.bf16.mxu0 %v8764
        %10609 = vmatpush1.bf16.msra.mxu0 %v8763
        %10610 = vmatprep.subr.bf16.mxu0 %v8768
        %10611 = vmatpush1.bf16.msra.mxu0 %v8767
        %10612 = vmatprep.subr.bf16.mxu0 %v8772
        %10613 = vmatpush1.bf16.msra.mxu0 %v8771
        %10614 = vmatprep.subr.bf16.mxu0 0
        %10615 = vmatpush1.bf16.msra.mxu0 0
        %10616 = vmatprep.subr.bf16.mxu0 0
        %10617 = vmatpush1.bf16.msra.mxu0 0
        %10618 = vmatprep.subr.bf16.mxu0 0
        %10619 = vmatpush1.bf16.msra.mxu0 0
        %10620 = vmatprep.subr.bf16.mxu0 0
        %10621 = vmatpush1.bf16.msra.mxu0 0
        %10622 = vmatprep.subr.bf16.mxu0 0
        %10623 = vmatpush1.bf16.msra.mxu0 0
        %10624 = vmatprep.subr.bf16.mxu0 0
        %10625 = vmatpush1.bf16.msra.mxu0 0
        %10626 = vmatprep.subr.bf16.mxu0 0
        %10627 = vmatpush1.bf16.msra.mxu0 0
        %10628 = vmatprep.subr.bf16.mxu0 0
        %10629 = vmatpush1.bf16.msra.mxu0 0
        %10630 = vmatprep.subr.bf16.mxu0 0
        %10631 = vmatpush1.bf16.msra.mxu0 0
        %10632 = vmatprep.subr.bf16.mxu0 0
        %10633 = vmatpush1.bf16.msra.mxu0 0
        %10634 = vmatprep.subr.bf16.mxu0 0
        %10635 = vmatpush1.bf16.msra.mxu0 0
        %10636 = vmatprep.subr.bf16.mxu0 0
        %10637 = vmatpush1.bf16.msra.mxu0 0
        %10638 = vmatprep.mubr.bf16.mxu0 0
        %10639 = vmatmul.mubr.bf16.gmra.mrb[0].mxu0 %v9579
        %v10640 = vpop.f32.mrb[0].mxu0
        %v10641 = vadd.f32 %v10600, %v10640
        %v10642 = vpop.f32.mrb[0].mxu0
        %v10643 = vadd.f32 %v10602, %v10642
        %v10644 = vpop.f32.mrb[0].mxu0
        %v10645 = vpop.f32.mrb[0].mxu0
        %10646 = vdwg.mxu0
        %v10647 = vmax.f32 %v10108, 0.0
        %v10648 = vmax.f32 %v10110, 0.0
        %v10649 = vmax.f32 %v10641, 0.0
        %v10650 = vmax.f32 %v10643, 0.0
        %v10651 = vpack.c.bf16 %v10647, %v10647
        %v10652 = vpack.c.bf16 %v10648, %v10648
        %v10653 = vpack.c.bf16 %v10649, %v10649
        %v10654 = vpack.c.bf16 %v10650, %v10650
        %v10655 = vld [vmem:[%s9] sm:$0xf]
        %v10656 = vld [vmem:[%s9 + $0x4] sm:$0xf]
        %v10657 = vld [vmem:[%s9 + $0x8] sm:$0xf]
        %v10658 = vld [vmem:[%s9 + $0xc] sm:$0xf]
        %v10659 = vld [vmem:[%s9 + $0x10] sm:$0xf]
        %v10660 = vld [vmem:[%s9 + $0x14] sm:$0xf]
        %v10661 = vld [vmem:[%s9 + $0x18] sm:$0xf]
        %v10662 = vld [vmem:[%s9 + $0x1c] sm:$0xf]
        %v10663 = vld [vmem:[%s9 + $0x20] sm:$0xf]
        %v10664 = vld [vmem:[%s9 + $0x24] sm:$0xf]
        %v10665 = vld [vmem:[%s9 + $0x28] sm:$0xf]
        %v10666 = vld [vmem:[%s9 + $0x2c] sm:$0xf]
        %v10667 = vld [vmem:[%s9 + $0x30] sm:$0xf]
        %v10668 = vld [vmem:[%s9 + $0x34] sm:$0xf]
        %v10669 = vld [vmem:[%s9 + $0x38] sm:$0xf]
        %v10670 = vld [vmem:[%s9 + $0x3c] sm:$0xf]
        %v10671 = vld [vmem:[%s9 + $0x40] sm:$0xf]
        %v10672 = vld [vmem:[%s9 + $0x44] sm:$0xf]
        %v10673 = vld [vmem:[%s9 + $0x48] sm:$0xf]
        %v10674 = vld [vmem:[%s9 + $0x4c] sm:$0xf]
        %v10675 = vld [vmem:[%s9 + $0x50] sm:$0xf]
        %v10676 = vld [vmem:[%s9 + $0x54] sm:$0xf]
        %v10677 = vld [vmem:[%s9 + $0x58] sm:$0xf]
        %v10678 = vld [vmem:[%s9 + $0x5c] sm:$0xf]
        %v10679 = vld [vmem:[%s9 + $0x60] sm:$0xf]
        %v10680 = vld [vmem:[%s9 + $0x64] sm:$0xf]
        %v10681 = vld [vmem:[%s9 + $0x68] sm:$0xf]
        %v10682 = vld [vmem:[%s9 + $0x6c] sm:$0xf]
        %v10683 = vld [vmem:[%s9 + $0x70] sm:$0xf]
        %v10684 = vld [vmem:[%s9 + $0x74] sm:$0xf]
        %v10685 = vld [vmem:[%s9 + $0x78] sm:$0xf]
        %v10686 = vld [vmem:[%s9 + $0x7c] sm:$0xf]
        %v10687 = vld [vmem:[%s9 + $0x80] sm:$0xf]
        %v10688 = vld [vmem:[%s9 + $0x84] sm:$0xf]
        %v10689 = vld [vmem:[%s9 + $0x88] sm:$0xf]
        %v10690 = vld [vmem:[%s9 + $0x8c] sm:$0xf]
        %v10691 = vld [vmem:[%s9 + $0x90] sm:$0xf]
        %v10692 = vld [vmem:[%s9 + $0x94] sm:$0xf]
        %v10693 = vld [vmem:[%s9 + $0x98] sm:$0xf]
        %v10694 = vld [vmem:[%s9 + $0x9c] sm:$0xf]
        %v10695 = vld [vmem:[%s9 + $0xa0] sm:$0xf]
        %v10696 = vld [vmem:[%s9 + $0xa4] sm:$0xf]
        %v10697 = vld [vmem:[%s9 + $0xa8] sm:$0xf]
        %v10698 = vld [vmem:[%s9 + $0xac] sm:$0xf]
        %v10699 = vld [vmem:[%s9 + $0xb0] sm:$0xf]
        %v10700 = vld [vmem:[%s9 + $0xb4] sm:$0xf]
        %v10701 = vld [vmem:[%s9 + $0xb8] sm:$0xf]
        %v10702 = vld [vmem:[%s9 + $0xbc] sm:$0xf]
        %v10703 = vld [vmem:[%s9 + $0xc0] sm:$0xf]
        %v10704 = vld [vmem:[%s9 + $0xc4] sm:$0xf]
        %v10705 = vld [vmem:[%s9 + $0xc8] sm:$0xf]
        %v10706 = vld [vmem:[%s9 + $0xcc] sm:$0xf]
        %v10707 = vld [vmem:[%s9 + $0xd0] sm:$0xf]
        %v10708 = vld [vmem:[%s9 + $0xd4] sm:$0xf]
        %v10709 = vld [vmem:[%s9 + $0xd8] sm:$0xf]
        %v10710 = vld [vmem:[%s9 + $0xdc] sm:$0xf]
        %v10711 = vld [vmem:[%s9 + $0xe0] sm:$0xf]
        %v10712 = vld [vmem:[%s9 + $0xe4] sm:$0xf]
        %v10713 = vld [vmem:[%s9 + $0xe8] sm:$0xf]
        %v10714 = vld [vmem:[%s9 + $0xec] sm:$0xf]
        %v10715 = vld [vmem:[%s9 + $0xf0] sm:$0xf]
        %v10716 = vld [vmem:[%s9 + $0xf4] sm:$0xf]
        %v10717 = vld [vmem:[%s9 + $0xf8] sm:$0xf]
        %v10718 = vld [vmem:[%s9 + $0xfc] sm:$0xf]
        %v10719 = vld [vmem:[%s10] sm:$0x1]
        %v10784 = vunpack.c.l.b16 %v10655
        %v10785 = vunpack.c.l.b16 %v10656
        %v10786 = vunpack.c.l.b16 %v10657
        %v10787 = vunpack.c.l.b16 %v10658
        %v10788 = vunpack.c.l.b16 %v10659
        %v10789 = vunpack.c.l.b16 %v10660
        %v10790 = vunpack.c.l.b16 %v10661
        %v10791 = vunpack.c.l.b16 %v10662
        %v10792 = vunpack.c.l.b16 %v10663
        %v10793 = vunpack.c.l.b16 %v10664
        %v10794 = vunpack.c.l.b16 %v10665
        %v10795 = vunpack.c.l.b16 %v10666
        %v10796 = vunpack.c.l.b16 %v10667
        %v10797 = vunpack.c.l.b16 %v10668
        %v10798 = vunpack.c.l.b16 %v10669
        %v10799 = vunpack.c.l.b16 %v10670
        %v10800 = vunpack.c.l.b16 %v10671
        %v10801 = vunpack.c.l.b16 %v10672
        %v10802 = vunpack.c.l.b16 %v10673
        %v10803 = vunpack.c.l.b16 %v10674
        %v10804 = vunpack.c.l.b16 %v10675
        %v10805 = vunpack.c.l.b16 %v10676
        %v10806 = vunpack.c.l.b16 %v10677
        %v10807 = vunpack.c.l.b16 %v10678
        %v10808 = vunpack.c.l.b16 %v10679
        %v10809 = vunpack.c.l.b16 %v10680
        %v10810 = vunpack.c.l.b16 %v10681
        %v10811 = vunpack.c.l.b16 %v10682
        %v10812 = vunpack.c.l.b16 %v10683
        %v10813 = vunpack.c.l.b16 %v10684
        %v10814 = vunpack.c.l.b16 %v10685
        %v10815 = vunpack.c.l.b16 %v10686
        %v10816 = vunpack.c.l.b16 %v10687
        %v10817 = vunpack.c.l.b16 %v10688
        %v10818 = vunpack.c.l.b16 %v10689
        %v10819 = vunpack.c.l.b16 %v10690
        %v10820 = vunpack.c.l.b16 %v10691
        %v10821 = vunpack.c.l.b16 %v10692
        %v10822 = vunpack.c.l.b16 %v10693
        %v10823 = vunpack.c.l.b16 %v10694
        %v10824 = vunpack.c.l.b16 %v10695
        %v10825 = vunpack.c.l.b16 %v10696
        %v10826 = vunpack.c.l.b16 %v10697
        %v10827 = vunpack.c.l.b16 %v10698
        %v10828 = vunpack.c.l.b16 %v10699
        %v10829 = vunpack.c.l.b16 %v10700
        %v10830 = vunpack.c.l.b16 %v10701
        %v10831 = vunpack.c.l.b16 %v10702
        %v10832 = vunpack.c.l.b16 %v10703
        %v10833 = vunpack.c.l.b16 %v10704
        %v10834 = vunpack.c.l.b16 %v10705
        %v10835 = vunpack.c.l.b16 %v10706
        %v10836 = vunpack.c.l.b16 %v10707
        %v10837 = vunpack.c.l.b16 %v10708
        %v10838 = vunpack.c.l.b16 %v10709
        %v10839 = vunpack.c.l.b16 %v10710
        %v10840 = vunpack.c.l.b16 %v10711
        %v10841 = vunpack.c.l.b16 %v10712
        %v10842 = vunpack.c.l.b16 %v10713
        %v10843 = vunpack.c.l.b16 %v10714
        %v10844 = vunpack.c.l.b16 %v10715
        %v10845 = vunpack.c.l.b16 %v10716
        %v10846 = vunpack.c.l.b16 %v10717
        %v10847 = vunpack.c.l.b16 %v10718
        %v10848 = vpack.c.b16 %v10785, %v10784
        %v10849 = vpack.c.b16 %v10787, %v10786
        %v10850 = vpack.c.b16 %v10789, %v10788
        %v10851 = vpack.c.b16 %v10791, %v10790
        %v10852 = vpack.c.b16 %v10793, %v10792
        %v10853 = vpack.c.b16 %v10795, %v10794
        %v10854 = vpack.c.b16 %v10797, %v10796
        %v10855 = vpack.c.b16 %v10799, %v10798
        %v10856 = vpack.c.b16 %v10801, %v10800
        %v10857 = vpack.c.b16 %v10803, %v10802
        %v10858 = vpack.c.b16 %v10805, %v10804
        %v10859 = vpack.c.b16 %v10807, %v10806
        %v10860 = vpack.c.b16 %v10809, %v10808
        %v10861 = vpack.c.b16 %v10811, %v10810
        %v10862 = vpack.c.b16 %v10813, %v10812
        %v10863 = vpack.c.b16 %v10815, %v10814
        %v10864 = vpack.c.b16 %v10817, %v10816
        %v10865 = vpack.c.b16 %v10819, %v10818
        %v10866 = vpack.c.b16 %v10821, %v10820
        %v10867 = vpack.c.b16 %v10823, %v10822
        %v10868 = vpack.c.b16 %v10825, %v10824
        %v10869 = vpack.c.b16 %v10827, %v10826
        %v10870 = vpack.c.b16 %v10829, %v10828
        %v10871 = vpack.c.b16 %v10831, %v10830
        %v10872 = vpack.c.b16 %v10833, %v10832
        %v10873 = vpack.c.b16 %v10835, %v10834
        %v10874 = vpack.c.b16 %v10837, %v10836
        %v10875 = vpack.c.b16 %v10839, %v10838
        %v10876 = vpack.c.b16 %v10841, %v10840
        %v10877 = vpack.c.b16 %v10843, %v10842
        %v10878 = vpack.c.b16 %v10845, %v10844
        %v10879 = vpack.c.b16 %v10847, %v10846
        %10912 = vmatprep.subr.bf16.mxu0 0
        %10913 = vmatpush1.bf16.msra.mxu0 %v10848
        %10914 = vmatprep.subr.bf16.mxu0 0
        %10915 = vmatpush1.bf16.msra.mxu0 %v10849
        %10916 = vmatprep.subr.bf16.mxu0 0
        %10917 = vmatpush1.bf16.msra.mxu0 %v10850
        %10918 = vmatprep.subr.bf16.mxu0 0
        %10919 = vmatpush1.bf16.msra.mxu0 %v10851
        %10920 = vmatprep.subr.bf16.mxu0 0
        %10921 = vmatpush1.bf16.msra.mxu0 %v10852
        %10922 = vmatprep.subr.bf16.mxu0 0
        %10923 = vmatpush1.bf16.msra.mxu0 %v10853
        %10924 = vmatprep.subr.bf16.mxu0 0
        %10925 = vmatpush1.bf16.msra.mxu0 %v10854
        %10926 = vmatprep.subr.bf16.mxu0 0
        %10927 = vmatpush1.bf16.msra.mxu0 %v10855
        %10928 = vmatprep.subr.bf16.mxu0 0
        %10929 = vmatpush1.bf16.msra.mxu0 %v10856
        %10930 = vmatprep.subr.bf16.mxu0 0
        %10931 = vmatpush1.bf16.msra.mxu0 %v10857
        %10932 = vmatprep.subr.bf16.mxu0 0
        %10933 = vmatpush1.bf16.msra.mxu0 %v10858
        %10934 = vmatprep.subr.bf16.mxu0 0
        %10935 = vmatpush1.bf16.msra.mxu0 %v10859
        %10936 = vmatprep.subr.bf16.mxu0 0
        %10937 = vmatpush1.bf16.msra.mxu0 %v10860
        %10938 = vmatprep.subr.bf16.mxu0 0
        %10939 = vmatpush1.bf16.msra.mxu0 %v10861
        %10940 = vmatprep.subr.bf16.mxu0 0
        %10941 = vmatpush1.bf16.msra.mxu0 %v10862
        %10942 = vmatprep.subr.bf16.mxu0 0
        %10943 = vmatpush1.bf16.msra.mxu0 %v10863
        %10944 = vmatprep.mubr.bf16.mxu0 %v10652
        %10945 = vmatmul.mubr.bf16.gmra.mrb[0].mxu0 %v10651
        %v10946 = vpop.f32.mrb[0].mxu0
        %v10947 = vadd.f32 %v10719, %v10946
        %v10948 = vpop.f32.mrb[0].mxu0
        %v10949 = vpop.f32.mrb[0].mxu0
        %v10950 = vpop.f32.mrb[0].mxu0
        %10951 = vdwg.mxu0
        %10952 = vmatprep.subr.bf16.mxu0 0
        %10953 = vmatpush1.bf16.msra.mxu0 %v10864
        %10954 = vmatprep.subr.bf16.mxu0 0
        %10955 = vmatpush1.bf16.msra.mxu0 %v10865
        %10956 = vmatprep.subr.bf16.mxu0 0
        %10957 = vmatpush1.bf16.msra.mxu0 %v10866
        %10958 = vmatprep.subr.bf16.mxu0 0
        %10959 = vmatpush1.bf16.msra.mxu0 %v10867
        %10960 = vmatprep.subr.bf16.mxu0 0
        %10961 = vmatpush1.bf16.msra.mxu0 %v10868
        %10962 = vmatprep.subr.bf16.mxu0 0
        %10963 = vmatpush1.bf16.msra.mxu0 %v10869
        %10964 = vmatprep.subr.bf16.mxu0 0
        %10965 = vmatpush1.bf16.msra.mxu0 %v10870
        %10966 = vmatprep.subr.bf16.mxu0 0
        %10967 = vmatpush1.bf16.msra.mxu0 %v10871
        %10968 = vmatprep.subr.bf16.mxu0 0
        %10969 = vmatpush1.bf16.msra.mxu0 %v10872
        %10970 = vmatprep.subr.bf16.mxu0 0
        %10971 = vmatpush1.bf16.msra.mxu0 %v10873
        %10972 = vmatprep.subr.bf16.mxu0 0
        %10973 = vmatpush1.bf16.msra.mxu0 %v10874
        %10974 = vmatprep.subr.bf16.mxu0 0
        %10975 = vmatpush1.bf16.msra.mxu0 %v10875
        %10976 = vmatprep.subr.bf16.mxu0 0
        %10977 = vmatpush1.bf16.msra.mxu0 %v10876
        %10978 = vmatprep.subr.bf16.mxu0 0
        %10979 = vmatpush1.bf16.msra.mxu0 %v10877
        %10980 = vmatprep.subr.bf16.mxu0 0
        %10981 = vmatpush1.bf16.msra.mxu0 %v10878
        %10982 = vmatprep.subr.bf16.mxu0 0
        %10983 = vmatpush1.bf16.msra.mxu0 %v10879
        %10984 = vmatprep.mubr.bf16.mxu0 %v10654
        %10985 = vmatmul.mubr.bf16.gmra.mrb[0].mxu0 %v10653
        %v10986 = vpop.f32.mrb[0].mxu0
        %v10987 = vadd.f32 %v10947, %v10986
        %v10988 = vpop.f32.mrb[0].mxu0
        %v10989 = vpop.f32.mrb[0].mxu0
        %v10990 = vpop.f32.mrb[0].mxu0
        %10991 = vdwg.mxu0
        %vm10992 = vcmask 24576
        %10993 = vst.msk [vmem:[%s381] sm:$0x1] %vm10992, %v10987
        %s10994 = sand.u32 %s269, 1
        %s10995 = scalar_lea.sflag [#allocation8], %s10994
        %s10996 = sand.u32 %s269, 1
        %s10997 = scalar_lea.vmem [#allocation7], %s10996
        // Predicated region
        $region65: #{conv_dqn_forward.1} parent=63 // pred_check
          %p10998 = pneg %p279
        $region66: #{conv_dqn_forward.1} parent=63 // pred_check_branch
          %11000 = sbr.rel (%p10998) target = $region68
        $region67: #{conv_dqn_forward.1} parent=63 // pred_region
          %s11002 = ssub.s32 16, 16
          %11003 = vsyncadd %s10995, %s11002
          %s11004 = smul.addr %s25, 16
          %s11005 = scalar_lea.hbm %s11, %s11004
          %s11007 = sshll.u32 %s10997, 4
          %s11008 = int_to_ptr.vmem [resolvable:$true] %s11007
          %11010 = dma.vmem_to_hbm [thread:$0]  %s11008, 16, %s11005, %s10995
        $region68: #{conv_dqn_forward.1} parent=63 // pred_fallthru
          _
      $region64: #{conv_dqn_forward.1} parent=5 // pred_fallthru
        _
      %p11011 = scmp.le.s32.totalorder 2, %s20
      // Predicated region
      $region69: #{conv_dqn_forward.1} parent=5 // pred_check
        %p11012 = pneg %p11011
      $region70: #{conv_dqn_forward.1} parent=5 // pred_check_branch
        %11014 = sbr.rel (%p11012) target = $region72
      $region71: #{conv_dqn_forward.1} parent=5 // pred_region
        %s11015 = ssub.s32 %s20, 2
        // Predicated region
        $region73: #{conv_dqn_forward.1} parent=71 // pred_check
          %p11016 = pneg %p285
        $region74: #{conv_dqn_forward.1} parent=71 // pred_check_branch
          %11018 = sbr.rel (%p11016) target = $region76
        $region75: #{conv_dqn_forward.1} parent=71 // pred_region
          %s11019 = sand.u32 %s270, 1
          %s11020 = scalar_lea.sflag [#allocation8], %s11019
          %s11021 = sand.u32 %s270, 1
          %s11022 = scalar_lea.vmem [#allocation7], %s11021
          %11023 = dma.done %s11020, 16
        $region76: #{conv_dqn_forward.1} parent=71 // pred_fallthru
          _
      $region72: #{conv_dqn_forward.1} parent=5 // pred_fallthru
        _
    $region6: #{conv_dqn_forward.1} parent=1 // loop_footer
      %s24 = sadd.s32 1, %s20
    $region7: #{conv_dqn_forward.1} parent=1 // loop_footer_branch
      %19 = sbr.rel target = $region3
    $region8: #{conv_dqn_forward.1} parent=1 // loop_exit
      _
    %11024 = vsyncpa [#allocation8], 1
    %s11025 = scalar_lea.sflag [#allocation8], 1
    %11026 = vsyncpa %s11025, 1

</llo_original>
